<compile_context>
chip_gen: v7x
topology: tpu7x:2x2x1
jax: 0.10.0
libtpu: 0.0.40
codegen_flags: <defaults>
</compile_context>

<pallas_src>
import functools
import math

import jax
import jax.numpy as jnp
from jax import lax
from jax.experimental import pallas as pl
from jax.experimental.pallas import tpu as pltpu


# ----------------------------------------------------------------------------- kernel

def _layer_norm(h, gamma, beta, eps=1e-5):
    mean = jnp.mean(h, axis=-1, keepdims=True)
    var = jnp.mean(jnp.square(h - mean), axis=-1, keepdims=True)
    return (h - mean) * lax.rsqrt(var + eps) * gamma + beta


def _transformer_block_kernel(*refs, n_heads, b_blk, has_mask):
    if has_mask:
        (x_ref, mask_ref,
         wq_ref, wk_ref, wv_ref, wo_ref, bo_ref,
         ln1_g_ref, ln1_b_ref,
         w1_ref, b1_ref, w2_ref, b2_ref,
         ln2_g_ref, ln2_b_ref,
         o_ref, ctx_ref) = refs
    else:
        (x_ref,
         wq_ref, wk_ref, wv_ref, wo_ref, bo_ref,
         ln1_g_ref, ln1_b_ref,
         w1_ref, b1_ref, w2_ref, b2_ref,
         ln2_g_ref, ln2_b_ref,
         o_ref, ctx_ref) = refs
        mask_ref = None

    Bb, L, D = x_ref.shape
    dk = D // n_heads
    scale = 1.0 / math.sqrt(dk)

    # (b_block, L, D) -> (b_block*L, D): all dense matmuls / LN run on one slab.
    x2 = x_ref[...].reshape(Bb * L, D).astype(jnp.float32)
    xb = x2.astype(jnp.bfloat16)

    # --- QKV projections (bias-free, as in the torch module); bf16 MXU feed,
    #     f32 accumulation. Scale folded into Q once. ---------------------------
    q = jnp.dot(xb, wq_ref[...], preferred_element_type=jnp.float32)
    k = jnp.dot(xb, wk_ref[...], preferred_element_type=jnp.float32)
    v = jnp.dot(xb, wv_ref[...], preferred_element_type=jnp.float32)

    qb = (q * scale).astype(jnp.bfloat16)
    kb = k.astype(jnp.bfloat16)
    vb = v.astype(jnp.bfloat16)

    # --- attention: per (batch-in-block, head) (L, L) scores; contexts are
    #     written into a single (Bb*L, D) scratch, W_O applied once afterwards --
    for b in range(b_blk):
        r0 = b * L
        if has_mask:
            keep = mask_ref[b] != 0.0                      # (1, L) key mask
            bias = jnp.where(keep, 0.0, -1e9)              # additive score bias
        for h in range(n_heads):
            c0 = h * dk
            qh = qb[r0:r0 + L, c0:c0 + dk]                 # (L, dk) bf16
            kh = kb[r0:r0 + L, c0:c0 + dk]
            vh = vb[r0:r0 + L, c0:c0 + dk]
            s = jnp.einsum("qd,kd->qk", qh, kh,
                           preferred_element_type=jnp.float32)      # (L, L)
            if has_mask:
                s = s + bias
            s = s - jnp.max(s, axis=-1, keepdims=True)
            p = jnp.exp(s)
            # Defer normalization to the (L, dk) context; EUP approx reciprocal.
            inv = pl.reciprocal(jnp.sum(p, axis=-1, keepdims=True), approx=True)
            ctx = jnp.dot(p.astype(jnp.bfloat16), vh,
                          preferred_element_type=jnp.float32) * inv  # (L, dk)
            ctx_ref[pl.ds(r0, L), pl.ds(c0, dk)] = ctx.astype(ctx_ref.dtype)

    attn_out = jnp.dot(ctx_ref[...], wo_ref[...],
                       preferred_element_type=jnp.float32) + bo_ref[...]

    # --- residual + LayerNorm 1 ------------------------------------------------
    h1 = _layer_norm(x2 + attn_out, ln1_g_ref[...], ln1_b_ref[...])

    # --- FFN: Linear -> GELU -> Linear (dropout = identity) ---------------------
    f = jnp.dot(h1.astype(jnp.bfloat16), w1_ref[...],
                preferred_element_type=jnp.float32) + b1_ref[...]
    f = jax.nn.gelu(f, approximate=True)
    ffn = jnp.dot(f.astype(jnp.bfloat16), w2_ref[...],
                  preferred_element_type=jnp.float32) + b2_ref[...]

    # --- residual + LayerNorm 2 ------------------------------------------------
    out = _layer_norm(h1 + ffn, ln2_g_ref[...], ln2_b_ref[...])
    o_ref[...] = out.reshape(Bb, L, D).astype(o_ref.dtype)


# ----------------------------------------------------------------------------- wrapper

def transformer_block(x, params, *, n_heads, mask=None, b_block=None):
    """x: [B, L, D] float32; mask: optional [B, L] (nonzero = keep key position)."""
    B, L, D = x.shape
    F = params["w1"].shape[1]
    assert D % n_heads == 0

    # Pick the largest batch block whose row count stays near one MXU M tile.
    if b_block is None:
        b_block = 1
        for cand in range(1, B + 1):
            if B % cand == 0 and cand * L <= 128:
                b_block = cand
    assert B % b_block == 0
    grid = (B // b_block,)
    has_mask = mask is not None

    # MXU-fed weights in bf16 (f32 accumulation in-kernel); biases / LN params
    # stay f32 since they are applied on the f32 path.
    bf = jnp.bfloat16
    wq = params["wq"].astype(bf)
    wk = params["wk"].astype(bf)
    wv = params["wv"].astype(bf)
    wo = params["wo"].astype(bf)
    w1 = params["w1"].astype(bf)
    w2 = params["w2"].astype(bf)

    kernel = functools.partial(_transformer_block_kernel, n_heads=n_heads,
                               b_blk=b_block, has_mask=has_mask)

    def resident(shape):
        # Full-array block, constant index_map -> stays in VMEM across grid steps.
        return pl.BlockSpec(shape, lambda i, _n=len(shape): (0,) * _n)

    in_specs = [pl.BlockSpec((b_block, L, D), lambda i: (i, 0, 0))]   # x
    args = [x]
    if has_mask:
        in_specs.append(pl.BlockSpec((b_block, 1, L), lambda i: (i, 0, 0)))
        args.append(mask.astype(jnp.float32).reshape(B, 1, L))

    in_specs += [
        resident((D, D)),  # wq
        resident((D, D)),  # wk
        resident((D, D)),  # wv
        resident((D, D)),  # wo
        resident((1, D)),  # bo
        resident((1, D)),  # ln1 gamma
        resident((1, D)),  # ln1 beta
        resident((D, F)),  # w1
        resident((1, F)),  # b1
        resident((F, D)),  # w2
        resident((1, D)),  # b2
        resident((1, D)),  # ln2 gamma
        resident((1, D)),  # ln2 beta
    ]
    args += [wq, wk, wv, wo, params["bo"],
             params["ln1_g"], params["ln1_b"],
             w1, params["b1"], w2, params["b2"],
             params["ln2_g"], params["ln2_b"]]

    return pl.pallas_call(
        kernel,
        out_shape=jax.ShapeDtypeStruct((B, L, D), x.dtype),
        grid_spec=pltpu.PrefetchScalarGridSpec(
            num_scalar_prefetch=0,
            grid=grid,
            in_specs=in_specs,
            out_specs=pl.BlockSpec((b_block, L, D), lambda i: (i, 0, 0)),
            scratch_shapes=[pltpu.VMEM((b_block * L, D), jnp.bfloat16)],
        ),
        compiler_params=pltpu.CompilerParams(
            dimension_semantics=("parallel",),
            vmem_limit_bytes=64 * 1024 * 1024,
        ),
    )(*args)


# ----------------------------------------------------------------------------- reference

def transformer_block_ref(x, params, *, n_heads, mask=None):
    """Pure-JAX f32 reference with the same math / parameter layout."""
    B, L, D = x.shape
    dk = D // n_heads
    hp = jax.lax.Precision.HIGHEST

    q = jnp.dot(x, params["wq"], precision=hp)
    k = jnp.dot(x, params["wk"], precision=hp)
    v = jnp.dot(x, params["wv"], precision=hp)

    def split(t):
        return t.reshape(B, L, n_heads, dk).transpose(0, 2, 1, 3)

    q, k, v = split(q), split(k), split(v)
    scores = jnp.einsum("bhqd,bhkd->bhqk", q, k, precision=hp) / math.sqrt(dk)
    if mask is not None:
        keep = (mask != 0)[:, None, None, :]
        scores = jnp.where(keep, scores, -1e9)
    attn = jax.nn.softmax(scores, axis=-1)
    ctx = jnp.einsum("bhqk,bhkd->bhqd", attn, v, precision=hp)
    ctx = ctx.transpose(0, 2, 1, 3).reshape(B, L, D)
    attn_out = jnp.dot(ctx, params["wo"], precision=hp) + params["bo"][0]

    def ln(h, g, b, eps=1e-5):
        mean = jnp.mean(h, -1, keepdims=True)
        var = jnp.mean(jnp.square(h - mean), -1, keepdims=True)
        return (h - mean) / jnp.sqrt(var + eps) * g + b

    h1 = ln(x + attn_out, params["ln1_g"][0], params["ln1_b"][0])
    f = jax.nn.gelu(jnp.dot(h1, params["w1"], precision=hp) + params["b1"][0],
                    approximate=True)
    ffn = jnp.dot(f, params["w2"], precision=hp) + params["b2"][0]
    return ln(h1 + ffn, params["ln2_g"][0], params["ln2_b"][0])


# ----------------------------------------------------------------------------- demo

if __name__ == "__main__":
    # d_model / d_ff are multiples of 128 so every HBM store is lane-dense, and
    # B*L per batch block reaches a full 128-row MXU tile (b_block=8 here).
    B, L, D, H, F = 16, 16, 128, 4, 256

    key = jax.random.PRNGKey(0)
    ks = jax.random.split(key, 13)
    s = 0.05
    params = {
        "wq":    s * jax.random.normal(ks[0], (D, D), jnp.float32),
        "wk":    s * jax.random.normal(ks[1], (D, D), jnp.float32),
        "wv":    s * jax.random.normal(ks[2], (D, D), jnp.float32),
        "wo":    s * jax.random.normal(ks[3], (D, D), jnp.float32),
        "bo":    0.1 * jax.random.normal(ks[4], (1, D), jnp.float32),
        "ln1_g": 1.0 + 0.1 * jax.random.normal(ks[5], (1, D), jnp.float32),
        "ln1_b": 0.1 * jax.random.normal(ks[6], (1, D), jnp.float32),
        "w1":    s * jax.random.normal(ks[7], (D, F), jnp.float32),
        "b1":    0.1 * jax.random.normal(ks[8], (1, F), jnp.float32),
        "w2":    s * jax.random.normal(ks[9], (F, D), jnp.float32),
        "b2":    0.1 * jax.random.normal(ks[10], (1, D), jnp.float32),
        "ln2_g": jnp.ones((1, D), jnp.float32),
        "ln2_b": jnp.zeros((1, D), jnp.float32),
    }
    x = jax.random.normal(ks[11], (B, L, D), jnp.float32)
    mask = (jax.random.uniform(ks[12], (B, L)) > 0.2).astype(jnp.float32)
    mask = mask.at[:, 0].set(1.0)   # ensure every row keeps at least one key

    # bf16 MXU operands vs f32 reference -> tolerance loosened per review.
    TOL = 5e-2

    # unmasked path (mask-free specialization: no mask input / select emitted)
    out = jax.block_until_ready(transformer_block(x, params, n_heads=H, mask=None))
    ref = transformer_block_ref(x, params, n_heads=H, mask=None)
    assert out.shape == (B, L, D)
    d0 = float(jnp.max(jnp.abs(out - ref)))
    assert jnp.allclose(out, ref, atol=TOL, rtol=TOL), f"unmasked max diff {d0}"

    # masked path (additive key-padding bias)
    out_m = jax.block_until_ready(transformer_block(x, params, n_heads=H, mask=mask))
    ref_m = transformer_block_ref(x, params, n_heads=H, mask=mask)
    d1 = float(jnp.max(jnp.abs(out_m - ref_m)))
    assert jnp.allclose(out_m, ref_m, atol=TOL, rtol=TOL), f"masked max diff {d1}"

    print("KERNEL_OK")
</pallas_src>

<mosaic_0001>
module attributes {stable_mosaic.version = 11 : i64} {
  func.func @_transformer_block_kernel(%arg0: i32, %arg1: memref<8x16x128xf32, #tpu.memory_space<vmem>>, %arg2: memref<128x128xbf16, #tpu.memory_space<vmem>>, %arg3: memref<128x128xbf16, #tpu.memory_space<vmem>>, %arg4: memref<128x128xbf16, #tpu.memory_space<vmem>>, %arg5: memref<128x128xbf16, #tpu.memory_space<vmem>>, %arg6: memref<1x128xf32, #tpu.memory_space<vmem>>, %arg7: memref<1x128xf32, #tpu.memory_space<vmem>>, %arg8: memref<1x128xf32, #tpu.memory_space<vmem>>, %arg9: memref<128x256xbf16, #tpu.memory_space<vmem>>, %arg10: memref<1x256xf32, #tpu.memory_space<vmem>>, %arg11: memref<256x128xbf16, #tpu.memory_space<vmem>>, %arg12: memref<1x128xf32, #tpu.memory_space<vmem>>, %arg13: memref<1x128xf32, #tpu.memory_space<vmem>>, %arg14: memref<1x128xf32, #tpu.memory_space<vmem>>, %arg15: memref<8x16x128xf32, #tpu.memory_space<vmem>>, %arg16: memref<128x128xbf16, #tpu.memory_space<vmem>>) attributes {dimension_semantics = [#tpu.dimension_semantics<parallel>], iteration_bounds = array<i64: 2>, scalar_prefetch = 0 : i64, scratch_operands = 1 : i64, tpu.core_type = #tpu.core_type<tc>, window_params = [{transform_indices = @transform_0, window_bounds = array<i64: 8, 16, 128>}, {pipeline_mode = #tpu.pipeline_mode<synchronous>, transform_indices = @transform_1, window_bounds = array<i64: 128, 128>}, {pipeline_mode = #tpu.pipeline_mode<synchronous>, transform_indices = @transform_2, window_bounds = array<i64: 128, 128>}, {pipeline_mode = #tpu.pipeline_mode<synchronous>, transform_indices = @transform_3, window_bounds = array<i64: 128, 128>}, {pipeline_mode = #tpu.pipeline_mode<synchronous>, transform_indices = @transform_4, window_bounds = array<i64: 128, 128>}, {pipeline_mode = #tpu.pipeline_mode<synchronous>, transform_indices = @transform_5, window_bounds = array<i64: 1, 128>}, {pipeline_mode = #tpu.pipeline_mode<synchronous>, transform_indices = @transform_6, window_bounds = array<i64: 1, 128>}, {pipeline_mode = #tpu.pipeline_mode<synchronous>, transform_indices = @transform_7, window_bounds = array<i64: 1, 128>}, {pipeline_mode = #tpu.pipeline_mode<synchronous>, transform_indices = @transform_8, window_bounds = array<i64: 128, 256>}, {pipeline_mode = #tpu.pipeline_mode<synchronous>, transform_indices = @transform_9, window_bounds = array<i64: 1, 256>}, {pipeline_mode = #tpu.pipeline_mode<synchronous>, transform_indices = @transform_10, window_bounds = array<i64: 256, 128>}, {pipeline_mode = #tpu.pipeline_mode<synchronous>, transform_indices = @transform_11, window_bounds = array<i64: 1, 128>}, {pipeline_mode = #tpu.pipeline_mode<synchronous>, transform_indices = @transform_12, window_bounds = array<i64: 1, 128>}, {pipeline_mode = #tpu.pipeline_mode<synchronous>, transform_indices = @transform_13, window_bounds = array<i64: 1, 128>}, {transform_indices = @transform_14, window_bounds = array<i64: 8, 16, 128>}]} {
    %c0 = arith.constant 0 : index
    %c0_0 = arith.constant 0 : index
    %c0_1 = arith.constant 0 : index
    %0 = vector.load %arg1[%c0, %c0_0, %c0_1] : memref<8x16x128xf32, #tpu.memory_space<vmem>>, vector<8x16x128xf32>
    %1 = vector.shape_cast %0 : vector<8x16x128xf32> to vector<128x128xf32>
    %2 = arith.truncf %1 : vector<128x128xf32> to vector<128x128xbf16>
    %c0_2 = arith.constant 0 : index
    %c0_3 = arith.constant 0 : index
    %3 = vector.load %arg2[%c0_2, %c0_3] : memref<128x128xbf16, #tpu.memory_space<vmem>>, vector<128x128xbf16>
    %cst = arith.constant dense<0.000000e+00> : vector<128x128xf32>
    %4 = tpu.matmul %2, %3, %cst {dimension_numbers = #tpu.dot_dimension_numbers<[1], [0], [0], [1], [0, 0, 1, 1], [], []>} : vector<128x128xbf16>, vector<128x128xbf16>, vector<128x128xf32> -> vector<128x128xf32>
    %c0_4 = arith.constant 0 : index
    %c0_5 = arith.constant 0 : index
    %5 = vector.load %arg3[%c0_4, %c0_5] : memref<128x128xbf16, #tpu.memory_space<vmem>>, vector<128x128xbf16>
    %cst_6 = arith.constant dense<0.000000e+00> : vector<128x128xf32>
    %6 = tpu.matmul %2, %5, %cst_6 {dimension_numbers = #tpu.dot_dimension_numbers<[1], [0], [0], [1], [0, 0, 1, 1], [], []>} : vector<128x128xbf16>, vector<128x128xbf16>, vector<128x128xf32> -> vector<128x128xf32>
    %c0_7 = arith.constant 0 : index
    %c0_8 = arith.constant 0 : index
    %7 = vector.load %arg4[%c0_7, %c0_8] : memref<128x128xbf16, #tpu.memory_space<vmem>>, vector<128x128xbf16>
    %cst_9 = arith.constant dense<0.000000e+00> : vector<128x128xf32>
    %8 = tpu.matmul %2, %7, %cst_9 {dimension_numbers = #tpu.dot_dimension_numbers<[1], [0], [0], [1], [0, 0, 1, 1], [], []>} : vector<128x128xbf16>, vector<128x128xbf16>, vector<128x128xf32> -> vector<128x128xf32>
    %cst_10 = arith.constant 0.176776692 : f32
    %9 = vector.broadcast %cst_10 : f32 to vector<128x128xf32>
    %10 = arith.mulf %4, %9 : vector<128x128xf32>
    %11 = arith.truncf %10 : vector<128x128xf32> to vector<128x128xbf16>
    %12 = arith.truncf %6 : vector<128x128xf32> to vector<128x128xbf16>
    %13 = arith.truncf %8 : vector<128x128xf32> to vector<128x128xbf16>
    %14 = vector.extract_strided_slice %11 {offsets = [0, 0], sizes = [16, 32], strides = [1, 1]} : vector<128x128xbf16> to vector<16x32xbf16>
    %15 = vector.extract_strided_slice %12 {offsets = [0, 0], sizes = [16, 32], strides = [1, 1]} : vector<128x128xbf16> to vector<16x32xbf16>
    %16 = vector.extract_strided_slice %13 {offsets = [0, 0], sizes = [16, 32], strides = [1, 1]} : vector<128x128xbf16> to vector<16x32xbf16>
    "tpu.trace_start"() <{level = 10 : i32, message = "qd,kd->qk"}> : () -> ()
    %cst_11 = arith.constant dense<0.000000e+00> : vector<16x16xf32>
    %17 = tpu.matmul %14, %15, %cst_11 {dimension_numbers = #tpu.dot_dimension_numbers<[1], [1], [0], [0], [0, 0, 1, 0], [], []>} : vector<16x32xbf16>, vector<16x32xbf16>, vector<16x16xf32> -> vector<16x16xf32>
    "tpu.trace_stop"() : () -> ()
    %cst_12 = arith.constant dense<0xFF800000> : vector<16xf32>
    %18 = vector.multi_reduction <maximumf>, %17, %cst_12 [1] : vector<16x16xf32> to vector<16xf32>
    %19 = vector.shape_cast %18 : vector<16xf32> to vector<16x1xf32>
    %20 = vector.broadcast %19 : vector<16x1xf32> to vector<16x16xf32>
    %21 = arith.subf %17, %20 : vector<16x16xf32>
    %22 = math.exp %21 : vector<16x16xf32>
    %cst_13 = arith.constant dense<0.000000e+00> : vector<16xf32>
    %23 = vector.multi_reduction <add>, %22, %cst_13 [1] : vector<16x16xf32> to vector<16xf32>
    %24 = vector.shape_cast %23 : vector<16xf32> to vector<16x1xf32>
    %25 = tpu.reciprocal %24 {approx = true} : vector<16x1xf32> -> vector<16x1xf32>
    %26 = arith.truncf %22 : vector<16x16xf32> to vector<16x16xbf16>
    %cst_14 = arith.constant dense<0.000000e+00> : vector<16x32xf32>
    %27 = tpu.matmul %26, %16, %cst_14 {dimension_numbers = #tpu.dot_dimension_numbers<[1], [0], [0], [1], [0, 0, 1, 1], [], []>} : vector<16x16xbf16>, vector<16x32xbf16>, vector<16x32xf32> -> vector<16x32xf32>
    %28 = vector.broadcast %25 : vector<16x1xf32> to vector<16x32xf32>
    %29 = arith.mulf %27, %28 : vector<16x32xf32>
    %30 = arith.truncf %29 : vector<16x32xf32> to vector<16x32xbf16>
    %c0_15 = arith.constant 0 : index
    %c0_16 = arith.constant 0 : index
    %31 = vector.load %arg16[%c0_15, %c0_16] : memref<128x128xbf16, #tpu.memory_space<vmem>>, vector<16x32xbf16>
    tpu.vector_store %arg16[%c0_15, %c0_16], %30 {strides = array<i32>} : memref<128x128xbf16, #tpu.memory_space<vmem>>, vector<16x32xbf16>,
    %32 = vector.extract_strided_slice %11 {offsets = [0, 32], sizes = [16, 32], strides = [1, 1]} : vector<128x128xbf16> to vector<16x32xbf16>
    %33 = vector.extract_strided_slice %12 {offsets = [0, 32], sizes = [16, 32], strides = [1, 1]} : vector<128x128xbf16> to vector<16x32xbf16>
    %34 = vector.extract_strided_slice %13 {offsets = [0, 32], sizes = [16, 32], strides = [1, 1]} : vector<128x128xbf16> to vector<16x32xbf16>
    "tpu.trace_start"() <{level = 10 : i32, message = "qd,kd->qk"}> : () -> ()
    %cst_17 = arith.constant dense<0.000000e+00> : vector<16x16xf32>
    %35 = tpu.matmul %32, %33, %cst_17 {dimension_numbers = #tpu.dot_dimension_numbers<[1], [1], [0], [0], [0, 0, 1, 0], [], []>} : vector<16x32xbf16>, vector<16x32xbf16>, vector<16x16xf32> -> vector<16x16xf32>
    "tpu.trace_stop"() : () -> ()
    %cst_18 = arith.constant dense<0xFF800000> : vector<16xf32>
    %36 = vector.multi_reduction <maximumf>, %35, %cst_18 [1] : vector<16x16xf32> to vector<16xf32>
    %37 = vector.shape_cast %36 : vector<16xf32> to vector<16x1xf32>
    %38 = vector.broadcast %37 : vector<16x1xf32> to vector<16x16xf32>
    %39 = arith.subf %35, %38 : vector<16x16xf32>
    %40 = math.exp %39 : vector<16x16xf32>
    %cst_19 = arith.constant dense<0.000000e+00> : vector<16xf32>
    %41 = vector.multi_reduction <add>, %40, %cst_19 [1] : vector<16x16xf32> to vector<16xf32>
    %42 = vector.shape_cast %41 : vector<16xf32> to vector<16x1xf32>
    %43 = tpu.reciprocal %42 {approx = true} : vector<16x1xf32> -> vector<16x1xf32>
    %44 = arith.truncf %40 : vector<16x16xf32> to vector<16x16xbf16>
    %cst_20 = arith.constant dense<0.000000e+00> : vector<16x32xf32>
    %45 = tpu.matmul %44, %34, %cst_20 {dimension_numbers = #tpu.dot_dimension_numbers<[1], [0], [0], [1], [0, 0, 1, 1], [], []>} : vector<16x16xbf16>, vector<16x32xbf16>, vector<16x32xf32> -> vector<16x32xf32>
    %46 = vector.broadcast %43 : vector<16x1xf32> to vector<16x32xf32>
    %47 = arith.mulf %45, %46 : vector<16x32xf32>
    %48 = arith.truncf %47 : vector<16x32xf32> to vector<16x32xbf16>
    %c0_21 = arith.constant 0 : index
    %c32 = arith.constant 32 : index
    %49 = vector.load %arg16[%c0_21, %c32] : memref<128x128xbf16, #tpu.memory_space<vmem>>, vector<16x32xbf16>
    tpu.vector_store %arg16[%c0_21, %c32], %48 {strides = array<i32>} : memref<128x128xbf16, #tpu.memory_space<vmem>>, vector<16x32xbf16>,
    %50 = vector.extract_strided_slice %11 {offsets = [0, 64], sizes = [16, 32], strides = [1, 1]} : vector<128x128xbf16> to vector<16x32xbf16>
    %51 = vector.extract_strided_slice %12 {offsets = [0, 64], sizes = [16, 32], strides = [1, 1]} : vector<128x128xbf16> to vector<16x32xbf16>
    %52 = vector.extract_strided_slice %13 {offsets = [0, 64], sizes = [16, 32], strides = [1, 1]} : vector<128x128xbf16> to vector<16x32xbf16>
    "tpu.trace_start"() <{level = 10 : i32, message = "qd,kd->qk"}> : () -> ()
    %cst_22 = arith.constant dense<0.000000e+00> : vector<16x16xf32>
    %53 = tpu.matmul %50, %51, %cst_22 {dimension_numbers = #tpu.dot_dimension_numbers<[1], [1], [0], [0], [0, 0, 1, 0], [], []>} : vector<16x32xbf16>, vector<16x32xbf16>, vector<16x16xf32> -> vector<16x16xf32>
    "tpu.trace_stop"() : () -> ()
    %cst_23 = arith.constant dense<0xFF800000> : vector<16xf32>
    %54 = vector.multi_reduction <maximumf>, %53, %cst_23 [1] : vector<16x16xf32> to vector<16xf32>
    %55 = vector.shape_cast %54 : vector<16xf32> to vector<16x1xf32>
    %56 = vector.broadcast %55 : vector<16x1xf32> to vector<16x16xf32>
    %57 = arith.subf %53, %56 : vector<16x16xf32>
    %58 = math.exp %57 : vector<16x16xf32>
    %cst_24 = arith.constant dense<0.000000e+00> : vector<16xf32>
    %59 = vector.multi_reduction <add>, %58, %cst_24 [1] : vector<16x16xf32> to vector<16xf32>
    %60 = vector.shape_cast %59 : vector<16xf32> to vector<16x1xf32>
    %61 = tpu.reciprocal %60 {approx = true} : vector<16x1xf32> -> vector<16x1xf32>
    %62 = arith.truncf %58 : vector<16x16xf32> to vector<16x16xbf16>
    %cst_25 = arith.constant dense<0.000000e+00> : vector<16x32xf32>
    %63 = tpu.matmul %62, %52, %cst_25 {dimension_numbers = #tpu.dot_dimension_numbers<[1], [0], [0], [1], [0, 0, 1, 1], [], []>} : vector<16x16xbf16>, vector<16x32xbf16>, vector<16x32xf32> -> vector<16x32xf32>
    %64 = vector.broadcast %61 : vector<16x1xf32> to vector<16x32xf32>
    %65 = arith.mulf %63, %64 : vector<16x32xf32>
    %66 = arith.truncf %65 : vector<16x32xf32> to vector<16x32xbf16>
    %c0_26 = arith.constant 0 : index
    %c64 = arith.constant 64 : index
    %67 = vector.load %arg16[%c0_26, %c64] : memref<128x128xbf16, #tpu.memory_space<vmem>>, vector<16x32xbf16>
    tpu.vector_store %arg16[%c0_26, %c64], %66 {strides = array<i32>} : memref<128x128xbf16, #tpu.memory_space<vmem>>, vector<16x32xbf16>,
    %68 = vector.extract_strided_slice %11 {offsets = [0, 96], sizes = [16, 32], strides = [1, 1]} : vector<128x128xbf16> to vector<16x32xbf16>
    %69 = vector.extract_strided_slice %12 {offsets = [0, 96], sizes = [16, 32], strides = [1, 1]} : vector<128x128xbf16> to vector<16x32xbf16>
    %70 = vector.extract_strided_slice %13 {offsets = [0, 96], sizes = [16, 32], strides = [1, 1]} : vector<128x128xbf16> to vector<16x32xbf16>
    "tpu.trace_start"() <{level = 10 : i32, message = "qd,kd->qk"}> : () -> ()
    %cst_27 = arith.constant dense<0.000000e+00> : vector<16x16xf32>
    %71 = tpu.matmul %68, %69, %cst_27 {dimension_numbers = #tpu.dot_dimension_numbers<[1], [1], [0], [0], [0, 0, 1, 0], [], []>} : vector<16x32xbf16>, vector<16x32xbf16>, vector<16x16xf32> -> vector<16x16xf32>
    "tpu.trace_stop"() : () -> ()
    %cst_28 = arith.constant dense<0xFF800000> : vector<16xf32>
    %72 = vector.multi_reduction <maximumf>, %71, %cst_28 [1] : vector<16x16xf32> to vector<16xf32>
    %73 = vector.shape_cast %72 : vector<16xf32> to vector<16x1xf32>
    %74 = vector.broadcast %73 : vector<16x1xf32> to vector<16x16xf32>
    %75 = arith.subf %71, %74 : vector<16x16xf32>
    %76 = math.exp %75 : vector<16x16xf32>
    %cst_29 = arith.constant dense<0.000000e+00> : vector<16xf32>
    %77 = vector.multi_reduction <add>, %76, %cst_29 [1] : vector<16x16xf32> to vector<16xf32>
    %78 = vector.shape_cast %77 : vector<16xf32> to vector<16x1xf32>
    %79 = tpu.reciprocal %78 {approx = true} : vector<16x1xf32> -> vector<16x1xf32>
    %80 = arith.truncf %76 : vector<16x16xf32> to vector<16x16xbf16>
    %cst_30 = arith.constant dense<0.000000e+00> : vector<16x32xf32>
    %81 = tpu.matmul %80, %70, %cst_30 {dimension_numbers = #tpu.dot_dimension_numbers<[1], [0], [0], [1], [0, 0, 1, 1], [], []>} : vector<16x16xbf16>, vector<16x32xbf16>, vector<16x32xf32> -> vector<16x32xf32>
    %82 = vector.broadcast %79 : vector<16x1xf32> to vector<16x32xf32>
    %83 = arith.mulf %81, %82 : vector<16x32xf32>
    %84 = arith.truncf %83 : vector<16x32xf32> to vector<16x32xbf16>
    %c0_31 = arith.constant 0 : index
    %c96 = arith.constant 96 : index
    %85 = vector.load %arg16[%c0_31, %c96] : memref<128x128xbf16, #tpu.memory_space<vmem>>, vector<16x32xbf16>
    tpu.vector_store %arg16[%c0_31, %c96], %84 {strides = array<i32>} : memref<128x128xbf16, #tpu.memory_space<vmem>>, vector<16x32xbf16>,
    %86 = vector.extract_strided_slice %11 {offsets = [16, 0], sizes = [16, 32], strides = [1, 1]} : vector<128x128xbf16> to vector<16x32xbf16>
    %87 = vector.extract_strided_slice %12 {offsets = [16, 0], sizes = [16, 32], strides = [1, 1]} : vector<128x128xbf16> to vector<16x32xbf16>
    %88 = vector.extract_strided_slice %13 {offsets = [16, 0], sizes = [16, 32], strides = [1, 1]} : vector<128x128xbf16> to vector<16x32xbf16>
    "tpu.trace_start"() <{level = 10 : i32, message = "qd,kd->qk"}> : () -> ()
    %cst_32 = arith.constant dense<0.000000e+00> : vector<16x16xf32>
    %89 = tpu.matmul %86, %87, %cst_32 {dimension_numbers = #tpu.dot_dimension_numbers<[1], [1], [0], [0], [0, 0, 1, 0], [], []>} : vector<16x32xbf16>, vector<16x32xbf16>, vector<16x16xf32> -> vector<16x16xf32>
    "tpu.trace_stop"() : () -> ()
    %cst_33 = arith.constant dense<0xFF800000> : vector<16xf32>
    %90 = vector.multi_reduction <maximumf>, %89, %cst_33 [1] : vector<16x16xf32> to vector<16xf32>
    %91 = vector.shape_cast %90 : vector<16xf32> to vector<16x1xf32>
    %92 = vector.broadcast %91 : vector<16x1xf32> to vector<16x16xf32>
    %93 = arith.subf %89, %92 : vector<16x16xf32>
    %94 = math.exp %93 : vector<16x16xf32>
    %cst_34 = arith.constant dense<0.000000e+00> : vector<16xf32>
    %95 = vector.multi_reduction <add>, %94, %cst_34 [1] : vector<16x16xf32> to vector<16xf32>
    %96 = vector.shape_cast %95 : vector<16xf32> to vector<16x1xf32>
    %97 = tpu.reciprocal %96 {approx = true} : vector<16x1xf32> -> vector<16x1xf32>
    %98 = arith.truncf %94 : vector<16x16xf32> to vector<16x16xbf16>
    %cst_35 = arith.constant dense<0.000000e+00> : vector<16x32xf32>
    %99 = tpu.matmul %98, %88, %cst_35 {dimension_numbers = #tpu.dot_dimension_numbers<[1], [0], [0], [1], [0, 0, 1, 1], [], []>} : vector<16x16xbf16>, vector<16x32xbf16>, vector<16x32xf32> -> vector<16x32xf32>
    %100 = vector.broadcast %97 : vector<16x1xf32> to vector<16x32xf32>
    %101 = arith.mulf %99, %100 : vector<16x32xf32>
    %102 = arith.truncf %101 : vector<16x32xf32> to vector<16x32xbf16>
    %c16 = arith.constant 16 : index
    %c0_36 = arith.constant 0 : index
    %103 = vector.load %arg16[%c16, %c0_36] : memref<128x128xbf16, #tpu.memory_space<vmem>>, vector<16x32xbf16>
    tpu.vector_store %arg16[%c16, %c0_36], %102 {strides = array<i32>} : memref<128x128xbf16, #tpu.memory_space<vmem>>, vector<16x32xbf16>,
    %104 = vector.extract_strided_slice %11 {offsets = [16, 32], sizes = [16, 32], strides = [1, 1]} : vector<128x128xbf16> to vector<16x32xbf16>
    %105 = vector.extract_strided_slice %12 {offsets = [16, 32], sizes = [16, 32], strides = [1, 1]} : vector<128x128xbf16> to vector<16x32xbf16>
    %106 = vector.extract_strided_slice %13 {offsets = [16, 32], sizes = [16, 32], strides = [1, 1]} : vector<128x128xbf16> to vector<16x32xbf16>
    "tpu.trace_start"() <{level = 10 : i32, message = "qd,kd->qk"}> : () -> ()
    %cst_37 = arith.constant dense<0.000000e+00> : vector<16x16xf32>
    %107 = tpu.matmul %104, %105, %cst_37 {dimension_numbers = #tpu.dot_dimension_numbers<[1], [1], [0], [0], [0, 0, 1, 0], [], []>} : vector<16x32xbf16>, vector<16x32xbf16>, vector<16x16xf32> -> vector<16x16xf32>
    "tpu.trace_stop"() : () -> ()
    %cst_38 = arith.constant dense<0xFF800000> : vector<16xf32>
    %108 = vector.multi_reduction <maximumf>, %107, %cst_38 [1] : vector<16x16xf32> to vector<16xf32>
    %109 = vector.shape_cast %108 : vector<16xf32> to vector<16x1xf32>
    %110 = vector.broadcast %109 : vector<16x1xf32> to vector<16x16xf32>
    %111 = arith.subf %107, %110 : vector<16x16xf32>
    %112 = math.exp %111 : vector<16x16xf32>
    %cst_39 = arith.constant dense<0.000000e+00> : vector<16xf32>
    %113 = vector.multi_reduction <add>, %112, %cst_39 [1] : vector<16x16xf32> to vector<16xf32>
    %114 = vector.shape_cast %113 : vector<16xf32> to vector<16x1xf32>
    %115 = tpu.reciprocal %114 {approx = true} : vector<16x1xf32> -> vector<16x1xf32>
    %116 = arith.truncf %112 : vector<16x16xf32> to vector<16x16xbf16>
    %cst_40 = arith.constant dense<0.000000e+00> : vector<16x32xf32>
    %117 = tpu.matmul %116, %106, %cst_40 {dimension_numbers = #tpu.dot_dimension_numbers<[1], [0], [0], [1], [0, 0, 1, 1], [], []>} : vector<16x16xbf16>, vector<16x32xbf16>, vector<16x32xf32> -> vector<16x32xf32>
    %118 = vector.broadcast %115 : vector<16x1xf32> to vector<16x32xf32>
    %119 = arith.mulf %117, %118 : vector<16x32xf32>
    %120 = arith.truncf %119 : vector<16x32xf32> to vector<16x32xbf16>
    %c16_41 = arith.constant 16 : index
    %c32_42 = arith.constant 32 : index
    %121 = vector.load %arg16[%c16_41, %c32_42] : memref<128x128xbf16, #tpu.memory_space<vmem>>, vector<16x32xbf16>
    tpu.vector_store %arg16[%c16_41, %c32_42], %120 {strides = array<i32>} : memref<128x128xbf16, #tpu.memory_space<vmem>>, vector<16x32xbf16>,
    %122 = vector.extract_strided_slice %11 {offsets = [16, 64], sizes = [16, 32], strides = [1, 1]} : vector<128x128xbf16> to vector<16x32xbf16>
    %123 = vector.extract_strided_slice %12 {offsets = [16, 64], sizes = [16, 32], strides = [1, 1]} : vector<128x128xbf16> to vector<16x32xbf16>
    %124 = vector.extract_strided_slice %13 {offsets = [16, 64], sizes = [16, 32], strides = [1, 1]} : vector<128x128xbf16> to vector<16x32xbf16>
    "tpu.trace_start"() <{level = 10 : i32, message = "qd,kd->qk"}> : () -> ()
    %cst_43 = arith.constant dense<0.000000e+00> : vector<16x16xf32>
    %125 = tpu.matmul %122, %123, %cst_43 {dimension_numbers = #tpu.dot_dimension_numbers<[1], [1], [0], [0], [0, 0, 1, 0], [], []>} : vector<16x32xbf16>, vector<16x32xbf16>, vector<16x16xf32> -> vector<16x16xf32>
    "tpu.trace_stop"() : () -> ()
    %cst_44 = arith.constant dense<0xFF800000> : vector<16xf32>
    %126 = vector.multi_reduction <maximumf>, %125, %cst_44 [1] : vector<16x16xf32> to vector<16xf32>
    %127 = vector.shape_cast %126 : vector<16xf32> to vector<16x1xf32>
    %128 = vector.broadcast %127 : vector<16x1xf32> to vector<16x16xf32>
    %129 = arith.subf %125, %128 : vector<16x16xf32>
    %130 = math.exp %129 : vector<16x16xf32>
    %cst_45 = arith.constant dense<0.000000e+00> : vector<16xf32>
    %131 = vector.multi_reduction <add>, %130, %cst_45 [1] : vector<16x16xf32> to vector<16xf32>
    %132 = vector.shape_cast %131 : vector<16xf32> to vector<16x1xf32>
    %133 = tpu.reciprocal %132 {approx = true} : vector<16x1xf32> -> vector<16x1xf32>
    %134 = arith.truncf %130 : vector<16x16xf32> to vector<16x16xbf16>
    %cst_46 = arith.constant dense<0.000000e+00> : vector<16x32xf32>
    %135 = tpu.matmul %134, %124, %cst_46 {dimension_numbers = #tpu.dot_dimension_numbers<[1], [0], [0], [1], [0, 0, 1, 1], [], []>} : vector<16x16xbf16>, vector<16x32xbf16>, vector<16x32xf32> -> vector<16x32xf32>
    %136 = vector.broadcast %133 : vector<16x1xf32> to vector<16x32xf32>
    %137 = arith.mulf %135, %136 : vector<16x32xf32>
    %138 = arith.truncf %137 : vector<16x32xf32> to vector<16x32xbf16>
    %c16_47 = arith.constant 16 : index
    %c64_48 = arith.constant 64 : index
    %139 = vector.load %arg16[%c16_47, %c64_48] : memref<128x128xbf16, #tpu.memory_space<vmem>>, vector<16x32xbf16>
    tpu.vector_store %arg16[%c16_47, %c64_48], %138 {strides = array<i32>} : memref<128x128xbf16, #tpu.memory_space<vmem>>, vector<16x32xbf16>,
    %140 = vector.extract_strided_slice %11 {offsets = [16, 96], sizes = [16, 32], strides = [1, 1]} : vector<128x128xbf16> to vector<16x32xbf16>
    %141 = vector.extract_strided_slice %12 {offsets = [16, 96], sizes = [16, 32], strides = [1, 1]} : vector<128x128xbf16> to vector<16x32xbf16>
    %142 = vector.extract_strided_slice %13 {offsets = [16, 96], sizes = [16, 32], strides = [1, 1]} : vector<128x128xbf16> to vector<16x32xbf16>
    "tpu.trace_start"() <{level = 10 : i32, message = "qd,kd->qk"}> : () -> ()
    %cst_49 = arith.constant dense<0.000000e+00> : vector<16x16xf32>
    %143 = tpu.matmul %140, %141, %cst_49 {dimension_numbers = #tpu.dot_dimension_numbers<[1], [1], [0], [0], [0, 0, 1, 0], [], []>} : vector<16x32xbf16>, vector<16x32xbf16>, vector<16x16xf32> -> vector<16x16xf32>
    "tpu.trace_stop"() : () -> ()
    %cst_50 = arith.constant dense<0xFF800000> : vector<16xf32>
    %144 = vector.multi_reduction <maximumf>, %143, %cst_50 [1] : vector<16x16xf32> to vector<16xf32>
    %145 = vector.shape_cast %144 : vector<16xf32> to vector<16x1xf32>
    %146 = vector.broadcast %145 : vector<16x1xf32> to vector<16x16xf32>
    %147 = arith.subf %143, %146 : vector<16x16xf32>
    %148 = math.exp %147 : vector<16x16xf32>
    %cst_51 = arith.constant dense<0.000000e+00> : vector<16xf32>
    %149 = vector.multi_reduction <add>, %148, %cst_51 [1] : vector<16x16xf32> to vector<16xf32>
    %150 = vector.shape_cast %149 : vector<16xf32> to vector<16x1xf32>
    %151 = tpu.reciprocal %150 {approx = true} : vector<16x1xf32> -> vector<16x1xf32>
    %152 = arith.truncf %148 : vector<16x16xf32> to vector<16x16xbf16>
    %cst_52 = arith.constant dense<0.000000e+00> : vector<16x32xf32>
    %153 = tpu.matmul %152, %142, %cst_52 {dimension_numbers = #tpu.dot_dimension_numbers<[1], [0], [0], [1], [0, 0, 1, 1], [], []>} : vector<16x16xbf16>, vector<16x32xbf16>, vector<16x32xf32> -> vector<16x32xf32>
    %154 = vector.broadcast %151 : vector<16x1xf32> to vector<16x32xf32>
    %155 = arith.mulf %153, %154 : vector<16x32xf32>
    %156 = arith.truncf %155 : vector<16x32xf32> to vector<16x32xbf16>
    %c16_53 = arith.constant 16 : index
    %c96_54 = arith.constant 96 : index
    %157 = vector.load %arg16[%c16_53, %c96_54] : memref<128x128xbf16, #tpu.memory_space<vmem>>, vector<16x32xbf16>
    tpu.vector_store %arg16[%c16_53, %c96_54], %156 {strides = array<i32>} : memref<128x128xbf16, #tpu.memory_space<vmem>>, vector<16x32xbf16>,
    %158 = vector.extract_strided_slice %11 {offsets = [32, 0], sizes = [16, 32], strides = [1, 1]} : vector<128x128xbf16> to vector<16x32xbf16>
    %159 = vector.extract_strided_slice %12 {offsets = [32, 0], sizes = [16, 32], strides = [1, 1]} : vector<128x128xbf16> to vector<16x32xbf16>
    %160 = vector.extract_strided_slice %13 {offsets = [32, 0], sizes = [16, 32], strides = [1, 1]} : vector<128x128xbf16> to vector<16x32xbf16>
    "tpu.trace_start"() <{level = 10 : i32, message = "qd,kd->qk"}> : () -> ()
    %cst_55 = arith.constant dense<0.000000e+00> : vector<16x16xf32>
    %161 = tpu.matmul %158, %159, %cst_55 {dimension_numbers = #tpu.dot_dimension_numbers<[1], [1], [0], [0], [0, 0, 1, 0], [], []>} : vector<16x32xbf16>, vector<16x32xbf16>, vector<16x16xf32> -> vector<16x16xf32>
    "tpu.trace_stop"() : () -> ()
    %cst_56 = arith.constant dense<0xFF800000> : vector<16xf32>
    %162 = vector.multi_reduction <maximumf>, %161, %cst_56 [1] : vector<16x16xf32> to vector<16xf32>
    %163 = vector.shape_cast %162 : vector<16xf32> to vector<16x1xf32>
    %164 = vector.broadcast %163 : vector<16x1xf32> to vector<16x16xf32>
    %165 = arith.subf %161, %164 : vector<16x16xf32>
    %166 = math.exp %165 : vector<16x16xf32>
    %cst_57 = arith.constant dense<0.000000e+00> : vector<16xf32>
    %167 = vector.multi_reduction <add>, %166, %cst_57 [1] : vector<16x16xf32> to vector<16xf32>
    %168 = vector.shape_cast %167 : vector<16xf32> to vector<16x1xf32>
    %169 = tpu.reciprocal %168 {approx = true} : vector<16x1xf32> -> vector<16x1xf32>
    %170 = arith.truncf %166 : vector<16x16xf32> to vector<16x16xbf16>
    %cst_58 = arith.constant dense<0.000000e+00> : vector<16x32xf32>
    %171 = tpu.matmul %170, %160, %cst_58 {dimension_numbers = #tpu.dot_dimension_numbers<[1], [0], [0], [1], [0, 0, 1, 1], [], []>} : vector<16x16xbf16>, vector<16x32xbf16>, vector<16x32xf32> -> vector<16x32xf32>
    %172 = vector.broadcast %169 : vector<16x1xf32> to vector<16x32xf32>
    %173 = arith.mulf %171, %172 : vector<16x32xf32>
    %174 = arith.truncf %173 : vector<16x32xf32> to vector<16x32xbf16>
    %c32_59 = arith.constant 32 : index
    %c0_60 = arith.constant 0 : index
    %175 = vector.load %arg16[%c32_59, %c0_60] : memref<128x128xbf16, #tpu.memory_space<vmem>>, vector<16x32xbf16>
    tpu.vector_store %arg16[%c32_59, %c0_60], %174 {strides = array<i32>} : memref<128x128xbf16, #tpu.memory_space<vmem>>, vector<16x32xbf16>,
    %176 = vector.extract_strided_slice %11 {offsets = [32, 32], sizes = [16, 32], strides = [1, 1]} : vector<128x128xbf16> to vector<16x32xbf16>
    %177 = vector.extract_strided_slice %12 {offsets = [32, 32], sizes = [16, 32], strides = [1, 1]} : vector<128x128xbf16> to vector<16x32xbf16>
    %178 = vector.extract_strided_slice %13 {offsets = [32, 32], sizes = [16, 32], strides = [1, 1]} : vector<128x128xbf16> to vector<16x32xbf16>
    "tpu.trace_start"() <{level = 10 : i32, message = "qd,kd->qk"}> : () -> ()
    %cst_61 = arith.constant dense<0.000000e+00> : vector<16x16xf32>
    %179 = tpu.matmul %176, %177, %cst_61 {dimension_numbers = #tpu.dot_dimension_numbers<[1], [1], [0], [0], [0, 0, 1, 0], [], []>} : vector<16x32xbf16>, vector<16x32xbf16>, vector<16x16xf32> -> vector<16x16xf32>
    "tpu.trace_stop"() : () -> ()
    %cst_62 = arith.constant dense<0xFF800000> : vector<16xf32>
    %180 = vector.multi_reduction <maximumf>, %179, %cst_62 [1] : vector<16x16xf32> to vector<16xf32>
    %181 = vector.shape_cast %180 : vector<16xf32> to vector<16x1xf32>
    %182 = vector.broadcast %181 : vector<16x1xf32> to vector<16x16xf32>
    %183 = arith.subf %179, %182 : vector<16x16xf32>
    %184 = math.exp %183 : vector<16x16xf32>
    %cst_63 = arith.constant dense<0.000000e+00> : vector<16xf32>
    %185 = vector.multi_reduction <add>, %184, %cst_63 [1] : vector<16x16xf32> to vector<16xf32>
    %186 = vector.shape_cast %185 : vector<16xf32> to vector<16x1xf32>
    %187 = tpu.reciprocal %186 {approx = true} : vector<16x1xf32> -> vector<16x1xf32>
    %188 = arith.truncf %184 : vector<16x16xf32> to vector<16x16xbf16>
    %cst_64 = arith.constant dense<0.000000e+00> : vector<16x32xf32>
    %189 = tpu.matmul %188, %178, %cst_64 {dimension_numbers = #tpu.dot_dimension_numbers<[1], [0], [0], [1], [0, 0, 1, 1], [], []>} : vector<16x16xbf16>, vector<16x32xbf16>, vector<16x32xf32> -> vector<16x32xf32>
    %190 = vector.broadcast %187 : vector<16x1xf32> to vector<16x32xf32>
    %191 = arith.mulf %189, %190 : vector<16x32xf32>
    %192 = arith.truncf %191 : vector<16x32xf32> to vector<16x32xbf16>
    %c32_65 = arith.constant 32 : index
    %c32_66 = arith.constant 32 : index
    %193 = vector.load %arg16[%c32_65, %c32_66] : memref<128x128xbf16, #tpu.memory_space<vmem>>, vector<16x32xbf16>
    tpu.vector_store %arg16[%c32_65, %c32_66], %192 {strides = array<i32>} : memref<128x128xbf16, #tpu.memory_space<vmem>>, vector<16x32xbf16>,
    %194 = vector.extract_strided_slice %11 {offsets = [32, 64], sizes = [16, 32], strides = [1, 1]} : vector<128x128xbf16> to vector<16x32xbf16>
    %195 = vector.extract_strided_slice %12 {offsets = [32, 64], sizes = [16, 32], strides = [1, 1]} : vector<128x128xbf16> to vector<16x32xbf16>
    %196 = vector.extract_strided_slice %13 {offsets = [32, 64], sizes = [16, 32], strides = [1, 1]} : vector<128x128xbf16> to vector<16x32xbf16>
    "tpu.trace_start"() <{level = 10 : i32, message = "qd,kd->qk"}> : () -> ()
    %cst_67 = arith.constant dense<0.000000e+00> : vector<16x16xf32>
    %197 = tpu.matmul %194, %195, %cst_67 {dimension_numbers = #tpu.dot_dimension_numbers<[1], [1], [0], [0], [0, 0, 1, 0], [], []>} : vector<16x32xbf16>, vector<16x32xbf16>, vector<16x16xf32> -> vector<16x16xf32>
    "tpu.trace_stop"() : () -> ()
    %cst_68 = arith.constant dense<0xFF800000> : vector<16xf32>
    %198 = vector.multi_reduction <maximumf>, %197, %cst_68 [1] : vector<16x16xf32> to vector<16xf32>
    %199 = vector.shape_cast %198 : vector<16xf32> to vector<16x1xf32>
    %200 = vector.broadcast %199 : vector<16x1xf32> to vector<16x16xf32>
    %201 = arith.subf %197, %200 : vector<16x16xf32>
    %202 = math.exp %201 : vector<16x16xf32>
    %cst_69 = arith.constant dense<0.000000e+00> : vector<16xf32>
    %203 = vector.multi_reduction <add>, %202, %cst_69 [1] : vector<16x16xf32> to vector<16xf32>
    %204 = vector.shape_cast %203 : vector<16xf32> to vector<16x1xf32>
    %205 = tpu.reciprocal %204 {approx = true} : vector<16x1xf32> -> vector<16x1xf32>
    %206 = arith.truncf %202 : vector<16x16xf32> to vector<16x16xbf16>
    %cst_70 = arith.constant dense<0.000000e+00> : vector<16x32xf32>
    %207 = tpu.matmul %206, %196, %cst_70 {dimension_numbers = #tpu.dot_dimension_numbers<[1], [0], [0], [1], [0, 0, 1, 1], [], []>} : vector<16x16xbf16>, vector<16x32xbf16>, vector<16x32xf32> -> vector<16x32xf32>
    %208 = vector.broadcast %205 : vector<16x1xf32> to vector<16x32xf32>
    %209 = arith.mulf %207, %208 : vector<16x32xf32>
    %210 = arith.truncf %209 : vector<16x32xf32> to vector<16x32xbf16>
    %c32_71 = arith.constant 32 : index
    %c64_72 = arith.constant 64 : index
    %211 = vector.load %arg16[%c32_71, %c64_72] : memref<128x128xbf16, #tpu.memory_space<vmem>>, vector<16x32xbf16>
    tpu.vector_store %arg16[%c32_71, %c64_72], %210 {strides = array<i32>} : memref<128x128xbf16, #tpu.memory_space<vmem>>, vector<16x32xbf16>,
    %212 = vector.extract_strided_slice %11 {offsets = [32, 96], sizes = [16, 32], strides = [1, 1]} : vector<128x128xbf16> to vector<16x32xbf16>
    %213 = vector.extract_strided_slice %12 {offsets = [32, 96], sizes = [16, 32], strides = [1, 1]} : vector<128x128xbf16> to vector<16x32xbf16>
    %214 = vector.extract_strided_slice %13 {offsets = [32, 96], sizes = [16, 32], strides = [1, 1]} : vector<128x128xbf16> to vector<16x32xbf16>
    "tpu.trace_start"() <{level = 10 : i32, message = "qd,kd->qk"}> : () -> ()
    %cst_73 = arith.constant dense<0.000000e+00> : vector<16x16xf32>
    %215 = tpu.matmul %212, %213, %cst_73 {dimension_numbers = #tpu.dot_dimension_numbers<[1], [1], [0], [0], [0, 0, 1, 0], [], []>} : vector<16x32xbf16>, vector<16x32xbf16>, vector<16x16xf32> -> vector<16x16xf32>
    "tpu.trace_stop"() : () -> ()
    %cst_74 = arith.constant dense<0xFF800000> : vector<16xf32>
    %216 = vector.multi_reduction <maximumf>, %215, %cst_74 [1] : vector<16x16xf32> to vector<16xf32>
    %217 = vector.shape_cast %216 : vector<16xf32> to vector<16x1xf32>
    %218 = vector.broadcast %217 : vector<16x1xf32> to vector<16x16xf32>
    %219 = arith.subf %215, %218 : vector<16x16xf32>
    %220 = math.exp %219 : vector<16x16xf32>
    %cst_75 = arith.constant dense<0.000000e+00> : vector<16xf32>
    %221 = vector.multi_reduction <add>, %220, %cst_75 [1] : vector<16x16xf32> to vector<16xf32>
    %222 = vector.shape_cast %221 : vector<16xf32> to vector<16x1xf32>
    %223 = tpu.reciprocal %222 {approx = true} : vector<16x1xf32> -> vector<16x1xf32>
    %224 = arith.truncf %220 : vector<16x16xf32> to vector<16x16xbf16>
    %cst_76 = arith.constant dense<0.000000e+00> : vector<16x32xf32>
    %225 = tpu.matmul %224, %214, %cst_76 {dimension_numbers = #tpu.dot_dimension_numbers<[1], [0], [0], [1], [0, 0, 1, 1], [], []>} : vector<16x16xbf16>, vector<16x32xbf16>, vector<16x32xf32> -> vector<16x32xf32>
    %226 = vector.broadcast %223 : vector<16x1xf32> to vector<16x32xf32>
    %227 = arith.mulf %225, %226 : vector<16x32xf32>
    %228 = arith.truncf %227 : vector<16x32xf32> to vector<16x32xbf16>
    %c32_77 = arith.constant 32 : index
    %c96_78 = arith.constant 96 : index
    %229 = vector.load %arg16[%c32_77, %c96_78] : memref<128x128xbf16, #tpu.memory_space<vmem>>, vector<16x32xbf16>
    tpu.vector_store %arg16[%c32_77, %c96_78], %228 {strides = array<i32>} : memref<128x128xbf16, #tpu.memory_space<vmem>>, vector<16x32xbf16>,
    %230 = vector.extract_strided_slice %11 {offsets = [48, 0], sizes = [16, 32], strides = [1, 1]} : vector<128x128xbf16> to vector<16x32xbf16>
    %231 = vector.extract_strided_slice %12 {offsets = [48, 0], sizes = [16, 32], strides = [1, 1]} : vector<128x128xbf16> to vector<16x32xbf16>
    %232 = vector.extract_strided_slice %13 {offsets = [48, 0], sizes = [16, 32], strides = [1, 1]} : vector<128x128xbf16> to vector<16x32xbf16>
    "tpu.trace_start"() <{level = 10 : i32, message = "qd,kd->qk"}> : () -> ()
    %cst_79 = arith.constant dense<0.000000e+00> : vector<16x16xf32>
    %233 = tpu.matmul %230, %231, %cst_79 {dimension_numbers = #tpu.dot_dimension_numbers<[1], [1], [0], [0], [0, 0, 1, 0], [], []>} : vector<16x32xbf16>, vector<16x32xbf16>, vector<16x16xf32> -> vector<16x16xf32>
    "tpu.trace_stop"() : () -> ()
    %cst_80 = arith.constant dense<0xFF800000> : vector<16xf32>
    %234 = vector.multi_reduction <maximumf>, %233, %cst_80 [1] : vector<16x16xf32> to vector<16xf32>
    %235 = vector.shape_cast %234 : vector<16xf32> to vector<16x1xf32>
    %236 = vector.broadcast %235 : vector<16x1xf32> to vector<16x16xf32>
    %237 = arith.subf %233, %236 : vector<16x16xf32>
    %238 = math.exp %237 : vector<16x16xf32>
    %cst_81 = arith.constant dense<0.000000e+00> : vector<16xf32>
    %239 = vector.multi_reduction <add>, %238, %cst_81 [1] : vector<16x16xf32> to vector<16xf32>
    %240 = vector.shape_cast %239 : vector<16xf32> to vector<16x1xf32>
    %241 = tpu.reciprocal %240 {approx = true} : vector<16x1xf32> -> vector<16x1xf32>
    %242 = arith.truncf %238 : vector<16x16xf32> to vector<16x16xbf16>
    %cst_82 = arith.constant dense<0.000000e+00> : vector<16x32xf32>
    %243 = tpu.matmul %242, %232, %cst_82 {dimension_numbers = #tpu.dot_dimension_numbers<[1], [0], [0], [1], [0, 0, 1, 1], [], []>} : vector<16x16xbf16>, vector<16x32xbf16>, vector<16x32xf32> -> vector<16x32xf32>
    %244 = vector.broadcast %241 : vector<16x1xf32> to vector<16x32xf32>
    %245 = arith.mulf %243, %244 : vector<16x32xf32>
    %246 = arith.truncf %245 : vector<16x32xf32> to vector<16x32xbf16>
    %c48 = arith.constant 48 : index
    %c0_83 = arith.constant 0 : index
    %247 = vector.load %arg16[%c48, %c0_83] : memref<128x128xbf16, #tpu.memory_space<vmem>>, vector<16x32xbf16>
    tpu.vector_store %arg16[%c48, %c0_83], %246 {strides = array<i32>} : memref<128x128xbf16, #tpu.memory_space<vmem>>, vector<16x32xbf16>,
    %248 = vector.extract_strided_slice %11 {offsets = [48, 32], sizes = [16, 32], strides = [1, 1]} : vector<128x128xbf16> to vector<16x32xbf16>
    %249 = vector.extract_strided_slice %12 {offsets = [48, 32], sizes = [16, 32], strides = [1, 1]} : vector<128x128xbf16> to vector<16x32xbf16>
    %250 = vector.extract_strided_slice %13 {offsets = [48, 32], sizes = [16, 32], strides = [1, 1]} : vector<128x128xbf16> to vector<16x32xbf16>
    "tpu.trace_start"() <{level = 10 : i32, message = "qd,kd->qk"}> : () -> ()
    %cst_84 = arith.constant dense<0.000000e+00> : vector<16x16xf32>
    %251 = tpu.matmul %248, %249, %cst_84 {dimension_numbers = #tpu.dot_dimension_numbers<[1], [1], [0], [0], [0, 0, 1, 0], [], []>} : vector<16x32xbf16>, vector<16x32xbf16>, vector<16x16xf32> -> vector<16x16xf32>
    "tpu.trace_stop"() : () -> ()
    %cst_85 = arith.constant dense<0xFF800000> : vector<16xf32>
    %252 = vector.multi_reduction <maximumf>, %251, %cst_85 [1] : vector<16x16xf32> to vector<16xf32>
    %253 = vector.shape_cast %252 : vector<16xf32> to vector<16x1xf32>
    %254 = vector.broadcast %253 : vector<16x1xf32> to vector<16x16xf32>
    %255 = arith.subf %251, %254 : vector<16x16xf32>
    %256 = math.exp %255 : vector<16x16xf32>
    %cst_86 = arith.constant dense<0.000000e+00> : vector<16xf32>
    %257 = vector.multi_reduction <add>, %256, %cst_86 [1] : vector<16x16xf32> to vector<16xf32>
    %258 = vector.shape_cast %257 : vector<16xf32> to vector<16x1xf32>
    %259 = tpu.reciprocal %258 {approx = true} : vector<16x1xf32> -> vector<16x1xf32>
    %260 = arith.truncf %256 : vector<16x16xf32> to vector<16x16xbf16>
    %cst_87 = arith.constant dense<0.000000e+00> : vector<16x32xf32>
    %261 = tpu.matmul %260, %250, %cst_87 {dimension_numbers = #tpu.dot_dimension_numbers<[1], [0], [0], [1], [0, 0, 1, 1], [], []>} : vector<16x16xbf16>, vector<16x32xbf16>, vector<16x32xf32> -> vector<16x32xf32>
    %262 = vector.broadcast %259 : vector<16x1xf32> to vector<16x32xf32>
    %263 = arith.mulf %261, %262 : vector<16x32xf32>
    %264 = arith.truncf %263 : vector<16x32xf32> to vector<16x32xbf16>
    %c48_88 = arith.constant 48 : index
    %c32_89 = arith.constant 32 : index
    %265 = vector.load %arg16[%c48_88, %c32_89] : memref<128x128xbf16, #tpu.memory_space<vmem>>, vector<16x32xbf16>
    tpu.vector_store %arg16[%c48_88, %c32_89], %264 {strides = array<i32>} : memref<128x128xbf16, #tpu.memory_space<vmem>>, vector<16x32xbf16>,
    %266 = vector.extract_strided_slice %11 {offsets = [48, 64], sizes = [16, 32], strides = [1, 1]} : vector<128x128xbf16> to vector<16x32xbf16>
    %267 = vector.extract_strided_slice %12 {offsets = [48, 64], sizes = [16, 32], strides = [1, 1]} : vector<128x128xbf16> to vector<16x32xbf16>
    %268 = vector.extract_strided_slice %13 {offsets = [48, 64], sizes = [16, 32], strides = [1, 1]} : vector<128x128xbf16> to vector<16x32xbf16>
    "tpu.trace_start"() <{level = 10 : i32, message = "qd,kd->qk"}> : () -> ()
    %cst_90 = arith.constant dense<0.000000e+00> : vector<16x16xf32>
    %269 = tpu.matmul %266, %267, %cst_90 {dimension_numbers = #tpu.dot_dimension_numbers<[1], [1], [0], [0], [0, 0, 1, 0], [], []>} : vector<16x32xbf16>, vector<16x32xbf16>, vector<16x16xf32> -> vector<16x16xf32>
    "tpu.trace_stop"() : () -> ()
    %cst_91 = arith.constant dense<0xFF800000> : vector<16xf32>
    %270 = vector.multi_reduction <maximumf>, %269, %cst_91 [1] : vector<16x16xf32> to vector<16xf32>
    %271 = vector.shape_cast %270 : vector<16xf32> to vector<16x1xf32>
    %272 = vector.broadcast %271 : vector<16x1xf32> to vector<16x16xf32>
    %273 = arith.subf %269, %272 : vector<16x16xf32>
    %274 = math.exp %273 : vector<16x16xf32>
    %cst_92 = arith.constant dense<0.000000e+00> : vector<16xf32>
    %275 = vector.multi_reduction <add>, %274, %cst_92 [1] : vector<16x16xf32> to vector<16xf32>
    %276 = vector.shape_cast %275 : vector<16xf32> to vector<16x1xf32>
    %277 = tpu.reciprocal %276 {approx = true} : vector<16x1xf32> -> vector<16x1xf32>
    %278 = arith.truncf %274 : vector<16x16xf32> to vector<16x16xbf16>
    %cst_93 = arith.constant dense<0.000000e+00> : vector<16x32xf32>
    %279 = tpu.matmul %278, %268, %cst_93 {dimension_numbers = #tpu.dot_dimension_numbers<[1], [0], [0], [1], [0, 0, 1, 1], [], []>} : vector<16x16xbf16>, vector<16x32xbf16>, vector<16x32xf32> -> vector<16x32xf32>
    %280 = vector.broadcast %277 : vector<16x1xf32> to vector<16x32xf32>
    %281 = arith.mulf %279, %280 : vector<16x32xf32>
    %282 = arith.truncf %281 : vector<16x32xf32> to vector<16x32xbf16>
    %c48_94 = arith.constant 48 : index
    %c64_95 = arith.constant 64 : index
    %283 = vector.load %arg16[%c48_94, %c64_95] : memref<128x128xbf16, #tpu.memory_space<vmem>>, vector<16x32xbf16>
    tpu.vector_store %arg16[%c48_94, %c64_95], %282 {strides = array<i32>} : memref<128x128xbf16, #tpu.memory_space<vmem>>, vector<16x32xbf16>,
    %284 = vector.extract_strided_slice %11 {offsets = [48, 96], sizes = [16, 32], strides = [1, 1]} : vector<128x128xbf16> to vector<16x32xbf16>
    %285 = vector.extract_strided_slice %12 {offsets = [48, 96], sizes = [16, 32], strides = [1, 1]} : vector<128x128xbf16> to vector<16x32xbf16>
    %286 = vector.extract_strided_slice %13 {offsets = [48, 96], sizes = [16, 32], strides = [1, 1]} : vector<128x128xbf16> to vector<16x32xbf16>
    "tpu.trace_start"() <{level = 10 : i32, message = "qd,kd->qk"}> : () -> ()
    %cst_96 = arith.constant dense<0.000000e+00> : vector<16x16xf32>
    %287 = tpu.matmul %284, %285, %cst_96 {dimension_numbers = #tpu.dot_dimension_numbers<[1], [1], [0], [0], [0, 0, 1, 0], [], []>} : vector<16x32xbf16>, vector<16x32xbf16>, vector<16x16xf32> -> vector<16x16xf32>
    "tpu.trace_stop"() : () -> ()
    %cst_97 = arith.constant dense<0xFF800000> : vector<16xf32>
    %288 = vector.multi_reduction <maximumf>, %287, %cst_97 [1] : vector<16x16xf32> to vector<16xf32>
    %289 = vector.shape_cast %288 : vector<16xf32> to vector<16x1xf32>
    %290 = vector.broadcast %289 : vector<16x1xf32> to vector<16x16xf32>
    %291 = arith.subf %287, %290 : vector<16x16xf32>
    %292 = math.exp %291 : vector<16x16xf32>
    %cst_98 = arith.constant dense<0.000000e+00> : vector<16xf32>
    %293 = vector.multi_reduction <add>, %292, %cst_98 [1] : vector<16x16xf32> to vector<16xf32>
    %294 = vector.shape_cast %293 : vector<16xf32> to vector<16x1xf32>
    %295 = tpu.reciprocal %294 {approx = true} : vector<16x1xf32> -> vector<16x1xf32>
    %296 = arith.truncf %292 : vector<16x16xf32> to vector<16x16xbf16>
    %cst_99 = arith.constant dense<0.000000e+00> : vector<16x32xf32>
    %297 = tpu.matmul %296, %286, %cst_99 {dimension_numbers = #tpu.dot_dimension_numbers<[1], [0], [0], [1], [0, 0, 1, 1], [], []>} : vector<16x16xbf16>, vector<16x32xbf16>, vector<16x32xf32> -> vector<16x32xf32>
    %298 = vector.broadcast %295 : vector<16x1xf32> to vector<16x32xf32>
    %299 = arith.mulf %297, %298 : vector<16x32xf32>
    %300 = arith.truncf %299 : vector<16x32xf32> to vector<16x32xbf16>
    %c48_100 = arith.constant 48 : index
    %c96_101 = arith.constant 96 : index
    %301 = vector.load %arg16[%c48_100, %c96_101] : memref<128x128xbf16, #tpu.memory_space<vmem>>, vector<16x32xbf16>
    tpu.vector_store %arg16[%c48_100, %c96_101], %300 {strides = array<i32>} : memref<128x128xbf16, #tpu.memory_space<vmem>>, vector<16x32xbf16>,
    %302 = vector.extract_strided_slice %11 {offsets = [64, 0], sizes = [16, 32], strides = [1, 1]} : vector<128x128xbf16> to vector<16x32xbf16>
    %303 = vector.extract_strided_slice %12 {offsets = [64, 0], sizes = [16, 32], strides = [1, 1]} : vector<128x128xbf16> to vector<16x32xbf16>
    %304 = vector.extract_strided_slice %13 {offsets = [64, 0], sizes = [16, 32], strides = [1, 1]} : vector<128x128xbf16> to vector<16x32xbf16>
    "tpu.trace_start"() <{level = 10 : i32, message = "qd,kd->qk"}> : () -> ()
    %cst_102 = arith.constant dense<0.000000e+00> : vector<16x16xf32>
    %305 = tpu.matmul %302, %303, %cst_102 {dimension_numbers = #tpu.dot_dimension_numbers<[1], [1], [0], [0], [0, 0, 1, 0], [], []>} : vector<16x32xbf16>, vector<16x32xbf16>, vector<16x16xf32> -> vector<16x16xf32>
    "tpu.trace_stop"() : () -> ()
    %cst_103 = arith.constant dense<0xFF800000> : vector<16xf32>
    %306 = vector.multi_reduction <maximumf>, %305, %cst_103 [1] : vector<16x16xf32> to vector<16xf32>
    %307 = vector.shape_cast %306 : vector<16xf32> to vector<16x1xf32>
    %308 = vector.broadcast %307 : vector<16x1xf32> to vector<16x16xf32>
    %309 = arith.subf %305, %308 : vector<16x16xf32>
    %310 = math.exp %309 : vector<16x16xf32>
    %cst_104 = arith.constant dense<0.000000e+00> : vector<16xf32>
    %311 = vector.multi_reduction <add>, %310, %cst_104 [1] : vector<16x16xf32> to vector<16xf32>
    %312 = vector.shape_cast %311 : vector<16xf32> to vector<16x1xf32>
    %313 = tpu.reciprocal %312 {approx = true} : vector<16x1xf32> -> vector<16x1xf32>
    %314 = arith.truncf %310 : vector<16x16xf32> to vector<16x16xbf16>
    %cst_105 = arith.constant dense<0.000000e+00> : vector<16x32xf32>
    %315 = tpu.matmul %314, %304, %cst_105 {dimension_numbers = #tpu.dot_dimension_numbers<[1], [0], [0], [1], [0, 0, 1, 1], [], []>} : vector<16x16xbf16>, vector<16x32xbf16>, vector<16x32xf32> -> vector<16x32xf32>
    %316 = vector.broadcast %313 : vector<16x1xf32> to vector<16x32xf32>
    %317 = arith.mulf %315, %316 : vector<16x32xf32>
    %318 = arith.truncf %317 : vector<16x32xf32> to vector<16x32xbf16>
    %c64_106 = arith.constant 64 : index
    %c0_107 = arith.constant 0 : index
    %319 = vector.load %arg16[%c64_106, %c0_107] : memref<128x128xbf16, #tpu.memory_space<vmem>>, vector<16x32xbf16>
    tpu.vector_store %arg16[%c64_106, %c0_107], %318 {strides = array<i32>} : memref<128x128xbf16, #tpu.memory_space<vmem>>, vector<16x32xbf16>,
    %320 = vector.extract_strided_slice %11 {offsets = [64, 32], sizes = [16, 32], strides = [1, 1]} : vector<128x128xbf16> to vector<16x32xbf16>
    %321 = vector.extract_strided_slice %12 {offsets = [64, 32], sizes = [16, 32], strides = [1, 1]} : vector<128x128xbf16> to vector<16x32xbf16>
    %322 = vector.extract_strided_slice %13 {offsets = [64, 32], sizes = [16, 32], strides = [1, 1]} : vector<128x128xbf16> to vector<16x32xbf16>
    "tpu.trace_start"() <{level = 10 : i32, message = "qd,kd->qk"}> : () -> ()
    %cst_108 = arith.constant dense<0.000000e+00> : vector<16x16xf32>
    %323 = tpu.matmul %320, %321, %cst_108 {dimension_numbers = #tpu.dot_dimension_numbers<[1], [1], [0], [0], [0, 0, 1, 0], [], []>} : vector<16x32xbf16>, vector<16x32xbf16>, vector<16x16xf32> -> vector<16x16xf32>
    "tpu.trace_stop"() : () -> ()
    %cst_109 = arith.constant dense<0xFF800000> : vector<16xf32>
    %324 = vector.multi_reduction <maximumf>, %323, %cst_109 [1] : vector<16x16xf32> to vector<16xf32>
    %325 = vector.shape_cast %324 : vector<16xf32> to vector<16x1xf32>
    %326 = vector.broadcast %325 : vector<16x1xf32> to vector<16x16xf32>
    %327 = arith.subf %323, %326 : vector<16x16xf32>
    %328 = math.exp %327 : vector<16x16xf32>
    %cst_110 = arith.constant dense<0.000000e+00> : vector<16xf32>
    %329 = vector.multi_reduction <add>, %328, %cst_110 [1] : vector<16x16xf32> to vector<16xf32>
    %330 = vector.shape_cast %329 : vector<16xf32> to vector<16x1xf32>
    %331 = tpu.reciprocal %330 {approx = true} : vector<16x1xf32> -> vector<16x1xf32>
    %332 = arith.truncf %328 : vector<16x16xf32> to vector<16x16xbf16>
    %cst_111 = arith.constant dense<0.000000e+00> : vector<16x32xf32>
    %333 = tpu.matmul %332, %322, %cst_111 {dimension_numbers = #tpu.dot_dimension_numbers<[1], [0], [0], [1], [0, 0, 1, 1], [], []>} : vector<16x16xbf16>, vector<16x32xbf16>, vector<16x32xf32> -> vector<16x32xf32>
    %334 = vector.broadcast %331 : vector<16x1xf32> to vector<16x32xf32>
    %335 = arith.mulf %333, %334 : vector<16x32xf32>
    %336 = arith.truncf %335 : vector<16x32xf32> to vector<16x32xbf16>
    %c64_112 = arith.constant 64 : index
    %c32_113 = arith.constant 32 : index
    %337 = vector.load %arg16[%c64_112, %c32_113] : memref<128x128xbf16, #tpu.memory_space<vmem>>, vector<16x32xbf16>
    tpu.vector_store %arg16[%c64_112, %c32_113], %336 {strides = array<i32>} : memref<128x128xbf16, #tpu.memory_space<vmem>>, vector<16x32xbf16>,
    %338 = vector.extract_strided_slice %11 {offsets = [64, 64], sizes = [16, 32], strides = [1, 1]} : vector<128x128xbf16> to vector<16x32xbf16>
    %339 = vector.extract_strided_slice %12 {offsets = [64, 64], sizes = [16, 32], strides = [1, 1]} : vector<128x128xbf16> to vector<16x32xbf16>
    %340 = vector.extract_strided_slice %13 {offsets = [64, 64], sizes = [16, 32], strides = [1, 1]} : vector<128x128xbf16> to vector<16x32xbf16>
    "tpu.trace_start"() <{level = 10 : i32, message = "qd,kd->qk"}> : () -> ()
    %cst_114 = arith.constant dense<0.000000e+00> : vector<16x16xf32>
    %341 = tpu.matmul %338, %339, %cst_114 {dimension_numbers = #tpu.dot_dimension_numbers<[1], [1], [0], [0], [0, 0, 1, 0], [], []>} : vector<16x32xbf16>, vector<16x32xbf16>, vector<16x16xf32> -> vector<16x16xf32>
    "tpu.trace_stop"() : () -> ()
    %cst_115 = arith.constant dense<0xFF800000> : vector<16xf32>
    %342 = vector.multi_reduction <maximumf>, %341, %cst_115 [1] : vector<16x16xf32> to vector<16xf32>
    %343 = vector.shape_cast %342 : vector<16xf32> to vector<16x1xf32>
    %344 = vector.broadcast %343 : vector<16x1xf32> to vector<16x16xf32>
    %345 = arith.subf %341, %344 : vector<16x16xf32>
    %346 = math.exp %345 : vector<16x16xf32>
    %cst_116 = arith.constant dense<0.000000e+00> : vector<16xf32>
    %347 = vector.multi_reduction <add>, %346, %cst_116 [1] : vector<16x16xf32> to vector<16xf32>
    %348 = vector.shape_cast %347 : vector<16xf32> to vector<16x1xf32>
    %349 = tpu.reciprocal %348 {approx = true} : vector<16x1xf32> -> vector<16x1xf32>
    %350 = arith.truncf %346 : vector<16x16xf32> to vector<16x16xbf16>
    %cst_117 = arith.constant dense<0.000000e+00> : vector<16x32xf32>
    %351 = tpu.matmul %350, %340, %cst_117 {dimension_numbers = #tpu.dot_dimension_numbers<[1], [0], [0], [1], [0, 0, 1, 1], [], []>} : vector<16x16xbf16>, vector<16x32xbf16>, vector<16x32xf32> -> vector<16x32xf32>
    %352 = vector.broadcast %349 : vector<16x1xf32> to vector<16x32xf32>
    %353 = arith.mulf %351, %352 : vector<16x32xf32>
    %354 = arith.truncf %353 : vector<16x32xf32> to vector<16x32xbf16>
    %c64_118 = arith.constant 64 : index
    %c64_119 = arith.constant 64 : index
    %355 = vector.load %arg16[%c64_118, %c64_119] : memref<128x128xbf16, #tpu.memory_space<vmem>>, vector<16x32xbf16>
    tpu.vector_store %arg16[%c64_118, %c64_119], %354 {strides = array<i32>} : memref<128x128xbf16, #tpu.memory_space<vmem>>, vector<16x32xbf16>,
    %356 = vector.extract_strided_slice %11 {offsets = [64, 96], sizes = [16, 32], strides = [1, 1]} : vector<128x128xbf16> to vector<16x32xbf16>
    %357 = vector.extract_strided_slice %12 {offsets = [64, 96], sizes = [16, 32], strides = [1, 1]} : vector<128x128xbf16> to vector<16x32xbf16>
    %358 = vector.extract_strided_slice %13 {offsets = [64, 96], sizes = [16, 32], strides = [1, 1]} : vector<128x128xbf16> to vector<16x32xbf16>
    "tpu.trace_start"() <{level = 10 : i32, message = "qd,kd->qk"}> : () -> ()
    %cst_120 = arith.constant dense<0.000000e+00> : vector<16x16xf32>
    %359 = tpu.matmul %356, %357, %cst_120 {dimension_numbers = #tpu.dot_dimension_numbers<[1], [1], [0], [0], [0, 0, 1, 0], [], []>} : vector<16x32xbf16>, vector<16x32xbf16>, vector<16x16xf32> -> vector<16x16xf32>
    "tpu.trace_stop"() : () -> ()
    %cst_121 = arith.constant dense<0xFF800000> : vector<16xf32>
    %360 = vector.multi_reduction <maximumf>, %359, %cst_121 [1] : vector<16x16xf32> to vector<16xf32>
    %361 = vector.shape_cast %360 : vector<16xf32> to vector<16x1xf32>
    %362 = vector.broadcast %361 : vector<16x1xf32> to vector<16x16xf32>
    %363 = arith.subf %359, %362 : vector<16x16xf32>
    %364 = math.exp %363 : vector<16x16xf32>
    %cst_122 = arith.constant dense<0.000000e+00> : vector<16xf32>
    %365 = vector.multi_reduction <add>, %364, %cst_122 [1] : vector<16x16xf32> to vector<16xf32>
    %366 = vector.shape_cast %365 : vector<16xf32> to vector<16x1xf32>
    %367 = tpu.reciprocal %366 {approx = true} : vector<16x1xf32> -> vector<16x1xf32>
    %368 = arith.truncf %364 : vector<16x16xf32> to vector<16x16xbf16>
    %cst_123 = arith.constant dense<0.000000e+00> : vector<16x32xf32>
    %369 = tpu.matmul %368, %358, %cst_123 {dimension_numbers = #tpu.dot_dimension_numbers<[1], [0], [0], [1], [0, 0, 1, 1], [], []>} : vector<16x16xbf16>, vector<16x32xbf16>, vector<16x32xf32> -> vector<16x32xf32>
    %370 = vector.broadcast %367 : vector<16x1xf32> to vector<16x32xf32>
    %371 = arith.mulf %369, %370 : vector<16x32xf32>
    %372 = arith.truncf %371 : vector<16x32xf32> to vector<16x32xbf16>
    %c64_124 = arith.constant 64 : index
    %c96_125 = arith.constant 96 : index
    %373 = vector.load %arg16[%c64_124, %c96_125] : memref<128x128xbf16, #tpu.memory_space<vmem>>, vector<16x32xbf16>
    tpu.vector_store %arg16[%c64_124, %c96_125], %372 {strides = array<i32>} : memref<128x128xbf16, #tpu.memory_space<vmem>>, vector<16x32xbf16>,
    %374 = vector.extract_strided_slice %11 {offsets = [80, 0], sizes = [16, 32], strides = [1, 1]} : vector<128x128xbf16> to vector<16x32xbf16>
    %375 = vector.extract_strided_slice %12 {offsets = [80, 0], sizes = [16, 32], strides = [1, 1]} : vector<128x128xbf16> to vector<16x32xbf16>
    %376 = vector.extract_strided_slice %13 {offsets = [80, 0], sizes = [16, 32], strides = [1, 1]} : vector<128x128xbf16> to vector<16x32xbf16>
    "tpu.trace_start"() <{level = 10 : i32, message = "qd,kd->qk"}> : () -> ()
    %cst_126 = arith.constant dense<0.000000e+00> : vector<16x16xf32>
    %377 = tpu.matmul %374, %375, %cst_126 {dimension_numbers = #tpu.dot_dimension_numbers<[1], [1], [0], [0], [0, 0, 1, 0], [], []>} : vector<16x32xbf16>, vector<16x32xbf16>, vector<16x16xf32> -> vector<16x16xf32>
    "tpu.trace_stop"() : () -> ()
    %cst_127 = arith.constant dense<0xFF800000> : vector<16xf32>
    %378 = vector.multi_reduction <maximumf>, %377, %cst_127 [1] : vector<16x16xf32> to vector<16xf32>
    %379 = vector.shape_cast %378 : vector<16xf32> to vector<16x1xf32>
    %380 = vector.broadcast %379 : vector<16x1xf32> to vector<16x16xf32>
    %381 = arith.subf %377, %380 : vector<16x16xf32>
    %382 = math.exp %381 : vector<16x16xf32>
    %cst_128 = arith.constant dense<0.000000e+00> : vector<16xf32>
    %383 = vector.multi_reduction <add>, %382, %cst_128 [1] : vector<16x16xf32> to vector<16xf32>
    %384 = vector.shape_cast %383 : vector<16xf32> to vector<16x1xf32>
    %385 = tpu.reciprocal %384 {approx = true} : vector<16x1xf32> -> vector<16x1xf32>
    %386 = arith.truncf %382 : vector<16x16xf32> to vector<16x16xbf16>
    %cst_129 = arith.constant dense<0.000000e+00> : vector<16x32xf32>
    %387 = tpu.matmul %386, %376, %cst_129 {dimension_numbers = #tpu.dot_dimension_numbers<[1], [0], [0], [1], [0, 0, 1, 1], [], []>} : vector<16x16xbf16>, vector<16x32xbf16>, vector<16x32xf32> -> vector<16x32xf32>
    %388 = vector.broadcast %385 : vector<16x1xf32> to vector<16x32xf32>
    %389 = arith.mulf %387, %388 : vector<16x32xf32>
    %390 = arith.truncf %389 : vector<16x32xf32> to vector<16x32xbf16>
    %c80 = arith.constant 80 : index
    %c0_130 = arith.constant 0 : index
    %391 = vector.load %arg16[%c80, %c0_130] : memref<128x128xbf16, #tpu.memory_space<vmem>>, vector<16x32xbf16>
    tpu.vector_store %arg16[%c80, %c0_130], %390 {strides = array<i32>} : memref<128x128xbf16, #tpu.memory_space<vmem>>, vector<16x32xbf16>,
    %392 = vector.extract_strided_slice %11 {offsets = [80, 32], sizes = [16, 32], strides = [1, 1]} : vector<128x128xbf16> to vector<16x32xbf16>
    %393 = vector.extract_strided_slice %12 {offsets = [80, 32], sizes = [16, 32], strides = [1, 1]} : vector<128x128xbf16> to vector<16x32xbf16>
    %394 = vector.extract_strided_slice %13 {offsets = [80, 32], sizes = [16, 32], strides = [1, 1]} : vector<128x128xbf16> to vector<16x32xbf16>
    "tpu.trace_start"() <{level = 10 : i32, message = "qd,kd->qk"}> : () -> ()
    %cst_131 = arith.constant dense<0.000000e+00> : vector<16x16xf32>
    %395 = tpu.matmul %392, %393, %cst_131 {dimension_numbers = #tpu.dot_dimension_numbers<[1], [1], [0], [0], [0, 0, 1, 0], [], []>} : vector<16x32xbf16>, vector<16x32xbf16>, vector<16x16xf32> -> vector<16x16xf32>
    "tpu.trace_stop"() : () -> ()
    %cst_132 = arith.constant dense<0xFF800000> : vector<16xf32>
    %396 = vector.multi_reduction <maximumf>, %395, %cst_132 [1] : vector<16x16xf32> to vector<16xf32>
    %397 = vector.shape_cast %396 : vector<16xf32> to vector<16x1xf32>
    %398 = vector.broadcast %397 : vector<16x1xf32> to vector<16x16xf32>
    %399 = arith.subf %395, %398 : vector<16x16xf32>
    %400 = math.exp %399 : vector<16x16xf32>
    %cst_133 = arith.constant dense<0.000000e+00> : vector<16xf32>
    %401 = vector.multi_reduction <add>, %400, %cst_133 [1] : vector<16x16xf32> to vector<16xf32>
    %402 = vector.shape_cast %401 : vector<16xf32> to vector<16x1xf32>
    %403 = tpu.reciprocal %402 {approx = true} : vector<16x1xf32> -> vector<16x1xf32>
    %404 = arith.truncf %400 : vector<16x16xf32> to vector<16x16xbf16>
    %cst_134 = arith.constant dense<0.000000e+00> : vector<16x32xf32>
    %405 = tpu.matmul %404, %394, %cst_134 {dimension_numbers = #tpu.dot_dimension_numbers<[1], [0], [0], [1], [0, 0, 1, 1], [], []>} : vector<16x16xbf16>, vector<16x32xbf16>, vector<16x32xf32> -> vector<16x32xf32>
    %406 = vector.broadcast %403 : vector<16x1xf32> to vector<16x32xf32>
    %407 = arith.mulf %405, %406 : vector<16x32xf32>
    %408 = arith.truncf %407 : vector<16x32xf32> to vector<16x32xbf16>
    %c80_135 = arith.constant 80 : index
    %c32_136 = arith.constant 32 : index
    %409 = vector.load %arg16[%c80_135, %c32_136] : memref<128x128xbf16, #tpu.memory_space<vmem>>, vector<16x32xbf16>
    tpu.vector_store %arg16[%c80_135, %c32_136], %408 {strides = array<i32>} : memref<128x128xbf16, #tpu.memory_space<vmem>>, vector<16x32xbf16>,
    %410 = vector.extract_strided_slice %11 {offsets = [80, 64], sizes = [16, 32], strides = [1, 1]} : vector<128x128xbf16> to vector<16x32xbf16>
    %411 = vector.extract_strided_slice %12 {offsets = [80, 64], sizes = [16, 32], strides = [1, 1]} : vector<128x128xbf16> to vector<16x32xbf16>
    %412 = vector.extract_strided_slice %13 {offsets = [80, 64], sizes = [16, 32], strides = [1, 1]} : vector<128x128xbf16> to vector<16x32xbf16>
    "tpu.trace_start"() <{level = 10 : i32, message = "qd,kd->qk"}> : () -> ()
    %cst_137 = arith.constant dense<0.000000e+00> : vector<16x16xf32>
    %413 = tpu.matmul %410, %411, %cst_137 {dimension_numbers = #tpu.dot_dimension_numbers<[1], [1], [0], [0], [0, 0, 1, 0], [], []>} : vector<16x32xbf16>, vector<16x32xbf16>, vector<16x16xf32> -> vector<16x16xf32>
    "tpu.trace_stop"() : () -> ()
    %cst_138 = arith.constant dense<0xFF800000> : vector<16xf32>
    %414 = vector.multi_reduction <maximumf>, %413, %cst_138 [1] : vector<16x16xf32> to vector<16xf32>
    %415 = vector.shape_cast %414 : vector<16xf32> to vector<16x1xf32>
    %416 = vector.broadcast %415 : vector<16x1xf32> to vector<16x16xf32>
    %417 = arith.subf %413, %416 : vector<16x16xf32>
    %418 = math.exp %417 : vector<16x16xf32>
    %cst_139 = arith.constant dense<0.000000e+00> : vector<16xf32>
    %419 = vector.multi_reduction <add>, %418, %cst_139 [1] : vector<16x16xf32> to vector<16xf32>
    %420 = vector.shape_cast %419 : vector<16xf32> to vector<16x1xf32>
    %421 = tpu.reciprocal %420 {approx = true} : vector<16x1xf32> -> vector<16x1xf32>
    %422 = arith.truncf %418 : vector<16x16xf32> to vector<16x16xbf16>
    %cst_140 = arith.constant dense<0.000000e+00> : vector<16x32xf32>
    %423 = tpu.matmul %422, %412, %cst_140 {dimension_numbers = #tpu.dot_dimension_numbers<[1], [0], [0], [1], [0, 0, 1, 1], [], []>} : vector<16x16xbf16>, vector<16x32xbf16>, vector<16x32xf32> -> vector<16x32xf32>
    %424 = vector.broadcast %421 : vector<16x1xf32> to vector<16x32xf32>
    %425 = arith.mulf %423, %424 : vector<16x32xf32>
    %426 = arith.truncf %425 : vector<16x32xf32> to vector<16x32xbf16>
    %c80_141 = arith.constant 80 : index
    %c64_142 = arith.constant 64 : index
    %427 = vector.load %arg16[%c80_141, %c64_142] : memref<128x128xbf16, #tpu.memory_space<vmem>>, vector<16x32xbf16>
    tpu.vector_store %arg16[%c80_141, %c64_142], %426 {strides = array<i32>} : memref<128x128xbf16, #tpu.memory_space<vmem>>, vector<16x32xbf16>,
    %428 = vector.extract_strided_slice %11 {offsets = [80, 96], sizes = [16, 32], strides = [1, 1]} : vector<128x128xbf16> to vector<16x32xbf16>
    %429 = vector.extract_strided_slice %12 {offsets = [80, 96], sizes = [16, 32], strides = [1, 1]} : vector<128x128xbf16> to vector<16x32xbf16>
    %430 = vector.extract_strided_slice %13 {offsets = [80, 96], sizes = [16, 32], strides = [1, 1]} : vector<128x128xbf16> to vector<16x32xbf16>
    "tpu.trace_start"() <{level = 10 : i32, message = "qd,kd->qk"}> : () -> ()
    %cst_143 = arith.constant dense<0.000000e+00> : vector<16x16xf32>
    %431 = tpu.matmul %428, %429, %cst_143 {dimension_numbers = #tpu.dot_dimension_numbers<[1], [1], [0], [0], [0, 0, 1, 0], [], []>} : vector<16x32xbf16>, vector<16x32xbf16>, vector<16x16xf32> -> vector<16x16xf32>
    "tpu.trace_stop"() : () -> ()
    %cst_144 = arith.constant dense<0xFF800000> : vector<16xf32>
    %432 = vector.multi_reduction <maximumf>, %431, %cst_144 [1] : vector<16x16xf32> to vector<16xf32>
    %433 = vector.shape_cast %432 : vector<16xf32> to vector<16x1xf32>
    %434 = vector.broadcast %433 : vector<16x1xf32> to vector<16x16xf32>
    %435 = arith.subf %431, %434 : vector<16x16xf32>
    %436 = math.exp %435 : vector<16x16xf32>
    %cst_145 = arith.constant dense<0.000000e+00> : vector<16xf32>
    %437 = vector.multi_reduction <add>, %436, %cst_145 [1] : vector<16x16xf32> to vector<16xf32>
    %438 = vector.shape_cast %437 : vector<16xf32> to vector<16x1xf32>
    %439 = tpu.reciprocal %438 {approx = true} : vector<16x1xf32> -> vector<16x1xf32>
    %440 = arith.truncf %436 : vector<16x16xf32> to vector<16x16xbf16>
    %cst_146 = arith.constant dense<0.000000e+00> : vector<16x32xf32>
    %441 = tpu.matmul %440, %430, %cst_146 {dimension_numbers = #tpu.dot_dimension_numbers<[1], [0], [0], [1], [0, 0, 1, 1], [], []>} : vector<16x16xbf16>, vector<16x32xbf16>, vector<16x32xf32> -> vector<16x32xf32>
    %442 = vector.broadcast %439 : vector<16x1xf32> to vector<16x32xf32>
    %443 = arith.mulf %441, %442 : vector<16x32xf32>
    %444 = arith.truncf %443 : vector<16x32xf32> to vector<16x32xbf16>
    %c80_147 = arith.constant 80 : index
    %c96_148 = arith.constant 96 : index
    %445 = vector.load %arg16[%c80_147, %c96_148] : memref<128x128xbf16, #tpu.memory_space<vmem>>, vector<16x32xbf16>
    tpu.vector_store %arg16[%c80_147, %c96_148], %444 {strides = array<i32>} : memref<128x128xbf16, #tpu.memory_space<vmem>>, vector<16x32xbf16>,
    %446 = vector.extract_strided_slice %11 {offsets = [96, 0], sizes = [16, 32], strides = [1, 1]} : vector<128x128xbf16> to vector<16x32xbf16>
    %447 = vector.extract_strided_slice %12 {offsets = [96, 0], sizes = [16, 32], strides = [1, 1]} : vector<128x128xbf16> to vector<16x32xbf16>
    %448 = vector.extract_strided_slice %13 {offsets = [96, 0], sizes = [16, 32], strides = [1, 1]} : vector<128x128xbf16> to vector<16x32xbf16>
    "tpu.trace_start"() <{level = 10 : i32, message = "qd,kd->qk"}> : () -> ()
    %cst_149 = arith.constant dense<0.000000e+00> : vector<16x16xf32>
    %449 = tpu.matmul %446, %447, %cst_149 {dimension_numbers = #tpu.dot_dimension_numbers<[1], [1], [0], [0], [0, 0, 1, 0], [], []>} : vector<16x32xbf16>, vector<16x32xbf16>, vector<16x16xf32> -> vector<16x16xf32>
    "tpu.trace_stop"() : () -> ()
    %cst_150 = arith.constant dense<0xFF800000> : vector<16xf32>
    %450 = vector.multi_reduction <maximumf>, %449, %cst_150 [1] : vector<16x16xf32> to vector<16xf32>
    %451 = vector.shape_cast %450 : vector<16xf32> to vector<16x1xf32>
    %452 = vector.broadcast %451 : vector<16x1xf32> to vector<16x16xf32>
    %453 = arith.subf %449, %452 : vector<16x16xf32>
    %454 = math.exp %453 : vector<16x16xf32>
    %cst_151 = arith.constant dense<0.000000e+00> : vector<16xf32>
    %455 = vector.multi_reduction <add>, %454, %cst_151 [1] : vector<16x16xf32> to vector<16xf32>
    %456 = vector.shape_cast %455 : vector<16xf32> to vector<16x1xf32>
    %457 = tpu.reciprocal %456 {approx = true} : vector<16x1xf32> -> vector<16x1xf32>
    %458 = arith.truncf %454 : vector<16x16xf32> to vector<16x16xbf16>
    %cst_152 = arith.constant dense<0.000000e+00> : vector<16x32xf32>
    %459 = tpu.matmul %458, %448, %cst_152 {dimension_numbers = #tpu.dot_dimension_numbers<[1], [0], [0], [1], [0, 0, 1, 1], [], []>} : vector<16x16xbf16>, vector<16x32xbf16>, vector<16x32xf32> -> vector<16x32xf32>
    %460 = vector.broadcast %457 : vector<16x1xf32> to vector<16x32xf32>
    %461 = arith.mulf %459, %460 : vector<16x32xf32>
    %462 = arith.truncf %461 : vector<16x32xf32> to vector<16x32xbf16>
    %c96_153 = arith.constant 96 : index
    %c0_154 = arith.constant 0 : index
    %463 = vector.load %arg16[%c96_153, %c0_154] : memref<128x128xbf16, #tpu.memory_space<vmem>>, vector<16x32xbf16>
    tpu.vector_store %arg16[%c96_153, %c0_154], %462 {strides = array<i32>} : memref<128x128xbf16, #tpu.memory_space<vmem>>, vector<16x32xbf16>,
    %464 = vector.extract_strided_slice %11 {offsets = [96, 32], sizes = [16, 32], strides = [1, 1]} : vector<128x128xbf16> to vector<16x32xbf16>
    %465 = vector.extract_strided_slice %12 {offsets = [96, 32], sizes = [16, 32], strides = [1, 1]} : vector<128x128xbf16> to vector<16x32xbf16>
    %466 = vector.extract_strided_slice %13 {offsets = [96, 32], sizes = [16, 32], strides = [1, 1]} : vector<128x128xbf16> to vector<16x32xbf16>
    "tpu.trace_start"() <{level = 10 : i32, message = "qd,kd->qk"}> : () -> ()
    %cst_155 = arith.constant dense<0.000000e+00> : vector<16x16xf32>
    %467 = tpu.matmul %464, %465, %cst_155 {dimension_numbers = #tpu.dot_dimension_numbers<[1], [1], [0], [0], [0, 0, 1, 0], [], []>} : vector<16x32xbf16>, vector<16x32xbf16>, vector<16x16xf32> -> vector<16x16xf32>
    "tpu.trace_stop"() : () -> ()
    %cst_156 = arith.constant dense<0xFF800000> : vector<16xf32>
    %468 = vector.multi_reduction <maximumf>, %467, %cst_156 [1] : vector<16x16xf32> to vector<16xf32>
    %469 = vector.shape_cast %468 : vector<16xf32> to vector<16x1xf32>
    %470 = vector.broadcast %469 : vector<16x1xf32> to vector<16x16xf32>
    %471 = arith.subf %467, %470 : vector<16x16xf32>
    %472 = math.exp %471 : vector<16x16xf32>
    %cst_157 = arith.constant dense<0.000000e+00> : vector<16xf32>
    %473 = vector.multi_reduction <add>, %472, %cst_157 [1] : vector<16x16xf32> to vector<16xf32>
    %474 = vector.shape_cast %473 : vector<16xf32> to vector<16x1xf32>
    %475 = tpu.reciprocal %474 {approx = true} : vector<16x1xf32> -> vector<16x1xf32>
    %476 = arith.truncf %472 : vector<16x16xf32> to vector<16x16xbf16>
    %cst_158 = arith.constant dense<0.000000e+00> : vector<16x32xf32>
    %477 = tpu.matmul %476, %466, %cst_158 {dimension_numbers = #tpu.dot_dimension_numbers<[1], [0], [0], [1], [0, 0, 1, 1], [], []>} : vector<16x16xbf16>, vector<16x32xbf16>, vector<16x32xf32> -> vector<16x32xf32>
    %478 = vector.broadcast %475 : vector<16x1xf32> to vector<16x32xf32>
    %479 = arith.mulf %477, %478 : vector<16x32xf32>
    %480 = arith.truncf %479 : vector<16x32xf32> to vector<16x32xbf16>
    %c96_159 = arith.constant 96 : index
    %c32_160 = arith.constant 32 : index
    %481 = vector.load %arg16[%c96_159, %c32_160] : memref<128x128xbf16, #tpu.memory_space<vmem>>, vector<16x32xbf16>
    tpu.vector_store %arg16[%c96_159, %c32_160], %480 {strides = array<i32>} : memref<128x128xbf16, #tpu.memory_space<vmem>>, vector<16x32xbf16>,
    %482 = vector.extract_strided_slice %11 {offsets = [96, 64], sizes = [16, 32], strides = [1, 1]} : vector<128x128xbf16> to vector<16x32xbf16>
    %483 = vector.extract_strided_slice %12 {offsets = [96, 64], sizes = [16, 32], strides = [1, 1]} : vector<128x128xbf16> to vector<16x32xbf16>
    %484 = vector.extract_strided_slice %13 {offsets = [96, 64], sizes = [16, 32], strides = [1, 1]} : vector<128x128xbf16> to vector<16x32xbf16>
    "tpu.trace_start"() <{level = 10 : i32, message = "qd,kd->qk"}> : () -> ()
    %cst_161 = arith.constant dense<0.000000e+00> : vector<16x16xf32>
    %485 = tpu.matmul %482, %483, %cst_161 {dimension_numbers = #tpu.dot_dimension_numbers<[1], [1], [0], [0], [0, 0, 1, 0], [], []>} : vector<16x32xbf16>, vector<16x32xbf16>, vector<16x16xf32> -> vector<16x16xf32>
    "tpu.trace_stop"() : () -> ()
    %cst_162 = arith.constant dense<0xFF800000> : vector<16xf32>
    %486 = vector.multi_reduction <maximumf>, %485, %cst_162 [1] : vector<16x16xf32> to vector<16xf32>
    %487 = vector.shape_cast %486 : vector<16xf32> to vector<16x1xf32>
    %488 = vector.broadcast %487 : vector<16x1xf32> to vector<16x16xf32>
    %489 = arith.subf %485, %488 : vector<16x16xf32>
    %490 = math.exp %489 : vector<16x16xf32>
    %cst_163 = arith.constant dense<0.000000e+00> : vector<16xf32>
    %491 = vector.multi_reduction <add>, %490, %cst_163 [1] : vector<16x16xf32> to vector<16xf32>
    %492 = vector.shape_cast %491 : vector<16xf32> to vector<16x1xf32>
    %493 = tpu.reciprocal %492 {approx = true} : vector<16x1xf32> -> vector<16x1xf32>
    %494 = arith.truncf %490 : vector<16x16xf32> to vector<16x16xbf16>
    %cst_164 = arith.constant dense<0.000000e+00> : vector<16x32xf32>
    %495 = tpu.matmul %494, %484, %cst_164 {dimension_numbers = #tpu.dot_dimension_numbers<[1], [0], [0], [1], [0, 0, 1, 1], [], []>} : vector<16x16xbf16>, vector<16x32xbf16>, vector<16x32xf32> -> vector<16x32xf32>
    %496 = vector.broadcast %493 : vector<16x1xf32> to vector<16x32xf32>
    %497 = arith.mulf %495, %496 : vector<16x32xf32>
    %498 = arith.truncf %497 : vector<16x32xf32> to vector<16x32xbf16>
    %c96_165 = arith.constant 96 : index
    %c64_166 = arith.constant 64 : index
    %499 = vector.load %arg16[%c96_165, %c64_166] : memref<128x128xbf16, #tpu.memory_space<vmem>>, vector<16x32xbf16>
    tpu.vector_store %arg16[%c96_165, %c64_166], %498 {strides = array<i32>} : memref<128x128xbf16, #tpu.memory_space<vmem>>, vector<16x32xbf16>,
    %500 = vector.extract_strided_slice %11 {offsets = [96, 96], sizes = [16, 32], strides = [1, 1]} : vector<128x128xbf16> to vector<16x32xbf16>
    %501 = vector.extract_strided_slice %12 {offsets = [96, 96], sizes = [16, 32], strides = [1, 1]} : vector<128x128xbf16> to vector<16x32xbf16>
    %502 = vector.extract_strided_slice %13 {offsets = [96, 96], sizes = [16, 32], strides = [1, 1]} : vector<128x128xbf16> to vector<16x32xbf16>
    "tpu.trace_start"() <{level = 10 : i32, message = "qd,kd->qk"}> : () -> ()
    %cst_167 = arith.constant dense<0.000000e+00> : vector<16x16xf32>
    %503 = tpu.matmul %500, %501, %cst_167 {dimension_numbers = #tpu.dot_dimension_numbers<[1], [1], [0], [0], [0, 0, 1, 0], [], []>} : vector<16x32xbf16>, vector<16x32xbf16>, vector<16x16xf32> -> vector<16x16xf32>
    "tpu.trace_stop"() : () -> ()
    %cst_168 = arith.constant dense<0xFF800000> : vector<16xf32>
    %504 = vector.multi_reduction <maximumf>, %503, %cst_168 [1] : vector<16x16xf32> to vector<16xf32>
    %505 = vector.shape_cast %504 : vector<16xf32> to vector<16x1xf32>
    %506 = vector.broadcast %505 : vector<16x1xf32> to vector<16x16xf32>
    %507 = arith.subf %503, %506 : vector<16x16xf32>
    %508 = math.exp %507 : vector<16x16xf32>
    %cst_169 = arith.constant dense<0.000000e+00> : vector<16xf32>
    %509 = vector.multi_reduction <add>, %508, %cst_169 [1] : vector<16x16xf32> to vector<16xf32>
    %510 = vector.shape_cast %509 : vector<16xf32> to vector<16x1xf32>
    %511 = tpu.reciprocal %510 {approx = true} : vector<16x1xf32> -> vector<16x1xf32>
    %512 = arith.truncf %508 : vector<16x16xf32> to vector<16x16xbf16>
    %cst_170 = arith.constant dense<0.000000e+00> : vector<16x32xf32>
    %513 = tpu.matmul %512, %502, %cst_170 {dimension_numbers = #tpu.dot_dimension_numbers<[1], [0], [0], [1], [0, 0, 1, 1], [], []>} : vector<16x16xbf16>, vector<16x32xbf16>, vector<16x32xf32> -> vector<16x32xf32>
    %514 = vector.broadcast %511 : vector<16x1xf32> to vector<16x32xf32>
    %515 = arith.mulf %513, %514 : vector<16x32xf32>
    %516 = arith.truncf %515 : vector<16x32xf32> to vector<16x32xbf16>
    %c96_171 = arith.constant 96 : index
    %c96_172 = arith.constant 96 : index
    %517 = vector.load %arg16[%c96_171, %c96_172] : memref<128x128xbf16, #tpu.memory_space<vmem>>, vector<16x32xbf16>
    tpu.vector_store %arg16[%c96_171, %c96_172], %516 {strides = array<i32>} : memref<128x128xbf16, #tpu.memory_space<vmem>>, vector<16x32xbf16>,
    %518 = vector.extract_strided_slice %11 {offsets = [112, 0], sizes = [16, 32], strides = [1, 1]} : vector<128x128xbf16> to vector<16x32xbf16>
    %519 = vector.extract_strided_slice %12 {offsets = [112, 0], sizes = [16, 32], strides = [1, 1]} : vector<128x128xbf16> to vector<16x32xbf16>
    %520 = vector.extract_strided_slice %13 {offsets = [112, 0], sizes = [16, 32], strides = [1, 1]} : vector<128x128xbf16> to vector<16x32xbf16>
    "tpu.trace_start"() <{level = 10 : i32, message = "qd,kd->qk"}> : () -> ()
    %cst_173 = arith.constant dense<0.000000e+00> : vector<16x16xf32>
    %521 = tpu.matmul %518, %519, %cst_173 {dimension_numbers = #tpu.dot_dimension_numbers<[1], [1], [0], [0], [0, 0, 1, 0], [], []>} : vector<16x32xbf16>, vector<16x32xbf16>, vector<16x16xf32> -> vector<16x16xf32>
    "tpu.trace_stop"() : () -> ()
    %cst_174 = arith.constant dense<0xFF800000> : vector<16xf32>
    %522 = vector.multi_reduction <maximumf>, %521, %cst_174 [1] : vector<16x16xf32> to vector<16xf32>
    %523 = vector.shape_cast %522 : vector<16xf32> to vector<16x1xf32>
    %524 = vector.broadcast %523 : vector<16x1xf32> to vector<16x16xf32>
    %525 = arith.subf %521, %524 : vector<16x16xf32>
    %526 = math.exp %525 : vector<16x16xf32>
    %cst_175 = arith.constant dense<0.000000e+00> : vector<16xf32>
    %527 = vector.multi_reduction <add>, %526, %cst_175 [1] : vector<16x16xf32> to vector<16xf32>
    %528 = vector.shape_cast %527 : vector<16xf32> to vector<16x1xf32>
    %529 = tpu.reciprocal %528 {approx = true} : vector<16x1xf32> -> vector<16x1xf32>
    %530 = arith.truncf %526 : vector<16x16xf32> to vector<16x16xbf16>
    %cst_176 = arith.constant dense<0.000000e+00> : vector<16x32xf32>
    %531 = tpu.matmul %530, %520, %cst_176 {dimension_numbers = #tpu.dot_dimension_numbers<[1], [0], [0], [1], [0, 0, 1, 1], [], []>} : vector<16x16xbf16>, vector<16x32xbf16>, vector<16x32xf32> -> vector<16x32xf32>
    %532 = vector.broadcast %529 : vector<16x1xf32> to vector<16x32xf32>
    %533 = arith.mulf %531, %532 : vector<16x32xf32>
    %534 = arith.truncf %533 : vector<16x32xf32> to vector<16x32xbf16>
    %c112 = arith.constant 112 : index
    %c0_177 = arith.constant 0 : index
    %535 = vector.load %arg16[%c112, %c0_177] : memref<128x128xbf16, #tpu.memory_space<vmem>>, vector<16x32xbf16>
    tpu.vector_store %arg16[%c112, %c0_177], %534 {strides = array<i32>} : memref<128x128xbf16, #tpu.memory_space<vmem>>, vector<16x32xbf16>,
    %536 = vector.extract_strided_slice %11 {offsets = [112, 32], sizes = [16, 32], strides = [1, 1]} : vector<128x128xbf16> to vector<16x32xbf16>
    %537 = vector.extract_strided_slice %12 {offsets = [112, 32], sizes = [16, 32], strides = [1, 1]} : vector<128x128xbf16> to vector<16x32xbf16>
    %538 = vector.extract_strided_slice %13 {offsets = [112, 32], sizes = [16, 32], strides = [1, 1]} : vector<128x128xbf16> to vector<16x32xbf16>
    "tpu.trace_start"() <{level = 10 : i32, message = "qd,kd->qk"}> : () -> ()
    %cst_178 = arith.constant dense<0.000000e+00> : vector<16x16xf32>
    %539 = tpu.matmul %536, %537, %cst_178 {dimension_numbers = #tpu.dot_dimension_numbers<[1], [1], [0], [0], [0, 0, 1, 0], [], []>} : vector<16x32xbf16>, vector<16x32xbf16>, vector<16x16xf32> -> vector<16x16xf32>
    "tpu.trace_stop"() : () -> ()
    %cst_179 = arith.constant dense<0xFF800000> : vector<16xf32>
    %540 = vector.multi_reduction <maximumf>, %539, %cst_179 [1] : vector<16x16xf32> to vector<16xf32>
    %541 = vector.shape_cast %540 : vector<16xf32> to vector<16x1xf32>
    %542 = vector.broadcast %541 : vector<16x1xf32> to vector<16x16xf32>
    %543 = arith.subf %539, %542 : vector<16x16xf32>
    %544 = math.exp %543 : vector<16x16xf32>
    %cst_180 = arith.constant dense<0.000000e+00> : vector<16xf32>
    %545 = vector.multi_reduction <add>, %544, %cst_180 [1] : vector<16x16xf32> to vector<16xf32>
    %546 = vector.shape_cast %545 : vector<16xf32> to vector<16x1xf32>
    %547 = tpu.reciprocal %546 {approx = true} : vector<16x1xf32> -> vector<16x1xf32>
    %548 = arith.truncf %544 : vector<16x16xf32> to vector<16x16xbf16>
    %cst_181 = arith.constant dense<0.000000e+00> : vector<16x32xf32>
    %549 = tpu.matmul %548, %538, %cst_181 {dimension_numbers = #tpu.dot_dimension_numbers<[1], [0], [0], [1], [0, 0, 1, 1], [], []>} : vector<16x16xbf16>, vector<16x32xbf16>, vector<16x32xf32> -> vector<16x32xf32>
    %550 = vector.broadcast %547 : vector<16x1xf32> to vector<16x32xf32>
    %551 = arith.mulf %549, %550 : vector<16x32xf32>
    %552 = arith.truncf %551 : vector<16x32xf32> to vector<16x32xbf16>
    %c112_182 = arith.constant 112 : index
    %c32_183 = arith.constant 32 : index
    %553 = vector.load %arg16[%c112_182, %c32_183] : memref<128x128xbf16, #tpu.memory_space<vmem>>, vector<16x32xbf16>
    tpu.vector_store %arg16[%c112_182, %c32_183], %552 {strides = array<i32>} : memref<128x128xbf16, #tpu.memory_space<vmem>>, vector<16x32xbf16>,
    %554 = vector.extract_strided_slice %11 {offsets = [112, 64], sizes = [16, 32], strides = [1, 1]} : vector<128x128xbf16> to vector<16x32xbf16>
    %555 = vector.extract_strided_slice %12 {offsets = [112, 64], sizes = [16, 32], strides = [1, 1]} : vector<128x128xbf16> to vector<16x32xbf16>
    %556 = vector.extract_strided_slice %13 {offsets = [112, 64], sizes = [16, 32], strides = [1, 1]} : vector<128x128xbf16> to vector<16x32xbf16>
    "tpu.trace_start"() <{level = 10 : i32, message = "qd,kd->qk"}> : () -> ()
    %cst_184 = arith.constant dense<0.000000e+00> : vector<16x16xf32>
    %557 = tpu.matmul %554, %555, %cst_184 {dimension_numbers = #tpu.dot_dimension_numbers<[1], [1], [0], [0], [0, 0, 1, 0], [], []>} : vector<16x32xbf16>, vector<16x32xbf16>, vector<16x16xf32> -> vector<16x16xf32>
    "tpu.trace_stop"() : () -> ()
    %cst_185 = arith.constant dense<0xFF800000> : vector<16xf32>
    %558 = vector.multi_reduction <maximumf>, %557, %cst_185 [1] : vector<16x16xf32> to vector<16xf32>
    %559 = vector.shape_cast %558 : vector<16xf32> to vector<16x1xf32>
    %560 = vector.broadcast %559 : vector<16x1xf32> to vector<16x16xf32>
    %561 = arith.subf %557, %560 : vector<16x16xf32>
    %562 = math.exp %561 : vector<16x16xf32>
    %cst_186 = arith.constant dense<0.000000e+00> : vector<16xf32>
    %563 = vector.multi_reduction <add>, %562, %cst_186 [1] : vector<16x16xf32> to vector<16xf32>
    %564 = vector.shape_cast %563 : vector<16xf32> to vector<16x1xf32>
    %565 = tpu.reciprocal %564 {approx = true} : vector<16x1xf32> -> vector<16x1xf32>
    %566 = arith.truncf %562 : vector<16x16xf32> to vector<16x16xbf16>
    %cst_187 = arith.constant dense<0.000000e+00> : vector<16x32xf32>
    %567 = tpu.matmul %566, %556, %cst_187 {dimension_numbers = #tpu.dot_dimension_numbers<[1], [0], [0], [1], [0, 0, 1, 1], [], []>} : vector<16x16xbf16>, vector<16x32xbf16>, vector<16x32xf32> -> vector<16x32xf32>
    %568 = vector.broadcast %565 : vector<16x1xf32> to vector<16x32xf32>
    %569 = arith.mulf %567, %568 : vector<16x32xf32>
    %570 = arith.truncf %569 : vector<16x32xf32> to vector<16x32xbf16>
    %c112_188 = arith.constant 112 : index
    %c64_189 = arith.constant 64 : index
    %571 = vector.load %arg16[%c112_188, %c64_189] : memref<128x128xbf16, #tpu.memory_space<vmem>>, vector<16x32xbf16>
    tpu.vector_store %arg16[%c112_188, %c64_189], %570 {strides = array<i32>} : memref<128x128xbf16, #tpu.memory_space<vmem>>, vector<16x32xbf16>,
    %572 = vector.extract_strided_slice %11 {offsets = [112, 96], sizes = [16, 32], strides = [1, 1]} : vector<128x128xbf16> to vector<16x32xbf16>
    %573 = vector.extract_strided_slice %12 {offsets = [112, 96], sizes = [16, 32], strides = [1, 1]} : vector<128x128xbf16> to vector<16x32xbf16>
    %574 = vector.extract_strided_slice %13 {offsets = [112, 96], sizes = [16, 32], strides = [1, 1]} : vector<128x128xbf16> to vector<16x32xbf16>
    "tpu.trace_start"() <{level = 10 : i32, message = "qd,kd->qk"}> : () -> ()
    %cst_190 = arith.constant dense<0.000000e+00> : vector<16x16xf32>
    %575 = tpu.matmul %572, %573, %cst_190 {dimension_numbers = #tpu.dot_dimension_numbers<[1], [1], [0], [0], [0, 0, 1, 0], [], []>} : vector<16x32xbf16>, vector<16x32xbf16>, vector<16x16xf32> -> vector<16x16xf32>
    "tpu.trace_stop"() : () -> ()
    %cst_191 = arith.constant dense<0xFF800000> : vector<16xf32>
    %576 = vector.multi_reduction <maximumf>, %575, %cst_191 [1] : vector<16x16xf32> to vector<16xf32>
    %577 = vector.shape_cast %576 : vector<16xf32> to vector<16x1xf32>
    %578 = vector.broadcast %577 : vector<16x1xf32> to vector<16x16xf32>
    %579 = arith.subf %575, %578 : vector<16x16xf32>
    %580 = math.exp %579 : vector<16x16xf32>
    %cst_192 = arith.constant dense<0.000000e+00> : vector<16xf32>
    %581 = vector.multi_reduction <add>, %580, %cst_192 [1] : vector<16x16xf32> to vector<16xf32>
    %582 = vector.shape_cast %581 : vector<16xf32> to vector<16x1xf32>
    %583 = tpu.reciprocal %582 {approx = true} : vector<16x1xf32> -> vector<16x1xf32>
    %584 = arith.truncf %580 : vector<16x16xf32> to vector<16x16xbf16>
    %cst_193 = arith.constant dense<0.000000e+00> : vector<16x32xf32>
    %585 = tpu.matmul %584, %574, %cst_193 {dimension_numbers = #tpu.dot_dimension_numbers<[1], [0], [0], [1], [0, 0, 1, 1], [], []>} : vector<16x16xbf16>, vector<16x32xbf16>, vector<16x32xf32> -> vector<16x32xf32>
    %586 = vector.broadcast %583 : vector<16x1xf32> to vector<16x32xf32>
    %587 = arith.mulf %585, %586 : vector<16x32xf32>
    %588 = arith.truncf %587 : vector<16x32xf32> to vector<16x32xbf16>
    %c112_194 = arith.constant 112 : index
    %c96_195 = arith.constant 96 : index
    %589 = vector.load %arg16[%c112_194, %c96_195] : memref<128x128xbf16, #tpu.memory_space<vmem>>, vector<16x32xbf16>
    tpu.vector_store %arg16[%c112_194, %c96_195], %588 {strides = array<i32>} : memref<128x128xbf16, #tpu.memory_space<vmem>>, vector<16x32xbf16>,
    %c0_196 = arith.constant 0 : index
    %c0_197 = arith.constant 0 : index
    %590 = vector.load %arg16[%c0_196, %c0_197] : memref<128x128xbf16, #tpu.memory_space<vmem>>, vector<128x128xbf16>
    %c0_198 = arith.constant 0 : index
    %c0_199 = arith.constant 0 : index
    %591 = vector.load %arg5[%c0_198, %c0_199] : memref<128x128xbf16, #tpu.memory_space<vmem>>, vector<128x128xbf16>
    %cst_200 = arith.constant dense<0.000000e+00> : vector<128x128xf32>
    %592 = tpu.matmul %590, %591, %cst_200 {dimension_numbers = #tpu.dot_dimension_numbers<[1], [0], [0], [1], [0, 0, 1, 1], [], []>} : vector<128x128xbf16>, vector<128x128xbf16>, vector<128x128xf32> -> vector<128x128xf32>
    %c0_201 = arith.constant 0 : index
    %c0_202 = arith.constant 0 : index
    %593 = vector.load %arg6[%c0_201, %c0_202] : memref<1x128xf32, #tpu.memory_space<vmem>>, vector<1x128xf32>
    %594 = vector.broadcast %593 : vector<1x128xf32> to vector<128x128xf32>
    %595 = arith.addf %592, %594 : vector<128x128xf32>
    %596 = arith.addf %1, %595 : vector<128x128xf32>
    %c0_203 = arith.constant 0 : index
    %c0_204 = arith.constant 0 : index
    %597 = vector.load %arg7[%c0_203, %c0_204] : memref<1x128xf32, #tpu.memory_space<vmem>>, vector<1x128xf32>
    %c0_205 = arith.constant 0 : index
    %c0_206 = arith.constant 0 : index
    %598 = vector.load %arg8[%c0_205, %c0_206] : memref<1x128xf32, #tpu.memory_space<vmem>>, vector<1x128xf32>
    %cst_207 = arith.constant dense<0.000000e+00> : vector<128xf32>
    %599 = vector.multi_reduction <add>, %596, %cst_207 [1] : vector<128x128xf32> to vector<128xf32>
    %600 = vector.shape_cast %599 : vector<128xf32> to vector<128x1xf32>
    %cst_208 = arith.constant 1.280000e+02 : f32
    %601 = vector.broadcast %cst_208 : f32 to vector<128x1xf32>
    %602 = arith.divf %600, %601 : vector<128x1xf32>
    %603 = vector.broadcast %602 : vector<128x1xf32> to vector<128x128xf32>
    %604 = arith.subf %596, %603 : vector<128x128xf32>
    %605 = arith.mulf %604, %604 : vector<128x128xf32>
    %cst_209 = arith.constant dense<0.000000e+00> : vector<128xf32>
    %606 = vector.multi_reduction <add>, %605, %cst_209 [1] : vector<128x128xf32> to vector<128xf32>
    %607 = vector.shape_cast %606 : vector<128xf32> to vector<128x1xf32>
    %cst_210 = arith.constant 1.280000e+02 : f32
    %608 = vector.broadcast %cst_210 : f32 to vector<128x1xf32>
    %609 = arith.divf %607, %608 : vector<128x1xf32>
    %610 = vector.broadcast %602 : vector<128x1xf32> to vector<128x128xf32>
    %611 = arith.subf %596, %610 : vector<128x128xf32>
    %cst_211 = arith.constant 9.99999974E-6 : f32
    %612 = vector.broadcast %cst_211 : f32 to vector<128x1xf32>
    %613 = arith.addf %609, %612 : vector<128x1xf32>
    %614 = math.rsqrt %613 : vector<128x1xf32>
    %615 = vector.broadcast %614 : vector<128x1xf32> to vector<128x128xf32>
    %616 = arith.mulf %611, %615 : vector<128x128xf32>
    %617 = vector.broadcast %597 : vector<1x128xf32> to vector<128x128xf32>
    %618 = arith.mulf %616, %617 : vector<128x128xf32>
    %619 = vector.broadcast %598 : vector<1x128xf32> to vector<128x128xf32>
    %620 = arith.addf %618, %619 : vector<128x128xf32>
    %621 = arith.truncf %620 : vector<128x128xf32> to vector<128x128xbf16>
    %c0_212 = arith.constant 0 : index
    %c0_213 = arith.constant 0 : index
    %622 = vector.load %arg9[%c0_212, %c0_213] : memref<128x256xbf16, #tpu.memory_space<vmem>>, vector<128x256xbf16>
    %cst_214 = arith.constant dense<0.000000e+00> : vector<128x256xf32>
    %623 = tpu.matmul %621, %622, %cst_214 {dimension_numbers = #tpu.dot_dimension_numbers<[1], [0], [0], [1], [0, 0, 1, 1], [], []>} : vector<128x128xbf16>, vector<128x256xbf16>, vector<128x256xf32> -> vector<128x256xf32>
    %c0_215 = arith.constant 0 : index
    %c0_216 = arith.constant 0 : index
    %624 = vector.load %arg10[%c0_215, %c0_216] : memref<1x256xf32, #tpu.memory_space<vmem>>, vector<1x256xf32>
    %625 = vector.broadcast %624 : vector<1x256xf32> to vector<128x256xf32>
    %626 = arith.addf %623, %625 : vector<128x256xf32>
    %627 = arith.mulf %626, %626 : vector<128x256xf32>
    %628 = arith.mulf %626, %627 : vector<128x256xf32>
    %cst_217 = arith.constant 4.471500e-02 : f32
    %629 = vector.broadcast %cst_217 : f32 to vector<128x256xf32>
    %630 = arith.mulf %629, %628 : vector<128x256xf32>
    %631 = arith.addf %626, %630 : vector<128x256xf32>
    %cst_218 = arith.constant 0.797884583 : f32
    %632 = vector.broadcast %cst_218 : f32 to vector<128x256xf32>
    %633 = arith.mulf %632, %631 : vector<128x256xf32>
    %634 = math.tanh %633 : vector<128x256xf32>
    %cst_219 = arith.constant 1.000000e+00 : f32
    %635 = vector.broadcast %cst_219 : f32 to vector<128x256xf32>
    %636 = arith.addf %635, %634 : vector<128x256xf32>
    %cst_220 = arith.constant 5.000000e-01 : f32
    %637 = vector.broadcast %cst_220 : f32 to vector<128x256xf32>
    %638 = arith.mulf %637, %636 : vector<128x256xf32>
    %639 = arith.mulf %626, %638 : vector<128x256xf32>
    %640 = arith.truncf %639 : vector<128x256xf32> to vector<128x256xbf16>
    %c0_221 = arith.constant 0 : index
    %c0_222 = arith.constant 0 : index
    %641 = vector.load %arg11[%c0_221, %c0_222] : memref<256x128xbf16, #tpu.memory_space<vmem>>, vector<256x128xbf16>
    %cst_223 = arith.constant dense<0.000000e+00> : vector<128x128xf32>
    %642 = tpu.matmul %640, %641, %cst_223 {dimension_numbers = #tpu.dot_dimension_numbers<[1], [0], [0], [1], [0, 0, 1, 1], [], []>} : vector<128x256xbf16>, vector<256x128xbf16>, vector<128x128xf32> -> vector<128x128xf32>
    %c0_224 = arith.constant 0 : index
    %c0_225 = arith.constant 0 : index
    %643 = vector.load %arg12[%c0_224, %c0_225] : memref<1x128xf32, #tpu.memory_space<vmem>>, vector<1x128xf32>
    %644 = vector.broadcast %643 : vector<1x128xf32> to vector<128x128xf32>
    %645 = arith.addf %642, %644 : vector<128x128xf32>
    %646 = arith.addf %620, %645 : vector<128x128xf32>
    %c0_226 = arith.constant 0 : index
    %c0_227 = arith.constant 0 : index
    %647 = vector.load %arg13[%c0_226, %c0_227] : memref<1x128xf32, #tpu.memory_space<vmem>>, vector<1x128xf32>
    %c0_228 = arith.constant 0 : index
    %c0_229 = arith.constant 0 : index
    %648 = vector.load %arg14[%c0_228, %c0_229] : memref<1x128xf32, #tpu.memory_space<vmem>>, vector<1x128xf32>
    %cst_230 = arith.constant dense<0.000000e+00> : vector<128xf32>
    %649 = vector.multi_reduction <add>, %646, %cst_230 [1] : vector<128x128xf32> to vector<128xf32>
    %650 = vector.shape_cast %649 : vector<128xf32> to vector<128x1xf32>
    %cst_231 = arith.constant 1.280000e+02 : f32
    %651 = vector.broadcast %cst_231 : f32 to vector<128x1xf32>
    %652 = arith.divf %650, %651 : vector<128x1xf32>
    %653 = vector.broadcast %652 : vector<128x1xf32> to vector<128x128xf32>
    %654 = arith.subf %646, %653 : vector<128x128xf32>
    %655 = arith.mulf %654, %654 : vector<128x128xf32>
    %cst_232 = arith.constant dense<0.000000e+00> : vector<128xf32>
    %656 = vector.multi_reduction <add>, %655, %cst_232 [1] : vector<128x128xf32> to vector<128xf32>
    %657 = vector.shape_cast %656 : vector<128xf32> to vector<128x1xf32>
    %cst_233 = arith.constant 1.280000e+02 : f32
    %658 = vector.broadcast %cst_233 : f32 to vector<128x1xf32>
    %659 = arith.divf %657, %658 : vector<128x1xf32>
    %660 = vector.broadcast %652 : vector<128x1xf32> to vector<128x128xf32>
    %661 = arith.subf %646, %660 : vector<128x128xf32>
    %cst_234 = arith.constant 9.99999974E-6 : f32
    %662 = vector.broadcast %cst_234 : f32 to vector<128x1xf32>
    %663 = arith.addf %659, %662 : vector<128x1xf32>
    %664 = math.rsqrt %663 : vector<128x1xf32>
    %665 = vector.broadcast %664 : vector<128x1xf32> to vector<128x128xf32>
    %666 = arith.mulf %661, %665 : vector<128x128xf32>
    %667 = vector.broadcast %647 : vector<1x128xf32> to vector<128x128xf32>
    %668 = arith.mulf %666, %667 : vector<128x128xf32>
    %669 = vector.broadcast %648 : vector<1x128xf32> to vector<128x128xf32>
    %670 = arith.addf %668, %669 : vector<128x128xf32>
    %671 = vector.shape_cast %670 : vector<128x128xf32> to vector<8x16x128xf32>
    %c0_235 = arith.constant 0 : index
    %c0_236 = arith.constant 0 : index
    %c0_237 = arith.constant 0 : index
    %672 = vector.load %arg15[%c0_235, %c0_236, %c0_237] : memref<8x16x128xf32, #tpu.memory_space<vmem>>, vector<8x16x128xf32>
    tpu.vector_store %arg15[%c0_235, %c0_236, %c0_237], %671 {strides = array<i32>} : memref<8x16x128xf32, #tpu.memory_space<vmem>>, vector<8x16x128xf32>,
    return
  }
  func.func @transform_0(%arg0: i32) -> (i32, i32, i32) {
    %c0_i32 = arith.constant 0 : i32
    %c0_i32_0 = arith.constant 0 : i32
    %c0_i32_1 = arith.constant 0 : i32
    return %arg0, %c0_i32, %c0_i32_0 : i32, i32, i32
  }
  func.func @transform_1(%arg0: i32) -> (i32, i32) {
    %c0_i32 = arith.constant 0 : i32
    %c0_i32_0 = arith.constant 0 : i32
    %c0_i32_1 = arith.constant 0 : i32
    return %c0_i32, %c0_i32_0 : i32, i32
  }
  func.func @transform_2(%arg0: i32) -> (i32, i32) {
    %c0_i32 = arith.constant 0 : i32
    %c0_i32_0 = arith.constant 0 : i32
    %c0_i32_1 = arith.constant 0 : i32
    return %c0_i32, %c0_i32_0 : i32, i32
  }
  func.func @transform_3(%arg0: i32) -> (i32, i32) {
    %c0_i32 = arith.constant 0 : i32
    %c0_i32_0 = arith.constant 0 : i32
    %c0_i32_1 = arith.constant 0 : i32
    return %c0_i32, %c0_i32_0 : i32, i32
  }
  func.func @transform_4(%arg0: i32) -> (i32, i32) {
    %c0_i32 = arith.constant 0 : i32
    %c0_i32_0 = arith.constant 0 : i32
    %c0_i32_1 = arith.constant 0 : i32
    return %c0_i32, %c0_i32_0 : i32, i32
  }
  func.func @transform_5(%arg0: i32) -> (i32, i32) {
    %c0_i32 = arith.constant 0 : i32
    %c0_i32_0 = arith.constant 0 : i32
    %c0_i32_1 = arith.constant 0 : i32
    return %c0_i32, %c0_i32_0 : i32, i32
  }
  func.func @transform_6(%arg0: i32) -> (i32, i32) {
    %c0_i32 = arith.constant 0 : i32
    %c0_i32_0 = arith.constant 0 : i32
    %c0_i32_1 = arith.constant 0 : i32
    return %c0_i32, %c0_i32_0 : i32, i32
  }
  func.func @transform_7(%arg0: i32) -> (i32, i32) {
    %c0_i32 = arith.constant 0 : i32
    %c0_i32_0 = arith.constant 0 : i32
    %c0_i32_1 = arith.constant 0 : i32
    return %c0_i32, %c0_i32_0 : i32, i32
  }
  func.func @transform_8(%arg0: i32) -> (i32, i32) {
    %c0_i32 = arith.constant 0 : i32
    %c0_i32_0 = arith.constant 0 : i32
    %c0_i32_1 = arith.constant 0 : i32
    return %c0_i32, %c0_i32_0 : i32, i32
  }
  func.func @transform_9(%arg0: i32) -> (i32, i32) {
    %c0_i32 = arith.constant 0 : i32
    %c0_i32_0 = arith.constant 0 : i32
    %c0_i32_1 = arith.constant 0 : i32
    return %c0_i32, %c0_i32_0 : i32, i32
  }
  func.func @transform_10(%arg0: i32) -> (i32, i32) {
    %c0_i32 = arith.constant 0 : i32
    %c0_i32_0 = arith.constant 0 : i32
    %c0_i32_1 = arith.constant 0 : i32
    return %c0_i32, %c0_i32_0 : i32, i32
  }
  func.func @transform_11(%arg0: i32) -> (i32, i32) {
    %c0_i32 = arith.constant 0 : i32
    %c0_i32_0 = arith.constant 0 : i32
    %c0_i32_1 = arith.constant 0 : i32
    return %c0_i32, %c0_i32_0 : i32, i32
  }
  func.func @transform_12(%arg0: i32) -> (i32, i32) {
    %c0_i32 = arith.constant 0 : i32
    %c0_i32_0 = arith.constant 0 : i32
    %c0_i32_1 = arith.constant 0 : i32
    return %c0_i32, %c0_i32_0 : i32, i32
  }
  func.func @transform_13(%arg0: i32) -> (i32, i32) {
    %c0_i32 = arith.constant 0 : i32
    %c0_i32_0 = arith.constant 0 : i32
    %c0_i32_1 = arith.constant 0 : i32
    return %c0_i32, %c0_i32_0 : i32, i32
  }
  func.func @transform_14(%arg0: i32) -> (i32, i32, i32) {
    %c0_i32 = arith.constant 0 : i32
    %c0_i32_0 = arith.constant 0 : i32
    %c0_i32_1 = arith.constant 0 : i32
    return %arg0, %c0_i32, %c0_i32_0 : i32, i32, i32
  }
}

</mosaic_0001>

<llo_original>
// kernel: tpu_custom_call.1
$region0: #{tpu_custom_call.1}
  #allocation0 [shape = 'u32[]', space=smem, size = 0x4, offset = 0x4, fixed_abs, tag = 'smem constant byte address 0x4 - core index']
  #allocation1 [shape = 'u32[144,128]{1,0:T(1,128)}', space=vmem, size = 0x12000, scoped, tag = 'internal scratch']
  #allocation2 [shape = 'bf16[128,128]{1,0:T(16,128)(2,1)}', space=vmem, size = 0x8000, scoped, tag = 'scratch operand']
  %s0 = inlined_call_operand.hbm [shape: f32[16,16,128], index: 0, kind: input, shape index: {}]
  %s1 = inlined_call_operand.hbm [shape: bf16[128,128], index: 1, kind: input, shape index: {}]
  %s2 = inlined_call_operand.hbm [shape: bf16[128,128], index: 2, kind: input, shape index: {}]
  %s3 = inlined_call_operand.hbm [shape: bf16[128,128], index: 3, kind: input, shape index: {}]
  %s4 = inlined_call_operand.hbm [shape: bf16[128,128], index: 4, kind: input, shape index: {}]
  %s5 = inlined_call_operand.hbm [shape: f32[1,128], index: 5, kind: input, shape index: {}]
  %s6 = inlined_call_operand.hbm [shape: f32[1,128], index: 6, kind: input, shape index: {}]
  %s7 = inlined_call_operand.hbm [shape: f32[1,128], index: 7, kind: input, shape index: {}]
  %s8 = inlined_call_operand.hbm [shape: bf16[128,256], index: 8, kind: input, shape index: {}]
  %s9 = inlined_call_operand.hbm [shape: f32[1,256], index: 9, kind: input, shape index: {}]
  %s10 = inlined_call_operand.hbm [shape: bf16[256,128], index: 10, kind: input, shape index: {}]
  %s11 = inlined_call_operand.hbm [shape: f32[1,128], index: 11, kind: input, shape index: {}]
  %s12 = inlined_call_operand.hbm [shape: f32[1,128], index: 12, kind: input, shape index: {}]
  %s13 = inlined_call_operand.hbm [shape: f32[1,128], index: 13, kind: input, shape index: {}]
  %s14 = inlined_call_operand.hbm [shape: f32[16,16,128], index: 14, kind: output, shape index: {}]
  %s15 = sld [smem:[#allocation0]]
  $region145: #{tpu_custom_call.1} parent=0
    _
  %s17 = ssub.s32 1, %s15
  %s18 = scalar_select 0, %s17, %s15
  $region1: #{tpu_custom_call.1} parent=0
    #allocation3 [shape = 'u8[131072]{0}', space=vmem, size = 0x20000, scoped, tag = 'input window, operand 0']
    #allocation4 [shape = 's32[2]{0}', space=sflag, size = 0x8, scoped, tag = 'scoped memory for tpu_custom_call.1']
    #allocation5 [shape = 's32[2]{0}', space=sflag, size = 0x8, scoped, tag = 'scoped memory for tpu_custom_call.1']
    #allocation6 [shape = 'u8[32768]{0}', space=vmem, size = 0x8000, scoped, tag = 'input window, operand 1, single buffered']
    #allocation7 [shape = 's32[1]{0}', space=sflag, size = 0x4, scoped, tag = 'scoped memory for tpu_custom_call.1']
    #allocation8 [shape = 'u8[32768]{0}', space=vmem, size = 0x8000, scoped, tag = 'input window, operand 2, single buffered']
    #allocation9 [shape = 'u8[32768]{0}', space=vmem, size = 0x8000, scoped, tag = 'input window, operand 3, single buffered']
    #allocation10 [shape = 's32[1]{0}', space=sflag, size = 0x4, scoped, tag = 'scoped memory for tpu_custom_call.1']
    #allocation11 [shape = 'u8[32768]{0}', space=vmem, size = 0x8000, scoped, tag = 'input window, operand 4, single buffered']
    #allocation12 [shape = 'u8[512]{0}', space=vmem, size = 0x400, scoped, tag = 'input window, operand 5, single buffered']
    #allocation13 [shape = 's32[1]{0}', space=sflag, size = 0x4, scoped, tag = 'scoped memory for tpu_custom_call.1']
    #allocation14 [shape = 'u8[512]{0}', space=vmem, size = 0x400, scoped, tag = 'input window, operand 6, single buffered']
    #allocation15 [shape = 'u8[512]{0}', space=vmem, size = 0x400, scoped, tag = 'input window, operand 7, single buffered']
    #allocation16 [shape = 's32[1]{0}', space=sflag, size = 0x4, scoped, tag = 'scoped memory for tpu_custom_call.1']
    #allocation17 [shape = 'u8[65536]{0}', space=vmem, size = 0x10000, scoped, tag = 'input window, operand 8, single buffered']
    #allocation18 [shape = 'u8[1024]{0}', space=vmem, size = 0x400, scoped, tag = 'input window, operand 9, single buffered']
    #allocation19 [shape = 's32[1]{0}', space=sflag, size = 0x4, scoped, tag = 'scoped memory for tpu_custom_call.1']
    #allocation20 [shape = 'u8[65536]{0}', space=vmem, size = 0x10000, scoped, tag = 'input window, operand 10, single buffered']
    #allocation21 [shape = 'u8[512]{0}', space=vmem, size = 0x400, scoped, tag = 'input window, operand 11, single buffered']
    #allocation22 [shape = 's32[1]{0}', space=sflag, size = 0x4, scoped, tag = 'scoped memory for tpu_custom_call.1']
    #allocation23 [shape = 'u8[512]{0}', space=vmem, size = 0x400, scoped, tag = 'input window, operand 12, single buffered']
    #allocation24 [shape = 'u8[512]{0}', space=vmem, size = 0x400, scoped, tag = 'input window, operand 13, single buffered']
    #allocation25 [shape = 's32[1]{0}', space=sflag, size = 0x4, scoped, tag = 'scoped memory for tpu_custom_call.1']
    #allocation26 [shape = 'u8[131072]{0}', space=vmem, size = 0x20000, scoped, tag = 'output window, operand 0']
    %19 = vsyncpa [#allocation4], 0
    %s20 = scalar_lea.sflag [#allocation4], 1
    %21 = vsyncpa %s20, 0
    %22 = vsyncpa [#allocation7], 0
    %23 = vsyncpa [#allocation10], 0
    %24 = vsyncpa [#allocation13], 0
    %25 = vsyncpa [#allocation16], 0
    %26 = vsyncpa [#allocation19], 0
    %27 = vsyncpa [#allocation22], 0
    %28 = vsyncpa [#allocation25], 0
    %29 = vsyncpa [#allocation5], 0
    %s30 = scalar_lea.sflag [#allocation5], 1
    %31 = vsyncpa %s30, 0
    loop: start=0, step=1, limit=4
    $region2: #{tpu_custom_call.1} parent=1 // loop_pre_header
      _
    $region3: #{tpu_custom_call.1} parent=1 // loop_header
      %s33 = sphi 0, %s37
      %p34 = scmp.ge.s32.totalorder %s33, 4
      %s43 = sphi 0, %s45
      %s46 = sphi 0, %s43
      %s47 = sphi 0, %s46
      %s63 = sphi 0, %s47
      %s67 = sphi 0, %s67
      %s69 = sphi 0, %s67
      %s70 = sphi 0, %s69
      %s84 = sphi 0, %s70
      %s88 = sphi 0, %s88
      %s90 = sphi 0, %s88
      %s91 = sphi 0, %s90
      %s105 = sphi 0, %s91
      %s109 = sphi 0, %s109
      %s111 = sphi 0, %s109
      %s112 = sphi 0, %s111
      %s126 = sphi 0, %s112
      %s130 = sphi 0, %s130
      %s132 = sphi 0, %s130
      %s133 = sphi 0, %s132
      %s147 = sphi 0, %s133
      %s151 = sphi 0, %s151
      %s153 = sphi 0, %s151
      %s154 = sphi 0, %s153
      %s168 = sphi 0, %s154
      %s172 = sphi 0, %s172
      %s174 = sphi 0, %s172
      %s175 = sphi 0, %s174
      %s189 = sphi 0, %s175
      %s193 = sphi 0, %s193
      %s195 = sphi 0, %s193
      %s196 = sphi 0, %s195
      %s210 = sphi 0, %s196
      %s214 = sphi 0, %s214
      %s216 = sphi 0, %s214
      %s217 = sphi 0, %s216
      %s231 = sphi 0, %s217
      %s235 = sphi 0, %s235
      %s237 = sphi 0, %s235
      %s238 = sphi 0, %s237
      %s252 = sphi 0, %s238
      %s256 = sphi 0, %s256
      %s258 = sphi 0, %s256
      %s259 = sphi 0, %s258
      %s273 = sphi 0, %s259
      %s277 = sphi 0, %s277
      %s279 = sphi 0, %s277
      %s280 = sphi 0, %s279
      %s294 = sphi 0, %s280
      %s298 = sphi 0, %s298
      %s300 = sphi 0, %s298
      %s301 = sphi 0, %s300
      %s315 = sphi 0, %s301
      %s319 = sphi 0, %s319
      %s321 = sphi 0, %s319
      %s322 = sphi 0, %s321
      %s336 = sphi 0, %s322
      %s342 = sphi 0, %s344
      %s345 = sphi 0, %s342
      %s346 = sphi 0, %s345
      %s362 = sphi 0, %s346
    $region4: #{tpu_custom_call.1} parent=1 // loop_header_branch
      %36 = sbr.rel (%p34) target = $region8
    $region5: #{tpu_custom_call.1} parent=1 // loop_body
      %s38 = ssub.s32 %s33, 1
      %s39 = ssub.s32 %s33, 2
      %s40 = sadd.s32 %s33, 1
      %s41 = ssub.s32 %s33, %s40
      %p42 = scmp.eq.s32.totalorder %s41, 0
      %s44 = sadd.s32 %s43, 1
      %s45 = scalar_select %p42, %s43, %s44
      %p48 = pneg %p42
      %p49 = scmp.eq.s32.totalorder %s33, 1
      %p50 = por %p48, %p49
      %p51 = scmp.ne.s32.totalorder %s43, %s46
      %p52 = scmp.eq.s32.totalorder %s33, 0
      %p53 = por %p51, %p52
      %p54 = scmp.ne.s32.totalorder %s43, %s46
      %p55 = scmp.eq.s32.totalorder %s38, 1
      %p56 = por %p54, %p55
      %p57 = scmp.ne.s32.totalorder %s46, %s47
      %p58 = scmp.eq.s32.totalorder %s38, 0
      %p59 = por %p57, %p58
      %p60 = scmp.ne.s32.totalorder %s46, %s47
      %p61 = scmp.eq.s32.totalorder %s39, 1
      %p62 = por %p60, %p61
      %p64 = scmp.ne.s32.totalorder %s47, %s63
      %p65 = scmp.eq.s32.totalorder %s39, 0
      %p66 = por %p64, %p65
      %s68 = sadd.s32 %s67, 1
      %p71 = scmp.eq.s32.totalorder %s33, 1
      %p72 = scmp.ne.s32.totalorder %s67, %s69
      %p73 = scmp.eq.s32.totalorder %s33, 0
      %p74 = por %p72, %p73
      %p75 = scmp.ne.s32.totalorder %s67, %s69
      %p76 = scmp.eq.s32.totalorder %s38, 1
      %p77 = por %p75, %p76
      %p78 = scmp.ne.s32.totalorder %s69, %s70
      %p79 = scmp.eq.s32.totalorder %s38, 0
      %p80 = por %p78, %p79
      %p81 = scmp.ne.s32.totalorder %s69, %s70
      %p82 = scmp.eq.s32.totalorder %s39, 1
      %p83 = por %p81, %p82
      %p85 = scmp.ne.s32.totalorder %s70, %s84
      %p86 = scmp.eq.s32.totalorder %s39, 0
      %p87 = por %p85, %p86
      %s89 = sadd.s32 %s88, 1
      %p92 = scmp.eq.s32.totalorder %s33, 1
      %p93 = scmp.ne.s32.totalorder %s88, %s90
      %p94 = scmp.eq.s32.totalorder %s33, 0
      %p95 = por %p93, %p94
      %p96 = scmp.ne.s32.totalorder %s88, %s90
      %p97 = scmp.eq.s32.totalorder %s38, 1
      %p98 = por %p96, %p97
      %p99 = scmp.ne.s32.totalorder %s90, %s91
      %p100 = scmp.eq.s32.totalorder %s38, 0
      %p101 = por %p99, %p100
      %p102 = scmp.ne.s32.totalorder %s90, %s91
      %p103 = scmp.eq.s32.totalorder %s39, 1
      %p104 = por %p102, %p103
      %p106 = scmp.ne.s32.totalorder %s91, %s105
      %p107 = scmp.eq.s32.totalorder %s39, 0
      %p108 = por %p106, %p107
      %s110 = sadd.s32 %s109, 1
      %p113 = scmp.eq.s32.totalorder %s33, 1
      %p114 = scmp.ne.s32.totalorder %s109, %s111
      %p115 = scmp.eq.s32.totalorder %s33, 0
      %p116 = por %p114, %p115
      %p117 = scmp.ne.s32.totalorder %s109, %s111
      %p118 = scmp.eq.s32.totalorder %s38, 1
      %p119 = por %p117, %p118
      %p120 = scmp.ne.s32.totalorder %s111, %s112
      %p121 = scmp.eq.s32.totalorder %s38, 0
      %p122 = por %p120, %p121
      %p123 = scmp.ne.s32.totalorder %s111, %s112
      %p124 = scmp.eq.s32.totalorder %s39, 1
      %p125 = por %p123, %p124
      %p127 = scmp.ne.s32.totalorder %s112, %s126
      %p128 = scmp.eq.s32.totalorder %s39, 0
      %p129 = por %p127, %p128
      %s131 = sadd.s32 %s130, 1
      %p134 = scmp.eq.s32.totalorder %s33, 1
      %p135 = scmp.ne.s32.totalorder %s130, %s132
      %p136 = scmp.eq.s32.totalorder %s33, 0
      %p137 = por %p135, %p136
      %p138 = scmp.ne.s32.totalorder %s130, %s132
      %p139 = scmp.eq.s32.totalorder %s38, 1
      %p140 = por %p138, %p139
      %p141 = scmp.ne.s32.totalorder %s132, %s133
      %p142 = scmp.eq.s32.totalorder %s38, 0
      %p143 = por %p141, %p142
      %p144 = scmp.ne.s32.totalorder %s132, %s133
      %p145 = scmp.eq.s32.totalorder %s39, 1
      %p146 = por %p144, %p145
      %p148 = scmp.ne.s32.totalorder %s133, %s147
      %p149 = scmp.eq.s32.totalorder %s39, 0
      %p150 = por %p148, %p149
      %s152 = sadd.s32 %s151, 1
      %p155 = scmp.eq.s32.totalorder %s33, 1
      %p156 = scmp.ne.s32.totalorder %s151, %s153
      %p157 = scmp.eq.s32.totalorder %s33, 0
      %p158 = por %p156, %p157
      %p159 = scmp.ne.s32.totalorder %s151, %s153
      %p160 = scmp.eq.s32.totalorder %s38, 1
      %p161 = por %p159, %p160
      %p162 = scmp.ne.s32.totalorder %s153, %s154
      %p163 = scmp.eq.s32.totalorder %s38, 0
      %p164 = por %p162, %p163
      %p165 = scmp.ne.s32.totalorder %s153, %s154
      %p166 = scmp.eq.s32.totalorder %s39, 1
      %p167 = por %p165, %p166
      %p169 = scmp.ne.s32.totalorder %s154, %s168
      %p170 = scmp.eq.s32.totalorder %s39, 0
      %p171 = por %p169, %p170
      %s173 = sadd.s32 %s172, 1
      %p176 = scmp.eq.s32.totalorder %s33, 1
      %p177 = scmp.ne.s32.totalorder %s172, %s174
      %p178 = scmp.eq.s32.totalorder %s33, 0
      %p179 = por %p177, %p178
      %p180 = scmp.ne.s32.totalorder %s172, %s174
      %p181 = scmp.eq.s32.totalorder %s38, 1
      %p182 = por %p180, %p181
      %p183 = scmp.ne.s32.totalorder %s174, %s175
      %p184 = scmp.eq.s32.totalorder %s38, 0
      %p185 = por %p183, %p184
      %p186 = scmp.ne.s32.totalorder %s174, %s175
      %p187 = scmp.eq.s32.totalorder %s39, 1
      %p188 = por %p186, %p187
      %p190 = scmp.ne.s32.totalorder %s175, %s189
      %p191 = scmp.eq.s32.totalorder %s39, 0
      %p192 = por %p190, %p191
      %s194 = sadd.s32 %s193, 1
      %p197 = scmp.eq.s32.totalorder %s33, 1
      %p198 = scmp.ne.s32.totalorder %s193, %s195
      %p199 = scmp.eq.s32.totalorder %s33, 0
      %p200 = por %p198, %p199
      %p201 = scmp.ne.s32.totalorder %s193, %s195
      %p202 = scmp.eq.s32.totalorder %s38, 1
      %p203 = por %p201, %p202
      %p204 = scmp.ne.s32.totalorder %s195, %s196
      %p205 = scmp.eq.s32.totalorder %s38, 0
      %p206 = por %p204, %p205
      %p207 = scmp.ne.s32.totalorder %s195, %s196
      %p208 = scmp.eq.s32.totalorder %s39, 1
      %p209 = por %p207, %p208
      %p211 = scmp.ne.s32.totalorder %s196, %s210
      %p212 = scmp.eq.s32.totalorder %s39, 0
      %p213 = por %p211, %p212
      %s215 = sadd.s32 %s214, 1
      %p218 = scmp.eq.s32.totalorder %s33, 1
      %p219 = scmp.ne.s32.totalorder %s214, %s216
      %p220 = scmp.eq.s32.totalorder %s33, 0
      %p221 = por %p219, %p220
      %p222 = scmp.ne.s32.totalorder %s214, %s216
      %p223 = scmp.eq.s32.totalorder %s38, 1
      %p224 = por %p222, %p223
      %p225 = scmp.ne.s32.totalorder %s216, %s217
      %p226 = scmp.eq.s32.totalorder %s38, 0
      %p227 = por %p225, %p226
      %p228 = scmp.ne.s32.totalorder %s216, %s217
      %p229 = scmp.eq.s32.totalorder %s39, 1
      %p230 = por %p228, %p229
      %p232 = scmp.ne.s32.totalorder %s217, %s231
      %p233 = scmp.eq.s32.totalorder %s39, 0
      %p234 = por %p232, %p233
      %s236 = sadd.s32 %s235, 1
      %p239 = scmp.eq.s32.totalorder %s33, 1
      %p240 = scmp.ne.s32.totalorder %s235, %s237
      %p241 = scmp.eq.s32.totalorder %s33, 0
      %p242 = por %p240, %p241
      %p243 = scmp.ne.s32.totalorder %s235, %s237
      %p244 = scmp.eq.s32.totalorder %s38, 1
      %p245 = por %p243, %p244
      %p246 = scmp.ne.s32.totalorder %s237, %s238
      %p247 = scmp.eq.s32.totalorder %s38, 0
      %p248 = por %p246, %p247
      %p249 = scmp.ne.s32.totalorder %s237, %s238
      %p250 = scmp.eq.s32.totalorder %s39, 1
      %p251 = por %p249, %p250
      %p253 = scmp.ne.s32.totalorder %s238, %s252
      %p254 = scmp.eq.s32.totalorder %s39, 0
      %p255 = por %p253, %p254
      %s257 = sadd.s32 %s256, 1
      %p260 = scmp.eq.s32.totalorder %s33, 1
      %p261 = scmp.ne.s32.totalorder %s256, %s258
      %p262 = scmp.eq.s32.totalorder %s33, 0
      %p263 = por %p261, %p262
      %p264 = scmp.ne.s32.totalorder %s256, %s258
      %p265 = scmp.eq.s32.totalorder %s38, 1
      %p266 = por %p264, %p265
      %p267 = scmp.ne.s32.totalorder %s258, %s259
      %p268 = scmp.eq.s32.totalorder %s38, 0
      %p269 = por %p267, %p268
      %p270 = scmp.ne.s32.totalorder %s258, %s259
      %p271 = scmp.eq.s32.totalorder %s39, 1
      %p272 = por %p270, %p271
      %p274 = scmp.ne.s32.totalorder %s259, %s273
      %p275 = scmp.eq.s32.totalorder %s39, 0
      %p276 = por %p274, %p275
      %s278 = sadd.s32 %s277, 1
      %p281 = scmp.eq.s32.totalorder %s33, 1
      %p282 = scmp.ne.s32.totalorder %s277, %s279
      %p283 = scmp.eq.s32.totalorder %s33, 0
      %p284 = por %p282, %p283
      %p285 = scmp.ne.s32.totalorder %s277, %s279
      %p286 = scmp.eq.s32.totalorder %s38, 1
      %p287 = por %p285, %p286
      %p288 = scmp.ne.s32.totalorder %s279, %s280
      %p289 = scmp.eq.s32.totalorder %s38, 0
      %p290 = por %p288, %p289
      %p291 = scmp.ne.s32.totalorder %s279, %s280
      %p292 = scmp.eq.s32.totalorder %s39, 1
      %p293 = por %p291, %p292
      %p295 = scmp.ne.s32.totalorder %s280, %s294
      %p296 = scmp.eq.s32.totalorder %s39, 0
      %p297 = por %p295, %p296
      %s299 = sadd.s32 %s298, 1
      %p302 = scmp.eq.s32.totalorder %s33, 1
      %p303 = scmp.ne.s32.totalorder %s298, %s300
      %p304 = scmp.eq.s32.totalorder %s33, 0
      %p305 = por %p303, %p304
      %p306 = scmp.ne.s32.totalorder %s298, %s300
      %p307 = scmp.eq.s32.totalorder %s38, 1
      %p308 = por %p306, %p307
      %p309 = scmp.ne.s32.totalorder %s300, %s301
      %p310 = scmp.eq.s32.totalorder %s38, 0
      %p311 = por %p309, %p310
      %p312 = scmp.ne.s32.totalorder %s300, %s301
      %p313 = scmp.eq.s32.totalorder %s39, 1
      %p314 = por %p312, %p313
      %p316 = scmp.ne.s32.totalorder %s301, %s315
      %p317 = scmp.eq.s32.totalorder %s39, 0
      %p318 = por %p316, %p317
      %s320 = sadd.s32 %s319, 1
      %p323 = scmp.eq.s32.totalorder %s33, 1
      %p324 = scmp.ne.s32.totalorder %s319, %s321
      %p325 = scmp.eq.s32.totalorder %s33, 0
      %p326 = por %p324, %p325
      %p327 = scmp.ne.s32.totalorder %s319, %s321
      %p328 = scmp.eq.s32.totalorder %s38, 1
      %p329 = por %p327, %p328
      %p330 = scmp.ne.s32.totalorder %s321, %s322
      %p331 = scmp.eq.s32.totalorder %s38, 0
      %p332 = por %p330, %p331
      %p333 = scmp.ne.s32.totalorder %s321, %s322
      %p334 = scmp.eq.s32.totalorder %s39, 1
      %p335 = por %p333, %p334
      %p337 = scmp.ne.s32.totalorder %s322, %s336
      %p338 = scmp.eq.s32.totalorder %s39, 0
      %p339 = por %p337, %p338
      %s340 = ssub.s32 %s33, %s40
      %p341 = scmp.eq.s32.totalorder %s340, 0
      %s343 = sadd.s32 %s342, 1
      %s344 = scalar_select %p341, %s342, %s343
      %p347 = pneg %p341
      %p348 = scmp.eq.s32.totalorder %s33, 1
      %p349 = por %p347, %p348
      %p350 = scmp.ne.s32.totalorder %s342, %s345
      %p351 = scmp.eq.s32.totalorder %s33, 0
      %p352 = por %p350, %p351
      %p353 = scmp.ne.s32.totalorder %s342, %s345
      %p354 = scmp.eq.s32.totalorder %s38, 1
      %p355 = por %p353, %p354
      %p356 = scmp.ne.s32.totalorder %s345, %s346
      %p357 = scmp.eq.s32.totalorder %s38, 0
      %p358 = por %p356, %p357
      %p359 = scmp.ne.s32.totalorder %s345, %s346
      %p360 = scmp.eq.s32.totalorder %s39, 1
      %p361 = por %p359, %p360
      %p363 = scmp.ne.s32.totalorder %s346, %s362
      %p364 = scmp.eq.s32.totalorder %s39, 0
      %p365 = por %p363, %p364
      %p366 = scmp.le.s32.totalorder 1, %s33
      %p367 = scmp.lt.s32.totalorder %s33, 3
      %p368 = pnand %p366, %p367
      %p369 = pneg %p368
      // Predicated region
      $region9: #{tpu_custom_call.1} parent=5 // pred_check
        _
      $region10: #{tpu_custom_call.1} parent=5 // pred_check_branch
        %371 = sbr.rel (%p368) target = $region12
      $region11: #{tpu_custom_call.1} parent=5 // pred_region
        %s372 = ssub.s32 %s33, 1
        // Predicated region
        $region13: #{tpu_custom_call.1} parent=11 // pred_check
          %p373 = pneg %p80
        $region14: #{tpu_custom_call.1} parent=11 // pred_check_branch
          %375 = sbr.rel (%p373) target = $region16
        $region15: #{tpu_custom_call.1} parent=11 // pred_region
          %s377 = ssub.s32 1024, 1024
          %378 = vsyncadd [#allocation7], %s377
          %s379 = sshll.u32 [#allocation6], 4
          %s380 = int_to_ptr.vmem [resolvable:$true] %s379
          %385 = dma.hbm_to_vmem [thread:$0]  %s1, 1024, %s380, [#allocation7], 64, 64, 4
        $region16: #{tpu_custom_call.1} parent=11 // pred_fallthru
          _
        // Predicated region
        $region17: #{tpu_custom_call.1} parent=11 // pred_check
          %p386 = pneg %p101
        $region18: #{tpu_custom_call.1} parent=11 // pred_check_branch
          %388 = sbr.rel (%p386) target = $region20
        $region19: #{tpu_custom_call.1} parent=11 // pred_region
          %s390 = ssub.s32 1024, 1024
          %391 = vsyncadd [#allocation7], %s390
          %s392 = sshll.u32 [#allocation8], 4
          %s393 = int_to_ptr.vmem [resolvable:$true] %s392
          %398 = dma.hbm_to_vmem [thread:$0]  %s2, 1024, %s393, [#allocation7], 64, 64, 4
        $region20: #{tpu_custom_call.1} parent=11 // pred_fallthru
          _
        // Predicated region
        $region21: #{tpu_custom_call.1} parent=11 // pred_check
          %p399 = pneg %p122
        $region22: #{tpu_custom_call.1} parent=11 // pred_check_branch
          %401 = sbr.rel (%p399) target = $region24
        $region23: #{tpu_custom_call.1} parent=11 // pred_region
          %s403 = ssub.s32 1024, 1024
          %404 = vsyncadd [#allocation10], %s403
          %s405 = sshll.u32 [#allocation9], 4
          %s406 = int_to_ptr.vmem [resolvable:$true] %s405
          %411 = dma.hbm_to_vmem [thread:$0]  %s3, 1024, %s406, [#allocation10], 64, 64, 4
        $region24: #{tpu_custom_call.1} parent=11 // pred_fallthru
          _
        // Predicated region
        $region25: #{tpu_custom_call.1} parent=11 // pred_check
          %p412 = pneg %p143
        $region26: #{tpu_custom_call.1} parent=11 // pred_check_branch
          %414 = sbr.rel (%p412) target = $region28
        $region27: #{tpu_custom_call.1} parent=11 // pred_region
          %s416 = ssub.s32 1024, 1024
          %417 = vsyncadd [#allocation10], %s416
          %s418 = sshll.u32 [#allocation11], 4
          %s419 = int_to_ptr.vmem [resolvable:$true] %s418
          %424 = dma.hbm_to_vmem [thread:$0]  %s4, 1024, %s419, [#allocation10], 64, 64, 4
        $region28: #{tpu_custom_call.1} parent=11 // pred_fallthru
          _
        // Predicated region
        $region29: #{tpu_custom_call.1} parent=11 // pred_check
          %p425 = pneg %p164
        $region30: #{tpu_custom_call.1} parent=11 // pred_check_branch
          %427 = sbr.rel (%p425) target = $region32
        $region31: #{tpu_custom_call.1} parent=11 // pred_region
          %s429 = ssub.s32 16, 16
          %430 = vsyncadd [#allocation13], %s429
          %s432 = sshll.u32 [#allocation12], 4
          %s433 = int_to_ptr.vmem [resolvable:$true] %s432
          %435 = dma.hbm_to_vmem [thread:$0]  %s5, 16, %s433, [#allocation13]
        $region32: #{tpu_custom_call.1} parent=11 // pred_fallthru
          _
        // Predicated region
        $region33: #{tpu_custom_call.1} parent=11 // pred_check
          %p436 = pneg %p185
        $region34: #{tpu_custom_call.1} parent=11 // pred_check_branch
          %438 = sbr.rel (%p436) target = $region36
        $region35: #{tpu_custom_call.1} parent=11 // pred_region
          %s440 = ssub.s32 16, 16
          %441 = vsyncadd [#allocation13], %s440
          %s443 = sshll.u32 [#allocation14], 4
          %s444 = int_to_ptr.vmem [resolvable:$true] %s443
          %446 = dma.hbm_to_vmem [thread:$0]  %s6, 16, %s444, [#allocation13]
        $region36: #{tpu_custom_call.1} parent=11 // pred_fallthru
          _
        // Predicated region
        $region37: #{tpu_custom_call.1} parent=11 // pred_check
          %p447 = pneg %p206
        $region38: #{tpu_custom_call.1} parent=11 // pred_check_branch
          %449 = sbr.rel (%p447) target = $region40
        $region39: #{tpu_custom_call.1} parent=11 // pred_region
          %s451 = ssub.s32 16, 16
          %452 = vsyncadd [#allocation16], %s451
          %s454 = sshll.u32 [#allocation15], 4
          %s455 = int_to_ptr.vmem [resolvable:$true] %s454
          %457 = dma.hbm_to_vmem [thread:$0]  %s7, 16, %s455, [#allocation16]
        $region40: #{tpu_custom_call.1} parent=11 // pred_fallthru
          _
        // Predicated region
        $region41: #{tpu_custom_call.1} parent=11 // pred_check
          %p458 = pneg %p227
        $region42: #{tpu_custom_call.1} parent=11 // pred_check_branch
          %460 = sbr.rel (%p458) target = $region44
        $region43: #{tpu_custom_call.1} parent=11 // pred_region
          %s462 = ssub.s32 2048, 2048
          %463 = vsyncadd [#allocation16], %s462
          %s464 = sshll.u32 [#allocation17], 4
          %s465 = int_to_ptr.vmem [resolvable:$true] %s464
          %470 = dma.hbm_to_vmem [thread:$0]  %s8, 2048, %s465, [#allocation16], 128, 128, 8
        $region44: #{tpu_custom_call.1} parent=11 // pred_fallthru
          _
        // Predicated region
        $region45: #{tpu_custom_call.1} parent=11 // pred_check
          %p471 = pneg %p248
        $region46: #{tpu_custom_call.1} parent=11 // pred_check_branch
          %473 = sbr.rel (%p471) target = $region48
        $region47: #{tpu_custom_call.1} parent=11 // pred_region
          %s475 = ssub.s32 32, 32
          %476 = vsyncadd [#allocation19], %s475
          %s478 = sshll.u32 [#allocation18], 4
          %s479 = int_to_ptr.vmem [resolvable:$true] %s478
          %481 = dma.hbm_to_vmem [thread:$0]  %s9, 32, %s479, [#allocation19]
        $region48: #{tpu_custom_call.1} parent=11 // pred_fallthru
          _
        // Predicated region
        $region49: #{tpu_custom_call.1} parent=11 // pred_check
          %p482 = pneg %p269
        $region50: #{tpu_custom_call.1} parent=11 // pred_check_branch
          %484 = sbr.rel (%p482) target = $region52
        $region51: #{tpu_custom_call.1} parent=11 // pred_region
          %s486 = ssub.s32 2048, 2048
          %487 = vsyncadd [#allocation19], %s486
          %s488 = sshll.u32 [#allocation20], 4
          %s489 = int_to_ptr.vmem [resolvable:$true] %s488
          %494 = dma.hbm_to_vmem [thread:$0]  %s10, 2048, %s489, [#allocation19], 64, 64, 4
        $region52: #{tpu_custom_call.1} parent=11 // pred_fallthru
          _
        // Predicated region
        $region53: #{tpu_custom_call.1} parent=11 // pred_check
          %p495 = pneg %p290
        $region54: #{tpu_custom_call.1} parent=11 // pred_check_branch
          %497 = sbr.rel (%p495) target = $region56
        $region55: #{tpu_custom_call.1} parent=11 // pred_region
          %s499 = ssub.s32 16, 16
          %500 = vsyncadd [#allocation22], %s499
          %s502 = sshll.u32 [#allocation21], 4
          %s503 = int_to_ptr.vmem [resolvable:$true] %s502
          %505 = dma.hbm_to_vmem [thread:$0]  %s11, 16, %s503, [#allocation22]
        $region56: #{tpu_custom_call.1} parent=11 // pred_fallthru
          _
        // Predicated region
        $region57: #{tpu_custom_call.1} parent=11 // pred_check
          %p506 = pneg %p311
        $region58: #{tpu_custom_call.1} parent=11 // pred_check_branch
          %508 = sbr.rel (%p506) target = $region60
        $region59: #{tpu_custom_call.1} parent=11 // pred_region
          %s510 = ssub.s32 16, 16
          %511 = vsyncadd [#allocation22], %s510
          %s513 = sshll.u32 [#allocation23], 4
          %s514 = int_to_ptr.vmem [resolvable:$true] %s513
          %516 = dma.hbm_to_vmem [thread:$0]  %s12, 16, %s514, [#allocation22]
        $region60: #{tpu_custom_call.1} parent=11 // pred_fallthru
          _
        // Predicated region
        $region61: #{tpu_custom_call.1} parent=11 // pred_check
          %p517 = pneg %p332
        $region62: #{tpu_custom_call.1} parent=11 // pred_check_branch
          %519 = sbr.rel (%p517) target = $region64
        $region63: #{tpu_custom_call.1} parent=11 // pred_region
          %s521 = ssub.s32 16, 16
          %522 = vsyncadd [#allocation25], %s521
          %s524 = sshll.u32 [#allocation24], 4
          %s525 = int_to_ptr.vmem [resolvable:$true] %s524
          %527 = dma.hbm_to_vmem [thread:$0]  %s13, 16, %s525, [#allocation25]
        $region64: #{tpu_custom_call.1} parent=11 // pred_fallthru
          _
      $region12: #{tpu_custom_call.1} parent=5 // pred_fallthru
        _
      %p528 = scmp.lt.s32.totalorder %s33, 2
      // Predicated region
      $region65: #{tpu_custom_call.1} parent=5 // pred_check
        %p529 = pneg %p528
      $region66: #{tpu_custom_call.1} parent=5 // pred_check_branch
        %531 = sbr.rel (%p529) target = $region68
      $region67: #{tpu_custom_call.1} parent=5 // pred_region
        // Predicated region
        $region69: #{tpu_custom_call.1} parent=67 // pred_check
          %p532 = pneg %p53
        $region70: #{tpu_custom_call.1} parent=67 // pred_check_branch
          %534 = sbr.rel (%p532) target = $region72
        $region71: #{tpu_custom_call.1} parent=67 // pred_region
          %s535 = sand.u32 %s43, 1
          %s536 = scalar_lea.sflag [#allocation4], %s535
          %s537 = sand.u32 %s43, 1
          %s538 = smul.addr %s537, 128
          %s539 = scalar_lea.vmem [#allocation3], %s538
          %s540 = smul.u32 8, %s33
          %s542 = ssub.s32 2048, 2048
          %543 = vsyncadd %s536, %s542
          %s544 = smul.addr %s540, 2
          %s545 = smul.addr %s544, 128
          %s546 = scalar_lea.hbm %s0, %s545
          %s547 = sshll.u32 %s539, 4
          %s548 = int_to_ptr.vmem [resolvable:$true] %s547
          %553 = dma.hbm_to_vmem [thread:$0]  %s546, 2048, %s548, %s536, 128, 128, 8
        $region72: #{tpu_custom_call.1} parent=67 // pred_fallthru
          _
      $region68: #{tpu_custom_call.1} parent=5 // pred_fallthru
        _
      %p554 = scmp.le.s32.totalorder 1, %s33
      %p555 = scmp.lt.s32.totalorder %s33, 3
      %p556 = pnand %p554, %p555
      %p557 = pneg %p556
      // Predicated region
      $region73: #{tpu_custom_call.1} parent=5 // pred_check
        _
      $region74: #{tpu_custom_call.1} parent=5 // pred_check_branch
        %559 = sbr.rel (%p556) target = $region76
      $region75: #{tpu_custom_call.1} parent=5 // pred_region
        %s560 = ssub.s32 %s33, 1
        %s561 = sand.u32 %s46, 1
        %s562 = scalar_lea.sflag [#allocation4], %s561
        %s563 = sand.u32 %s46, 1
        %s564 = smul.addr %s563, 128
        %s565 = scalar_lea.vmem [#allocation3], %s564
        // Predicated region
        $region77: #{tpu_custom_call.1} parent=75 // pred_check
          %p566 = pneg %p59
        $region78: #{tpu_custom_call.1} parent=75 // pred_check_branch
          %568 = sbr.rel (%p566) target = $region80
        $region79: #{tpu_custom_call.1} parent=75 // pred_region
          %569 = dma.done %s562, 2048
        $region80: #{tpu_custom_call.1} parent=75 // pred_fallthru
          _
        // Predicated region
        $region81: #{tpu_custom_call.1} parent=75 // pred_check
          %p570 = pneg %p80
        $region82: #{tpu_custom_call.1} parent=75 // pred_check_branch
          %572 = sbr.rel (%p570) target = $region84
        $region83: #{tpu_custom_call.1} parent=75 // pred_region
          %573 = dma.done [#allocation7], 1024
        $region84: #{tpu_custom_call.1} parent=75 // pred_fallthru
          _
        // Predicated region
        $region85: #{tpu_custom_call.1} parent=75 // pred_check
          %p574 = pneg %p101
        $region86: #{tpu_custom_call.1} parent=75 // pred_check_branch
          %576 = sbr.rel (%p574) target = $region88
        $region87: #{tpu_custom_call.1} parent=75 // pred_region
          %577 = dma.done [#allocation7], 1024
        $region88: #{tpu_custom_call.1} parent=75 // pred_fallthru
          _
        // Predicated region
        $region89: #{tpu_custom_call.1} parent=75 // pred_check
          %p578 = pneg %p122
        $region90: #{tpu_custom_call.1} parent=75 // pred_check_branch
          %580 = sbr.rel (%p578) target = $region92
        $region91: #{tpu_custom_call.1} parent=75 // pred_region
          %581 = dma.done [#allocation10], 1024
        $region92: #{tpu_custom_call.1} parent=75 // pred_fallthru
          _
        // Predicated region
        $region93: #{tpu_custom_call.1} parent=75 // pred_check
          %p582 = pneg %p143
        $region94: #{tpu_custom_call.1} parent=75 // pred_check_branch
          %584 = sbr.rel (%p582) target = $region96
        $region95: #{tpu_custom_call.1} parent=75 // pred_region
          %585 = dma.done [#allocation10], 1024
        $region96: #{tpu_custom_call.1} parent=75 // pred_fallthru
          _
        // Predicated region
        $region97: #{tpu_custom_call.1} parent=75 // pred_check
          %p586 = pneg %p164
        $region98: #{tpu_custom_call.1} parent=75 // pred_check_branch
          %588 = sbr.rel (%p586) target = $region100
        $region99: #{tpu_custom_call.1} parent=75 // pred_region
          %589 = dma.done [#allocation13], 16
        $region100: #{tpu_custom_call.1} parent=75 // pred_fallthru
          _
        // Predicated region
        $region101: #{tpu_custom_call.1} parent=75 // pred_check
          %p590 = pneg %p185
        $region102: #{tpu_custom_call.1} parent=75 // pred_check_branch
          %592 = sbr.rel (%p590) target = $region104
        $region103: #{tpu_custom_call.1} parent=75 // pred_region
          %593 = dma.done [#allocation13], 16
        $region104: #{tpu_custom_call.1} parent=75 // pred_fallthru
          _
        // Predicated region
        $region105: #{tpu_custom_call.1} parent=75 // pred_check
          %p594 = pneg %p206
        $region106: #{tpu_custom_call.1} parent=75 // pred_check_branch
          %596 = sbr.rel (%p594) target = $region108
        $region107: #{tpu_custom_call.1} parent=75 // pred_region
          %597 = dma.done [#allocation16], 16
        $region108: #{tpu_custom_call.1} parent=75 // pred_fallthru
          _
        // Predicated region
        $region109: #{tpu_custom_call.1} parent=75 // pred_check
          %p598 = pneg %p227
        $region110: #{tpu_custom_call.1} parent=75 // pred_check_branch
          %600 = sbr.rel (%p598) target = $region112
        $region111: #{tpu_custom_call.1} parent=75 // pred_region
          %601 = dma.done [#allocation16], 2048
        $region112: #{tpu_custom_call.1} parent=75 // pred_fallthru
          _
        // Predicated region
        $region113: #{tpu_custom_call.1} parent=75 // pred_check
          %p602 = pneg %p248
        $region114: #{tpu_custom_call.1} parent=75 // pred_check_branch
          %604 = sbr.rel (%p602) target = $region116
        $region115: #{tpu_custom_call.1} parent=75 // pred_region
          %605 = dma.done [#allocation19], 32
        $region116: #{tpu_custom_call.1} parent=75 // pred_fallthru
          _
        // Predicated region
        $region117: #{tpu_custom_call.1} parent=75 // pred_check
          %p606 = pneg %p269
        $region118: #{tpu_custom_call.1} parent=75 // pred_check_branch
          %608 = sbr.rel (%p606) target = $region120
        $region119: #{tpu_custom_call.1} parent=75 // pred_region
          %609 = dma.done [#allocation19], 2048
        $region120: #{tpu_custom_call.1} parent=75 // pred_fallthru
          _
        // Predicated region
        $region121: #{tpu_custom_call.1} parent=75 // pred_check
          %p610 = pneg %p290
        $region122: #{tpu_custom_call.1} parent=75 // pred_check_branch
          %612 = sbr.rel (%p610) target = $region124
        $region123: #{tpu_custom_call.1} parent=75 // pred_region
          %613 = dma.done [#allocation22], 16
        $region124: #{tpu_custom_call.1} parent=75 // pred_fallthru
          _
        // Predicated region
        $region125: #{tpu_custom_call.1} parent=75 // pred_check
          %p614 = pneg %p311
        $region126: #{tpu_custom_call.1} parent=75 // pred_check_branch
          %616 = sbr.rel (%p614) target = $region128
        $region127: #{tpu_custom_call.1} parent=75 // pred_region
          %617 = dma.done [#allocation22], 16
        $region128: #{tpu_custom_call.1} parent=75 // pred_fallthru
          _
        // Predicated region
        $region129: #{tpu_custom_call.1} parent=75 // pred_check
          %p618 = pneg %p332
        $region130: #{tpu_custom_call.1} parent=75 // pred_check_branch
          %620 = sbr.rel (%p618) target = $region132
        $region131: #{tpu_custom_call.1} parent=75 // pred_region
          %621 = dma.done [#allocation25], 16
        $region132: #{tpu_custom_call.1} parent=75 // pred_fallthru
          _
        %s622 = sand.u32 %s46, 1
        %s623 = scalar_lea.sflag [#allocation4], %s622
        %s624 = sand.u32 %s46, 1
        %s625 = smul.addr %s624, 128
        %s626 = scalar_lea.vmem [#allocation3], %s625
        %p627 = pneg %p59
        %p628 = pneg %p56
        %p629 = pneg %p80
        %p630 = pneg %p77
        %p631 = pneg %p101
        %p632 = pneg %p98
        %p633 = pneg %p122
        %p634 = pneg %p119
        %p635 = pneg %p143
        %p636 = pneg %p140
        %p637 = pneg %p164
        %p638 = pneg %p161
        %p639 = pneg %p185
        %p640 = pneg %p182
        %p641 = pneg %p206
        %p642 = pneg %p203
        %p643 = pneg %p227
        %p644 = pneg %p224
        %p645 = pneg %p248
        %p646 = pneg %p245
        %p647 = pneg %p269
        %p648 = pneg %p266
        %p649 = pneg %p290
        %p650 = pneg %p287
        %p651 = pneg %p311
        %p652 = pneg %p308
        %p653 = pneg %p332
        %p654 = pneg %p329
        %p655 = pneg %p358
        %p656 = pneg %p355
        %s657 = sand.u32 %s345, 1
        %s658 = scalar_lea.sflag [#allocation5], %s657
        %s659 = sand.u32 %s345, 1
        %s660 = smul.addr %s659, 128
        %s661 = scalar_lea.vmem [#allocation26], %s660
        %s662 = smul.u32 8, %s38
        %s663 = smul.u32 8, %s38
        %v665 = vld [vmem:[%s565] sm:$0xff]
        %v666 = vld [vmem:[%s565 + $0x8] sm:$0xff]
        %v667 = vld [vmem:[%s565 + $0x10] sm:$0xff]
        %v668 = vld [vmem:[%s565 + $0x18] sm:$0xff]
        %v669 = vld [vmem:[%s565 + $0x20] sm:$0xff]
        %v670 = vld [vmem:[%s565 + $0x28] sm:$0xff]
        %v671 = vld [vmem:[%s565 + $0x30] sm:$0xff]
        %v672 = vld [vmem:[%s565 + $0x38] sm:$0xff]
        %v673 = vld [vmem:[%s565 + $0x40] sm:$0xff]
        %v674 = vld [vmem:[%s565 + $0x48] sm:$0xff]
        %v675 = vld [vmem:[%s565 + $0x50] sm:$0xff]
        %v676 = vld [vmem:[%s565 + $0x58] sm:$0xff]
        %v677 = vld [vmem:[%s565 + $0x60] sm:$0xff]
        %v678 = vld [vmem:[%s565 + $0x68] sm:$0xff]
        %v679 = vld [vmem:[%s565 + $0x70] sm:$0xff]
        %v680 = vld [vmem:[%s565 + $0x78] sm:$0xff]
        %v681 = vpack.c.bf16 %v666, %v665
        %v682 = vpack.c.bf16 %v668, %v667
        %v683 = vpack.c.bf16 %v670, %v669
        %v684 = vpack.c.bf16 %v672, %v671
        %v685 = vpack.c.bf16 %v674, %v673
        %v686 = vpack.c.bf16 %v676, %v675
        %v687 = vpack.c.bf16 %v678, %v677
        %v688 = vpack.c.bf16 %v680, %v679
        %v689 = vld [vmem:[#allocation6] sm:$0xf]
        %v690 = vld [vmem:[#allocation6 + $0x4] sm:$0xf]
        %v691 = vld [vmem:[#allocation6 + $0x8] sm:$0xf]
        %v692 = vld [vmem:[#allocation6 + $0xc] sm:$0xf]
        %v693 = vld [vmem:[#allocation6 + $0x10] sm:$0xf]
        %v694 = vld [vmem:[#allocation6 + $0x14] sm:$0xf]
        %v695 = vld [vmem:[#allocation6 + $0x18] sm:$0xf]
        %v696 = vld [vmem:[#allocation6 + $0x1c] sm:$0xf]
        %v697 = vld [vmem:[#allocation6 + $0x20] sm:$0xf]
        %v698 = vld [vmem:[#allocation6 + $0x24] sm:$0xf]
        %v699 = vld [vmem:[#allocation6 + $0x28] sm:$0xf]
        %v700 = vld [vmem:[#allocation6 + $0x2c] sm:$0xf]
        %v701 = vld [vmem:[#allocation6 + $0x30] sm:$0xf]
        %v702 = vld [vmem:[#allocation6 + $0x34] sm:$0xf]
        %v703 = vld [vmem:[#allocation6 + $0x38] sm:$0xf]
        %v704 = vld [vmem:[#allocation6 + $0x3c] sm:$0xf]
        %v721 = vunpack.c.l.b16 %v689
        %v722 = vunpack.c.l.b16 %v690
        %v723 = vunpack.c.l.b16 %v691
        %v724 = vunpack.c.l.b16 %v692
        %v725 = vunpack.c.l.b16 %v693
        %v726 = vunpack.c.l.b16 %v694
        %v727 = vunpack.c.l.b16 %v695
        %v728 = vunpack.c.l.b16 %v696
        %v729 = vunpack.c.l.b16 %v697
        %v730 = vunpack.c.l.b16 %v698
        %v731 = vunpack.c.l.b16 %v699
        %v732 = vunpack.c.l.b16 %v700
        %v733 = vunpack.c.l.b16 %v701
        %v734 = vunpack.c.l.b16 %v702
        %v735 = vunpack.c.l.b16 %v703
        %v736 = vunpack.c.l.b16 %v704
        %v737 = vpack.c.b16 %v722, %v721
        %v738 = vpack.c.b16 %v724, %v723
        %v739 = vpack.c.b16 %v726, %v725
        %v740 = vpack.c.b16 %v728, %v727
        %v741 = vpack.c.b16 %v730, %v729
        %v742 = vpack.c.b16 %v732, %v731
        %v743 = vpack.c.b16 %v734, %v733
        %v744 = vpack.c.b16 %v736, %v735
        %753 = vmatprep.subr.bf16.mxu0 0
        %754 = vmatpush1.bf16.msra.mxu0 %v737
        %755 = vmatprep.subr.bf16.mxu0 0
        %756 = vmatpush1.bf16.msra.mxu0 %v738
        %757 = vmatprep.subr.bf16.mxu0 0
        %758 = vmatpush1.bf16.msra.mxu0 %v739
        %759 = vmatprep.subr.bf16.mxu0 0
        %760 = vmatpush1.bf16.msra.mxu0 %v740
        %761 = vmatprep.subr.bf16.mxu0 0
        %762 = vmatpush1.bf16.msra.mxu0 %v741
        %763 = vmatprep.subr.bf16.mxu0 0
        %764 = vmatpush1.bf16.msra.mxu0 %v742
        %765 = vmatprep.subr.bf16.mxu0 0
        %766 = vmatpush1.bf16.msra.mxu0 %v743
        %767 = vmatprep.subr.bf16.mxu0 0
        %768 = vmatpush1.bf16.msra.mxu0 %v744
        %769 = vmatprep.subr.bf16.mxu0 0
        %770 = vmatpush1.bf16.msra.mxu0 0
        %771 = vmatprep.subr.bf16.mxu0 0
        %772 = vmatpush1.bf16.msra.mxu0 0
        %773 = vmatprep.subr.bf16.mxu0 0
        %774 = vmatpush1.bf16.msra.mxu0 0
        %775 = vmatprep.subr.bf16.mxu0 0
        %776 = vmatpush1.bf16.msra.mxu0 0
        %777 = vmatprep.subr.bf16.mxu0 0
        %778 = vmatpush1.bf16.msra.mxu0 0
        %779 = vmatprep.subr.bf16.mxu0 0
        %780 = vmatpush1.bf16.msra.mxu0 0
        %781 = vmatprep.subr.bf16.mxu0 0
        %782 = vmatpush1.bf16.msra.mxu0 0
        %783 = vmatprep.subr.bf16.mxu0 0
        %784 = vmatpush1.bf16.msra.mxu0 0
        %785 = vmatprep.mubr.bf16.mxu0 0
        %786 = vmatmul.mubr.bf16.gmra.mrb[0].mxu0 %v681
        %v787 = vpop.f32.mrb[0].mxu0
        %v788 = vadd.f32 0.0, %v787
        %v789 = vpop.f32.mrb[0].mxu0
        %v790 = vpop.f32.mrb[0].mxu0
        %v791 = vadd.f32 0.0, %v790
        %v792 = vpop.f32.mrb[0].mxu0
        %793 = vmatprep.mubr.bf16.mxu0 0
        %794 = vmatmul.mubr.bf16.gmra.mrb[0].mxu0 %v682
        %v795 = vpop.f32.mrb[0].mxu0
        %v796 = vadd.f32 0.0, %v795
        %v797 = vpop.f32.mrb[0].mxu0
        %v798 = vpop.f32.mrb[0].mxu0
        %v799 = vadd.f32 0.0, %v798
        %v800 = vpop.f32.mrb[0].mxu0
        %801 = vmatprep.mubr.bf16.mxu0 0
        %802 = vmatmul.mubr.bf16.gmra.mrb[0].mxu0 %v683
        %v803 = vpop.f32.mrb[0].mxu0
        %v804 = vadd.f32 0.0, %v803
        %v805 = vpop.f32.mrb[0].mxu0
        %v806 = vpop.f32.mrb[0].mxu0
        %v807 = vadd.f32 0.0, %v806
        %v808 = vpop.f32.mrb[0].mxu0
        %809 = vmatprep.mubr.bf16.mxu0 0
        %810 = vmatmul.mubr.bf16.gmra.mrb[0].mxu0 %v684
        %v811 = vpop.f32.mrb[0].mxu0
        %v812 = vadd.f32 0.0, %v811
        %v813 = vpop.f32.mrb[0].mxu0
        %v814 = vpop.f32.mrb[0].mxu0
        %v815 = vadd.f32 0.0, %v814
        %v816 = vpop.f32.mrb[0].mxu0
        %817 = vmatprep.mubr.bf16.mxu0 0
        %818 = vmatmul.mubr.bf16.gmra.mrb[0].mxu0 %v685
        %v819 = vpop.f32.mrb[0].mxu0
        %v820 = vadd.f32 0.0, %v819
        %v821 = vpop.f32.mrb[0].mxu0
        %v822 = vpop.f32.mrb[0].mxu0
        %v823 = vadd.f32 0.0, %v822
        %v824 = vpop.f32.mrb[0].mxu0
        %825 = vmatprep.mubr.bf16.mxu0 0
        %826 = vmatmul.mubr.bf16.gmra.mrb[0].mxu0 %v686
        %v827 = vpop.f32.mrb[0].mxu0
        %v828 = vadd.f32 0.0, %v827
        %v829 = vpop.f32.mrb[0].mxu0
        %v830 = vpop.f32.mrb[0].mxu0
        %v831 = vadd.f32 0.0, %v830
        %v832 = vpop.f32.mrb[0].mxu0
        %833 = vmatprep.mubr.bf16.mxu0 0
        %834 = vmatmul.mubr.bf16.gmra.mrb[0].mxu0 %v687
        %v835 = vpop.f32.mrb[0].mxu0
        %v836 = vadd.f32 0.0, %v835
        %v837 = vpop.f32.mrb[0].mxu0
        %v838 = vpop.f32.mrb[0].mxu0
        %v839 = vadd.f32 0.0, %v838
        %v840 = vpop.f32.mrb[0].mxu0
        %841 = vmatprep.mubr.bf16.mxu0 0
        %842 = vmatmul.mubr.bf16.gmra.mrb[0].mxu0 %v688
        %v843 = vpop.f32.mrb[0].mxu0
        %v844 = vadd.f32 0.0, %v843
        %v845 = vpop.f32.mrb[0].mxu0
        %v846 = vpop.f32.mrb[0].mxu0
        %v847 = vadd.f32 0.0, %v846
        %v848 = vpop.f32.mrb[0].mxu0
        %849 = vdwg.mxu0
        %v850 = vld [vmem:[#allocation8] sm:$0xf]
        %v851 = vld [vmem:[#allocation8 + $0x4] sm:$0xf]
        %v852 = vld [vmem:[#allocation8 + $0x8] sm:$0xf]
        %v853 = vld [vmem:[#allocation8 + $0xc] sm:$0xf]
        %v854 = vld [vmem:[#allocation8 + $0x10] sm:$0xf]
        %v855 = vld [vmem:[#allocation8 + $0x14] sm:$0xf]
        %v856 = vld [vmem:[#allocation8 + $0x18] sm:$0xf]
        %v857 = vld [vmem:[#allocation8 + $0x1c] sm:$0xf]
        %v858 = vld [vmem:[#allocation8 + $0x20] sm:$0xf]
        %v859 = vld [vmem:[#allocation8 + $0x24] sm:$0xf]
        %v860 = vld [vmem:[#allocation8 + $0x28] sm:$0xf]
        %v861 = vld [vmem:[#allocation8 + $0x2c] sm:$0xf]
        %v862 = vld [vmem:[#allocation8 + $0x30] sm:$0xf]
        %v863 = vld [vmem:[#allocation8 + $0x34] sm:$0xf]
        %v864 = vld [vmem:[#allocation8 + $0x38] sm:$0xf]
        %v865 = vld [vmem:[#allocation8 + $0x3c] sm:$0xf]
        %v882 = vunpack.c.l.b16 %v850
        %v883 = vunpack.c.l.b16 %v851
        %v884 = vunpack.c.l.b16 %v852
        %v885 = vunpack.c.l.b16 %v853
        %v886 = vunpack.c.l.b16 %v854
        %v887 = vunpack.c.l.b16 %v855
        %v888 = vunpack.c.l.b16 %v856
        %v889 = vunpack.c.l.b16 %v857
        %v890 = vunpack.c.l.b16 %v858
        %v891 = vunpack.c.l.b16 %v859
        %v892 = vunpack.c.l.b16 %v860
        %v893 = vunpack.c.l.b16 %v861
        %v894 = vunpack.c.l.b16 %v862
        %v895 = vunpack.c.l.b16 %v863
        %v896 = vunpack.c.l.b16 %v864
        %v897 = vunpack.c.l.b16 %v865
        %v898 = vpack.c.b16 %v883, %v882
        %v899 = vpack.c.b16 %v885, %v884
        %v900 = vpack.c.b16 %v887, %v886
        %v901 = vpack.c.b16 %v889, %v888
        %v902 = vpack.c.b16 %v891, %v890
        %v903 = vpack.c.b16 %v893, %v892
        %v904 = vpack.c.b16 %v895, %v894
        %v905 = vpack.c.b16 %v897, %v896
        %914 = vmatprep.subr.bf16.mxu0 0
        %915 = vmatpush1.bf16.msra.mxu0 %v898
        %916 = vmatprep.subr.bf16.mxu0 0
        %917 = vmatpush1.bf16.msra.mxu0 %v899
        %918 = vmatprep.subr.bf16.mxu0 0
        %919 = vmatpush1.bf16.msra.mxu0 %v900
        %920 = vmatprep.subr.bf16.mxu0 0
        %921 = vmatpush1.bf16.msra.mxu0 %v901
        %922 = vmatprep.subr.bf16.mxu0 0
        %923 = vmatpush1.bf16.msra.mxu0 %v902
        %924 = vmatprep.subr.bf16.mxu0 0
        %925 = vmatpush1.bf16.msra.mxu0 %v903
        %926 = vmatprep.subr.bf16.mxu0 0
        %927 = vmatpush1.bf16.msra.mxu0 %v904
        %928 = vmatprep.subr.bf16.mxu0 0
        %929 = vmatpush1.bf16.msra.mxu0 %v905
        %930 = vmatprep.subr.bf16.mxu0 0
        %931 = vmatpush1.bf16.msra.mxu0 0
        %932 = vmatprep.subr.bf16.mxu0 0
        %933 = vmatpush1.bf16.msra.mxu0 0
        %934 = vmatprep.subr.bf16.mxu0 0
        %935 = vmatpush1.bf16.msra.mxu0 0
        %936 = vmatprep.subr.bf16.mxu0 0
        %937 = vmatpush1.bf16.msra.mxu0 0
        %938 = vmatprep.subr.bf16.mxu0 0
        %939 = vmatpush1.bf16.msra.mxu0 0
        %940 = vmatprep.subr.bf16.mxu0 0
        %941 = vmatpush1.bf16.msra.mxu0 0
        %942 = vmatprep.subr.bf16.mxu0 0
        %943 = vmatpush1.bf16.msra.mxu0 0
        %944 = vmatprep.subr.bf16.mxu0 0
        %945 = vmatpush1.bf16.msra.mxu0 0
        %946 = vmatprep.mubr.bf16.mxu0 0
        %947 = vmatmul.mubr.bf16.gmra.mrb[0].mxu0 %v681
        %v948 = vpop.f32.mrb[0].mxu0
        %v949 = vadd.f32 0.0, %v948
        %v950 = vpop.f32.mrb[0].mxu0
        %v951 = vpop.f32.mrb[0].mxu0
        %v952 = vadd.f32 0.0, %v951
        %v953 = vpop.f32.mrb[0].mxu0
        %954 = vmatprep.mubr.bf16.mxu0 0
        %955 = vmatmul.mubr.bf16.gmra.mrb[0].mxu0 %v682
        %v956 = vpop.f32.mrb[0].mxu0
        %v957 = vadd.f32 0.0, %v956
        %v958 = vpop.f32.mrb[0].mxu0
        %v959 = vpop.f32.mrb[0].mxu0
        %v960 = vadd.f32 0.0, %v959
        %v961 = vpop.f32.mrb[0].mxu0
        %962 = vmatprep.mubr.bf16.mxu0 0
        %963 = vmatmul.mubr.bf16.gmra.mrb[0].mxu0 %v683
        %v964 = vpop.f32.mrb[0].mxu0
        %v965 = vadd.f32 0.0, %v964
        %v966 = vpop.f32.mrb[0].mxu0
        %v967 = vpop.f32.mrb[0].mxu0
        %v968 = vadd.f32 0.0, %v967
        %v969 = vpop.f32.mrb[0].mxu0
        %970 = vmatprep.mubr.bf16.mxu0 0
        %971 = vmatmul.mubr.bf16.gmra.mrb[0].mxu0 %v684
        %v972 = vpop.f32.mrb[0].mxu0
        %v973 = vadd.f32 0.0, %v972
        %v974 = vpop.f32.mrb[0].mxu0
        %v975 = vpop.f32.mrb[0].mxu0
        %v976 = vadd.f32 0.0, %v975
        %v977 = vpop.f32.mrb[0].mxu0
        %978 = vmatprep.mubr.bf16.mxu0 0
        %979 = vmatmul.mubr.bf16.gmra.mrb[0].mxu0 %v685
        %v980 = vpop.f32.mrb[0].mxu0
        %v981 = vadd.f32 0.0, %v980
        %v982 = vpop.f32.mrb[0].mxu0
        %v983 = vpop.f32.mrb[0].mxu0
        %v984 = vadd.f32 0.0, %v983
        %v985 = vpop.f32.mrb[0].mxu0
        %986 = vmatprep.mubr.bf16.mxu0 0
        %987 = vmatmul.mubr.bf16.gmra.mrb[0].mxu0 %v686
        %v988 = vpop.f32.mrb[0].mxu0
        %v989 = vadd.f32 0.0, %v988
        %v990 = vpop.f32.mrb[0].mxu0
        %v991 = vpop.f32.mrb[0].mxu0
        %v992 = vadd.f32 0.0, %v991
        %v993 = vpop.f32.mrb[0].mxu0
        %994 = vmatprep.mubr.bf16.mxu0 0
        %995 = vmatmul.mubr.bf16.gmra.mrb[0].mxu0 %v687
        %v996 = vpop.f32.mrb[0].mxu0
        %v997 = vadd.f32 0.0, %v996
        %v998 = vpop.f32.mrb[0].mxu0
        %v999 = vpop.f32.mrb[0].mxu0
        %v1000 = vadd.f32 0.0, %v999
        %v1001 = vpop.f32.mrb[0].mxu0
        %1002 = vmatprep.mubr.bf16.mxu0 0
        %1003 = vmatmul.mubr.bf16.gmra.mrb[0].mxu0 %v688
        %v1004 = vpop.f32.mrb[0].mxu0
        %v1005 = vadd.f32 0.0, %v1004
        %v1006 = vpop.f32.mrb[0].mxu0
        %v1007 = vpop.f32.mrb[0].mxu0
        %v1008 = vadd.f32 0.0, %v1007
        %v1009 = vpop.f32.mrb[0].mxu0
        %1010 = vdwg.mxu0
        %v1011 = vld [vmem:[#allocation9] sm:$0xf]
        %v1012 = vld [vmem:[#allocation9 + $0x4] sm:$0xf]
        %v1013 = vld [vmem:[#allocation9 + $0x8] sm:$0xf]
        %v1014 = vld [vmem:[#allocation9 + $0xc] sm:$0xf]
        %v1015 = vld [vmem:[#allocation9 + $0x10] sm:$0xf]
        %v1016 = vld [vmem:[#allocation9 + $0x14] sm:$0xf]
        %v1017 = vld [vmem:[#allocation9 + $0x18] sm:$0xf]
        %v1018 = vld [vmem:[#allocation9 + $0x1c] sm:$0xf]
        %v1019 = vld [vmem:[#allocation9 + $0x20] sm:$0xf]
        %v1020 = vld [vmem:[#allocation9 + $0x24] sm:$0xf]
        %v1021 = vld [vmem:[#allocation9 + $0x28] sm:$0xf]
        %v1022 = vld [vmem:[#allocation9 + $0x2c] sm:$0xf]
        %v1023 = vld [vmem:[#allocation9 + $0x30] sm:$0xf]
        %v1024 = vld [vmem:[#allocation9 + $0x34] sm:$0xf]
        %v1025 = vld [vmem:[#allocation9 + $0x38] sm:$0xf]
        %v1026 = vld [vmem:[#allocation9 + $0x3c] sm:$0xf]
        %v1043 = vunpack.c.l.b16 %v1011
        %v1044 = vunpack.c.l.b16 %v1012
        %v1045 = vunpack.c.l.b16 %v1013
        %v1046 = vunpack.c.l.b16 %v1014
        %v1047 = vunpack.c.l.b16 %v1015
        %v1048 = vunpack.c.l.b16 %v1016
        %v1049 = vunpack.c.l.b16 %v1017
        %v1050 = vunpack.c.l.b16 %v1018
        %v1051 = vunpack.c.l.b16 %v1019
        %v1052 = vunpack.c.l.b16 %v1020
        %v1053 = vunpack.c.l.b16 %v1021
        %v1054 = vunpack.c.l.b16 %v1022
        %v1055 = vunpack.c.l.b16 %v1023
        %v1056 = vunpack.c.l.b16 %v1024
        %v1057 = vunpack.c.l.b16 %v1025
        %v1058 = vunpack.c.l.b16 %v1026
        %v1059 = vpack.c.b16 %v1044, %v1043
        %v1060 = vpack.c.b16 %v1046, %v1045
        %v1061 = vpack.c.b16 %v1048, %v1047
        %v1062 = vpack.c.b16 %v1050, %v1049
        %v1063 = vpack.c.b16 %v1052, %v1051
        %v1064 = vpack.c.b16 %v1054, %v1053
        %v1065 = vpack.c.b16 %v1056, %v1055
        %v1066 = vpack.c.b16 %v1058, %v1057
        %1075 = vmatprep.subr.bf16.mxu0 0
        %1076 = vmatpush1.bf16.msra.mxu0 %v1059
        %1077 = vmatprep.subr.bf16.mxu0 0
        %1078 = vmatpush1.bf16.msra.mxu0 %v1060
        %1079 = vmatprep.subr.bf16.mxu0 0
        %1080 = vmatpush1.bf16.msra.mxu0 %v1061
        %1081 = vmatprep.subr.bf16.mxu0 0
        %1082 = vmatpush1.bf16.msra.mxu0 %v1062
        %1083 = vmatprep.subr.bf16.mxu0 0
        %1084 = vmatpush1.bf16.msra.mxu0 %v1063
        %1085 = vmatprep.subr.bf16.mxu0 0
        %1086 = vmatpush1.bf16.msra.mxu0 %v1064
        %1087 = vmatprep.subr.bf16.mxu0 0
        %1088 = vmatpush1.bf16.msra.mxu0 %v1065
        %1089 = vmatprep.subr.bf16.mxu0 0
        %1090 = vmatpush1.bf16.msra.mxu0 %v1066
        %1091 = vmatprep.subr.bf16.mxu0 0
        %1092 = vmatpush1.bf16.msra.mxu0 0
        %1093 = vmatprep.subr.bf16.mxu0 0
        %1094 = vmatpush1.bf16.msra.mxu0 0
        %1095 = vmatprep.subr.bf16.mxu0 0
        %1096 = vmatpush1.bf16.msra.mxu0 0
        %1097 = vmatprep.subr.bf16.mxu0 0
        %1098 = vmatpush1.bf16.msra.mxu0 0
        %1099 = vmatprep.subr.bf16.mxu0 0
        %1100 = vmatpush1.bf16.msra.mxu0 0
        %1101 = vmatprep.subr.bf16.mxu0 0
        %1102 = vmatpush1.bf16.msra.mxu0 0
        %1103 = vmatprep.subr.bf16.mxu0 0
        %1104 = vmatpush1.bf16.msra.mxu0 0
        %1105 = vmatprep.subr.bf16.mxu0 0
        %1106 = vmatpush1.bf16.msra.mxu0 0
        %1107 = vmatprep.mubr.bf16.mxu0 0
        %1108 = vmatmul.mubr.bf16.gmra.mrb[0].mxu0 %v681
        %v1109 = vpop.f32.mrb[0].mxu0
        %v1110 = vadd.f32 0.0, %v1109
        %v1111 = vpop.f32.mrb[0].mxu0
        %v1112 = vpop.f32.mrb[0].mxu0
        %v1113 = vadd.f32 0.0, %v1112
        %v1114 = vpop.f32.mrb[0].mxu0
        %1115 = vmatprep.mubr.bf16.mxu0 0
        %1116 = vmatmul.mubr.bf16.gmra.mrb[0].mxu0 %v682
        %v1117 = vpop.f32.mrb[0].mxu0
        %v1118 = vadd.f32 0.0, %v1117
        %v1119 = vpop.f32.mrb[0].mxu0
        %v1120 = vpop.f32.mrb[0].mxu0
        %v1121 = vadd.f32 0.0, %v1120
        %v1122 = vpop.f32.mrb[0].mxu0
        %1123 = vmatprep.mubr.bf16.mxu0 0
        %1124 = vmatmul.mubr.bf16.gmra.mrb[0].mxu0 %v683
        %v1125 = vpop.f32.mrb[0].mxu0
        %v1126 = vadd.f32 0.0, %v1125
        %v1127 = vpop.f32.mrb[0].mxu0
        %v1128 = vpop.f32.mrb[0].mxu0
        %v1129 = vadd.f32 0.0, %v1128
        %v1130 = vpop.f32.mrb[0].mxu0
        %1131 = vmatprep.mubr.bf16.mxu0 0
        %1132 = vmatmul.mubr.bf16.gmra.mrb[0].mxu0 %v684
        %v1133 = vpop.f32.mrb[0].mxu0
        %v1134 = vadd.f32 0.0, %v1133
        %v1135 = vpop.f32.mrb[0].mxu0
        %v1136 = vpop.f32.mrb[0].mxu0
        %v1137 = vadd.f32 0.0, %v1136
        %v1138 = vpop.f32.mrb[0].mxu0
        %1139 = vmatprep.mubr.bf16.mxu0 0
        %1140 = vmatmul.mubr.bf16.gmra.mrb[0].mxu0 %v685
        %v1141 = vpop.f32.mrb[0].mxu0
        %v1142 = vadd.f32 0.0, %v1141
        %v1143 = vpop.f32.mrb[0].mxu0
        %v1144 = vpop.f32.mrb[0].mxu0
        %v1145 = vadd.f32 0.0, %v1144
        %v1146 = vpop.f32.mrb[0].mxu0
        %1147 = vmatprep.mubr.bf16.mxu0 0
        %1148 = vmatmul.mubr.bf16.gmra.mrb[0].mxu0 %v686
        %v1149 = vpop.f32.mrb[0].mxu0
        %v1150 = vadd.f32 0.0, %v1149
        %v1151 = vpop.f32.mrb[0].mxu0
        %v1152 = vpop.f32.mrb[0].mxu0
        %v1153 = vadd.f32 0.0, %v1152
        %v1154 = vpop.f32.mrb[0].mxu0
        %1155 = vmatprep.mubr.bf16.mxu0 0
        %1156 = vmatmul.mubr.bf16.gmra.mrb[0].mxu0 %v687
        %v1157 = vpop.f32.mrb[0].mxu0
        %v1158 = vadd.f32 0.0, %v1157
        %v1159 = vpop.f32.mrb[0].mxu0
        %v1160 = vpop.f32.mrb[0].mxu0
        %v1161 = vadd.f32 0.0, %v1160
        %v1162 = vpop.f32.mrb[0].mxu0
        %1163 = vmatprep.mubr.bf16.mxu0 0
        %1164 = vmatmul.mubr.bf16.gmra.mrb[0].mxu0 %v688
        %v1165 = vpop.f32.mrb[0].mxu0
        %v1166 = vadd.f32 0.0, %v1165
        %v1167 = vpop.f32.mrb[0].mxu0
        %v1168 = vpop.f32.mrb[0].mxu0
        %v1169 = vadd.f32 0.0, %v1168
        %v1170 = vpop.f32.mrb[0].mxu0
        %1171 = vdwg.mxu0
        %v1172 = vmul.f32 %v788, 0.17677669
        %v1173 = vmul.f32 %v791, 0.17677669
        %v1174 = vmul.f32 %v796, 0.17677669
        %v1175 = vmul.f32 %v799, 0.17677669
        %v1176 = vmul.f32 %v804, 0.17677669
        %v1177 = vmul.f32 %v807, 0.17677669
        %v1178 = vmul.f32 %v812, 0.17677669
        %v1179 = vmul.f32 %v815, 0.17677669
        %v1180 = vmul.f32 %v820, 0.17677669
        %v1181 = vmul.f32 %v823, 0.17677669
        %v1182 = vmul.f32 %v828, 0.17677669
        %v1183 = vmul.f32 %v831, 0.17677669
        %v1184 = vmul.f32 %v836, 0.17677669
        %v1185 = vmul.f32 %v839, 0.17677669
        %v1186 = vmul.f32 %v844, 0.17677669
        %v1187 = vmul.f32 %v847, 0.17677669
        %v1188 = vpack.c.bf16 %v1173, %v1172
        %v1189 = vpack.c.bf16 %v1175, %v1174
        %v1190 = vpack.c.bf16 %v1177, %v1176
        %v1191 = vpack.c.bf16 %v1179, %v1178
        %v1192 = vpack.c.bf16 %v1181, %v1180
        %v1193 = vpack.c.bf16 %v1183, %v1182
        %v1194 = vpack.c.bf16 %v1185, %v1184
        %v1195 = vpack.c.bf16 %v1187, %v1186
        %v1196 = vpack.c.bf16 %v952, %v949
        %v1197 = vpack.c.bf16 %v960, %v957
        %v1198 = vpack.c.bf16 %v968, %v965
        %v1199 = vpack.c.bf16 %v976, %v973
        %v1200 = vpack.c.bf16 %v984, %v981
        %v1201 = vpack.c.bf16 %v992, %v989
        %v1202 = vpack.c.bf16 %v1000, %v997
        %v1203 = vpack.c.bf16 %v1008, %v1005
        %v1204 = vpack.c.bf16 %v1113, %v1110
        %v1205 = vpack.c.bf16 %v1121, %v1118
        %v1206 = vpack.c.bf16 %v1129, %v1126
        %v1207 = vpack.c.bf16 %v1137, %v1134
        %v1208 = vpack.c.bf16 %v1145, %v1142
        %v1209 = vpack.c.bf16 %v1153, %v1150
        %v1210 = vpack.c.bf16 %v1161, %v1158
        %v1211 = vpack.c.bf16 %v1169, %v1166
        %vm1212 = vcmask 261120
        %v1214 = vsel %vm1212, %v1188, 0
        %v1217 = vsel %vm1212, %v1196, 0
        %1219 = vmatprep.subr.bf16.mxu0 0
        %1220 = vmatpush1.bf16.xpose.msra.mxu0 %v1217
        %1221 = vmatprep.subr.bf16.mxu0 0
        %1222 = vmatpush1.bf16.xpose.msra.mxu0 0
        %1223 = vmatprep.subr.bf16.mxu0 0
        %1224 = vmatpush1.bf16.xpose.msra.mxu0 0
        %1225 = vmatprep.subr.bf16.mxu0 0
        %1226 = vmatpush1.bf16.xpose.msra.mxu0 0
        %1227 = vmatprep.subr.bf16.mxu0 0
        %1228 = vmatpush1.bf16.xpose.msra.mxu0 0
        %1229 = vmatprep.subr.bf16.mxu0 0
        %1230 = vmatpush1.bf16.xpose.msra.mxu0 0
        %1231 = vmatprep.subr.bf16.mxu0 0
        %1232 = vmatpush1.bf16.xpose.msra.mxu0 0
        %1233 = vmatprep.subr.bf16.mxu0 0
        %1234 = vmatpush1.bf16.xpose.msra.mxu0 0
        %1235 = vmatprep.subr.bf16.mxu0 0
        %1236 = vmatpush1.bf16.xpose.msra.mxu0 0
        %1237 = vmatprep.subr.bf16.mxu0 0
        %1238 = vmatpush1.bf16.xpose.msra.mxu0 0
        %1239 = vmatprep.subr.bf16.mxu0 0
        %1240 = vmatpush1.bf16.xpose.msra.mxu0 0
        %1241 = vmatprep.subr.bf16.mxu0 0
        %1242 = vmatpush1.bf16.xpose.msra.mxu0 0
        %1243 = vmatprep.subr.bf16.mxu0 0
        %1244 = vmatpush1.bf16.xpose.msra.mxu0 0
        %1245 = vmatprep.subr.bf16.mxu0 0
        %1246 = vmatpush1.bf16.xpose.msra.mxu0 0
        %1247 = vmatprep.subr.bf16.mxu0 0
        %1248 = vmatpush1.bf16.xpose.msra.mxu0 0
        %1249 = vmatprep.subr.bf16.mxu0 0
        %1250 = vmatpush1.bf16.xpose.msra.mxu0 0
        %1251 = vmatprep.mubr.bf16.mxu0 0
        %1252 = vmatmul.mubr.bf16.gmra.mrb[0].mxu0 %v1214
        %v1253 = vpop.f32.mrb[0].mxu0
        %v1254 = vadd.f32 0.0, %v1253
        %v1255 = vpop.f32.mrb[0].mxu0
        %v1256 = vpop.f32.mrb[0].mxu0
        %v1257 = vadd.f32 0.0, %v1256
        %v1258 = vpop.f32.mrb[0].mxu0
        %1259 = vdwg.mxu0
        %vm1260 = vcmask 130048
        %v1261 = vsel %vm1260, %v1254, -inf
        %1262 = vmax.xlane.f32.xlu0 %v1261
        %v1263 = vpop.xlane.xlu0 %1262
        %v1264 = vsel %vm1260, %v1257, -inf
        %1265 = vmax.xlane.f32.xlu0 %v1264
        %v1266 = vpop.xlane.xlu0 %1265
        %v1267 = vsub.f32 %v1254, %v1263
        %v1268 = vsub.f32 %v1257, %v1266
        %v1269 = vmul.f32 %v1267, 1.442695
        %v1270 = vpow.pop %v1269
        %v1271 = vmul.f32 %v1268, 1.442695
        %v1272 = vpow.pop %v1271
        %v1273 = vsel %vm1260, %v1270, 0.0
        %1274 = vadd.xlane.f32.xlu0 %v1273
        %v1275 = vpop.xlane.xlu0 %1274
        %v1276 = vsel %vm1260, %v1272, 0.0
        %1277 = vadd.xlane.f32.xlu0 %v1276
        %v1278 = vpop.xlane.xlu0 %1277
        %v1279 = vrcp.pop %v1275
        %v1280 = vrcp.pop %v1278
        %v1281 = vpack.c.bf16 %v1272, %v1270
        %v1283 = vsel %vm1260, %v1281, 0
        %1285 = vmatprep.subr.bf16.mxu0 0
        %1286 = vmatpush1.bf16.msra.mxu0 %v1204
        %1287 = vmatprep.subr.bf16.mxu0 0
        %1288 = vmatpush1.bf16.msra.mxu0 0
        %1289 = vmatprep.subr.bf16.mxu0 0
        %1290 = vmatpush1.bf16.msra.mxu0 0
        %1291 = vmatprep.subr.bf16.mxu0 0
        %1292 = vmatpush1.bf16.msra.mxu0 0
        %1293 = vmatprep.subr.bf16.mxu0 0
        %1294 = vmatpush1.bf16.msra.mxu0 0
        %1295 = vmatprep.subr.bf16.mxu0 0
        %1296 = vmatpush1.bf16.msra.mxu0 0
        %1297 = vmatprep.subr.bf16.mxu0 0
        %1298 = vmatpush1.bf16.msra.mxu0 0
        %1299 = vmatprep.subr.bf16.mxu0 0
        %1300 = vmatpush1.bf16.msra.mxu0 0
        %1301 = vmatprep.subr.bf16.mxu0 0
        %1302 = vmatpush1.bf16.msra.mxu0 0
        %1303 = vmatprep.subr.bf16.mxu0 0
        %1304 = vmatpush1.bf16.msra.mxu0 0
        %1305 = vmatprep.subr.bf16.mxu0 0
        %1306 = vmatpush1.bf16.msra.mxu0 0
        %1307 = vmatprep.subr.bf16.mxu0 0
        %1308 = vmatpush1.bf16.msra.mxu0 0
        %1309 = vmatprep.subr.bf16.mxu0 0
        %1310 = vmatpush1.bf16.msra.mxu0 0
        %1311 = vmatprep.subr.bf16.mxu0 0
        %1312 = vmatpush1.bf16.msra.mxu0 0
        %1313 = vmatprep.subr.bf16.mxu0 0
        %1314 = vmatpush1.bf16.msra.mxu0 0
        %1315 = vmatprep.subr.bf16.mxu0 0
        %1316 = vmatpush1.bf16.msra.mxu0 0
        %1317 = vmatprep.mubr.bf16.mxu0 0
        %1318 = vmatmul.mubr.bf16.gmra.mrb[0].mxu0 %v1283
        %v1319 = vpop.f32.mrb[0].mxu0
        %v1320 = vadd.f32 0.0, %v1319
        %v1321 = vpop.f32.mrb[0].mxu0
        %v1322 = vpop.f32.mrb[0].mxu0
        %v1323 = vadd.f32 0.0, %v1322
        %v1324 = vpop.f32.mrb[0].mxu0
        %1325 = vdwg.mxu0
        %v1326 = vmul.f32 %v1320, %v1279
        %v1327 = vmul.f32 %v1323, %v1280
        %v1328 = vpack.c.bf16 %v1327, %v1326
        %1329 = vst.msk [vmem:[#allocation2] sm:$0xff] %vm1212, %v1328
        %1331 = vrot.lane.b32.xlu0 %v1188, 96
        %v1332 = vpop.permute.xlu0 %1331
        %1334 = vrot.lane.b32.xlu0 %v1196, 96
        %v1335 = vpop.permute.xlu0 %1334
        %v1337 = vsel %vm1212, %v1332, 0
        %v1340 = vsel %vm1212, %v1335, 0
        %1342 = vmatprep.subr.bf16.mxu0 0
        %1343 = vmatpush1.bf16.xpose.msra.mxu0 %v1340
        %1344 = vmatprep.subr.bf16.mxu0 0
        %1345 = vmatpush1.bf16.xpose.msra.mxu0 0
        %1346 = vmatprep.subr.bf16.mxu0 0
        %1347 = vmatpush1.bf16.xpose.msra.mxu0 0
        %1348 = vmatprep.subr.bf16.mxu0 0
        %1349 = vmatpush1.bf16.xpose.msra.mxu0 0
        %1350 = vmatprep.subr.bf16.mxu0 0
        %1351 = vmatpush1.bf16.xpose.msra.mxu0 0
        %1352 = vmatprep.subr.bf16.mxu0 0
        %1353 = vmatpush1.bf16.xpose.msra.mxu0 0
        %1354 = vmatprep.subr.bf16.mxu0 0
        %1355 = vmatpush1.bf16.xpose.msra.mxu0 0
        %1356 = vmatprep.subr.bf16.mxu0 0
        %1357 = vmatpush1.bf16.xpose.msra.mxu0 0
        %1358 = vmatprep.subr.bf16.mxu0 0
        %1359 = vmatpush1.bf16.xpose.msra.mxu0 0
        %1360 = vmatprep.subr.bf16.mxu0 0
        %1361 = vmatpush1.bf16.xpose.msra.mxu0 0
        %1362 = vmatprep.subr.bf16.mxu0 0
        %1363 = vmatpush1.bf16.xpose.msra.mxu0 0
        %1364 = vmatprep.subr.bf16.mxu0 0
        %1365 = vmatpush1.bf16.xpose.msra.mxu0 0
        %1366 = vmatprep.subr.bf16.mxu0 0
        %1367 = vmatpush1.bf16.xpose.msra.mxu0 0
        %1368 = vmatprep.subr.bf16.mxu0 0
        %1369 = vmatpush1.bf16.xpose.msra.mxu0 0
        %1370 = vmatprep.subr.bf16.mxu0 0
        %1371 = vmatpush1.bf16.xpose.msra.mxu0 0
        %1372 = vmatprep.subr.bf16.mxu0 0
        %1373 = vmatpush1.bf16.xpose.msra.mxu0 0
        %1374 = vmatprep.mubr.bf16.mxu0 0
        %1375 = vmatmul.mubr.bf16.gmra.mrb[0].mxu0 %v1337
        %v1376 = vpop.f32.mrb[0].mxu0
        %v1377 = vadd.f32 0.0, %v1376
        %v1378 = vpop.f32.mrb[0].mxu0
        %v1379 = vpop.f32.mrb[0].mxu0
        %v1380 = vadd.f32 0.0, %v1379
        %v1381 = vpop.f32.mrb[0].mxu0
        %1382 = vdwg.mxu0
        %v1383 = vsel %vm1260, %v1377, -inf
        %1384 = vmax.xlane.f32.xlu0 %v1383
        %v1385 = vpop.xlane.xlu0 %1384
        %v1386 = vsel %vm1260, %v1380, -inf
        %1387 = vmax.xlane.f32.xlu0 %v1386
        %v1388 = vpop.xlane.xlu0 %1387
        %v1389 = vsub.f32 %v1377, %v1385
        %v1390 = vsub.f32 %v1380, %v1388
        %v1391 = vmul.f32 %v1389, 1.442695
        %v1392 = vpow.pop %v1391
        %v1393 = vmul.f32 %v1390, 1.442695
        %v1394 = vpow.pop %v1393
        %v1395 = vsel %vm1260, %v1392, 0.0
        %1396 = vadd.xlane.f32.xlu0 %v1395
        %v1397 = vpop.xlane.xlu0 %1396
        %v1398 = vsel %vm1260, %v1394, 0.0
        %1399 = vadd.xlane.f32.xlu0 %v1398
        %v1400 = vpop.xlane.xlu0 %1399
        %v1401 = vrcp.pop %v1397
        %v1402 = vrcp.pop %v1400
        %v1403 = vpack.c.bf16 %v1394, %v1392
        %1405 = vrot.lane.b32.xlu0 %v1204, 96
        %v1406 = vpop.permute.xlu0 %1405
        %v1409 = vsel %vm1260, %v1403, 0
        %1411 = vmatprep.subr.bf16.mxu0 0
        %1412 = vmatpush1.bf16.msra.mxu0 %v1406
        %1413 = vmatprep.subr.bf16.mxu0 0
        %1414 = vmatpush1.bf16.msra.mxu0 0
        %1415 = vmatprep.subr.bf16.mxu0 0
        %1416 = vmatpush1.bf16.msra.mxu0 0
        %1417 = vmatprep.subr.bf16.mxu0 0
        %1418 = vmatpush1.bf16.msra.mxu0 0
        %1419 = vmatprep.subr.bf16.mxu0 0
        %1420 = vmatpush1.bf16.msra.mxu0 0
        %1421 = vmatprep.subr.bf16.mxu0 0
        %1422 = vmatpush1.bf16.msra.mxu0 0
        %1423 = vmatprep.subr.bf16.mxu0 0
        %1424 = vmatpush1.bf16.msra.mxu0 0
        %1425 = vmatprep.subr.bf16.mxu0 0
        %1426 = vmatpush1.bf16.msra.mxu0 0
        %1427 = vmatprep.subr.bf16.mxu0 0
        %1428 = vmatpush1.bf16.msra.mxu0 0
        %1429 = vmatprep.subr.bf16.mxu0 0
        %1430 = vmatpush1.bf16.msra.mxu0 0
        %1431 = vmatprep.subr.bf16.mxu0 0
        %1432 = vmatpush1.bf16.msra.mxu0 0
        %1433 = vmatprep.subr.bf16.mxu0 0
        %1434 = vmatpush1.bf16.msra.mxu0 0
        %1435 = vmatprep.subr.bf16.mxu0 0
        %1436 = vmatpush1.bf16.msra.mxu0 0
        %1437 = vmatprep.subr.bf16.mxu0 0
        %1438 = vmatpush1.bf16.msra.mxu0 0
        %1439 = vmatprep.subr.bf16.mxu0 0
        %1440 = vmatpush1.bf16.msra.mxu0 0
        %1441 = vmatprep.subr.bf16.mxu0 0
        %1442 = vmatpush1.bf16.msra.mxu0 0
        %1443 = vmatprep.mubr.bf16.mxu0 0
        %1444 = vmatmul.mubr.bf16.gmra.mrb[0].mxu0 %v1409
        %v1445 = vpop.f32.mrb[0].mxu0
        %v1446 = vadd.f32 0.0, %v1445
        %v1447 = vpop.f32.mrb[0].mxu0
        %v1448 = vpop.f32.mrb[0].mxu0
        %v1449 = vadd.f32 0.0, %v1448
        %v1450 = vpop.f32.mrb[0].mxu0
        %1451 = vdwg.mxu0
        %v1452 = vmul.f32 %v1446, %v1401
        %v1453 = vmul.f32 %v1449, %v1402
        %v1454 = vpack.c.bf16 %v1453, %v1452
        %1456 = vrot.lane.b32.xlu0 %v1454, 32
        %v1457 = vpop.permute.xlu0 %1456
        %vm1459 = vcmask 523520
        %1460 = vst.msk [vmem:[#allocation2] sm:$0xff] %vm1459, %v1457
        %1461 = vrot.lane.b32.xlu0 %v1188, 64
        %v1462 = vpop.permute.xlu0 %1461
        %1463 = vrot.lane.b32.xlu0 %v1196, 64
        %v1464 = vpop.permute.xlu0 %1463
        %v1466 = vsel %vm1212, %v1462, 0
        %v1469 = vsel %vm1212, %v1464, 0
        %1471 = vmatprep.subr.bf16.mxu0 0
        %1472 = vmatpush1.bf16.xpose.msra.mxu0 %v1469
        %1473 = vmatprep.subr.bf16.mxu0 0
        %1474 = vmatpush1.bf16.xpose.msra.mxu0 0
        %1475 = vmatprep.subr.bf16.mxu0 0
        %1476 = vmatpush1.bf16.xpose.msra.mxu0 0
        %1477 = vmatprep.subr.bf16.mxu0 0
        %1478 = vmatpush1.bf16.xpose.msra.mxu0 0
        %1479 = vmatprep.subr.bf16.mxu0 0
        %1480 = vmatpush1.bf16.xpose.msra.mxu0 0
        %1481 = vmatprep.subr.bf16.mxu0 0
        %1482 = vmatpush1.bf16.xpose.msra.mxu0 0
        %1483 = vmatprep.subr.bf16.mxu0 0
        %1484 = vmatpush1.bf16.xpose.msra.mxu0 0
        %1485 = vmatprep.subr.bf16.mxu0 0
        %1486 = vmatpush1.bf16.xpose.msra.mxu0 0
        %1487 = vmatprep.subr.bf16.mxu0 0
        %1488 = vmatpush1.bf16.xpose.msra.mxu0 0
        %1489 = vmatprep.subr.bf16.mxu0 0
        %1490 = vmatpush1.bf16.xpose.msra.mxu0 0
        %1491 = vmatprep.subr.bf16.mxu0 0
        %1492 = vmatpush1.bf16.xpose.msra.mxu0 0
        %1493 = vmatprep.subr.bf16.mxu0 0
        %1494 = vmatpush1.bf16.xpose.msra.mxu0 0
        %1495 = vmatprep.subr.bf16.mxu0 0
        %1496 = vmatpush1.bf16.xpose.msra.mxu0 0
        %1497 = vmatprep.subr.bf16.mxu0 0
        %1498 = vmatpush1.bf16.xpose.msra.mxu0 0
        %1499 = vmatprep.subr.bf16.mxu0 0
        %1500 = vmatpush1.bf16.xpose.msra.mxu0 0
        %1501 = vmatprep.subr.bf16.mxu0 0
        %1502 = vmatpush1.bf16.xpose.msra.mxu0 0
        %1503 = vmatprep.mubr.bf16.mxu0 0
        %1504 = vmatmul.mubr.bf16.gmra.mrb[0].mxu0 %v1466
        %v1505 = vpop.f32.mrb[0].mxu0
        %v1506 = vadd.f32 0.0, %v1505
        %v1507 = vpop.f32.mrb[0].mxu0
        %v1508 = vpop.f32.mrb[0].mxu0
        %v1509 = vadd.f32 0.0, %v1508
        %v1510 = vpop.f32.mrb[0].mxu0
        %1511 = vdwg.mxu0
        %v1512 = vsel %vm1260, %v1506, -inf
        %1513 = vmax.xlane.f32.xlu0 %v1512
        %v1514 = vpop.xlane.xlu0 %1513
        %v1515 = vsel %vm1260, %v1509, -inf
        %1516 = vmax.xlane.f32.xlu0 %v1515
        %v1517 = vpop.xlane.xlu0 %1516
        %v1518 = vsub.f32 %v1506, %v1514
        %v1519 = vsub.f32 %v1509, %v1517
        %v1520 = vmul.f32 %v1518, 1.442695
        %v1521 = vpow.pop %v1520
        %v1522 = vmul.f32 %v1519, 1.442695
        %v1523 = vpow.pop %v1522
        %v1524 = vsel %vm1260, %v1521, 0.0
        %1525 = vadd.xlane.f32.xlu0 %v1524
        %v1526 = vpop.xlane.xlu0 %1525
        %v1527 = vsel %vm1260, %v1523, 0.0
        %1528 = vadd.xlane.f32.xlu0 %v1527
        %v1529 = vpop.xlane.xlu0 %1528
        %v1530 = vrcp.pop %v1526
        %v1531 = vrcp.pop %v1529
        %v1532 = vpack.c.bf16 %v1523, %v1521
        %1533 = vrot.lane.b32.xlu0 %v1204, 64
        %v1534 = vpop.permute.xlu0 %1533
        %v1537 = vsel %vm1260, %v1532, 0
        %1539 = vmatprep.subr.bf16.mxu0 0
        %1540 = vmatpush1.bf16.msra.mxu0 %v1534
        %1541 = vmatprep.subr.bf16.mxu0 0
        %1542 = vmatpush1.bf16.msra.mxu0 0
        %1543 = vmatprep.subr.bf16.mxu0 0
        %1544 = vmatpush1.bf16.msra.mxu0 0
        %1545 = vmatprep.subr.bf16.mxu0 0
        %1546 = vmatpush1.bf16.msra.mxu0 0
        %1547 = vmatprep.subr.bf16.mxu0 0
        %1548 = vmatpush1.bf16.msra.mxu0 0
        %1549 = vmatprep.subr.bf16.mxu0 0
        %1550 = vmatpush1.bf16.msra.mxu0 0
        %1551 = vmatprep.subr.bf16.mxu0 0
        %1552 = vmatpush1.bf16.msra.mxu0 0
        %1553 = vmatprep.subr.bf16.mxu0 0
        %1554 = vmatpush1.bf16.msra.mxu0 0
        %1555 = vmatprep.subr.bf16.mxu0 0
        %1556 = vmatpush1.bf16.msra.mxu0 0
        %1557 = vmatprep.subr.bf16.mxu0 0
        %1558 = vmatpush1.bf16.msra.mxu0 0
        %1559 = vmatprep.subr.bf16.mxu0 0
        %1560 = vmatpush1.bf16.msra.mxu0 0
        %1561 = vmatprep.subr.bf16.mxu0 0
        %1562 = vmatpush1.bf16.msra.mxu0 0
        %1563 = vmatprep.subr.bf16.mxu0 0
        %1564 = vmatpush1.bf16.msra.mxu0 0
        %1565 = vmatprep.subr.bf16.mxu0 0
        %1566 = vmatpush1.bf16.msra.mxu0 0
        %1567 = vmatprep.subr.bf16.mxu0 0
        %1568 = vmatpush1.bf16.msra.mxu0 0
        %1569 = vmatprep.subr.bf16.mxu0 0
        %1570 = vmatpush1.bf16.msra.mxu0 0
        %1571 = vmatprep.mubr.bf16.mxu0 0
        %1572 = vmatmul.mubr.bf16.gmra.mrb[0].mxu0 %v1537
        %v1573 = vpop.f32.mrb[0].mxu0
        %v1574 = vadd.f32 0.0, %v1573
        %v1575 = vpop.f32.mrb[0].mxu0
        %v1576 = vpop.f32.mrb[0].mxu0
        %v1577 = vadd.f32 0.0, %v1576
        %v1578 = vpop.f32.mrb[0].mxu0
        %1579 = vdwg.mxu0
        %v1580 = vmul.f32 %v1574, %v1530
        %v1581 = vmul.f32 %v1577, %v1531
        %v1582 = vpack.c.bf16 %v1581, %v1580
        %1584 = vrot.lane.b32.xlu0 %v1582, 64
        %v1585 = vpop.permute.xlu0 %1584
        %vm1587 = vcmask 785920
        %1588 = vst.msk [vmem:[#allocation2] sm:$0xff] %vm1587, %v1585
        %1589 = vrot.lane.b32.xlu0 %v1188, 32
        %v1590 = vpop.permute.xlu0 %1589
        %1591 = vrot.lane.b32.xlu0 %v1196, 32
        %v1592 = vpop.permute.xlu0 %1591
        %v1594 = vsel %vm1212, %v1590, 0
        %v1597 = vsel %vm1212, %v1592, 0
        %1599 = vmatprep.subr.bf16.mxu0 0
        %1600 = vmatpush1.bf16.xpose.msra.mxu0 %v1597
        %1601 = vmatprep.subr.bf16.mxu0 0
        %1602 = vmatpush1.bf16.xpose.msra.mxu0 0
        %1603 = vmatprep.subr.bf16.mxu0 0
        %1604 = vmatpush1.bf16.xpose.msra.mxu0 0
        %1605 = vmatprep.subr.bf16.mxu0 0
        %1606 = vmatpush1.bf16.xpose.msra.mxu0 0
        %1607 = vmatprep.subr.bf16.mxu0 0
        %1608 = vmatpush1.bf16.xpose.msra.mxu0 0
        %1609 = vmatprep.subr.bf16.mxu0 0
        %1610 = vmatpush1.bf16.xpose.msra.mxu0 0
        %1611 = vmatprep.subr.bf16.mxu0 0
        %1612 = vmatpush1.bf16.xpose.msra.mxu0 0
        %1613 = vmatprep.subr.bf16.mxu0 0
        %1614 = vmatpush1.bf16.xpose.msra.mxu0 0
        %1615 = vmatprep.subr.bf16.mxu0 0
        %1616 = vmatpush1.bf16.xpose.msra.mxu0 0
        %1617 = vmatprep.subr.bf16.mxu0 0
        %1618 = vmatpush1.bf16.xpose.msra.mxu0 0
        %1619 = vmatprep.subr.bf16.mxu0 0
        %1620 = vmatpush1.bf16.xpose.msra.mxu0 0
        %1621 = vmatprep.subr.bf16.mxu0 0
        %1622 = vmatpush1.bf16.xpose.msra.mxu0 0
        %1623 = vmatprep.subr.bf16.mxu0 0
        %1624 = vmatpush1.bf16.xpose.msra.mxu0 0
        %1625 = vmatprep.subr.bf16.mxu0 0
        %1626 = vmatpush1.bf16.xpose.msra.mxu0 0
        %1627 = vmatprep.subr.bf16.mxu0 0
        %1628 = vmatpush1.bf16.xpose.msra.mxu0 0
        %1629 = vmatprep.subr.bf16.mxu0 0
        %1630 = vmatpush1.bf16.xpose.msra.mxu0 0
        %1631 = vmatprep.mubr.bf16.mxu0 0
        %1632 = vmatmul.mubr.bf16.gmra.mrb[0].mxu0 %v1594
        %v1633 = vpop.f32.mrb[0].mxu0
        %v1634 = vadd.f32 0.0, %v1633
        %v1635 = vpop.f32.mrb[0].mxu0
        %v1636 = vpop.f32.mrb[0].mxu0
        %v1637 = vadd.f32 0.0, %v1636
        %v1638 = vpop.f32.mrb[0].mxu0
        %1639 = vdwg.mxu0
        %v1640 = vsel %vm1260, %v1634, -inf
        %1641 = vmax.xlane.f32.xlu0 %v1640
        %v1642 = vpop.xlane.xlu0 %1641
        %v1643 = vsel %vm1260, %v1637, -inf
        %1644 = vmax.xlane.f32.xlu0 %v1643
        %v1645 = vpop.xlane.xlu0 %1644
        %v1646 = vsub.f32 %v1634, %v1642
        %v1647 = vsub.f32 %v1637, %v1645
        %v1648 = vmul.f32 %v1646, 1.442695
        %v1649 = vpow.pop %v1648
        %v1650 = vmul.f32 %v1647, 1.442695
        %v1651 = vpow.pop %v1650
        %v1652 = vsel %vm1260, %v1649, 0.0
        %1653 = vadd.xlane.f32.xlu0 %v1652
        %v1654 = vpop.xlane.xlu0 %1653
        %v1655 = vsel %vm1260, %v1651, 0.0
        %1656 = vadd.xlane.f32.xlu0 %v1655
        %v1657 = vpop.xlane.xlu0 %1656
        %v1658 = vrcp.pop %v1654
        %v1659 = vrcp.pop %v1657
        %v1660 = vpack.c.bf16 %v1651, %v1649
        %1661 = vrot.lane.b32.xlu0 %v1204, 32
        %v1662 = vpop.permute.xlu0 %1661
        %v1665 = vsel %vm1260, %v1660, 0
        %1667 = vmatprep.subr.bf16.mxu0 0
        %1668 = vmatpush1.bf16.msra.mxu0 %v1662
        %1669 = vmatprep.subr.bf16.mxu0 0
        %1670 = vmatpush1.bf16.msra.mxu0 0
        %1671 = vmatprep.subr.bf16.mxu0 0
        %1672 = vmatpush1.bf16.msra.mxu0 0
        %1673 = vmatprep.subr.bf16.mxu0 0
        %1674 = vmatpush1.bf16.msra.mxu0 0
        %1675 = vmatprep.subr.bf16.mxu0 0
        %1676 = vmatpush1.bf16.msra.mxu0 0
        %1677 = vmatprep.subr.bf16.mxu0 0
        %1678 = vmatpush1.bf16.msra.mxu0 0
        %1679 = vmatprep.subr.bf16.mxu0 0
        %1680 = vmatpush1.bf16.msra.mxu0 0
        %1681 = vmatprep.subr.bf16.mxu0 0
        %1682 = vmatpush1.bf16.msra.mxu0 0
        %1683 = vmatprep.subr.bf16.mxu0 0
        %1684 = vmatpush1.bf16.msra.mxu0 0
        %1685 = vmatprep.subr.bf16.mxu0 0
        %1686 = vmatpush1.bf16.msra.mxu0 0
        %1687 = vmatprep.subr.bf16.mxu0 0
        %1688 = vmatpush1.bf16.msra.mxu0 0
        %1689 = vmatprep.subr.bf16.mxu0 0
        %1690 = vmatpush1.bf16.msra.mxu0 0
        %1691 = vmatprep.subr.bf16.mxu0 0
        %1692 = vmatpush1.bf16.msra.mxu0 0
        %1693 = vmatprep.subr.bf16.mxu0 0
        %1694 = vmatpush1.bf16.msra.mxu0 0
        %1695 = vmatprep.subr.bf16.mxu0 0
        %1696 = vmatpush1.bf16.msra.mxu0 0
        %1697 = vmatprep.subr.bf16.mxu0 0
        %1698 = vmatpush1.bf16.msra.mxu0 0
        %1699 = vmatprep.mubr.bf16.mxu0 0
        %1700 = vmatmul.mubr.bf16.gmra.mrb[0].mxu0 %v1665
        %v1701 = vpop.f32.mrb[0].mxu0
        %v1702 = vadd.f32 0.0, %v1701
        %v1703 = vpop.f32.mrb[0].mxu0
        %v1704 = vpop.f32.mrb[0].mxu0
        %v1705 = vadd.f32 0.0, %v1704
        %v1706 = vpop.f32.mrb[0].mxu0
        %1707 = vdwg.mxu0
        %v1708 = vmul.f32 %v1702, %v1658
        %v1709 = vmul.f32 %v1705, %v1659
        %v1710 = vpack.c.bf16 %v1709, %v1708
        %1712 = vrot.lane.b32.xlu0 %v1710, 96
        %v1713 = vpop.permute.xlu0 %1712
        %vm1715 = vcmask 1048320
        %1716 = vst.msk [vmem:[#allocation2] sm:$0xff] %vm1715, %v1713
        %v1718 = vsel %vm1212, %v1189, 0
        %v1721 = vsel %vm1212, %v1197, 0
        %1723 = vmatprep.subr.bf16.mxu0 0
        %1724 = vmatpush1.bf16.xpose.msra.mxu0 %v1721
        %1725 = vmatprep.subr.bf16.mxu0 0
        %1726 = vmatpush1.bf16.xpose.msra.mxu0 0
        %1727 = vmatprep.subr.bf16.mxu0 0
        %1728 = vmatpush1.bf16.xpose.msra.mxu0 0
        %1729 = vmatprep.subr.bf16.mxu0 0
        %1730 = vmatpush1.bf16.xpose.msra.mxu0 0
        %1731 = vmatprep.subr.bf16.mxu0 0
        %1732 = vmatpush1.bf16.xpose.msra.mxu0 0
        %1733 = vmatprep.subr.bf16.mxu0 0
        %1734 = vmatpush1.bf16.xpose.msra.mxu0 0
        %1735 = vmatprep.subr.bf16.mxu0 0
        %1736 = vmatpush1.bf16.xpose.msra.mxu0 0
        %1737 = vmatprep.subr.bf16.mxu0 0
        %1738 = vmatpush1.bf16.xpose.msra.mxu0 0
        %1739 = vmatprep.subr.bf16.mxu0 0
        %1740 = vmatpush1.bf16.xpose.msra.mxu0 0
        %1741 = vmatprep.subr.bf16.mxu0 0
        %1742 = vmatpush1.bf16.xpose.msra.mxu0 0
        %1743 = vmatprep.subr.bf16.mxu0 0
        %1744 = vmatpush1.bf16.xpose.msra.mxu0 0
        %1745 = vmatprep.subr.bf16.mxu0 0
        %1746 = vmatpush1.bf16.xpose.msra.mxu0 0
        %1747 = vmatprep.subr.bf16.mxu0 0
        %1748 = vmatpush1.bf16.xpose.msra.mxu0 0
        %1749 = vmatprep.subr.bf16.mxu0 0
        %1750 = vmatpush1.bf16.xpose.msra.mxu0 0
        %1751 = vmatprep.subr.bf16.mxu0 0
        %1752 = vmatpush1.bf16.xpose.msra.mxu0 0
        %1753 = vmatprep.subr.bf16.mxu0 0
        %1754 = vmatpush1.bf16.xpose.msra.mxu0 0
        %1755 = vmatprep.mubr.bf16.mxu0 0
        %1756 = vmatmul.mubr.bf16.gmra.mrb[0].mxu0 %v1718
        %v1757 = vpop.f32.mrb[0].mxu0
        %v1758 = vadd.f32 0.0, %v1757
        %v1759 = vpop.f32.mrb[0].mxu0
        %v1760 = vpop.f32.mrb[0].mxu0
        %v1761 = vadd.f32 0.0, %v1760
        %v1762 = vpop.f32.mrb[0].mxu0
        %1763 = vdwg.mxu0
        %v1764 = vsel %vm1260, %v1758, -inf
        %1765 = vmax.xlane.f32.xlu0 %v1764
        %v1766 = vpop.xlane.xlu0 %1765
        %v1767 = vsel %vm1260, %v1761, -inf
        %1768 = vmax.xlane.f32.xlu0 %v1767
        %v1769 = vpop.xlane.xlu0 %1768
        %v1770 = vsub.f32 %v1758, %v1766
        %v1771 = vsub.f32 %v1761, %v1769
        %v1772 = vmul.f32 %v1770, 1.442695
        %v1773 = vpow.pop %v1772
        %v1774 = vmul.f32 %v1771, 1.442695
        %v1775 = vpow.pop %v1774
        %v1776 = vsel %vm1260, %v1773, 0.0
        %1777 = vadd.xlane.f32.xlu0 %v1776
        %v1778 = vpop.xlane.xlu0 %1777
        %v1779 = vsel %vm1260, %v1775, 0.0
        %1780 = vadd.xlane.f32.xlu0 %v1779
        %v1781 = vpop.xlane.xlu0 %1780
        %v1782 = vrcp.pop %v1778
        %v1783 = vrcp.pop %v1781
        %v1784 = vpack.c.bf16 %v1775, %v1773
        %v1786 = vsel %vm1260, %v1784, 0
        %1788 = vmatprep.subr.bf16.mxu0 0
        %1789 = vmatpush1.bf16.msra.mxu0 %v1205
        %1790 = vmatprep.subr.bf16.mxu0 0
        %1791 = vmatpush1.bf16.msra.mxu0 0
        %1792 = vmatprep.subr.bf16.mxu0 0
        %1793 = vmatpush1.bf16.msra.mxu0 0
        %1794 = vmatprep.subr.bf16.mxu0 0
        %1795 = vmatpush1.bf16.msra.mxu0 0
        %1796 = vmatprep.subr.bf16.mxu0 0
        %1797 = vmatpush1.bf16.msra.mxu0 0
        %1798 = vmatprep.subr.bf16.mxu0 0
        %1799 = vmatpush1.bf16.msra.mxu0 0
        %1800 = vmatprep.subr.bf16.mxu0 0
        %1801 = vmatpush1.bf16.msra.mxu0 0
        %1802 = vmatprep.subr.bf16.mxu0 0
        %1803 = vmatpush1.bf16.msra.mxu0 0
        %1804 = vmatprep.subr.bf16.mxu0 0
        %1805 = vmatpush1.bf16.msra.mxu0 0
        %1806 = vmatprep.subr.bf16.mxu0 0
        %1807 = vmatpush1.bf16.msra.mxu0 0
        %1808 = vmatprep.subr.bf16.mxu0 0
        %1809 = vmatpush1.bf16.msra.mxu0 0
        %1810 = vmatprep.subr.bf16.mxu0 0
        %1811 = vmatpush1.bf16.msra.mxu0 0
        %1812 = vmatprep.subr.bf16.mxu0 0
        %1813 = vmatpush1.bf16.msra.mxu0 0
        %1814 = vmatprep.subr.bf16.mxu0 0
        %1815 = vmatpush1.bf16.msra.mxu0 0
        %1816 = vmatprep.subr.bf16.mxu0 0
        %1817 = vmatpush1.bf16.msra.mxu0 0
        %1818 = vmatprep.subr.bf16.mxu0 0
        %1819 = vmatpush1.bf16.msra.mxu0 0
        %1820 = vmatprep.mubr.bf16.mxu0 0
        %1821 = vmatmul.mubr.bf16.gmra.mrb[0].mxu0 %v1786
        %v1822 = vpop.f32.mrb[0].mxu0
        %v1823 = vadd.f32 0.0, %v1822
        %v1824 = vpop.f32.mrb[0].mxu0
        %v1825 = vpop.f32.mrb[0].mxu0
        %v1826 = vadd.f32 0.0, %v1825
        %v1827 = vpop.f32.mrb[0].mxu0
        %1828 = vdwg.mxu0
        %v1829 = vmul.f32 %v1823, %v1782
        %v1830 = vmul.f32 %v1826, %v1783
        %v1831 = vpack.c.bf16 %v1830, %v1829
        %1832 = vst.msk [vmem:[#allocation2 + $0x8] sm:$0xff] %vm1212, %v1831
        %1834 = vrot.lane.b32.xlu0 %v1189, 96
        %v1835 = vpop.permute.xlu0 %1834
        %1837 = vrot.lane.b32.xlu0 %v1197, 96
        %v1838 = vpop.permute.xlu0 %1837
        %v1840 = vsel %vm1212, %v1835, 0
        %v1843 = vsel %vm1212, %v1838, 0
        %1845 = vmatprep.subr.bf16.mxu0 0
        %1846 = vmatpush1.bf16.xpose.msra.mxu0 %v1843
        %1847 = vmatprep.subr.bf16.mxu0 0
        %1848 = vmatpush1.bf16.xpose.msra.mxu0 0
        %1849 = vmatprep.subr.bf16.mxu0 0
        %1850 = vmatpush1.bf16.xpose.msra.mxu0 0
        %1851 = vmatprep.subr.bf16.mxu0 0
        %1852 = vmatpush1.bf16.xpose.msra.mxu0 0
        %1853 = vmatprep.subr.bf16.mxu0 0
        %1854 = vmatpush1.bf16.xpose.msra.mxu0 0
        %1855 = vmatprep.subr.bf16.mxu0 0
        %1856 = vmatpush1.bf16.xpose.msra.mxu0 0
        %1857 = vmatprep.subr.bf16.mxu0 0
        %1858 = vmatpush1.bf16.xpose.msra.mxu0 0
        %1859 = vmatprep.subr.bf16.mxu0 0
        %1860 = vmatpush1.bf16.xpose.msra.mxu0 0
        %1861 = vmatprep.subr.bf16.mxu0 0
        %1862 = vmatpush1.bf16.xpose.msra.mxu0 0
        %1863 = vmatprep.subr.bf16.mxu0 0
        %1864 = vmatpush1.bf16.xpose.msra.mxu0 0
        %1865 = vmatprep.subr.bf16.mxu0 0
        %1866 = vmatpush1.bf16.xpose.msra.mxu0 0
        %1867 = vmatprep.subr.bf16.mxu0 0
        %1868 = vmatpush1.bf16.xpose.msra.mxu0 0
        %1869 = vmatprep.subr.bf16.mxu0 0
        %1870 = vmatpush1.bf16.xpose.msra.mxu0 0
        %1871 = vmatprep.subr.bf16.mxu0 0
        %1872 = vmatpush1.bf16.xpose.msra.mxu0 0
        %1873 = vmatprep.subr.bf16.mxu0 0
        %1874 = vmatpush1.bf16.xpose.msra.mxu0 0
        %1875 = vmatprep.subr.bf16.mxu0 0
        %1876 = vmatpush1.bf16.xpose.msra.mxu0 0
        %1877 = vmatprep.mubr.bf16.mxu0 0
        %1878 = vmatmul.mubr.bf16.gmra.mrb[0].mxu0 %v1840
        %v1879 = vpop.f32.mrb[0].mxu0
        %v1880 = vadd.f32 0.0, %v1879
        %v1881 = vpop.f32.mrb[0].mxu0
        %v1882 = vpop.f32.mrb[0].mxu0
        %v1883 = vadd.f32 0.0, %v1882
        %v1884 = vpop.f32.mrb[0].mxu0
        %1885 = vdwg.mxu0
        %v1886 = vsel %vm1260, %v1880, -inf
        %1887 = vmax.xlane.f32.xlu0 %v1886
        %v1888 = vpop.xlane.xlu0 %1887
        %v1889 = vsel %vm1260, %v1883, -inf
        %1890 = vmax.xlane.f32.xlu0 %v1889
        %v1891 = vpop.xlane.xlu0 %1890
        %v1892 = vsub.f32 %v1880, %v1888
        %v1893 = vsub.f32 %v1883, %v1891
        %v1894 = vmul.f32 %v1892, 1.442695
        %v1895 = vpow.pop %v1894
        %v1896 = vmul.f32 %v1893, 1.442695
        %v1897 = vpow.pop %v1896
        %v1898 = vsel %vm1260, %v1895, 0.0
        %1899 = vadd.xlane.f32.xlu0 %v1898
        %v1900 = vpop.xlane.xlu0 %1899
        %v1901 = vsel %vm1260, %v1897, 0.0
        %1902 = vadd.xlane.f32.xlu0 %v1901
        %v1903 = vpop.xlane.xlu0 %1902
        %v1904 = vrcp.pop %v1900
        %v1905 = vrcp.pop %v1903
        %v1906 = vpack.c.bf16 %v1897, %v1895
        %1908 = vrot.lane.b32.xlu0 %v1205, 96
        %v1909 = vpop.permute.xlu0 %1908
        %v1912 = vsel %vm1260, %v1906, 0
        %1914 = vmatprep.subr.bf16.mxu0 0
        %1915 = vmatpush1.bf16.msra.mxu0 %v1909
        %1916 = vmatprep.subr.bf16.mxu0 0
        %1917 = vmatpush1.bf16.msra.mxu0 0
        %1918 = vmatprep.subr.bf16.mxu0 0
        %1919 = vmatpush1.bf16.msra.mxu0 0
        %1920 = vmatprep.subr.bf16.mxu0 0
        %1921 = vmatpush1.bf16.msra.mxu0 0
        %1922 = vmatprep.subr.bf16.mxu0 0
        %1923 = vmatpush1.bf16.msra.mxu0 0
        %1924 = vmatprep.subr.bf16.mxu0 0
        %1925 = vmatpush1.bf16.msra.mxu0 0
        %1926 = vmatprep.subr.bf16.mxu0 0
        %1927 = vmatpush1.bf16.msra.mxu0 0
        %1928 = vmatprep.subr.bf16.mxu0 0
        %1929 = vmatpush1.bf16.msra.mxu0 0
        %1930 = vmatprep.subr.bf16.mxu0 0
        %1931 = vmatpush1.bf16.msra.mxu0 0
        %1932 = vmatprep.subr.bf16.mxu0 0
        %1933 = vmatpush1.bf16.msra.mxu0 0
        %1934 = vmatprep.subr.bf16.mxu0 0
        %1935 = vmatpush1.bf16.msra.mxu0 0
        %1936 = vmatprep.subr.bf16.mxu0 0
        %1937 = vmatpush1.bf16.msra.mxu0 0
        %1938 = vmatprep.subr.bf16.mxu0 0
        %1939 = vmatpush1.bf16.msra.mxu0 0
        %1940 = vmatprep.subr.bf16.mxu0 0
        %1941 = vmatpush1.bf16.msra.mxu0 0
        %1942 = vmatprep.subr.bf16.mxu0 0
        %1943 = vmatpush1.bf16.msra.mxu0 0
        %1944 = vmatprep.subr.bf16.mxu0 0
        %1945 = vmatpush1.bf16.msra.mxu0 0
        %1946 = vmatprep.mubr.bf16.mxu0 0
        %1947 = vmatmul.mubr.bf16.gmra.mrb[0].mxu0 %v1912
        %v1948 = vpop.f32.mrb[0].mxu0
        %v1949 = vadd.f32 0.0, %v1948
        %v1950 = vpop.f32.mrb[0].mxu0
        %v1951 = vpop.f32.mrb[0].mxu0
        %v1952 = vadd.f32 0.0, %v1951
        %v1953 = vpop.f32.mrb[0].mxu0
        %1954 = vdwg.mxu0
        %v1955 = vmul.f32 %v1949, %v1904
        %v1956 = vmul.f32 %v1952, %v1905
        %v1957 = vpack.c.bf16 %v1956, %v1955
        %1959 = vrot.lane.b32.xlu0 %v1957, 32
        %v1960 = vpop.permute.xlu0 %1959
        %1962 = vst.msk [vmem:[#allocation2 + $0x8] sm:$0xff] %vm1459, %v1960
        %1963 = vrot.lane.b32.xlu0 %v1189, 64
        %v1964 = vpop.permute.xlu0 %1963
        %1965 = vrot.lane.b32.xlu0 %v1197, 64
        %v1966 = vpop.permute.xlu0 %1965
        %v1968 = vsel %vm1212, %v1964, 0
        %v1971 = vsel %vm1212, %v1966, 0
        %1973 = vmatprep.subr.bf16.mxu0 0
        %1974 = vmatpush1.bf16.xpose.msra.mxu0 %v1971
        %1975 = vmatprep.subr.bf16.mxu0 0
        %1976 = vmatpush1.bf16.xpose.msra.mxu0 0
        %1977 = vmatprep.subr.bf16.mxu0 0
        %1978 = vmatpush1.bf16.xpose.msra.mxu0 0
        %1979 = vmatprep.subr.bf16.mxu0 0
        %1980 = vmatpush1.bf16.xpose.msra.mxu0 0
        %1981 = vmatprep.subr.bf16.mxu0 0
        %1982 = vmatpush1.bf16.xpose.msra.mxu0 0
        %1983 = vmatprep.subr.bf16.mxu0 0
        %1984 = vmatpush1.bf16.xpose.msra.mxu0 0
        %1985 = vmatprep.subr.bf16.mxu0 0
        %1986 = vmatpush1.bf16.xpose.msra.mxu0 0
        %1987 = vmatprep.subr.bf16.mxu0 0
        %1988 = vmatpush1.bf16.xpose.msra.mxu0 0
        %1989 = vmatprep.subr.bf16.mxu0 0
        %1990 = vmatpush1.bf16.xpose.msra.mxu0 0
        %1991 = vmatprep.subr.bf16.mxu0 0
        %1992 = vmatpush1.bf16.xpose.msra.mxu0 0
        %1993 = vmatprep.subr.bf16.mxu0 0
        %1994 = vmatpush1.bf16.xpose.msra.mxu0 0
        %1995 = vmatprep.subr.bf16.mxu0 0
        %1996 = vmatpush1.bf16.xpose.msra.mxu0 0
        %1997 = vmatprep.subr.bf16.mxu0 0
        %1998 = vmatpush1.bf16.xpose.msra.mxu0 0
        %1999 = vmatprep.subr.bf16.mxu0 0
        %2000 = vmatpush1.bf16.xpose.msra.mxu0 0
        %2001 = vmatprep.subr.bf16.mxu0 0
        %2002 = vmatpush1.bf16.xpose.msra.mxu0 0
        %2003 = vmatprep.subr.bf16.mxu0 0
        %2004 = vmatpush1.bf16.xpose.msra.mxu0 0
        %2005 = vmatprep.mubr.bf16.mxu0 0
        %2006 = vmatmul.mubr.bf16.gmra.mrb[0].mxu0 %v1968
        %v2007 = vpop.f32.mrb[0].mxu0
        %v2008 = vadd.f32 0.0, %v2007
        %v2009 = vpop.f32.mrb[0].mxu0
        %v2010 = vpop.f32.mrb[0].mxu0
        %v2011 = vadd.f32 0.0, %v2010
        %v2012 = vpop.f32.mrb[0].mxu0
        %2013 = vdwg.mxu0
        %v2014 = vsel %vm1260, %v2008, -inf
        %2015 = vmax.xlane.f32.xlu0 %v2014
        %v2016 = vpop.xlane.xlu0 %2015
        %v2017 = vsel %vm1260, %v2011, -inf
        %2018 = vmax.xlane.f32.xlu0 %v2017
        %v2019 = vpop.xlane.xlu0 %2018
        %v2020 = vsub.f32 %v2008, %v2016
        %v2021 = vsub.f32 %v2011, %v2019
        %v2022 = vmul.f32 %v2020, 1.442695
        %v2023 = vpow.pop %v2022
        %v2024 = vmul.f32 %v2021, 1.442695
        %v2025 = vpow.pop %v2024
        %v2026 = vsel %vm1260, %v2023, 0.0
        %2027 = vadd.xlane.f32.xlu0 %v2026
        %v2028 = vpop.xlane.xlu0 %2027
        %v2029 = vsel %vm1260, %v2025, 0.0
        %2030 = vadd.xlane.f32.xlu0 %v2029
        %v2031 = vpop.xlane.xlu0 %2030
        %v2032 = vrcp.pop %v2028
        %v2033 = vrcp.pop %v2031
        %v2034 = vpack.c.bf16 %v2025, %v2023
        %2035 = vrot.lane.b32.xlu0 %v1205, 64
        %v2036 = vpop.permute.xlu0 %2035
        %v2039 = vsel %vm1260, %v2034, 0
        %2041 = vmatprep.subr.bf16.mxu0 0
        %2042 = vmatpush1.bf16.msra.mxu0 %v2036
        %2043 = vmatprep.subr.bf16.mxu0 0
        %2044 = vmatpush1.bf16.msra.mxu0 0
        %2045 = vmatprep.subr.bf16.mxu0 0
        %2046 = vmatpush1.bf16.msra.mxu0 0
        %2047 = vmatprep.subr.bf16.mxu0 0
        %2048 = vmatpush1.bf16.msra.mxu0 0
        %2049 = vmatprep.subr.bf16.mxu0 0
        %2050 = vmatpush1.bf16.msra.mxu0 0
        %2051 = vmatprep.subr.bf16.mxu0 0
        %2052 = vmatpush1.bf16.msra.mxu0 0
        %2053 = vmatprep.subr.bf16.mxu0 0
        %2054 = vmatpush1.bf16.msra.mxu0 0
        %2055 = vmatprep.subr.bf16.mxu0 0
        %2056 = vmatpush1.bf16.msra.mxu0 0
        %2057 = vmatprep.subr.bf16.mxu0 0
        %2058 = vmatpush1.bf16.msra.mxu0 0
        %2059 = vmatprep.subr.bf16.mxu0 0
        %2060 = vmatpush1.bf16.msra.mxu0 0
        %2061 = vmatprep.subr.bf16.mxu0 0
        %2062 = vmatpush1.bf16.msra.mxu0 0
        %2063 = vmatprep.subr.bf16.mxu0 0
        %2064 = vmatpush1.bf16.msra.mxu0 0
        %2065 = vmatprep.subr.bf16.mxu0 0
        %2066 = vmatpush1.bf16.msra.mxu0 0
        %2067 = vmatprep.subr.bf16.mxu0 0
        %2068 = vmatpush1.bf16.msra.mxu0 0
        %2069 = vmatprep.subr.bf16.mxu0 0
        %2070 = vmatpush1.bf16.msra.mxu0 0
        %2071 = vmatprep.subr.bf16.mxu0 0
        %2072 = vmatpush1.bf16.msra.mxu0 0
        %2073 = vmatprep.mubr.bf16.mxu0 0
        %2074 = vmatmul.mubr.bf16.gmra.mrb[0].mxu0 %v2039
        %v2075 = vpop.f32.mrb[0].mxu0
        %v2076 = vadd.f32 0.0, %v2075
        %v2077 = vpop.f32.mrb[0].mxu0
        %v2078 = vpop.f32.mrb[0].mxu0
        %v2079 = vadd.f32 0.0, %v2078
        %v2080 = vpop.f32.mrb[0].mxu0
        %2081 = vdwg.mxu0
        %v2082 = vmul.f32 %v2076, %v2032
        %v2083 = vmul.f32 %v2079, %v2033
        %v2084 = vpack.c.bf16 %v2083, %v2082
        %2086 = vrot.lane.b32.xlu0 %v2084, 64
        %v2087 = vpop.permute.xlu0 %2086
        %2089 = vst.msk [vmem:[#allocation2 + $0x8] sm:$0xff] %vm1587, %v2087
        %2090 = vrot.lane.b32.xlu0 %v1189, 32
        %v2091 = vpop.permute.xlu0 %2090
        %2092 = vrot.lane.b32.xlu0 %v1197, 32
        %v2093 = vpop.permute.xlu0 %2092
        %v2095 = vsel %vm1212, %v2091, 0
        %v2098 = vsel %vm1212, %v2093, 0
        %2100 = vmatprep.subr.bf16.mxu0 0
        %2101 = vmatpush1.bf16.xpose.msra.mxu0 %v2098
        %2102 = vmatprep.subr.bf16.mxu0 0
        %2103 = vmatpush1.bf16.xpose.msra.mxu0 0
        %2104 = vmatprep.subr.bf16.mxu0 0
        %2105 = vmatpush1.bf16.xpose.msra.mxu0 0
        %2106 = vmatprep.subr.bf16.mxu0 0
        %2107 = vmatpush1.bf16.xpose.msra.mxu0 0
        %2108 = vmatprep.subr.bf16.mxu0 0
        %2109 = vmatpush1.bf16.xpose.msra.mxu0 0
        %2110 = vmatprep.subr.bf16.mxu0 0
        %2111 = vmatpush1.bf16.xpose.msra.mxu0 0
        %2112 = vmatprep.subr.bf16.mxu0 0
        %2113 = vmatpush1.bf16.xpose.msra.mxu0 0
        %2114 = vmatprep.subr.bf16.mxu0 0
        %2115 = vmatpush1.bf16.xpose.msra.mxu0 0
        %2116 = vmatprep.subr.bf16.mxu0 0
        %2117 = vmatpush1.bf16.xpose.msra.mxu0 0
        %2118 = vmatprep.subr.bf16.mxu0 0
        %2119 = vmatpush1.bf16.xpose.msra.mxu0 0
        %2120 = vmatprep.subr.bf16.mxu0 0
        %2121 = vmatpush1.bf16.xpose.msra.mxu0 0
        %2122 = vmatprep.subr.bf16.mxu0 0
        %2123 = vmatpush1.bf16.xpose.msra.mxu0 0
        %2124 = vmatprep.subr.bf16.mxu0 0
        %2125 = vmatpush1.bf16.xpose.msra.mxu0 0
        %2126 = vmatprep.subr.bf16.mxu0 0
        %2127 = vmatpush1.bf16.xpose.msra.mxu0 0
        %2128 = vmatprep.subr.bf16.mxu0 0
        %2129 = vmatpush1.bf16.xpose.msra.mxu0 0
        %2130 = vmatprep.subr.bf16.mxu0 0
        %2131 = vmatpush1.bf16.xpose.msra.mxu0 0
        %2132 = vmatprep.mubr.bf16.mxu0 0
        %2133 = vmatmul.mubr.bf16.gmra.mrb[0].mxu0 %v2095
        %v2134 = vpop.f32.mrb[0].mxu0
        %v2135 = vadd.f32 0.0, %v2134
        %v2136 = vpop.f32.mrb[0].mxu0
        %v2137 = vpop.f32.mrb[0].mxu0
        %v2138 = vadd.f32 0.0, %v2137
        %v2139 = vpop.f32.mrb[0].mxu0
        %2140 = vdwg.mxu0
        %v2141 = vsel %vm1260, %v2135, -inf
        %2142 = vmax.xlane.f32.xlu0 %v2141
        %v2143 = vpop.xlane.xlu0 %2142
        %v2144 = vsel %vm1260, %v2138, -inf
        %2145 = vmax.xlane.f32.xlu0 %v2144
        %v2146 = vpop.xlane.xlu0 %2145
        %v2147 = vsub.f32 %v2135, %v2143
        %v2148 = vsub.f32 %v2138, %v2146
        %v2149 = vmul.f32 %v2147, 1.442695
        %v2150 = vpow.pop %v2149
        %v2151 = vmul.f32 %v2148, 1.442695
        %v2152 = vpow.pop %v2151
        %v2153 = vsel %vm1260, %v2150, 0.0
        %2154 = vadd.xlane.f32.xlu0 %v2153
        %v2155 = vpop.xlane.xlu0 %2154
        %v2156 = vsel %vm1260, %v2152, 0.0
        %2157 = vadd.xlane.f32.xlu0 %v2156
        %v2158 = vpop.xlane.xlu0 %2157
        %v2159 = vrcp.pop %v2155
        %v2160 = vrcp.pop %v2158
        %v2161 = vpack.c.bf16 %v2152, %v2150
        %2162 = vrot.lane.b32.xlu0 %v1205, 32
        %v2163 = vpop.permute.xlu0 %2162
        %v2166 = vsel %vm1260, %v2161, 0
        %2168 = vmatprep.subr.bf16.mxu0 0
        %2169 = vmatpush1.bf16.msra.mxu0 %v2163
        %2170 = vmatprep.subr.bf16.mxu0 0
        %2171 = vmatpush1.bf16.msra.mxu0 0
        %2172 = vmatprep.subr.bf16.mxu0 0
        %2173 = vmatpush1.bf16.msra.mxu0 0
        %2174 = vmatprep.subr.bf16.mxu0 0
        %2175 = vmatpush1.bf16.msra.mxu0 0
        %2176 = vmatprep.subr.bf16.mxu0 0
        %2177 = vmatpush1.bf16.msra.mxu0 0
        %2178 = vmatprep.subr.bf16.mxu0 0
        %2179 = vmatpush1.bf16.msra.mxu0 0
        %2180 = vmatprep.subr.bf16.mxu0 0
        %2181 = vmatpush1.bf16.msra.mxu0 0
        %2182 = vmatprep.subr.bf16.mxu0 0
        %2183 = vmatpush1.bf16.msra.mxu0 0
        %2184 = vmatprep.subr.bf16.mxu0 0
        %2185 = vmatpush1.bf16.msra.mxu0 0
        %2186 = vmatprep.subr.bf16.mxu0 0
        %2187 = vmatpush1.bf16.msra.mxu0 0
        %2188 = vmatprep.subr.bf16.mxu0 0
        %2189 = vmatpush1.bf16.msra.mxu0 0
        %2190 = vmatprep.subr.bf16.mxu0 0
        %2191 = vmatpush1.bf16.msra.mxu0 0
        %2192 = vmatprep.subr.bf16.mxu0 0
        %2193 = vmatpush1.bf16.msra.mxu0 0
        %2194 = vmatprep.subr.bf16.mxu0 0
        %2195 = vmatpush1.bf16.msra.mxu0 0
        %2196 = vmatprep.subr.bf16.mxu0 0
        %2197 = vmatpush1.bf16.msra.mxu0 0
        %2198 = vmatprep.subr.bf16.mxu0 0
        %2199 = vmatpush1.bf16.msra.mxu0 0
        %2200 = vmatprep.mubr.bf16.mxu0 0
        %2201 = vmatmul.mubr.bf16.gmra.mrb[0].mxu0 %v2166
        %v2202 = vpop.f32.mrb[0].mxu0
        %v2203 = vadd.f32 0.0, %v2202
        %v2204 = vpop.f32.mrb[0].mxu0
        %v2205 = vpop.f32.mrb[0].mxu0
        %v2206 = vadd.f32 0.0, %v2205
        %v2207 = vpop.f32.mrb[0].mxu0
        %2208 = vdwg.mxu0
        %v2209 = vmul.f32 %v2203, %v2159
        %v2210 = vmul.f32 %v2206, %v2160
        %v2211 = vpack.c.bf16 %v2210, %v2209
        %2213 = vrot.lane.b32.xlu0 %v2211, 96
        %v2214 = vpop.permute.xlu0 %2213
        %2216 = vst.msk [vmem:[#allocation2 + $0x8] sm:$0xff] %vm1715, %v2214
        %v2218 = vsel %vm1212, %v1190, 0
        %v2221 = vsel %vm1212, %v1198, 0
        %2223 = vmatprep.subr.bf16.mxu0 0
        %2224 = vmatpush1.bf16.xpose.msra.mxu0 %v2221
        %2225 = vmatprep.subr.bf16.mxu0 0
        %2226 = vmatpush1.bf16.xpose.msra.mxu0 0
        %2227 = vmatprep.subr.bf16.mxu0 0
        %2228 = vmatpush1.bf16.xpose.msra.mxu0 0
        %2229 = vmatprep.subr.bf16.mxu0 0
        %2230 = vmatpush1.bf16.xpose.msra.mxu0 0
        %2231 = vmatprep.subr.bf16.mxu0 0
        %2232 = vmatpush1.bf16.xpose.msra.mxu0 0
        %2233 = vmatprep.subr.bf16.mxu0 0
        %2234 = vmatpush1.bf16.xpose.msra.mxu0 0
        %2235 = vmatprep.subr.bf16.mxu0 0
        %2236 = vmatpush1.bf16.xpose.msra.mxu0 0
        %2237 = vmatprep.subr.bf16.mxu0 0
        %2238 = vmatpush1.bf16.xpose.msra.mxu0 0
        %2239 = vmatprep.subr.bf16.mxu0 0
        %2240 = vmatpush1.bf16.xpose.msra.mxu0 0
        %2241 = vmatprep.subr.bf16.mxu0 0
        %2242 = vmatpush1.bf16.xpose.msra.mxu0 0
        %2243 = vmatprep.subr.bf16.mxu0 0
        %2244 = vmatpush1.bf16.xpose.msra.mxu0 0
        %2245 = vmatprep.subr.bf16.mxu0 0
        %2246 = vmatpush1.bf16.xpose.msra.mxu0 0
        %2247 = vmatprep.subr.bf16.mxu0 0
        %2248 = vmatpush1.bf16.xpose.msra.mxu0 0
        %2249 = vmatprep.subr.bf16.mxu0 0
        %2250 = vmatpush1.bf16.xpose.msra.mxu0 0
        %2251 = vmatprep.subr.bf16.mxu0 0
        %2252 = vmatpush1.bf16.xpose.msra.mxu0 0
        %2253 = vmatprep.subr.bf16.mxu0 0
        %2254 = vmatpush1.bf16.xpose.msra.mxu0 0
        %2255 = vmatprep.mubr.bf16.mxu0 0
        %2256 = vmatmul.mubr.bf16.gmra.mrb[0].mxu0 %v2218
        %v2257 = vpop.f32.mrb[0].mxu0
        %v2258 = vadd.f32 0.0, %v2257
        %v2259 = vpop.f32.mrb[0].mxu0
        %v2260 = vpop.f32.mrb[0].mxu0
        %v2261 = vadd.f32 0.0, %v2260
        %v2262 = vpop.f32.mrb[0].mxu0
        %2263 = vdwg.mxu0
        %v2264 = vsel %vm1260, %v2258, -inf
        %2265 = vmax.xlane.f32.xlu0 %v2264
        %v2266 = vpop.xlane.xlu0 %2265
        %v2267 = vsel %vm1260, %v2261, -inf
        %2268 = vmax.xlane.f32.xlu0 %v2267
        %v2269 = vpop.xlane.xlu0 %2268
        %v2270 = vsub.f32 %v2258, %v2266
        %v2271 = vsub.f32 %v2261, %v2269
        %v2272 = vmul.f32 %v2270, 1.442695
        %v2273 = vpow.pop %v2272
        %v2274 = vmul.f32 %v2271, 1.442695
        %v2275 = vpow.pop %v2274
        %v2276 = vsel %vm1260, %v2273, 0.0
        %2277 = vadd.xlane.f32.xlu0 %v2276
        %v2278 = vpop.xlane.xlu0 %2277
        %v2279 = vsel %vm1260, %v2275, 0.0
        %2280 = vadd.xlane.f32.xlu0 %v2279
        %v2281 = vpop.xlane.xlu0 %2280
        %v2282 = vrcp.pop %v2278
        %v2283 = vrcp.pop %v2281
        %v2284 = vpack.c.bf16 %v2275, %v2273
        %v2286 = vsel %vm1260, %v2284, 0
        %2288 = vmatprep.subr.bf16.mxu0 0
        %2289 = vmatpush1.bf16.msra.mxu0 %v1206
        %2290 = vmatprep.subr.bf16.mxu0 0
        %2291 = vmatpush1.bf16.msra.mxu0 0
        %2292 = vmatprep.subr.bf16.mxu0 0
        %2293 = vmatpush1.bf16.msra.mxu0 0
        %2294 = vmatprep.subr.bf16.mxu0 0
        %2295 = vmatpush1.bf16.msra.mxu0 0
        %2296 = vmatprep.subr.bf16.mxu0 0
        %2297 = vmatpush1.bf16.msra.mxu0 0
        %2298 = vmatprep.subr.bf16.mxu0 0
        %2299 = vmatpush1.bf16.msra.mxu0 0
        %2300 = vmatprep.subr.bf16.mxu0 0
        %2301 = vmatpush1.bf16.msra.mxu0 0
        %2302 = vmatprep.subr.bf16.mxu0 0
        %2303 = vmatpush1.bf16.msra.mxu0 0
        %2304 = vmatprep.subr.bf16.mxu0 0
        %2305 = vmatpush1.bf16.msra.mxu0 0
        %2306 = vmatprep.subr.bf16.mxu0 0
        %2307 = vmatpush1.bf16.msra.mxu0 0
        %2308 = vmatprep.subr.bf16.mxu0 0
        %2309 = vmatpush1.bf16.msra.mxu0 0
        %2310 = vmatprep.subr.bf16.mxu0 0
        %2311 = vmatpush1.bf16.msra.mxu0 0
        %2312 = vmatprep.subr.bf16.mxu0 0
        %2313 = vmatpush1.bf16.msra.mxu0 0
        %2314 = vmatprep.subr.bf16.mxu0 0
        %2315 = vmatpush1.bf16.msra.mxu0 0
        %2316 = vmatprep.subr.bf16.mxu0 0
        %2317 = vmatpush1.bf16.msra.mxu0 0
        %2318 = vmatprep.subr.bf16.mxu0 0
        %2319 = vmatpush1.bf16.msra.mxu0 0
        %2320 = vmatprep.mubr.bf16.mxu0 0
        %2321 = vmatmul.mubr.bf16.gmra.mrb[0].mxu0 %v2286
        %v2322 = vpop.f32.mrb[0].mxu0
        %v2323 = vadd.f32 0.0, %v2322
        %v2324 = vpop.f32.mrb[0].mxu0
        %v2325 = vpop.f32.mrb[0].mxu0
        %v2326 = vadd.f32 0.0, %v2325
        %v2327 = vpop.f32.mrb[0].mxu0
        %2328 = vdwg.mxu0
        %v2329 = vmul.f32 %v2323, %v2282
        %v2330 = vmul.f32 %v2326, %v2283
        %v2331 = vpack.c.bf16 %v2330, %v2329
        %2332 = vst.msk [vmem:[#allocation2 + $0x10] sm:$0xff] %vm1212, %v2331
        %2334 = vrot.lane.b32.xlu0 %v1190, 96
        %v2335 = vpop.permute.xlu0 %2334
        %2337 = vrot.lane.b32.xlu0 %v1198, 96
        %v2338 = vpop.permute.xlu0 %2337
        %v2340 = vsel %vm1212, %v2335, 0
        %v2343 = vsel %vm1212, %v2338, 0
        %2345 = vmatprep.subr.bf16.mxu0 0
        %2346 = vmatpush1.bf16.xpose.msra.mxu0 %v2343
        %2347 = vmatprep.subr.bf16.mxu0 0
        %2348 = vmatpush1.bf16.xpose.msra.mxu0 0
        %2349 = vmatprep.subr.bf16.mxu0 0
        %2350 = vmatpush1.bf16.xpose.msra.mxu0 0
        %2351 = vmatprep.subr.bf16.mxu0 0
        %2352 = vmatpush1.bf16.xpose.msra.mxu0 0
        %2353 = vmatprep.subr.bf16.mxu0 0
        %2354 = vmatpush1.bf16.xpose.msra.mxu0 0
        %2355 = vmatprep.subr.bf16.mxu0 0
        %2356 = vmatpush1.bf16.xpose.msra.mxu0 0
        %2357 = vmatprep.subr.bf16.mxu0 0
        %2358 = vmatpush1.bf16.xpose.msra.mxu0 0
        %2359 = vmatprep.subr.bf16.mxu0 0
        %2360 = vmatpush1.bf16.xpose.msra.mxu0 0
        %2361 = vmatprep.subr.bf16.mxu0 0
        %2362 = vmatpush1.bf16.xpose.msra.mxu0 0
        %2363 = vmatprep.subr.bf16.mxu0 0
        %2364 = vmatpush1.bf16.xpose.msra.mxu0 0
        %2365 = vmatprep.subr.bf16.mxu0 0
        %2366 = vmatpush1.bf16.xpose.msra.mxu0 0
        %2367 = vmatprep.subr.bf16.mxu0 0
        %2368 = vmatpush1.bf16.xpose.msra.mxu0 0
        %2369 = vmatprep.subr.bf16.mxu0 0
        %2370 = vmatpush1.bf16.xpose.msra.mxu0 0
        %2371 = vmatprep.subr.bf16.mxu0 0
        %2372 = vmatpush1.bf16.xpose.msra.mxu0 0
        %2373 = vmatprep.subr.bf16.mxu0 0
        %2374 = vmatpush1.bf16.xpose.msra.mxu0 0
        %2375 = vmatprep.subr.bf16.mxu0 0
        %2376 = vmatpush1.bf16.xpose.msra.mxu0 0
        %2377 = vmatprep.mubr.bf16.mxu0 0
        %2378 = vmatmul.mubr.bf16.gmra.mrb[0].mxu0 %v2340
        %v2379 = vpop.f32.mrb[0].mxu0
        %v2380 = vadd.f32 0.0, %v2379
        %v2381 = vpop.f32.mrb[0].mxu0
        %v2382 = vpop.f32.mrb[0].mxu0
        %v2383 = vadd.f32 0.0, %v2382
        %v2384 = vpop.f32.mrb[0].mxu0
        %2385 = vdwg.mxu0
        %v2386 = vsel %vm1260, %v2380, -inf
        %2387 = vmax.xlane.f32.xlu0 %v2386
        %v2388 = vpop.xlane.xlu0 %2387
        %v2389 = vsel %vm1260, %v2383, -inf
        %2390 = vmax.xlane.f32.xlu0 %v2389
        %v2391 = vpop.xlane.xlu0 %2390
        %v2392 = vsub.f32 %v2380, %v2388
        %v2393 = vsub.f32 %v2383, %v2391
        %v2394 = vmul.f32 %v2392, 1.442695
        %v2395 = vpow.pop %v2394
        %v2396 = vmul.f32 %v2393, 1.442695
        %v2397 = vpow.pop %v2396
        %v2398 = vsel %vm1260, %v2395, 0.0
        %2399 = vadd.xlane.f32.xlu0 %v2398
        %v2400 = vpop.xlane.xlu0 %2399
        %v2401 = vsel %vm1260, %v2397, 0.0
        %2402 = vadd.xlane.f32.xlu0 %v2401
        %v2403 = vpop.xlane.xlu0 %2402
        %v2404 = vrcp.pop %v2400
        %v2405 = vrcp.pop %v2403
        %v2406 = vpack.c.bf16 %v2397, %v2395
        %2408 = vrot.lane.b32.xlu0 %v1206, 96
        %v2409 = vpop.permute.xlu0 %2408
        %v2412 = vsel %vm1260, %v2406, 0
        %2414 = vmatprep.subr.bf16.mxu0 0
        %2415 = vmatpush1.bf16.msra.mxu0 %v2409
        %2416 = vmatprep.subr.bf16.mxu0 0
        %2417 = vmatpush1.bf16.msra.mxu0 0
        %2418 = vmatprep.subr.bf16.mxu0 0
        %2419 = vmatpush1.bf16.msra.mxu0 0
        %2420 = vmatprep.subr.bf16.mxu0 0
        %2421 = vmatpush1.bf16.msra.mxu0 0
        %2422 = vmatprep.subr.bf16.mxu0 0
        %2423 = vmatpush1.bf16.msra.mxu0 0
        %2424 = vmatprep.subr.bf16.mxu0 0
        %2425 = vmatpush1.bf16.msra.mxu0 0
        %2426 = vmatprep.subr.bf16.mxu0 0
        %2427 = vmatpush1.bf16.msra.mxu0 0
        %2428 = vmatprep.subr.bf16.mxu0 0
        %2429 = vmatpush1.bf16.msra.mxu0 0
        %2430 = vmatprep.subr.bf16.mxu0 0
        %2431 = vmatpush1.bf16.msra.mxu0 0
        %2432 = vmatprep.subr.bf16.mxu0 0
        %2433 = vmatpush1.bf16.msra.mxu0 0
        %2434 = vmatprep.subr.bf16.mxu0 0
        %2435 = vmatpush1.bf16.msra.mxu0 0
        %2436 = vmatprep.subr.bf16.mxu0 0
        %2437 = vmatpush1.bf16.msra.mxu0 0
        %2438 = vmatprep.subr.bf16.mxu0 0
        %2439 = vmatpush1.bf16.msra.mxu0 0
        %2440 = vmatprep.subr.bf16.mxu0 0
        %2441 = vmatpush1.bf16.msra.mxu0 0
        %2442 = vmatprep.subr.bf16.mxu0 0
        %2443 = vmatpush1.bf16.msra.mxu0 0
        %2444 = vmatprep.subr.bf16.mxu0 0
        %2445 = vmatpush1.bf16.msra.mxu0 0
        %2446 = vmatprep.mubr.bf16.mxu0 0
        %2447 = vmatmul.mubr.bf16.gmra.mrb[0].mxu0 %v2412
        %v2448 = vpop.f32.mrb[0].mxu0
        %v2449 = vadd.f32 0.0, %v2448
        %v2450 = vpop.f32.mrb[0].mxu0
        %v2451 = vpop.f32.mrb[0].mxu0
        %v2452 = vadd.f32 0.0, %v2451
        %v2453 = vpop.f32.mrb[0].mxu0
        %2454 = vdwg.mxu0
        %v2455 = vmul.f32 %v2449, %v2404
        %v2456 = vmul.f32 %v2452, %v2405
        %v2457 = vpack.c.bf16 %v2456, %v2455
        %2459 = vrot.lane.b32.xlu0 %v2457, 32
        %v2460 = vpop.permute.xlu0 %2459
        %2462 = vst.msk [vmem:[#allocation2 + $0x10] sm:$0xff] %vm1459, %v2460
        %2463 = vrot.lane.b32.xlu0 %v1190, 64
        %v2464 = vpop.permute.xlu0 %2463
        %2465 = vrot.lane.b32.xlu0 %v1198, 64
        %v2466 = vpop.permute.xlu0 %2465
        %v2468 = vsel %vm1212, %v2464, 0
        %v2471 = vsel %vm1212, %v2466, 0
        %2473 = vmatprep.subr.bf16.mxu0 0
        %2474 = vmatpush1.bf16.xpose.msra.mxu0 %v2471
        %2475 = vmatprep.subr.bf16.mxu0 0
        %2476 = vmatpush1.bf16.xpose.msra.mxu0 0
        %2477 = vmatprep.subr.bf16.mxu0 0
        %2478 = vmatpush1.bf16.xpose.msra.mxu0 0
        %2479 = vmatprep.subr.bf16.mxu0 0
        %2480 = vmatpush1.bf16.xpose.msra.mxu0 0
        %2481 = vmatprep.subr.bf16.mxu0 0
        %2482 = vmatpush1.bf16.xpose.msra.mxu0 0
        %2483 = vmatprep.subr.bf16.mxu0 0
        %2484 = vmatpush1.bf16.xpose.msra.mxu0 0
        %2485 = vmatprep.subr.bf16.mxu0 0
        %2486 = vmatpush1.bf16.xpose.msra.mxu0 0
        %2487 = vmatprep.subr.bf16.mxu0 0
        %2488 = vmatpush1.bf16.xpose.msra.mxu0 0
        %2489 = vmatprep.subr.bf16.mxu0 0
        %2490 = vmatpush1.bf16.xpose.msra.mxu0 0
        %2491 = vmatprep.subr.bf16.mxu0 0
        %2492 = vmatpush1.bf16.xpose.msra.mxu0 0
        %2493 = vmatprep.subr.bf16.mxu0 0
        %2494 = vmatpush1.bf16.xpose.msra.mxu0 0
        %2495 = vmatprep.subr.bf16.mxu0 0
        %2496 = vmatpush1.bf16.xpose.msra.mxu0 0
        %2497 = vmatprep.subr.bf16.mxu0 0
        %2498 = vmatpush1.bf16.xpose.msra.mxu0 0
        %2499 = vmatprep.subr.bf16.mxu0 0
        %2500 = vmatpush1.bf16.xpose.msra.mxu0 0
        %2501 = vmatprep.subr.bf16.mxu0 0
        %2502 = vmatpush1.bf16.xpose.msra.mxu0 0
        %2503 = vmatprep.subr.bf16.mxu0 0
        %2504 = vmatpush1.bf16.xpose.msra.mxu0 0
        %2505 = vmatprep.mubr.bf16.mxu0 0
        %2506 = vmatmul.mubr.bf16.gmra.mrb[0].mxu0 %v2468
        %v2507 = vpop.f32.mrb[0].mxu0
        %v2508 = vadd.f32 0.0, %v2507
        %v2509 = vpop.f32.mrb[0].mxu0
        %v2510 = vpop.f32.mrb[0].mxu0
        %v2511 = vadd.f32 0.0, %v2510
        %v2512 = vpop.f32.mrb[0].mxu0
        %2513 = vdwg.mxu0
        %v2514 = vsel %vm1260, %v2508, -inf
        %2515 = vmax.xlane.f32.xlu0 %v2514
        %v2516 = vpop.xlane.xlu0 %2515
        %v2517 = vsel %vm1260, %v2511, -inf
        %2518 = vmax.xlane.f32.xlu0 %v2517
        %v2519 = vpop.xlane.xlu0 %2518
        %v2520 = vsub.f32 %v2508, %v2516
        %v2521 = vsub.f32 %v2511, %v2519
        %v2522 = vmul.f32 %v2520, 1.442695
        %v2523 = vpow.pop %v2522
        %v2524 = vmul.f32 %v2521, 1.442695
        %v2525 = vpow.pop %v2524
        %v2526 = vsel %vm1260, %v2523, 0.0
        %2527 = vadd.xlane.f32.xlu0 %v2526
        %v2528 = vpop.xlane.xlu0 %2527
        %v2529 = vsel %vm1260, %v2525, 0.0
        %2530 = vadd.xlane.f32.xlu0 %v2529
        %v2531 = vpop.xlane.xlu0 %2530
        %v2532 = vrcp.pop %v2528
        %v2533 = vrcp.pop %v2531
        %v2534 = vpack.c.bf16 %v2525, %v2523
        %2535 = vrot.lane.b32.xlu0 %v1206, 64
        %v2536 = vpop.permute.xlu0 %2535
        %v2539 = vsel %vm1260, %v2534, 0
        %2541 = vmatprep.subr.bf16.mxu0 0
        %2542 = vmatpush1.bf16.msra.mxu0 %v2536
        %2543 = vmatprep.subr.bf16.mxu0 0
        %2544 = vmatpush1.bf16.msra.mxu0 0
        %2545 = vmatprep.subr.bf16.mxu0 0
        %2546 = vmatpush1.bf16.msra.mxu0 0
        %2547 = vmatprep.subr.bf16.mxu0 0
        %2548 = vmatpush1.bf16.msra.mxu0 0
        %2549 = vmatprep.subr.bf16.mxu0 0
        %2550 = vmatpush1.bf16.msra.mxu0 0
        %2551 = vmatprep.subr.bf16.mxu0 0
        %2552 = vmatpush1.bf16.msra.mxu0 0
        %2553 = vmatprep.subr.bf16.mxu0 0
        %2554 = vmatpush1.bf16.msra.mxu0 0
        %2555 = vmatprep.subr.bf16.mxu0 0
        %2556 = vmatpush1.bf16.msra.mxu0 0
        %2557 = vmatprep.subr.bf16.mxu0 0
        %2558 = vmatpush1.bf16.msra.mxu0 0
        %2559 = vmatprep.subr.bf16.mxu0 0
        %2560 = vmatpush1.bf16.msra.mxu0 0
        %2561 = vmatprep.subr.bf16.mxu0 0
        %2562 = vmatpush1.bf16.msra.mxu0 0
        %2563 = vmatprep.subr.bf16.mxu0 0
        %2564 = vmatpush1.bf16.msra.mxu0 0
        %2565 = vmatprep.subr.bf16.mxu0 0
        %2566 = vmatpush1.bf16.msra.mxu0 0
        %2567 = vmatprep.subr.bf16.mxu0 0
        %2568 = vmatpush1.bf16.msra.mxu0 0
        %2569 = vmatprep.subr.bf16.mxu0 0
        %2570 = vmatpush1.bf16.msra.mxu0 0
        %2571 = vmatprep.subr.bf16.mxu0 0
        %2572 = vmatpush1.bf16.msra.mxu0 0
        %2573 = vmatprep.mubr.bf16.mxu0 0
        %2574 = vmatmul.mubr.bf16.gmra.mrb[0].mxu0 %v2539
        %v2575 = vpop.f32.mrb[0].mxu0
        %v2576 = vadd.f32 0.0, %v2575
        %v2577 = vpop.f32.mrb[0].mxu0
        %v2578 = vpop.f32.mrb[0].mxu0
        %v2579 = vadd.f32 0.0, %v2578
        %v2580 = vpop.f32.mrb[0].mxu0
        %2581 = vdwg.mxu0
        %v2582 = vmul.f32 %v2576, %v2532
        %v2583 = vmul.f32 %v2579, %v2533
        %v2584 = vpack.c.bf16 %v2583, %v2582
        %2586 = vrot.lane.b32.xlu0 %v2584, 64
        %v2587 = vpop.permute.xlu0 %2586
        %2589 = vst.msk [vmem:[#allocation2 + $0x10] sm:$0xff] %vm1587, %v2587
        %2590 = vrot.lane.b32.xlu0 %v1190, 32
        %v2591 = vpop.permute.xlu0 %2590
        %2592 = vrot.lane.b32.xlu0 %v1198, 32
        %v2593 = vpop.permute.xlu0 %2592
        %v2595 = vsel %vm1212, %v2591, 0
        %v2598 = vsel %vm1212, %v2593, 0
        %2600 = vmatprep.subr.bf16.mxu0 0
        %2601 = vmatpush1.bf16.xpose.msra.mxu0 %v2598
        %2602 = vmatprep.subr.bf16.mxu0 0
        %2603 = vmatpush1.bf16.xpose.msra.mxu0 0
        %2604 = vmatprep.subr.bf16.mxu0 0
        %2605 = vmatpush1.bf16.xpose.msra.mxu0 0
        %2606 = vmatprep.subr.bf16.mxu0 0
        %2607 = vmatpush1.bf16.xpose.msra.mxu0 0
        %2608 = vmatprep.subr.bf16.mxu0 0
        %2609 = vmatpush1.bf16.xpose.msra.mxu0 0
        %2610 = vmatprep.subr.bf16.mxu0 0
        %2611 = vmatpush1.bf16.xpose.msra.mxu0 0
        %2612 = vmatprep.subr.bf16.mxu0 0
        %2613 = vmatpush1.bf16.xpose.msra.mxu0 0
        %2614 = vmatprep.subr.bf16.mxu0 0
        %2615 = vmatpush1.bf16.xpose.msra.mxu0 0
        %2616 = vmatprep.subr.bf16.mxu0 0
        %2617 = vmatpush1.bf16.xpose.msra.mxu0 0
        %2618 = vmatprep.subr.bf16.mxu0 0
        %2619 = vmatpush1.bf16.xpose.msra.mxu0 0
        %2620 = vmatprep.subr.bf16.mxu0 0
        %2621 = vmatpush1.bf16.xpose.msra.mxu0 0
        %2622 = vmatprep.subr.bf16.mxu0 0
        %2623 = vmatpush1.bf16.xpose.msra.mxu0 0
        %2624 = vmatprep.subr.bf16.mxu0 0
        %2625 = vmatpush1.bf16.xpose.msra.mxu0 0
        %2626 = vmatprep.subr.bf16.mxu0 0
        %2627 = vmatpush1.bf16.xpose.msra.mxu0 0
        %2628 = vmatprep.subr.bf16.mxu0 0
        %2629 = vmatpush1.bf16.xpose.msra.mxu0 0
        %2630 = vmatprep.subr.bf16.mxu0 0
        %2631 = vmatpush1.bf16.xpose.msra.mxu0 0
        %2632 = vmatprep.mubr.bf16.mxu0 0
        %2633 = vmatmul.mubr.bf16.gmra.mrb[0].mxu0 %v2595
        %v2634 = vpop.f32.mrb[0].mxu0
        %v2635 = vadd.f32 0.0, %v2634
        %v2636 = vpop.f32.mrb[0].mxu0
        %v2637 = vpop.f32.mrb[0].mxu0
        %v2638 = vadd.f32 0.0, %v2637
        %v2639 = vpop.f32.mrb[0].mxu0
        %2640 = vdwg.mxu0
        %v2641 = vsel %vm1260, %v2635, -inf
        %2642 = vmax.xlane.f32.xlu0 %v2641
        %v2643 = vpop.xlane.xlu0 %2642
        %v2644 = vsel %vm1260, %v2638, -inf
        %2645 = vmax.xlane.f32.xlu0 %v2644
        %v2646 = vpop.xlane.xlu0 %2645
        %v2647 = vsub.f32 %v2635, %v2643
        %v2648 = vsub.f32 %v2638, %v2646
        %v2649 = vmul.f32 %v2647, 1.442695
        %v2650 = vpow.pop %v2649
        %v2651 = vmul.f32 %v2648, 1.442695
        %v2652 = vpow.pop %v2651
        %v2653 = vsel %vm1260, %v2650, 0.0
        %2654 = vadd.xlane.f32.xlu0 %v2653
        %v2655 = vpop.xlane.xlu0 %2654
        %v2656 = vsel %vm1260, %v2652, 0.0
        %2657 = vadd.xlane.f32.xlu0 %v2656
        %v2658 = vpop.xlane.xlu0 %2657
        %v2659 = vrcp.pop %v2655
        %v2660 = vrcp.pop %v2658
        %v2661 = vpack.c.bf16 %v2652, %v2650
        %2662 = vrot.lane.b32.xlu0 %v1206, 32
        %v2663 = vpop.permute.xlu0 %2662
        %v2666 = vsel %vm1260, %v2661, 0
        %2668 = vmatprep.subr.bf16.mxu0 0
        %2669 = vmatpush1.bf16.msra.mxu0 %v2663
        %2670 = vmatprep.subr.bf16.mxu0 0
        %2671 = vmatpush1.bf16.msra.mxu0 0
        %2672 = vmatprep.subr.bf16.mxu0 0
        %2673 = vmatpush1.bf16.msra.mxu0 0
        %2674 = vmatprep.subr.bf16.mxu0 0
        %2675 = vmatpush1.bf16.msra.mxu0 0
        %2676 = vmatprep.subr.bf16.mxu0 0
        %2677 = vmatpush1.bf16.msra.mxu0 0
        %2678 = vmatprep.subr.bf16.mxu0 0
        %2679 = vmatpush1.bf16.msra.mxu0 0
        %2680 = vmatprep.subr.bf16.mxu0 0
        %2681 = vmatpush1.bf16.msra.mxu0 0
        %2682 = vmatprep.subr.bf16.mxu0 0
        %2683 = vmatpush1.bf16.msra.mxu0 0
        %2684 = vmatprep.subr.bf16.mxu0 0
        %2685 = vmatpush1.bf16.msra.mxu0 0
        %2686 = vmatprep.subr.bf16.mxu0 0
        %2687 = vmatpush1.bf16.msra.mxu0 0
        %2688 = vmatprep.subr.bf16.mxu0 0
        %2689 = vmatpush1.bf16.msra.mxu0 0
        %2690 = vmatprep.subr.bf16.mxu0 0
        %2691 = vmatpush1.bf16.msra.mxu0 0
        %2692 = vmatprep.subr.bf16.mxu0 0
        %2693 = vmatpush1.bf16.msra.mxu0 0
        %2694 = vmatprep.subr.bf16.mxu0 0
        %2695 = vmatpush1.bf16.msra.mxu0 0
        %2696 = vmatprep.subr.bf16.mxu0 0
        %2697 = vmatpush1.bf16.msra.mxu0 0
        %2698 = vmatprep.subr.bf16.mxu0 0
        %2699 = vmatpush1.bf16.msra.mxu0 0
        %2700 = vmatprep.mubr.bf16.mxu0 0
        %2701 = vmatmul.mubr.bf16.gmra.mrb[0].mxu0 %v2666
        %v2702 = vpop.f32.mrb[0].mxu0
        %v2703 = vadd.f32 0.0, %v2702
        %v2704 = vpop.f32.mrb[0].mxu0
        %v2705 = vpop.f32.mrb[0].mxu0
        %v2706 = vadd.f32 0.0, %v2705
        %v2707 = vpop.f32.mrb[0].mxu0
        %2708 = vdwg.mxu0
        %v2709 = vmul.f32 %v2703, %v2659
        %v2710 = vmul.f32 %v2706, %v2660
        %v2711 = vpack.c.bf16 %v2710, %v2709
        %2713 = vrot.lane.b32.xlu0 %v2711, 96
        %v2714 = vpop.permute.xlu0 %2713
        %2716 = vst.msk [vmem:[#allocation2 + $0x10] sm:$0xff] %vm1715, %v2714
        %v2718 = vsel %vm1212, %v1191, 0
        %v2721 = vsel %vm1212, %v1199, 0
        %2723 = vmatprep.subr.bf16.mxu0 0
        %2724 = vmatpush1.bf16.xpose.msra.mxu0 %v2721
        %2725 = vmatprep.subr.bf16.mxu0 0
        %2726 = vmatpush1.bf16.xpose.msra.mxu0 0
        %2727 = vmatprep.subr.bf16.mxu0 0
        %2728 = vmatpush1.bf16.xpose.msra.mxu0 0
        %2729 = vmatprep.subr.bf16.mxu0 0
        %2730 = vmatpush1.bf16.xpose.msra.mxu0 0
        %2731 = vmatprep.subr.bf16.mxu0 0
        %2732 = vmatpush1.bf16.xpose.msra.mxu0 0
        %2733 = vmatprep.subr.bf16.mxu0 0
        %2734 = vmatpush1.bf16.xpose.msra.mxu0 0
        %2735 = vmatprep.subr.bf16.mxu0 0
        %2736 = vmatpush1.bf16.xpose.msra.mxu0 0
        %2737 = vmatprep.subr.bf16.mxu0 0
        %2738 = vmatpush1.bf16.xpose.msra.mxu0 0
        %2739 = vmatprep.subr.bf16.mxu0 0
        %2740 = vmatpush1.bf16.xpose.msra.mxu0 0
        %2741 = vmatprep.subr.bf16.mxu0 0
        %2742 = vmatpush1.bf16.xpose.msra.mxu0 0
        %2743 = vmatprep.subr.bf16.mxu0 0
        %2744 = vmatpush1.bf16.xpose.msra.mxu0 0
        %2745 = vmatprep.subr.bf16.mxu0 0
        %2746 = vmatpush1.bf16.xpose.msra.mxu0 0
        %2747 = vmatprep.subr.bf16.mxu0 0
        %2748 = vmatpush1.bf16.xpose.msra.mxu0 0
        %2749 = vmatprep.subr.bf16.mxu0 0
        %2750 = vmatpush1.bf16.xpose.msra.mxu0 0
        %2751 = vmatprep.subr.bf16.mxu0 0
        %2752 = vmatpush1.bf16.xpose.msra.mxu0 0
        %2753 = vmatprep.subr.bf16.mxu0 0
        %2754 = vmatpush1.bf16.xpose.msra.mxu0 0
        %2755 = vmatprep.mubr.bf16.mxu0 0
        %2756 = vmatmul.mubr.bf16.gmra.mrb[0].mxu0 %v2718
        %v2757 = vpop.f32.mrb[0].mxu0
        %v2758 = vadd.f32 0.0, %v2757
        %v2759 = vpop.f32.mrb[0].mxu0
        %v2760 = vpop.f32.mrb[0].mxu0
        %v2761 = vadd.f32 0.0, %v2760
        %v2762 = vpop.f32.mrb[0].mxu0
        %2763 = vdwg.mxu0
        %v2764 = vsel %vm1260, %v2758, -inf
        %2765 = vmax.xlane.f32.xlu0 %v2764
        %v2766 = vpop.xlane.xlu0 %2765
        %v2767 = vsel %vm1260, %v2761, -inf
        %2768 = vmax.xlane.f32.xlu0 %v2767
        %v2769 = vpop.xlane.xlu0 %2768
        %v2770 = vsub.f32 %v2758, %v2766
        %v2771 = vsub.f32 %v2761, %v2769
        %v2772 = vmul.f32 %v2770, 1.442695
        %v2773 = vpow.pop %v2772
        %v2774 = vmul.f32 %v2771, 1.442695
        %v2775 = vpow.pop %v2774
        %v2776 = vsel %vm1260, %v2773, 0.0
        %2777 = vadd.xlane.f32.xlu0 %v2776
        %v2778 = vpop.xlane.xlu0 %2777
        %v2779 = vsel %vm1260, %v2775, 0.0
        %2780 = vadd.xlane.f32.xlu0 %v2779
        %v2781 = vpop.xlane.xlu0 %2780
        %v2782 = vrcp.pop %v2778
        %v2783 = vrcp.pop %v2781
        %v2784 = vpack.c.bf16 %v2775, %v2773
        %v2786 = vsel %vm1260, %v2784, 0
        %2788 = vmatprep.subr.bf16.mxu0 0
        %2789 = vmatpush1.bf16.msra.mxu0 %v1207
        %2790 = vmatprep.subr.bf16.mxu0 0
        %2791 = vmatpush1.bf16.msra.mxu0 0
        %2792 = vmatprep.subr.bf16.mxu0 0
        %2793 = vmatpush1.bf16.msra.mxu0 0
        %2794 = vmatprep.subr.bf16.mxu0 0
        %2795 = vmatpush1.bf16.msra.mxu0 0
        %2796 = vmatprep.subr.bf16.mxu0 0
        %2797 = vmatpush1.bf16.msra.mxu0 0
        %2798 = vmatprep.subr.bf16.mxu0 0
        %2799 = vmatpush1.bf16.msra.mxu0 0
        %2800 = vmatprep.subr.bf16.mxu0 0
        %2801 = vmatpush1.bf16.msra.mxu0 0
        %2802 = vmatprep.subr.bf16.mxu0 0
        %2803 = vmatpush1.bf16.msra.mxu0 0
        %2804 = vmatprep.subr.bf16.mxu0 0
        %2805 = vmatpush1.bf16.msra.mxu0 0
        %2806 = vmatprep.subr.bf16.mxu0 0
        %2807 = vmatpush1.bf16.msra.mxu0 0
        %2808 = vmatprep.subr.bf16.mxu0 0
        %2809 = vmatpush1.bf16.msra.mxu0 0
        %2810 = vmatprep.subr.bf16.mxu0 0
        %2811 = vmatpush1.bf16.msra.mxu0 0
        %2812 = vmatprep.subr.bf16.mxu0 0
        %2813 = vmatpush1.bf16.msra.mxu0 0
        %2814 = vmatprep.subr.bf16.mxu0 0
        %2815 = vmatpush1.bf16.msra.mxu0 0
        %2816 = vmatprep.subr.bf16.mxu0 0
        %2817 = vmatpush1.bf16.msra.mxu0 0
        %2818 = vmatprep.subr.bf16.mxu0 0
        %2819 = vmatpush1.bf16.msra.mxu0 0
        %2820 = vmatprep.mubr.bf16.mxu0 0
        %2821 = vmatmul.mubr.bf16.gmra.mrb[0].mxu0 %v2786
        %v2822 = vpop.f32.mrb[0].mxu0
        %v2823 = vadd.f32 0.0, %v2822
        %v2824 = vpop.f32.mrb[0].mxu0
        %v2825 = vpop.f32.mrb[0].mxu0
        %v2826 = vadd.f32 0.0, %v2825
        %v2827 = vpop.f32.mrb[0].mxu0
        %2828 = vdwg.mxu0
        %v2829 = vmul.f32 %v2823, %v2782
        %v2830 = vmul.f32 %v2826, %v2783
        %v2831 = vpack.c.bf16 %v2830, %v2829
        %2832 = vst.msk [vmem:[#allocation2 + $0x18] sm:$0xff] %vm1212, %v2831
        %2834 = vrot.lane.b32.xlu0 %v1191, 96
        %v2835 = vpop.permute.xlu0 %2834
        %2837 = vrot.lane.b32.xlu0 %v1199, 96
        %v2838 = vpop.permute.xlu0 %2837
        %v2840 = vsel %vm1212, %v2835, 0
        %v2843 = vsel %vm1212, %v2838, 0
        %2845 = vmatprep.subr.bf16.mxu0 0
        %2846 = vmatpush1.bf16.xpose.msra.mxu0 %v2843
        %2847 = vmatprep.subr.bf16.mxu0 0
        %2848 = vmatpush1.bf16.xpose.msra.mxu0 0
        %2849 = vmatprep.subr.bf16.mxu0 0
        %2850 = vmatpush1.bf16.xpose.msra.mxu0 0
        %2851 = vmatprep.subr.bf16.mxu0 0
        %2852 = vmatpush1.bf16.xpose.msra.mxu0 0
        %2853 = vmatprep.subr.bf16.mxu0 0
        %2854 = vmatpush1.bf16.xpose.msra.mxu0 0
        %2855 = vmatprep.subr.bf16.mxu0 0
        %2856 = vmatpush1.bf16.xpose.msra.mxu0 0
        %2857 = vmatprep.subr.bf16.mxu0 0
        %2858 = vmatpush1.bf16.xpose.msra.mxu0 0
        %2859 = vmatprep.subr.bf16.mxu0 0
        %2860 = vmatpush1.bf16.xpose.msra.mxu0 0
        %2861 = vmatprep.subr.bf16.mxu0 0
        %2862 = vmatpush1.bf16.xpose.msra.mxu0 0
        %2863 = vmatprep.subr.bf16.mxu0 0
        %2864 = vmatpush1.bf16.xpose.msra.mxu0 0
        %2865 = vmatprep.subr.bf16.mxu0 0
        %2866 = vmatpush1.bf16.xpose.msra.mxu0 0
        %2867 = vmatprep.subr.bf16.mxu0 0
        %2868 = vmatpush1.bf16.xpose.msra.mxu0 0
        %2869 = vmatprep.subr.bf16.mxu0 0
        %2870 = vmatpush1.bf16.xpose.msra.mxu0 0
        %2871 = vmatprep.subr.bf16.mxu0 0
        %2872 = vmatpush1.bf16.xpose.msra.mxu0 0
        %2873 = vmatprep.subr.bf16.mxu0 0
        %2874 = vmatpush1.bf16.xpose.msra.mxu0 0
        %2875 = vmatprep.subr.bf16.mxu0 0
        %2876 = vmatpush1.bf16.xpose.msra.mxu0 0
        %2877 = vmatprep.mubr.bf16.mxu0 0
        %2878 = vmatmul.mubr.bf16.gmra.mrb[0].mxu0 %v2840
        %v2879 = vpop.f32.mrb[0].mxu0
        %v2880 = vadd.f32 0.0, %v2879
        %v2881 = vpop.f32.mrb[0].mxu0
        %v2882 = vpop.f32.mrb[0].mxu0
        %v2883 = vadd.f32 0.0, %v2882
        %v2884 = vpop.f32.mrb[0].mxu0
        %2885 = vdwg.mxu0
        %v2886 = vsel %vm1260, %v2880, -inf
        %2887 = vmax.xlane.f32.xlu0 %v2886
        %v2888 = vpop.xlane.xlu0 %2887
        %v2889 = vsel %vm1260, %v2883, -inf
        %2890 = vmax.xlane.f32.xlu0 %v2889
        %v2891 = vpop.xlane.xlu0 %2890
        %v2892 = vsub.f32 %v2880, %v2888
        %v2893 = vsub.f32 %v2883, %v2891
        %v2894 = vmul.f32 %v2892, 1.442695
        %v2895 = vpow.pop %v2894
        %v2896 = vmul.f32 %v2893, 1.442695
        %v2897 = vpow.pop %v2896
        %v2898 = vsel %vm1260, %v2895, 0.0
        %2899 = vadd.xlane.f32.xlu0 %v2898
        %v2900 = vpop.xlane.xlu0 %2899
        %v2901 = vsel %vm1260, %v2897, 0.0
        %2902 = vadd.xlane.f32.xlu0 %v2901
        %v2903 = vpop.xlane.xlu0 %2902
        %v2904 = vrcp.pop %v2900
        %v2905 = vrcp.pop %v2903
        %v2906 = vpack.c.bf16 %v2897, %v2895
        %2908 = vrot.lane.b32.xlu0 %v1207, 96
        %v2909 = vpop.permute.xlu0 %2908
        %v2912 = vsel %vm1260, %v2906, 0
        %2914 = vmatprep.subr.bf16.mxu0 0
        %2915 = vmatpush1.bf16.msra.mxu0 %v2909
        %2916 = vmatprep.subr.bf16.mxu0 0
        %2917 = vmatpush1.bf16.msra.mxu0 0
        %2918 = vmatprep.subr.bf16.mxu0 0
        %2919 = vmatpush1.bf16.msra.mxu0 0
        %2920 = vmatprep.subr.bf16.mxu0 0
        %2921 = vmatpush1.bf16.msra.mxu0 0
        %2922 = vmatprep.subr.bf16.mxu0 0
        %2923 = vmatpush1.bf16.msra.mxu0 0
        %2924 = vmatprep.subr.bf16.mxu0 0
        %2925 = vmatpush1.bf16.msra.mxu0 0
        %2926 = vmatprep.subr.bf16.mxu0 0
        %2927 = vmatpush1.bf16.msra.mxu0 0
        %2928 = vmatprep.subr.bf16.mxu0 0
        %2929 = vmatpush1.bf16.msra.mxu0 0
        %2930 = vmatprep.subr.bf16.mxu0 0
        %2931 = vmatpush1.bf16.msra.mxu0 0
        %2932 = vmatprep.subr.bf16.mxu0 0
        %2933 = vmatpush1.bf16.msra.mxu0 0
        %2934 = vmatprep.subr.bf16.mxu0 0
        %2935 = vmatpush1.bf16.msra.mxu0 0
        %2936 = vmatprep.subr.bf16.mxu0 0
        %2937 = vmatpush1.bf16.msra.mxu0 0
        %2938 = vmatprep.subr.bf16.mxu0 0
        %2939 = vmatpush1.bf16.msra.mxu0 0
        %2940 = vmatprep.subr.bf16.mxu0 0
        %2941 = vmatpush1.bf16.msra.mxu0 0
        %2942 = vmatprep.subr.bf16.mxu0 0
        %2943 = vmatpush1.bf16.msra.mxu0 0
        %2944 = vmatprep.subr.bf16.mxu0 0
        %2945 = vmatpush1.bf16.msra.mxu0 0
        %2946 = vmatprep.mubr.bf16.mxu0 0
        %2947 = vmatmul.mubr.bf16.gmra.mrb[0].mxu0 %v2912
        %v2948 = vpop.f32.mrb[0].mxu0
        %v2949 = vadd.f32 0.0, %v2948
        %v2950 = vpop.f32.mrb[0].mxu0
        %v2951 = vpop.f32.mrb[0].mxu0
        %v2952 = vadd.f32 0.0, %v2951
        %v2953 = vpop.f32.mrb[0].mxu0
        %2954 = vdwg.mxu0
        %v2955 = vmul.f32 %v2949, %v2904
        %v2956 = vmul.f32 %v2952, %v2905
        %v2957 = vpack.c.bf16 %v2956, %v2955
        %2959 = vrot.lane.b32.xlu0 %v2957, 32
        %v2960 = vpop.permute.xlu0 %2959
        %2962 = vst.msk [vmem:[#allocation2 + $0x18] sm:$0xff] %vm1459, %v2960
        %2963 = vrot.lane.b32.xlu0 %v1191, 64
        %v2964 = vpop.permute.xlu0 %2963
        %2965 = vrot.lane.b32.xlu0 %v1199, 64
        %v2966 = vpop.permute.xlu0 %2965
        %v2968 = vsel %vm1212, %v2964, 0
        %v2971 = vsel %vm1212, %v2966, 0
        %2973 = vmatprep.subr.bf16.mxu0 0
        %2974 = vmatpush1.bf16.xpose.msra.mxu0 %v2971
        %2975 = vmatprep.subr.bf16.mxu0 0
        %2976 = vmatpush1.bf16.xpose.msra.mxu0 0
        %2977 = vmatprep.subr.bf16.mxu0 0
        %2978 = vmatpush1.bf16.xpose.msra.mxu0 0
        %2979 = vmatprep.subr.bf16.mxu0 0
        %2980 = vmatpush1.bf16.xpose.msra.mxu0 0
        %2981 = vmatprep.subr.bf16.mxu0 0
        %2982 = vmatpush1.bf16.xpose.msra.mxu0 0
        %2983 = vmatprep.subr.bf16.mxu0 0
        %2984 = vmatpush1.bf16.xpose.msra.mxu0 0
        %2985 = vmatprep.subr.bf16.mxu0 0
        %2986 = vmatpush1.bf16.xpose.msra.mxu0 0
        %2987 = vmatprep.subr.bf16.mxu0 0
        %2988 = vmatpush1.bf16.xpose.msra.mxu0 0
        %2989 = vmatprep.subr.bf16.mxu0 0
        %2990 = vmatpush1.bf16.xpose.msra.mxu0 0
        %2991 = vmatprep.subr.bf16.mxu0 0
        %2992 = vmatpush1.bf16.xpose.msra.mxu0 0
        %2993 = vmatprep.subr.bf16.mxu0 0
        %2994 = vmatpush1.bf16.xpose.msra.mxu0 0
        %2995 = vmatprep.subr.bf16.mxu0 0
        %2996 = vmatpush1.bf16.xpose.msra.mxu0 0
        %2997 = vmatprep.subr.bf16.mxu0 0
        %2998 = vmatpush1.bf16.xpose.msra.mxu0 0
        %2999 = vmatprep.subr.bf16.mxu0 0
        %3000 = vmatpush1.bf16.xpose.msra.mxu0 0
        %3001 = vmatprep.subr.bf16.mxu0 0
        %3002 = vmatpush1.bf16.xpose.msra.mxu0 0
        %3003 = vmatprep.subr.bf16.mxu0 0
        %3004 = vmatpush1.bf16.xpose.msra.mxu0 0
        %3005 = vmatprep.mubr.bf16.mxu0 0
        %3006 = vmatmul.mubr.bf16.gmra.mrb[0].mxu0 %v2968
        %v3007 = vpop.f32.mrb[0].mxu0
        %v3008 = vadd.f32 0.0, %v3007
        %v3009 = vpop.f32.mrb[0].mxu0
        %v3010 = vpop.f32.mrb[0].mxu0
        %v3011 = vadd.f32 0.0, %v3010
        %v3012 = vpop.f32.mrb[0].mxu0
        %3013 = vdwg.mxu0
        %v3014 = vsel %vm1260, %v3008, -inf
        %3015 = vmax.xlane.f32.xlu0 %v3014
        %v3016 = vpop.xlane.xlu0 %3015
        %v3017 = vsel %vm1260, %v3011, -inf
        %3018 = vmax.xlane.f32.xlu0 %v3017
        %v3019 = vpop.xlane.xlu0 %3018
        %v3020 = vsub.f32 %v3008, %v3016
        %v3021 = vsub.f32 %v3011, %v3019
        %v3022 = vmul.f32 %v3020, 1.442695
        %v3023 = vpow.pop %v3022
        %v3024 = vmul.f32 %v3021, 1.442695
        %v3025 = vpow.pop %v3024
        %v3026 = vsel %vm1260, %v3023, 0.0
        %3027 = vadd.xlane.f32.xlu0 %v3026
        %v3028 = vpop.xlane.xlu0 %3027
        %v3029 = vsel %vm1260, %v3025, 0.0
        %3030 = vadd.xlane.f32.xlu0 %v3029
        %v3031 = vpop.xlane.xlu0 %3030
        %v3032 = vrcp.pop %v3028
        %v3033 = vrcp.pop %v3031
        %v3034 = vpack.c.bf16 %v3025, %v3023
        %3035 = vrot.lane.b32.xlu0 %v1207, 64
        %v3036 = vpop.permute.xlu0 %3035
        %v3039 = vsel %vm1260, %v3034, 0
        %3041 = vmatprep.subr.bf16.mxu0 0
        %3042 = vmatpush1.bf16.msra.mxu0 %v3036
        %3043 = vmatprep.subr.bf16.mxu0 0
        %3044 = vmatpush1.bf16.msra.mxu0 0
        %3045 = vmatprep.subr.bf16.mxu0 0
        %3046 = vmatpush1.bf16.msra.mxu0 0
        %3047 = vmatprep.subr.bf16.mxu0 0
        %3048 = vmatpush1.bf16.msra.mxu0 0
        %3049 = vmatprep.subr.bf16.mxu0 0
        %3050 = vmatpush1.bf16.msra.mxu0 0
        %3051 = vmatprep.subr.bf16.mxu0 0
        %3052 = vmatpush1.bf16.msra.mxu0 0
        %3053 = vmatprep.subr.bf16.mxu0 0
        %3054 = vmatpush1.bf16.msra.mxu0 0
        %3055 = vmatprep.subr.bf16.mxu0 0
        %3056 = vmatpush1.bf16.msra.mxu0 0
        %3057 = vmatprep.subr.bf16.mxu0 0
        %3058 = vmatpush1.bf16.msra.mxu0 0
        %3059 = vmatprep.subr.bf16.mxu0 0
        %3060 = vmatpush1.bf16.msra.mxu0 0
        %3061 = vmatprep.subr.bf16.mxu0 0
        %3062 = vmatpush1.bf16.msra.mxu0 0
        %3063 = vmatprep.subr.bf16.mxu0 0
        %3064 = vmatpush1.bf16.msra.mxu0 0
        %3065 = vmatprep.subr.bf16.mxu0 0
        %3066 = vmatpush1.bf16.msra.mxu0 0
        %3067 = vmatprep.subr.bf16.mxu0 0
        %3068 = vmatpush1.bf16.msra.mxu0 0
        %3069 = vmatprep.subr.bf16.mxu0 0
        %3070 = vmatpush1.bf16.msra.mxu0 0
        %3071 = vmatprep.subr.bf16.mxu0 0
        %3072 = vmatpush1.bf16.msra.mxu0 0
        %3073 = vmatprep.mubr.bf16.mxu0 0
        %3074 = vmatmul.mubr.bf16.gmra.mrb[0].mxu0 %v3039
        %v3075 = vpop.f32.mrb[0].mxu0
        %v3076 = vadd.f32 0.0, %v3075
        %v3077 = vpop.f32.mrb[0].mxu0
        %v3078 = vpop.f32.mrb[0].mxu0
        %v3079 = vadd.f32 0.0, %v3078
        %v3080 = vpop.f32.mrb[0].mxu0
        %3081 = vdwg.mxu0
        %v3082 = vmul.f32 %v3076, %v3032
        %v3083 = vmul.f32 %v3079, %v3033
        %v3084 = vpack.c.bf16 %v3083, %v3082
        %3086 = vrot.lane.b32.xlu0 %v3084, 64
        %v3087 = vpop.permute.xlu0 %3086
        %3089 = vst.msk [vmem:[#allocation2 + $0x18] sm:$0xff] %vm1587, %v3087
        %3090 = vrot.lane.b32.xlu0 %v1191, 32
        %v3091 = vpop.permute.xlu0 %3090
        %3092 = vrot.lane.b32.xlu0 %v1199, 32
        %v3093 = vpop.permute.xlu0 %3092
        %v3095 = vsel %vm1212, %v3091, 0
        %v3098 = vsel %vm1212, %v3093, 0
        %3100 = vmatprep.subr.bf16.mxu0 0
        %3101 = vmatpush1.bf16.xpose.msra.mxu0 %v3098
        %3102 = vmatprep.subr.bf16.mxu0 0
        %3103 = vmatpush1.bf16.xpose.msra.mxu0 0
        %3104 = vmatprep.subr.bf16.mxu0 0
        %3105 = vmatpush1.bf16.xpose.msra.mxu0 0
        %3106 = vmatprep.subr.bf16.mxu0 0
        %3107 = vmatpush1.bf16.xpose.msra.mxu0 0
        %3108 = vmatprep.subr.bf16.mxu0 0
        %3109 = vmatpush1.bf16.xpose.msra.mxu0 0
        %3110 = vmatprep.subr.bf16.mxu0 0
        %3111 = vmatpush1.bf16.xpose.msra.mxu0 0
        %3112 = vmatprep.subr.bf16.mxu0 0
        %3113 = vmatpush1.bf16.xpose.msra.mxu0 0
        %3114 = vmatprep.subr.bf16.mxu0 0
        %3115 = vmatpush1.bf16.xpose.msra.mxu0 0
        %3116 = vmatprep.subr.bf16.mxu0 0
        %3117 = vmatpush1.bf16.xpose.msra.mxu0 0
        %3118 = vmatprep.subr.bf16.mxu0 0
        %3119 = vmatpush1.bf16.xpose.msra.mxu0 0
        %3120 = vmatprep.subr.bf16.mxu0 0
        %3121 = vmatpush1.bf16.xpose.msra.mxu0 0
        %3122 = vmatprep.subr.bf16.mxu0 0
        %3123 = vmatpush1.bf16.xpose.msra.mxu0 0
        %3124 = vmatprep.subr.bf16.mxu0 0
        %3125 = vmatpush1.bf16.xpose.msra.mxu0 0
        %3126 = vmatprep.subr.bf16.mxu0 0
        %3127 = vmatpush1.bf16.xpose.msra.mxu0 0
        %3128 = vmatprep.subr.bf16.mxu0 0
        %3129 = vmatpush1.bf16.xpose.msra.mxu0 0
        %3130 = vmatprep.subr.bf16.mxu0 0
        %3131 = vmatpush1.bf16.xpose.msra.mxu0 0
        %3132 = vmatprep.mubr.bf16.mxu0 0
        %3133 = vmatmul.mubr.bf16.gmra.mrb[0].mxu0 %v3095
        %v3134 = vpop.f32.mrb[0].mxu0
        %v3135 = vadd.f32 0.0, %v3134
        %v3136 = vpop.f32.mrb[0].mxu0
        %v3137 = vpop.f32.mrb[0].mxu0
        %v3138 = vadd.f32 0.0, %v3137
        %v3139 = vpop.f32.mrb[0].mxu0
        %3140 = vdwg.mxu0
        %v3141 = vsel %vm1260, %v3135, -inf
        %3142 = vmax.xlane.f32.xlu0 %v3141
        %v3143 = vpop.xlane.xlu0 %3142
        %v3144 = vsel %vm1260, %v3138, -inf
        %3145 = vmax.xlane.f32.xlu0 %v3144
        %v3146 = vpop.xlane.xlu0 %3145
        %v3147 = vsub.f32 %v3135, %v3143
        %v3148 = vsub.f32 %v3138, %v3146
        %v3149 = vmul.f32 %v3147, 1.442695
        %v3150 = vpow.pop %v3149
        %v3151 = vmul.f32 %v3148, 1.442695
        %v3152 = vpow.pop %v3151
        %v3153 = vsel %vm1260, %v3150, 0.0
        %3154 = vadd.xlane.f32.xlu0 %v3153
        %v3155 = vpop.xlane.xlu0 %3154
        %v3156 = vsel %vm1260, %v3152, 0.0
        %3157 = vadd.xlane.f32.xlu0 %v3156
        %v3158 = vpop.xlane.xlu0 %3157
        %v3159 = vrcp.pop %v3155
        %v3160 = vrcp.pop %v3158
        %v3161 = vpack.c.bf16 %v3152, %v3150
        %3162 = vrot.lane.b32.xlu0 %v1207, 32
        %v3163 = vpop.permute.xlu0 %3162
        %v3166 = vsel %vm1260, %v3161, 0
        %3168 = vmatprep.subr.bf16.mxu0 0
        %3169 = vmatpush1.bf16.msra.mxu0 %v3163
        %3170 = vmatprep.subr.bf16.mxu0 0
        %3171 = vmatpush1.bf16.msra.mxu0 0
        %3172 = vmatprep.subr.bf16.mxu0 0
        %3173 = vmatpush1.bf16.msra.mxu0 0
        %3174 = vmatprep.subr.bf16.mxu0 0
        %3175 = vmatpush1.bf16.msra.mxu0 0
        %3176 = vmatprep.subr.bf16.mxu0 0
        %3177 = vmatpush1.bf16.msra.mxu0 0
        %3178 = vmatprep.subr.bf16.mxu0 0
        %3179 = vmatpush1.bf16.msra.mxu0 0
        %3180 = vmatprep.subr.bf16.mxu0 0
        %3181 = vmatpush1.bf16.msra.mxu0 0
        %3182 = vmatprep.subr.bf16.mxu0 0
        %3183 = vmatpush1.bf16.msra.mxu0 0
        %3184 = vmatprep.subr.bf16.mxu0 0
        %3185 = vmatpush1.bf16.msra.mxu0 0
        %3186 = vmatprep.subr.bf16.mxu0 0
        %3187 = vmatpush1.bf16.msra.mxu0 0
        %3188 = vmatprep.subr.bf16.mxu0 0
        %3189 = vmatpush1.bf16.msra.mxu0 0
        %3190 = vmatprep.subr.bf16.mxu0 0
        %3191 = vmatpush1.bf16.msra.mxu0 0
        %3192 = vmatprep.subr.bf16.mxu0 0
        %3193 = vmatpush1.bf16.msra.mxu0 0
        %3194 = vmatprep.subr.bf16.mxu0 0
        %3195 = vmatpush1.bf16.msra.mxu0 0
        %3196 = vmatprep.subr.bf16.mxu0 0
        %3197 = vmatpush1.bf16.msra.mxu0 0
        %3198 = vmatprep.subr.bf16.mxu0 0
        %3199 = vmatpush1.bf16.msra.mxu0 0
        %3200 = vmatprep.mubr.bf16.mxu0 0
        %3201 = vmatmul.mubr.bf16.gmra.mrb[0].mxu0 %v3166
        %v3202 = vpop.f32.mrb[0].mxu0
        %v3203 = vadd.f32 0.0, %v3202
        %v3204 = vpop.f32.mrb[0].mxu0
        %v3205 = vpop.f32.mrb[0].mxu0
        %v3206 = vadd.f32 0.0, %v3205
        %v3207 = vpop.f32.mrb[0].mxu0
        %3208 = vdwg.mxu0
        %v3209 = vmul.f32 %v3203, %v3159
        %v3210 = vmul.f32 %v3206, %v3160
        %v3211 = vpack.c.bf16 %v3210, %v3209
        %3213 = vrot.lane.b32.xlu0 %v3211, 96
        %v3214 = vpop.permute.xlu0 %3213
        %3216 = vst.msk [vmem:[#allocation2 + $0x18] sm:$0xff] %vm1715, %v3214
        %v3218 = vsel %vm1212, %v1192, 0
        %v3221 = vsel %vm1212, %v1200, 0
        %3223 = vmatprep.subr.bf16.mxu0 0
        %3224 = vmatpush1.bf16.xpose.msra.mxu0 %v3221
        %3225 = vmatprep.subr.bf16.mxu0 0
        %3226 = vmatpush1.bf16.xpose.msra.mxu0 0
        %3227 = vmatprep.subr.bf16.mxu0 0
        %3228 = vmatpush1.bf16.xpose.msra.mxu0 0
        %3229 = vmatprep.subr.bf16.mxu0 0
        %3230 = vmatpush1.bf16.xpose.msra.mxu0 0
        %3231 = vmatprep.subr.bf16.mxu0 0
        %3232 = vmatpush1.bf16.xpose.msra.mxu0 0
        %3233 = vmatprep.subr.bf16.mxu0 0
        %3234 = vmatpush1.bf16.xpose.msra.mxu0 0
        %3235 = vmatprep.subr.bf16.mxu0 0
        %3236 = vmatpush1.bf16.xpose.msra.mxu0 0
        %3237 = vmatprep.subr.bf16.mxu0 0
        %3238 = vmatpush1.bf16.xpose.msra.mxu0 0
        %3239 = vmatprep.subr.bf16.mxu0 0
        %3240 = vmatpush1.bf16.xpose.msra.mxu0 0
        %3241 = vmatprep.subr.bf16.mxu0 0
        %3242 = vmatpush1.bf16.xpose.msra.mxu0 0
        %3243 = vmatprep.subr.bf16.mxu0 0
        %3244 = vmatpush1.bf16.xpose.msra.mxu0 0
        %3245 = vmatprep.subr.bf16.mxu0 0
        %3246 = vmatpush1.bf16.xpose.msra.mxu0 0
        %3247 = vmatprep.subr.bf16.mxu0 0
        %3248 = vmatpush1.bf16.xpose.msra.mxu0 0
        %3249 = vmatprep.subr.bf16.mxu0 0
        %3250 = vmatpush1.bf16.xpose.msra.mxu0 0
        %3251 = vmatprep.subr.bf16.mxu0 0
        %3252 = vmatpush1.bf16.xpose.msra.mxu0 0
        %3253 = vmatprep.subr.bf16.mxu0 0
        %3254 = vmatpush1.bf16.xpose.msra.mxu0 0
        %3255 = vmatprep.mubr.bf16.mxu0 0
        %3256 = vmatmul.mubr.bf16.gmra.mrb[0].mxu0 %v3218
        %v3257 = vpop.f32.mrb[0].mxu0
        %v3258 = vadd.f32 0.0, %v3257
        %v3259 = vpop.f32.mrb[0].mxu0
        %v3260 = vpop.f32.mrb[0].mxu0
        %v3261 = vadd.f32 0.0, %v3260
        %v3262 = vpop.f32.mrb[0].mxu0
        %3263 = vdwg.mxu0
        %v3264 = vsel %vm1260, %v3258, -inf
        %3265 = vmax.xlane.f32.xlu0 %v3264
        %v3266 = vpop.xlane.xlu0 %3265
        %v3267 = vsel %vm1260, %v3261, -inf
        %3268 = vmax.xlane.f32.xlu0 %v3267
        %v3269 = vpop.xlane.xlu0 %3268
        %v3270 = vsub.f32 %v3258, %v3266
        %v3271 = vsub.f32 %v3261, %v3269
        %v3272 = vmul.f32 %v3270, 1.442695
        %v3273 = vpow.pop %v3272
        %v3274 = vmul.f32 %v3271, 1.442695
        %v3275 = vpow.pop %v3274
        %v3276 = vsel %vm1260, %v3273, 0.0
        %3277 = vadd.xlane.f32.xlu0 %v3276
        %v3278 = vpop.xlane.xlu0 %3277
        %v3279 = vsel %vm1260, %v3275, 0.0
        %3280 = vadd.xlane.f32.xlu0 %v3279
        %v3281 = vpop.xlane.xlu0 %3280
        %v3282 = vrcp.pop %v3278
        %v3283 = vrcp.pop %v3281
        %v3284 = vpack.c.bf16 %v3275, %v3273
        %v3286 = vsel %vm1260, %v3284, 0
        %3288 = vmatprep.subr.bf16.mxu0 0
        %3289 = vmatpush1.bf16.msra.mxu0 %v1208
        %3290 = vmatprep.subr.bf16.mxu0 0
        %3291 = vmatpush1.bf16.msra.mxu0 0
        %3292 = vmatprep.subr.bf16.mxu0 0
        %3293 = vmatpush1.bf16.msra.mxu0 0
        %3294 = vmatprep.subr.bf16.mxu0 0
        %3295 = vmatpush1.bf16.msra.mxu0 0
        %3296 = vmatprep.subr.bf16.mxu0 0
        %3297 = vmatpush1.bf16.msra.mxu0 0
        %3298 = vmatprep.subr.bf16.mxu0 0
        %3299 = vmatpush1.bf16.msra.mxu0 0
        %3300 = vmatprep.subr.bf16.mxu0 0
        %3301 = vmatpush1.bf16.msra.mxu0 0
        %3302 = vmatprep.subr.bf16.mxu0 0
        %3303 = vmatpush1.bf16.msra.mxu0 0
        %3304 = vmatprep.subr.bf16.mxu0 0
        %3305 = vmatpush1.bf16.msra.mxu0 0
        %3306 = vmatprep.subr.bf16.mxu0 0
        %3307 = vmatpush1.bf16.msra.mxu0 0
        %3308 = vmatprep.subr.bf16.mxu0 0
        %3309 = vmatpush1.bf16.msra.mxu0 0
        %3310 = vmatprep.subr.bf16.mxu0 0
        %3311 = vmatpush1.bf16.msra.mxu0 0
        %3312 = vmatprep.subr.bf16.mxu0 0
        %3313 = vmatpush1.bf16.msra.mxu0 0
        %3314 = vmatprep.subr.bf16.mxu0 0
        %3315 = vmatpush1.bf16.msra.mxu0 0
        %3316 = vmatprep.subr.bf16.mxu0 0
        %3317 = vmatpush1.bf16.msra.mxu0 0
        %3318 = vmatprep.subr.bf16.mxu0 0
        %3319 = vmatpush1.bf16.msra.mxu0 0
        %3320 = vmatprep.mubr.bf16.mxu0 0
        %3321 = vmatmul.mubr.bf16.gmra.mrb[0].mxu0 %v3286
        %v3322 = vpop.f32.mrb[0].mxu0
        %v3323 = vadd.f32 0.0, %v3322
        %v3324 = vpop.f32.mrb[0].mxu0
        %v3325 = vpop.f32.mrb[0].mxu0
        %v3326 = vadd.f32 0.0, %v3325
        %v3327 = vpop.f32.mrb[0].mxu0
        %3328 = vdwg.mxu0
        %v3329 = vmul.f32 %v3323, %v3282
        %v3330 = vmul.f32 %v3326, %v3283
        %v3331 = vpack.c.bf16 %v3330, %v3329
        %3332 = vst.msk [vmem:[#allocation2 + $0x20] sm:$0xff] %vm1212, %v3331
        %3334 = vrot.lane.b32.xlu0 %v1192, 96
        %v3335 = vpop.permute.xlu0 %3334
        %3337 = vrot.lane.b32.xlu0 %v1200, 96
        %v3338 = vpop.permute.xlu0 %3337
        %v3340 = vsel %vm1212, %v3335, 0
        %v3343 = vsel %vm1212, %v3338, 0
        %3345 = vmatprep.subr.bf16.mxu0 0
        %3346 = vmatpush1.bf16.xpose.msra.mxu0 %v3343
        %3347 = vmatprep.subr.bf16.mxu0 0
        %3348 = vmatpush1.bf16.xpose.msra.mxu0 0
        %3349 = vmatprep.subr.bf16.mxu0 0
        %3350 = vmatpush1.bf16.xpose.msra.mxu0 0
        %3351 = vmatprep.subr.bf16.mxu0 0
        %3352 = vmatpush1.bf16.xpose.msra.mxu0 0
        %3353 = vmatprep.subr.bf16.mxu0 0
        %3354 = vmatpush1.bf16.xpose.msra.mxu0 0
        %3355 = vmatprep.subr.bf16.mxu0 0
        %3356 = vmatpush1.bf16.xpose.msra.mxu0 0
        %3357 = vmatprep.subr.bf16.mxu0 0
        %3358 = vmatpush1.bf16.xpose.msra.mxu0 0
        %3359 = vmatprep.subr.bf16.mxu0 0
        %3360 = vmatpush1.bf16.xpose.msra.mxu0 0
        %3361 = vmatprep.subr.bf16.mxu0 0
        %3362 = vmatpush1.bf16.xpose.msra.mxu0 0
        %3363 = vmatprep.subr.bf16.mxu0 0
        %3364 = vmatpush1.bf16.xpose.msra.mxu0 0
        %3365 = vmatprep.subr.bf16.mxu0 0
        %3366 = vmatpush1.bf16.xpose.msra.mxu0 0
        %3367 = vmatprep.subr.bf16.mxu0 0
        %3368 = vmatpush1.bf16.xpose.msra.mxu0 0
        %3369 = vmatprep.subr.bf16.mxu0 0
        %3370 = vmatpush1.bf16.xpose.msra.mxu0 0
        %3371 = vmatprep.subr.bf16.mxu0 0
        %3372 = vmatpush1.bf16.xpose.msra.mxu0 0
        %3373 = vmatprep.subr.bf16.mxu0 0
        %3374 = vmatpush1.bf16.xpose.msra.mxu0 0
        %3375 = vmatprep.subr.bf16.mxu0 0
        %3376 = vmatpush1.bf16.xpose.msra.mxu0 0
        %3377 = vmatprep.mubr.bf16.mxu0 0
        %3378 = vmatmul.mubr.bf16.gmra.mrb[0].mxu0 %v3340
        %v3379 = vpop.f32.mrb[0].mxu0
        %v3380 = vadd.f32 0.0, %v3379
        %v3381 = vpop.f32.mrb[0].mxu0
        %v3382 = vpop.f32.mrb[0].mxu0
        %v3383 = vadd.f32 0.0, %v3382
        %v3384 = vpop.f32.mrb[0].mxu0
        %3385 = vdwg.mxu0
        %v3386 = vsel %vm1260, %v3380, -inf
        %3387 = vmax.xlane.f32.xlu0 %v3386
        %v3388 = vpop.xlane.xlu0 %3387
        %v3389 = vsel %vm1260, %v3383, -inf
        %3390 = vmax.xlane.f32.xlu0 %v3389
        %v3391 = vpop.xlane.xlu0 %3390
        %v3392 = vsub.f32 %v3380, %v3388
        %v3393 = vsub.f32 %v3383, %v3391
        %v3394 = vmul.f32 %v3392, 1.442695
        %v3395 = vpow.pop %v3394
        %v3396 = vmul.f32 %v3393, 1.442695
        %v3397 = vpow.pop %v3396
        %v3398 = vsel %vm1260, %v3395, 0.0
        %3399 = vadd.xlane.f32.xlu0 %v3398
        %v3400 = vpop.xlane.xlu0 %3399
        %v3401 = vsel %vm1260, %v3397, 0.0
        %3402 = vadd.xlane.f32.xlu0 %v3401
        %v3403 = vpop.xlane.xlu0 %3402
        %v3404 = vrcp.pop %v3400
        %v3405 = vrcp.pop %v3403
        %v3406 = vpack.c.bf16 %v3397, %v3395
        %3408 = vrot.lane.b32.xlu0 %v1208, 96
        %v3409 = vpop.permute.xlu0 %3408
        %v3412 = vsel %vm1260, %v3406, 0
        %3414 = vmatprep.subr.bf16.mxu0 0
        %3415 = vmatpush1.bf16.msra.mxu0 %v3409
        %3416 = vmatprep.subr.bf16.mxu0 0
        %3417 = vmatpush1.bf16.msra.mxu0 0
        %3418 = vmatprep.subr.bf16.mxu0 0
        %3419 = vmatpush1.bf16.msra.mxu0 0
        %3420 = vmatprep.subr.bf16.mxu0 0
        %3421 = vmatpush1.bf16.msra.mxu0 0
        %3422 = vmatprep.subr.bf16.mxu0 0
        %3423 = vmatpush1.bf16.msra.mxu0 0
        %3424 = vmatprep.subr.bf16.mxu0 0
        %3425 = vmatpush1.bf16.msra.mxu0 0
        %3426 = vmatprep.subr.bf16.mxu0 0
        %3427 = vmatpush1.bf16.msra.mxu0 0
        %3428 = vmatprep.subr.bf16.mxu0 0
        %3429 = vmatpush1.bf16.msra.mxu0 0
        %3430 = vmatprep.subr.bf16.mxu0 0
        %3431 = vmatpush1.bf16.msra.mxu0 0
        %3432 = vmatprep.subr.bf16.mxu0 0
        %3433 = vmatpush1.bf16.msra.mxu0 0
        %3434 = vmatprep.subr.bf16.mxu0 0
        %3435 = vmatpush1.bf16.msra.mxu0 0
        %3436 = vmatprep.subr.bf16.mxu0 0
        %3437 = vmatpush1.bf16.msra.mxu0 0
        %3438 = vmatprep.subr.bf16.mxu0 0
        %3439 = vmatpush1.bf16.msra.mxu0 0
        %3440 = vmatprep.subr.bf16.mxu0 0
        %3441 = vmatpush1.bf16.msra.mxu0 0
        %3442 = vmatprep.subr.bf16.mxu0 0
        %3443 = vmatpush1.bf16.msra.mxu0 0
        %3444 = vmatprep.subr.bf16.mxu0 0
        %3445 = vmatpush1.bf16.msra.mxu0 0
        %3446 = vmatprep.mubr.bf16.mxu0 0
        %3447 = vmatmul.mubr.bf16.gmra.mrb[0].mxu0 %v3412
        %v3448 = vpop.f32.mrb[0].mxu0
        %v3449 = vadd.f32 0.0, %v3448
        %v3450 = vpop.f32.mrb[0].mxu0
        %v3451 = vpop.f32.mrb[0].mxu0
        %v3452 = vadd.f32 0.0, %v3451
        %v3453 = vpop.f32.mrb[0].mxu0
        %3454 = vdwg.mxu0
        %v3455 = vmul.f32 %v3449, %v3404
        %v3456 = vmul.f32 %v3452, %v3405
        %v3457 = vpack.c.bf16 %v3456, %v3455
        %3459 = vrot.lane.b32.xlu0 %v3457, 32
        %v3460 = vpop.permute.xlu0 %3459
        %3462 = vst.msk [vmem:[#allocation2 + $0x20] sm:$0xff] %vm1459, %v3460
        %3463 = vrot.lane.b32.xlu0 %v1192, 64
        %v3464 = vpop.permute.xlu0 %3463
        %3465 = vrot.lane.b32.xlu0 %v1200, 64
        %v3466 = vpop.permute.xlu0 %3465
        %v3468 = vsel %vm1212, %v3464, 0
        %v3471 = vsel %vm1212, %v3466, 0
        %3473 = vmatprep.subr.bf16.mxu0 0
        %3474 = vmatpush1.bf16.xpose.msra.mxu0 %v3471
        %3475 = vmatprep.subr.bf16.mxu0 0
        %3476 = vmatpush1.bf16.xpose.msra.mxu0 0
        %3477 = vmatprep.subr.bf16.mxu0 0
        %3478 = vmatpush1.bf16.xpose.msra.mxu0 0
        %3479 = vmatprep.subr.bf16.mxu0 0
        %3480 = vmatpush1.bf16.xpose.msra.mxu0 0
        %3481 = vmatprep.subr.bf16.mxu0 0
        %3482 = vmatpush1.bf16.xpose.msra.mxu0 0
        %3483 = vmatprep.subr.bf16.mxu0 0
        %3484 = vmatpush1.bf16.xpose.msra.mxu0 0
        %3485 = vmatprep.subr.bf16.mxu0 0
        %3486 = vmatpush1.bf16.xpose.msra.mxu0 0
        %3487 = vmatprep.subr.bf16.mxu0 0
        %3488 = vmatpush1.bf16.xpose.msra.mxu0 0
        %3489 = vmatprep.subr.bf16.mxu0 0
        %3490 = vmatpush1.bf16.xpose.msra.mxu0 0
        %3491 = vmatprep.subr.bf16.mxu0 0
        %3492 = vmatpush1.bf16.xpose.msra.mxu0 0
        %3493 = vmatprep.subr.bf16.mxu0 0
        %3494 = vmatpush1.bf16.xpose.msra.mxu0 0
        %3495 = vmatprep.subr.bf16.mxu0 0
        %3496 = vmatpush1.bf16.xpose.msra.mxu0 0
        %3497 = vmatprep.subr.bf16.mxu0 0
        %3498 = vmatpush1.bf16.xpose.msra.mxu0 0
        %3499 = vmatprep.subr.bf16.mxu0 0
        %3500 = vmatpush1.bf16.xpose.msra.mxu0 0
        %3501 = vmatprep.subr.bf16.mxu0 0
        %3502 = vmatpush1.bf16.xpose.msra.mxu0 0
        %3503 = vmatprep.subr.bf16.mxu0 0
        %3504 = vmatpush1.bf16.xpose.msra.mxu0 0
        %3505 = vmatprep.mubr.bf16.mxu0 0
        %3506 = vmatmul.mubr.bf16.gmra.mrb[0].mxu0 %v3468
        %v3507 = vpop.f32.mrb[0].mxu0
        %v3508 = vadd.f32 0.0, %v3507
        %v3509 = vpop.f32.mrb[0].mxu0
        %v3510 = vpop.f32.mrb[0].mxu0
        %v3511 = vadd.f32 0.0, %v3510
        %v3512 = vpop.f32.mrb[0].mxu0
        %3513 = vdwg.mxu0
        %v3514 = vsel %vm1260, %v3508, -inf
        %3515 = vmax.xlane.f32.xlu0 %v3514
        %v3516 = vpop.xlane.xlu0 %3515
        %v3517 = vsel %vm1260, %v3511, -inf
        %3518 = vmax.xlane.f32.xlu0 %v3517
        %v3519 = vpop.xlane.xlu0 %3518
        %v3520 = vsub.f32 %v3508, %v3516
        %v3521 = vsub.f32 %v3511, %v3519
        %v3522 = vmul.f32 %v3520, 1.442695
        %v3523 = vpow.pop %v3522
        %v3524 = vmul.f32 %v3521, 1.442695
        %v3525 = vpow.pop %v3524
        %v3526 = vsel %vm1260, %v3523, 0.0
        %3527 = vadd.xlane.f32.xlu0 %v3526
        %v3528 = vpop.xlane.xlu0 %3527
        %v3529 = vsel %vm1260, %v3525, 0.0
        %3530 = vadd.xlane.f32.xlu0 %v3529
        %v3531 = vpop.xlane.xlu0 %3530
        %v3532 = vrcp.pop %v3528
        %v3533 = vrcp.pop %v3531
        %v3534 = vpack.c.bf16 %v3525, %v3523
        %3535 = vrot.lane.b32.xlu0 %v1208, 64
        %v3536 = vpop.permute.xlu0 %3535
        %v3539 = vsel %vm1260, %v3534, 0
        %3541 = vmatprep.subr.bf16.mxu0 0
        %3542 = vmatpush1.bf16.msra.mxu0 %v3536
        %3543 = vmatprep.subr.bf16.mxu0 0
        %3544 = vmatpush1.bf16.msra.mxu0 0
        %3545 = vmatprep.subr.bf16.mxu0 0
        %3546 = vmatpush1.bf16.msra.mxu0 0
        %3547 = vmatprep.subr.bf16.mxu0 0
        %3548 = vmatpush1.bf16.msra.mxu0 0
        %3549 = vmatprep.subr.bf16.mxu0 0
        %3550 = vmatpush1.bf16.msra.mxu0 0
        %3551 = vmatprep.subr.bf16.mxu0 0
        %3552 = vmatpush1.bf16.msra.mxu0 0
        %3553 = vmatprep.subr.bf16.mxu0 0
        %3554 = vmatpush1.bf16.msra.mxu0 0
        %3555 = vmatprep.subr.bf16.mxu0 0
        %3556 = vmatpush1.bf16.msra.mxu0 0
        %3557 = vmatprep.subr.bf16.mxu0 0
        %3558 = vmatpush1.bf16.msra.mxu0 0
        %3559 = vmatprep.subr.bf16.mxu0 0
        %3560 = vmatpush1.bf16.msra.mxu0 0
        %3561 = vmatprep.subr.bf16.mxu0 0
        %3562 = vmatpush1.bf16.msra.mxu0 0
        %3563 = vmatprep.subr.bf16.mxu0 0
        %3564 = vmatpush1.bf16.msra.mxu0 0
        %3565 = vmatprep.subr.bf16.mxu0 0
        %3566 = vmatpush1.bf16.msra.mxu0 0
        %3567 = vmatprep.subr.bf16.mxu0 0
        %3568 = vmatpush1.bf16.msra.mxu0 0
        %3569 = vmatprep.subr.bf16.mxu0 0
        %3570 = vmatpush1.bf16.msra.mxu0 0
        %3571 = vmatprep.subr.bf16.mxu0 0
        %3572 = vmatpush1.bf16.msra.mxu0 0
        %3573 = vmatprep.mubr.bf16.mxu0 0
        %3574 = vmatmul.mubr.bf16.gmra.mrb[0].mxu0 %v3539
        %v3575 = vpop.f32.mrb[0].mxu0
        %v3576 = vadd.f32 0.0, %v3575
        %v3577 = vpop.f32.mrb[0].mxu0
        %v3578 = vpop.f32.mrb[0].mxu0
        %v3579 = vadd.f32 0.0, %v3578
        %v3580 = vpop.f32.mrb[0].mxu0
        %3581 = vdwg.mxu0
        %v3582 = vmul.f32 %v3576, %v3532
        %v3583 = vmul.f32 %v3579, %v3533
        %v3584 = vpack.c.bf16 %v3583, %v3582
        %3586 = vrot.lane.b32.xlu0 %v3584, 64
        %v3587 = vpop.permute.xlu0 %3586
        %3589 = vst.msk [vmem:[#allocation2 + $0x20] sm:$0xff] %vm1587, %v3587
        %3590 = vrot.lane.b32.xlu0 %v1192, 32
        %v3591 = vpop.permute.xlu0 %3590
        %3592 = vrot.lane.b32.xlu0 %v1200, 32
        %v3593 = vpop.permute.xlu0 %3592
        %v3595 = vsel %vm1212, %v3591, 0
        %v3598 = vsel %vm1212, %v3593, 0
        %3600 = vmatprep.subr.bf16.mxu0 0
        %3601 = vmatpush1.bf16.xpose.msra.mxu0 %v3598
        %3602 = vmatprep.subr.bf16.mxu0 0
        %3603 = vmatpush1.bf16.xpose.msra.mxu0 0
        %3604 = vmatprep.subr.bf16.mxu0 0
        %3605 = vmatpush1.bf16.xpose.msra.mxu0 0
        %3606 = vmatprep.subr.bf16.mxu0 0
        %3607 = vmatpush1.bf16.xpose.msra.mxu0 0
        %3608 = vmatprep.subr.bf16.mxu0 0
        %3609 = vmatpush1.bf16.xpose.msra.mxu0 0
        %3610 = vmatprep.subr.bf16.mxu0 0
        %3611 = vmatpush1.bf16.xpose.msra.mxu0 0
        %3612 = vmatprep.subr.bf16.mxu0 0
        %3613 = vmatpush1.bf16.xpose.msra.mxu0 0
        %3614 = vmatprep.subr.bf16.mxu0 0
        %3615 = vmatpush1.bf16.xpose.msra.mxu0 0
        %3616 = vmatprep.subr.bf16.mxu0 0
        %3617 = vmatpush1.bf16.xpose.msra.mxu0 0
        %3618 = vmatprep.subr.bf16.mxu0 0
        %3619 = vmatpush1.bf16.xpose.msra.mxu0 0
        %3620 = vmatprep.subr.bf16.mxu0 0
        %3621 = vmatpush1.bf16.xpose.msra.mxu0 0
        %3622 = vmatprep.subr.bf16.mxu0 0
        %3623 = vmatpush1.bf16.xpose.msra.mxu0 0
        %3624 = vmatprep.subr.bf16.mxu0 0
        %3625 = vmatpush1.bf16.xpose.msra.mxu0 0
        %3626 = vmatprep.subr.bf16.mxu0 0
        %3627 = vmatpush1.bf16.xpose.msra.mxu0 0
        %3628 = vmatprep.subr.bf16.mxu0 0
        %3629 = vmatpush1.bf16.xpose.msra.mxu0 0
        %3630 = vmatprep.subr.bf16.mxu0 0
        %3631 = vmatpush1.bf16.xpose.msra.mxu0 0
        %3632 = vmatprep.mubr.bf16.mxu0 0
        %3633 = vmatmul.mubr.bf16.gmra.mrb[0].mxu0 %v3595
        %v3634 = vpop.f32.mrb[0].mxu0
        %v3635 = vadd.f32 0.0, %v3634
        %v3636 = vpop.f32.mrb[0].mxu0
        %v3637 = vpop.f32.mrb[0].mxu0
        %v3638 = vadd.f32 0.0, %v3637
        %v3639 = vpop.f32.mrb[0].mxu0
        %3640 = vdwg.mxu0
        %v3641 = vsel %vm1260, %v3635, -inf
        %3642 = vmax.xlane.f32.xlu0 %v3641
        %v3643 = vpop.xlane.xlu0 %3642
        %v3644 = vsel %vm1260, %v3638, -inf
        %3645 = vmax.xlane.f32.xlu0 %v3644
        %v3646 = vpop.xlane.xlu0 %3645
        %v3647 = vsub.f32 %v3635, %v3643
        %v3648 = vsub.f32 %v3638, %v3646
        %v3649 = vmul.f32 %v3647, 1.442695
        %v3650 = vpow.pop %v3649
        %v3651 = vmul.f32 %v3648, 1.442695
        %v3652 = vpow.pop %v3651
        %v3653 = vsel %vm1260, %v3650, 0.0
        %3654 = vadd.xlane.f32.xlu0 %v3653
        %v3655 = vpop.xlane.xlu0 %3654
        %v3656 = vsel %vm1260, %v3652, 0.0
        %3657 = vadd.xlane.f32.xlu0 %v3656
        %v3658 = vpop.xlane.xlu0 %3657
        %v3659 = vrcp.pop %v3655
        %v3660 = vrcp.pop %v3658
        %v3661 = vpack.c.bf16 %v3652, %v3650
        %3662 = vrot.lane.b32.xlu0 %v1208, 32
        %v3663 = vpop.permute.xlu0 %3662
        %v3666 = vsel %vm1260, %v3661, 0
        %3668 = vmatprep.subr.bf16.mxu0 0
        %3669 = vmatpush1.bf16.msra.mxu0 %v3663
        %3670 = vmatprep.subr.bf16.mxu0 0
        %3671 = vmatpush1.bf16.msra.mxu0 0
        %3672 = vmatprep.subr.bf16.mxu0 0
        %3673 = vmatpush1.bf16.msra.mxu0 0
        %3674 = vmatprep.subr.bf16.mxu0 0
        %3675 = vmatpush1.bf16.msra.mxu0 0
        %3676 = vmatprep.subr.bf16.mxu0 0
        %3677 = vmatpush1.bf16.msra.mxu0 0
        %3678 = vmatprep.subr.bf16.mxu0 0
        %3679 = vmatpush1.bf16.msra.mxu0 0
        %3680 = vmatprep.subr.bf16.mxu0 0
        %3681 = vmatpush1.bf16.msra.mxu0 0
        %3682 = vmatprep.subr.bf16.mxu0 0
        %3683 = vmatpush1.bf16.msra.mxu0 0
        %3684 = vmatprep.subr.bf16.mxu0 0
        %3685 = vmatpush1.bf16.msra.mxu0 0
        %3686 = vmatprep.subr.bf16.mxu0 0
        %3687 = vmatpush1.bf16.msra.mxu0 0
        %3688 = vmatprep.subr.bf16.mxu0 0
        %3689 = vmatpush1.bf16.msra.mxu0 0
        %3690 = vmatprep.subr.bf16.mxu0 0
        %3691 = vmatpush1.bf16.msra.mxu0 0
        %3692 = vmatprep.subr.bf16.mxu0 0
        %3693 = vmatpush1.bf16.msra.mxu0 0
        %3694 = vmatprep.subr.bf16.mxu0 0
        %3695 = vmatpush1.bf16.msra.mxu0 0
        %3696 = vmatprep.subr.bf16.mxu0 0
        %3697 = vmatpush1.bf16.msra.mxu0 0
        %3698 = vmatprep.subr.bf16.mxu0 0
        %3699 = vmatpush1.bf16.msra.mxu0 0
        %3700 = vmatprep.mubr.bf16.mxu0 0
        %3701 = vmatmul.mubr.bf16.gmra.mrb[0].mxu0 %v3666
        %v3702 = vpop.f32.mrb[0].mxu0
        %v3703 = vadd.f32 0.0, %v3702
        %v3704 = vpop.f32.mrb[0].mxu0
        %v3705 = vpop.f32.mrb[0].mxu0
        %v3706 = vadd.f32 0.0, %v3705
        %v3707 = vpop.f32.mrb[0].mxu0
        %3708 = vdwg.mxu0
        %v3709 = vmul.f32 %v3703, %v3659
        %v3710 = vmul.f32 %v3706, %v3660
        %v3711 = vpack.c.bf16 %v3710, %v3709
        %3713 = vrot.lane.b32.xlu0 %v3711, 96
        %v3714 = vpop.permute.xlu0 %3713
        %3716 = vst.msk [vmem:[#allocation2 + $0x20] sm:$0xff] %vm1715, %v3714
        %v3718 = vsel %vm1212, %v1193, 0
        %v3721 = vsel %vm1212, %v1201, 0
        %3723 = vmatprep.subr.bf16.mxu0 0
        %3724 = vmatpush1.bf16.xpose.msra.mxu0 %v3721
        %3725 = vmatprep.subr.bf16.mxu0 0
        %3726 = vmatpush1.bf16.xpose.msra.mxu0 0
        %3727 = vmatprep.subr.bf16.mxu0 0
        %3728 = vmatpush1.bf16.xpose.msra.mxu0 0
        %3729 = vmatprep.subr.bf16.mxu0 0
        %3730 = vmatpush1.bf16.xpose.msra.mxu0 0
        %3731 = vmatprep.subr.bf16.mxu0 0
        %3732 = vmatpush1.bf16.xpose.msra.mxu0 0
        %3733 = vmatprep.subr.bf16.mxu0 0
        %3734 = vmatpush1.bf16.xpose.msra.mxu0 0
        %3735 = vmatprep.subr.bf16.mxu0 0
        %3736 = vmatpush1.bf16.xpose.msra.mxu0 0
        %3737 = vmatprep.subr.bf16.mxu0 0
        %3738 = vmatpush1.bf16.xpose.msra.mxu0 0
        %3739 = vmatprep.subr.bf16.mxu0 0
        %3740 = vmatpush1.bf16.xpose.msra.mxu0 0
        %3741 = vmatprep.subr.bf16.mxu0 0
        %3742 = vmatpush1.bf16.xpose.msra.mxu0 0
        %3743 = vmatprep.subr.bf16.mxu0 0
        %3744 = vmatpush1.bf16.xpose.msra.mxu0 0
        %3745 = vmatprep.subr.bf16.mxu0 0
        %3746 = vmatpush1.bf16.xpose.msra.mxu0 0
        %3747 = vmatprep.subr.bf16.mxu0 0
        %3748 = vmatpush1.bf16.xpose.msra.mxu0 0
        %3749 = vmatprep.subr.bf16.mxu0 0
        %3750 = vmatpush1.bf16.xpose.msra.mxu0 0
        %3751 = vmatprep.subr.bf16.mxu0 0
        %3752 = vmatpush1.bf16.xpose.msra.mxu0 0
        %3753 = vmatprep.subr.bf16.mxu0 0
        %3754 = vmatpush1.bf16.xpose.msra.mxu0 0
        %3755 = vmatprep.mubr.bf16.mxu0 0
        %3756 = vmatmul.mubr.bf16.gmra.mrb[0].mxu0 %v3718
        %v3757 = vpop.f32.mrb[0].mxu0
        %v3758 = vadd.f32 0.0, %v3757
        %v3759 = vpop.f32.mrb[0].mxu0
        %v3760 = vpop.f32.mrb[0].mxu0
        %v3761 = vadd.f32 0.0, %v3760
        %v3762 = vpop.f32.mrb[0].mxu0
        %3763 = vdwg.mxu0
        %v3764 = vsel %vm1260, %v3758, -inf
        %3765 = vmax.xlane.f32.xlu0 %v3764
        %v3766 = vpop.xlane.xlu0 %3765
        %v3767 = vsel %vm1260, %v3761, -inf
        %3768 = vmax.xlane.f32.xlu0 %v3767
        %v3769 = vpop.xlane.xlu0 %3768
        %v3770 = vsub.f32 %v3758, %v3766
        %v3771 = vsub.f32 %v3761, %v3769
        %v3772 = vmul.f32 %v3770, 1.442695
        %v3773 = vpow.pop %v3772
        %v3774 = vmul.f32 %v3771, 1.442695
        %v3775 = vpow.pop %v3774
        %v3776 = vsel %vm1260, %v3773, 0.0
        %3777 = vadd.xlane.f32.xlu0 %v3776
        %v3778 = vpop.xlane.xlu0 %3777
        %v3779 = vsel %vm1260, %v3775, 0.0
        %3780 = vadd.xlane.f32.xlu0 %v3779
        %v3781 = vpop.xlane.xlu0 %3780
        %v3782 = vrcp.pop %v3778
        %v3783 = vrcp.pop %v3781
        %v3784 = vpack.c.bf16 %v3775, %v3773
        %v3786 = vsel %vm1260, %v3784, 0
        %3788 = vmatprep.subr.bf16.mxu0 0
        %3789 = vmatpush1.bf16.msra.mxu0 %v1209
        %3790 = vmatprep.subr.bf16.mxu0 0
        %3791 = vmatpush1.bf16.msra.mxu0 0
        %3792 = vmatprep.subr.bf16.mxu0 0
        %3793 = vmatpush1.bf16.msra.mxu0 0
        %3794 = vmatprep.subr.bf16.mxu0 0
        %3795 = vmatpush1.bf16.msra.mxu0 0
        %3796 = vmatprep.subr.bf16.mxu0 0
        %3797 = vmatpush1.bf16.msra.mxu0 0
        %3798 = vmatprep.subr.bf16.mxu0 0
        %3799 = vmatpush1.bf16.msra.mxu0 0
        %3800 = vmatprep.subr.bf16.mxu0 0
        %3801 = vmatpush1.bf16.msra.mxu0 0
        %3802 = vmatprep.subr.bf16.mxu0 0
        %3803 = vmatpush1.bf16.msra.mxu0 0
        %3804 = vmatprep.subr.bf16.mxu0 0
        %3805 = vmatpush1.bf16.msra.mxu0 0
        %3806 = vmatprep.subr.bf16.mxu0 0
        %3807 = vmatpush1.bf16.msra.mxu0 0
        %3808 = vmatprep.subr.bf16.mxu0 0
        %3809 = vmatpush1.bf16.msra.mxu0 0
        %3810 = vmatprep.subr.bf16.mxu0 0
        %3811 = vmatpush1.bf16.msra.mxu0 0
        %3812 = vmatprep.subr.bf16.mxu0 0
        %3813 = vmatpush1.bf16.msra.mxu0 0
        %3814 = vmatprep.subr.bf16.mxu0 0
        %3815 = vmatpush1.bf16.msra.mxu0 0
        %3816 = vmatprep.subr.bf16.mxu0 0
        %3817 = vmatpush1.bf16.msra.mxu0 0
        %3818 = vmatprep.subr.bf16.mxu0 0
        %3819 = vmatpush1.bf16.msra.mxu0 0
        %3820 = vmatprep.mubr.bf16.mxu0 0
        %3821 = vmatmul.mubr.bf16.gmra.mrb[0].mxu0 %v3786
        %v3822 = vpop.f32.mrb[0].mxu0
        %v3823 = vadd.f32 0.0, %v3822
        %v3824 = vpop.f32.mrb[0].mxu0
        %v3825 = vpop.f32.mrb[0].mxu0
        %v3826 = vadd.f32 0.0, %v3825
        %v3827 = vpop.f32.mrb[0].mxu0
        %3828 = vdwg.mxu0
        %v3829 = vmul.f32 %v3823, %v3782
        %v3830 = vmul.f32 %v3826, %v3783
        %v3831 = vpack.c.bf16 %v3830, %v3829
        %3832 = vst.msk [vmem:[#allocation2 + $0x28] sm:$0xff] %vm1212, %v3831
        %3834 = vrot.lane.b32.xlu0 %v1193, 96
        %v3835 = vpop.permute.xlu0 %3834
        %3837 = vrot.lane.b32.xlu0 %v1201, 96
        %v3838 = vpop.permute.xlu0 %3837
        %v3840 = vsel %vm1212, %v3835, 0
        %v3843 = vsel %vm1212, %v3838, 0
        %3845 = vmatprep.subr.bf16.mxu0 0
        %3846 = vmatpush1.bf16.xpose.msra.mxu0 %v3843
        %3847 = vmatprep.subr.bf16.mxu0 0
        %3848 = vmatpush1.bf16.xpose.msra.mxu0 0
        %3849 = vmatprep.subr.bf16.mxu0 0
        %3850 = vmatpush1.bf16.xpose.msra.mxu0 0
        %3851 = vmatprep.subr.bf16.mxu0 0
        %3852 = vmatpush1.bf16.xpose.msra.mxu0 0
        %3853 = vmatprep.subr.bf16.mxu0 0
        %3854 = vmatpush1.bf16.xpose.msra.mxu0 0
        %3855 = vmatprep.subr.bf16.mxu0 0
        %3856 = vmatpush1.bf16.xpose.msra.mxu0 0
        %3857 = vmatprep.subr.bf16.mxu0 0
        %3858 = vmatpush1.bf16.xpose.msra.mxu0 0
        %3859 = vmatprep.subr.bf16.mxu0 0
        %3860 = vmatpush1.bf16.xpose.msra.mxu0 0
        %3861 = vmatprep.subr.bf16.mxu0 0
        %3862 = vmatpush1.bf16.xpose.msra.mxu0 0
        %3863 = vmatprep.subr.bf16.mxu0 0
        %3864 = vmatpush1.bf16.xpose.msra.mxu0 0
        %3865 = vmatprep.subr.bf16.mxu0 0
        %3866 = vmatpush1.bf16.xpose.msra.mxu0 0
        %3867 = vmatprep.subr.bf16.mxu0 0
        %3868 = vmatpush1.bf16.xpose.msra.mxu0 0
        %3869 = vmatprep.subr.bf16.mxu0 0
        %3870 = vmatpush1.bf16.xpose.msra.mxu0 0
        %3871 = vmatprep.subr.bf16.mxu0 0
        %3872 = vmatpush1.bf16.xpose.msra.mxu0 0
        %3873 = vmatprep.subr.bf16.mxu0 0
        %3874 = vmatpush1.bf16.xpose.msra.mxu0 0
        %3875 = vmatprep.subr.bf16.mxu0 0
        %3876 = vmatpush1.bf16.xpose.msra.mxu0 0
        %3877 = vmatprep.mubr.bf16.mxu0 0
        %3878 = vmatmul.mubr.bf16.gmra.mrb[0].mxu0 %v3840
        %v3879 = vpop.f32.mrb[0].mxu0
        %v3880 = vadd.f32 0.0, %v3879
        %v3881 = vpop.f32.mrb[0].mxu0
        %v3882 = vpop.f32.mrb[0].mxu0
        %v3883 = vadd.f32 0.0, %v3882
        %v3884 = vpop.f32.mrb[0].mxu0
        %3885 = vdwg.mxu0
        %v3886 = vsel %vm1260, %v3880, -inf
        %3887 = vmax.xlane.f32.xlu0 %v3886
        %v3888 = vpop.xlane.xlu0 %3887
        %v3889 = vsel %vm1260, %v3883, -inf
        %3890 = vmax.xlane.f32.xlu0 %v3889
        %v3891 = vpop.xlane.xlu0 %3890
        %v3892 = vsub.f32 %v3880, %v3888
        %v3893 = vsub.f32 %v3883, %v3891
        %v3894 = vmul.f32 %v3892, 1.442695
        %v3895 = vpow.pop %v3894
        %v3896 = vmul.f32 %v3893, 1.442695
        %v3897 = vpow.pop %v3896
        %v3898 = vsel %vm1260, %v3895, 0.0
        %3899 = vadd.xlane.f32.xlu0 %v3898
        %v3900 = vpop.xlane.xlu0 %3899
        %v3901 = vsel %vm1260, %v3897, 0.0
        %3902 = vadd.xlane.f32.xlu0 %v3901
        %v3903 = vpop.xlane.xlu0 %3902
        %v3904 = vrcp.pop %v3900
        %v3905 = vrcp.pop %v3903
        %v3906 = vpack.c.bf16 %v3897, %v3895
        %3908 = vrot.lane.b32.xlu0 %v1209, 96
        %v3909 = vpop.permute.xlu0 %3908
        %v3912 = vsel %vm1260, %v3906, 0
        %3914 = vmatprep.subr.bf16.mxu0 0
        %3915 = vmatpush1.bf16.msra.mxu0 %v3909
        %3916 = vmatprep.subr.bf16.mxu0 0
        %3917 = vmatpush1.bf16.msra.mxu0 0
        %3918 = vmatprep.subr.bf16.mxu0 0
        %3919 = vmatpush1.bf16.msra.mxu0 0
        %3920 = vmatprep.subr.bf16.mxu0 0
        %3921 = vmatpush1.bf16.msra.mxu0 0
        %3922 = vmatprep.subr.bf16.mxu0 0
        %3923 = vmatpush1.bf16.msra.mxu0 0
        %3924 = vmatprep.subr.bf16.mxu0 0
        %3925 = vmatpush1.bf16.msra.mxu0 0
        %3926 = vmatprep.subr.bf16.mxu0 0
        %3927 = vmatpush1.bf16.msra.mxu0 0
        %3928 = vmatprep.subr.bf16.mxu0 0
        %3929 = vmatpush1.bf16.msra.mxu0 0
        %3930 = vmatprep.subr.bf16.mxu0 0
        %3931 = vmatpush1.bf16.msra.mxu0 0
        %3932 = vmatprep.subr.bf16.mxu0 0
        %3933 = vmatpush1.bf16.msra.mxu0 0
        %3934 = vmatprep.subr.bf16.mxu0 0
        %3935 = vmatpush1.bf16.msra.mxu0 0
        %3936 = vmatprep.subr.bf16.mxu0 0
        %3937 = vmatpush1.bf16.msra.mxu0 0
        %3938 = vmatprep.subr.bf16.mxu0 0
        %3939 = vmatpush1.bf16.msra.mxu0 0
        %3940 = vmatprep.subr.bf16.mxu0 0
        %3941 = vmatpush1.bf16.msra.mxu0 0
        %3942 = vmatprep.subr.bf16.mxu0 0
        %3943 = vmatpush1.bf16.msra.mxu0 0
        %3944 = vmatprep.subr.bf16.mxu0 0
        %3945 = vmatpush1.bf16.msra.mxu0 0
        %3946 = vmatprep.mubr.bf16.mxu0 0
        %3947 = vmatmul.mubr.bf16.gmra.mrb[0].mxu0 %v3912
        %v3948 = vpop.f32.mrb[0].mxu0
        %v3949 = vadd.f32 0.0, %v3948
        %v3950 = vpop.f32.mrb[0].mxu0
        %v3951 = vpop.f32.mrb[0].mxu0
        %v3952 = vadd.f32 0.0, %v3951
        %v3953 = vpop.f32.mrb[0].mxu0
        %3954 = vdwg.mxu0
        %v3955 = vmul.f32 %v3949, %v3904
        %v3956 = vmul.f32 %v3952, %v3905
        %v3957 = vpack.c.bf16 %v3956, %v3955
        %3959 = vrot.lane.b32.xlu0 %v3957, 32
        %v3960 = vpop.permute.xlu0 %3959
        %3962 = vst.msk [vmem:[#allocation2 + $0x28] sm:$0xff] %vm1459, %v3960
        %3963 = vrot.lane.b32.xlu0 %v1193, 64
        %v3964 = vpop.permute.xlu0 %3963
        %3965 = vrot.lane.b32.xlu0 %v1201, 64
        %v3966 = vpop.permute.xlu0 %3965
        %v3968 = vsel %vm1212, %v3964, 0
        %v3971 = vsel %vm1212, %v3966, 0
        %3973 = vmatprep.subr.bf16.mxu0 0
        %3974 = vmatpush1.bf16.xpose.msra.mxu0 %v3971
        %3975 = vmatprep.subr.bf16.mxu0 0
        %3976 = vmatpush1.bf16.xpose.msra.mxu0 0
        %3977 = vmatprep.subr.bf16.mxu0 0
        %3978 = vmatpush1.bf16.xpose.msra.mxu0 0
        %3979 = vmatprep.subr.bf16.mxu0 0
        %3980 = vmatpush1.bf16.xpose.msra.mxu0 0
        %3981 = vmatprep.subr.bf16.mxu0 0
        %3982 = vmatpush1.bf16.xpose.msra.mxu0 0
        %3983 = vmatprep.subr.bf16.mxu0 0
        %3984 = vmatpush1.bf16.xpose.msra.mxu0 0
        %3985 = vmatprep.subr.bf16.mxu0 0
        %3986 = vmatpush1.bf16.xpose.msra.mxu0 0
        %3987 = vmatprep.subr.bf16.mxu0 0
        %3988 = vmatpush1.bf16.xpose.msra.mxu0 0
        %3989 = vmatprep.subr.bf16.mxu0 0
        %3990 = vmatpush1.bf16.xpose.msra.mxu0 0
        %3991 = vmatprep.subr.bf16.mxu0 0
        %3992 = vmatpush1.bf16.xpose.msra.mxu0 0
        %3993 = vmatprep.subr.bf16.mxu0 0
        %3994 = vmatpush1.bf16.xpose.msra.mxu0 0
        %3995 = vmatprep.subr.bf16.mxu0 0
        %3996 = vmatpush1.bf16.xpose.msra.mxu0 0
        %3997 = vmatprep.subr.bf16.mxu0 0
        %3998 = vmatpush1.bf16.xpose.msra.mxu0 0
        %3999 = vmatprep.subr.bf16.mxu0 0
        %4000 = vmatpush1.bf16.xpose.msra.mxu0 0
        %4001 = vmatprep.subr.bf16.mxu0 0
        %4002 = vmatpush1.bf16.xpose.msra.mxu0 0
        %4003 = vmatprep.subr.bf16.mxu0 0
        %4004 = vmatpush1.bf16.xpose.msra.mxu0 0
        %4005 = vmatprep.mubr.bf16.mxu0 0
        %4006 = vmatmul.mubr.bf16.gmra.mrb[0].mxu0 %v3968
        %v4007 = vpop.f32.mrb[0].mxu0
        %v4008 = vadd.f32 0.0, %v4007
        %v4009 = vpop.f32.mrb[0].mxu0
        %v4010 = vpop.f32.mrb[0].mxu0
        %v4011 = vadd.f32 0.0, %v4010
        %v4012 = vpop.f32.mrb[0].mxu0
        %4013 = vdwg.mxu0
        %v4014 = vsel %vm1260, %v4008, -inf
        %4015 = vmax.xlane.f32.xlu0 %v4014
        %v4016 = vpop.xlane.xlu0 %4015
        %v4017 = vsel %vm1260, %v4011, -inf
        %4018 = vmax.xlane.f32.xlu0 %v4017
        %v4019 = vpop.xlane.xlu0 %4018
        %v4020 = vsub.f32 %v4008, %v4016
        %v4021 = vsub.f32 %v4011, %v4019
        %v4022 = vmul.f32 %v4020, 1.442695
        %v4023 = vpow.pop %v4022
        %v4024 = vmul.f32 %v4021, 1.442695
        %v4025 = vpow.pop %v4024
        %v4026 = vsel %vm1260, %v4023, 0.0
        %4027 = vadd.xlane.f32.xlu0 %v4026
        %v4028 = vpop.xlane.xlu0 %4027
        %v4029 = vsel %vm1260, %v4025, 0.0
        %4030 = vadd.xlane.f32.xlu0 %v4029
        %v4031 = vpop.xlane.xlu0 %4030
        %v4032 = vrcp.pop %v4028
        %v4033 = vrcp.pop %v4031
        %v4034 = vpack.c.bf16 %v4025, %v4023
        %4035 = vrot.lane.b32.xlu0 %v1209, 64
        %v4036 = vpop.permute.xlu0 %4035
        %v4039 = vsel %vm1260, %v4034, 0
        %4041 = vmatprep.subr.bf16.mxu0 0
        %4042 = vmatpush1.bf16.msra.mxu0 %v4036
        %4043 = vmatprep.subr.bf16.mxu0 0
        %4044 = vmatpush1.bf16.msra.mxu0 0
        %4045 = vmatprep.subr.bf16.mxu0 0
        %4046 = vmatpush1.bf16.msra.mxu0 0
        %4047 = vmatprep.subr.bf16.mxu0 0
        %4048 = vmatpush1.bf16.msra.mxu0 0
        %4049 = vmatprep.subr.bf16.mxu0 0
        %4050 = vmatpush1.bf16.msra.mxu0 0
        %4051 = vmatprep.subr.bf16.mxu0 0
        %4052 = vmatpush1.bf16.msra.mxu0 0
        %4053 = vmatprep.subr.bf16.mxu0 0
        %4054 = vmatpush1.bf16.msra.mxu0 0
        %4055 = vmatprep.subr.bf16.mxu0 0
        %4056 = vmatpush1.bf16.msra.mxu0 0
        %4057 = vmatprep.subr.bf16.mxu0 0
        %4058 = vmatpush1.bf16.msra.mxu0 0
        %4059 = vmatprep.subr.bf16.mxu0 0
        %4060 = vmatpush1.bf16.msra.mxu0 0
        %4061 = vmatprep.subr.bf16.mxu0 0
        %4062 = vmatpush1.bf16.msra.mxu0 0
        %4063 = vmatprep.subr.bf16.mxu0 0
        %4064 = vmatpush1.bf16.msra.mxu0 0
        %4065 = vmatprep.subr.bf16.mxu0 0
        %4066 = vmatpush1.bf16.msra.mxu0 0
        %4067 = vmatprep.subr.bf16.mxu0 0
        %4068 = vmatpush1.bf16.msra.mxu0 0
        %4069 = vmatprep.subr.bf16.mxu0 0
        %4070 = vmatpush1.bf16.msra.mxu0 0
        %4071 = vmatprep.subr.bf16.mxu0 0
        %4072 = vmatpush1.bf16.msra.mxu0 0
        %4073 = vmatprep.mubr.bf16.mxu0 0
        %4074 = vmatmul.mubr.bf16.gmra.mrb[0].mxu0 %v4039
        %v4075 = vpop.f32.mrb[0].mxu0
        %v4076 = vadd.f32 0.0, %v4075
        %v4077 = vpop.f32.mrb[0].mxu0
        %v4078 = vpop.f32.mrb[0].mxu0
        %v4079 = vadd.f32 0.0, %v4078
        %v4080 = vpop.f32.mrb[0].mxu0
        %4081 = vdwg.mxu0
        %v4082 = vmul.f32 %v4076, %v4032
        %v4083 = vmul.f32 %v4079, %v4033
        %v4084 = vpack.c.bf16 %v4083, %v4082
        %4086 = vrot.lane.b32.xlu0 %v4084, 64
        %v4087 = vpop.permute.xlu0 %4086
        %4089 = vst.msk [vmem:[#allocation2 + $0x28] sm:$0xff] %vm1587, %v4087
        %4090 = vrot.lane.b32.xlu0 %v1193, 32
        %v4091 = vpop.permute.xlu0 %4090
        %4092 = vrot.lane.b32.xlu0 %v1201, 32
        %v4093 = vpop.permute.xlu0 %4092
        %v4095 = vsel %vm1212, %v4091, 0
        %v4098 = vsel %vm1212, %v4093, 0
        %4100 = vmatprep.subr.bf16.mxu0 0
        %4101 = vmatpush1.bf16.xpose.msra.mxu0 %v4098
        %4102 = vmatprep.subr.bf16.mxu0 0
        %4103 = vmatpush1.bf16.xpose.msra.mxu0 0
        %4104 = vmatprep.subr.bf16.mxu0 0
        %4105 = vmatpush1.bf16.xpose.msra.mxu0 0
        %4106 = vmatprep.subr.bf16.mxu0 0
        %4107 = vmatpush1.bf16.xpose.msra.mxu0 0
        %4108 = vmatprep.subr.bf16.mxu0 0
        %4109 = vmatpush1.bf16.xpose.msra.mxu0 0
        %4110 = vmatprep.subr.bf16.mxu0 0
        %4111 = vmatpush1.bf16.xpose.msra.mxu0 0
        %4112 = vmatprep.subr.bf16.mxu0 0
        %4113 = vmatpush1.bf16.xpose.msra.mxu0 0
        %4114 = vmatprep.subr.bf16.mxu0 0
        %4115 = vmatpush1.bf16.xpose.msra.mxu0 0
        %4116 = vmatprep.subr.bf16.mxu0 0
        %4117 = vmatpush1.bf16.xpose.msra.mxu0 0
        %4118 = vmatprep.subr.bf16.mxu0 0
        %4119 = vmatpush1.bf16.xpose.msra.mxu0 0
        %4120 = vmatprep.subr.bf16.mxu0 0
        %4121 = vmatpush1.bf16.xpose.msra.mxu0 0
        %4122 = vmatprep.subr.bf16.mxu0 0
        %4123 = vmatpush1.bf16.xpose.msra.mxu0 0
        %4124 = vmatprep.subr.bf16.mxu0 0
        %4125 = vmatpush1.bf16.xpose.msra.mxu0 0
        %4126 = vmatprep.subr.bf16.mxu0 0
        %4127 = vmatpush1.bf16.xpose.msra.mxu0 0
        %4128 = vmatprep.subr.bf16.mxu0 0
        %4129 = vmatpush1.bf16.xpose.msra.mxu0 0
        %4130 = vmatprep.subr.bf16.mxu0 0
        %4131 = vmatpush1.bf16.xpose.msra.mxu0 0
        %4132 = vmatprep.mubr.bf16.mxu0 0
        %4133 = vmatmul.mubr.bf16.gmra.mrb[0].mxu0 %v4095
        %v4134 = vpop.f32.mrb[0].mxu0
        %v4135 = vadd.f32 0.0, %v4134
        %v4136 = vpop.f32.mrb[0].mxu0
        %v4137 = vpop.f32.mrb[0].mxu0
        %v4138 = vadd.f32 0.0, %v4137
        %v4139 = vpop.f32.mrb[0].mxu0
        %4140 = vdwg.mxu0
        %v4141 = vsel %vm1260, %v4135, -inf
        %4142 = vmax.xlane.f32.xlu0 %v4141
        %v4143 = vpop.xlane.xlu0 %4142
        %v4144 = vsel %vm1260, %v4138, -inf
        %4145 = vmax.xlane.f32.xlu0 %v4144
        %v4146 = vpop.xlane.xlu0 %4145
        %v4147 = vsub.f32 %v4135, %v4143
        %v4148 = vsub.f32 %v4138, %v4146
        %v4149 = vmul.f32 %v4147, 1.442695
        %v4150 = vpow.pop %v4149
        %v4151 = vmul.f32 %v4148, 1.442695
        %v4152 = vpow.pop %v4151
        %v4153 = vsel %vm1260, %v4150, 0.0
        %4154 = vadd.xlane.f32.xlu0 %v4153
        %v4155 = vpop.xlane.xlu0 %4154
        %v4156 = vsel %vm1260, %v4152, 0.0
        %4157 = vadd.xlane.f32.xlu0 %v4156
        %v4158 = vpop.xlane.xlu0 %4157
        %v4159 = vrcp.pop %v4155
        %v4160 = vrcp.pop %v4158
        %v4161 = vpack.c.bf16 %v4152, %v4150
        %4162 = vrot.lane.b32.xlu0 %v1209, 32
        %v4163 = vpop.permute.xlu0 %4162
        %v4166 = vsel %vm1260, %v4161, 0
        %4168 = vmatprep.subr.bf16.mxu0 0
        %4169 = vmatpush1.bf16.msra.mxu0 %v4163
        %4170 = vmatprep.subr.bf16.mxu0 0
        %4171 = vmatpush1.bf16.msra.mxu0 0
        %4172 = vmatprep.subr.bf16.mxu0 0
        %4173 = vmatpush1.bf16.msra.mxu0 0
        %4174 = vmatprep.subr.bf16.mxu0 0
        %4175 = vmatpush1.bf16.msra.mxu0 0
        %4176 = vmatprep.subr.bf16.mxu0 0
        %4177 = vmatpush1.bf16.msra.mxu0 0
        %4178 = vmatprep.subr.bf16.mxu0 0
        %4179 = vmatpush1.bf16.msra.mxu0 0
        %4180 = vmatprep.subr.bf16.mxu0 0
        %4181 = vmatpush1.bf16.msra.mxu0 0
        %4182 = vmatprep.subr.bf16.mxu0 0
        %4183 = vmatpush1.bf16.msra.mxu0 0
        %4184 = vmatprep.subr.bf16.mxu0 0
        %4185 = vmatpush1.bf16.msra.mxu0 0
        %4186 = vmatprep.subr.bf16.mxu0 0
        %4187 = vmatpush1.bf16.msra.mxu0 0
        %4188 = vmatprep.subr.bf16.mxu0 0
        %4189 = vmatpush1.bf16.msra.mxu0 0
        %4190 = vmatprep.subr.bf16.mxu0 0
        %4191 = vmatpush1.bf16.msra.mxu0 0
        %4192 = vmatprep.subr.bf16.mxu0 0
        %4193 = vmatpush1.bf16.msra.mxu0 0
        %4194 = vmatprep.subr.bf16.mxu0 0
        %4195 = vmatpush1.bf16.msra.mxu0 0
        %4196 = vmatprep.subr.bf16.mxu0 0
        %4197 = vmatpush1.bf16.msra.mxu0 0
        %4198 = vmatprep.subr.bf16.mxu0 0
        %4199 = vmatpush1.bf16.msra.mxu0 0
        %4200 = vmatprep.mubr.bf16.mxu0 0
        %4201 = vmatmul.mubr.bf16.gmra.mrb[0].mxu0 %v4166
        %v4202 = vpop.f32.mrb[0].mxu0
        %v4203 = vadd.f32 0.0, %v4202
        %v4204 = vpop.f32.mrb[0].mxu0
        %v4205 = vpop.f32.mrb[0].mxu0
        %v4206 = vadd.f32 0.0, %v4205
        %v4207 = vpop.f32.mrb[0].mxu0
        %4208 = vdwg.mxu0
        %v4209 = vmul.f32 %v4203, %v4159
        %v4210 = vmul.f32 %v4206, %v4160
        %v4211 = vpack.c.bf16 %v4210, %v4209
        %4213 = vrot.lane.b32.xlu0 %v4211, 96
        %v4214 = vpop.permute.xlu0 %4213
        %4216 = vst.msk [vmem:[#allocation2 + $0x28] sm:$0xff] %vm1715, %v4214
        %v4218 = vsel %vm1212, %v1194, 0
        %v4221 = vsel %vm1212, %v1202, 0
        %4223 = vmatprep.subr.bf16.mxu0 0
        %4224 = vmatpush1.bf16.xpose.msra.mxu0 %v4221
        %4225 = vmatprep.subr.bf16.mxu0 0
        %4226 = vmatpush1.bf16.xpose.msra.mxu0 0
        %4227 = vmatprep.subr.bf16.mxu0 0
        %4228 = vmatpush1.bf16.xpose.msra.mxu0 0
        %4229 = vmatprep.subr.bf16.mxu0 0
        %4230 = vmatpush1.bf16.xpose.msra.mxu0 0
        %4231 = vmatprep.subr.bf16.mxu0 0
        %4232 = vmatpush1.bf16.xpose.msra.mxu0 0
        %4233 = vmatprep.subr.bf16.mxu0 0
        %4234 = vmatpush1.bf16.xpose.msra.mxu0 0
        %4235 = vmatprep.subr.bf16.mxu0 0
        %4236 = vmatpush1.bf16.xpose.msra.mxu0 0
        %4237 = vmatprep.subr.bf16.mxu0 0
        %4238 = vmatpush1.bf16.xpose.msra.mxu0 0
        %4239 = vmatprep.subr.bf16.mxu0 0
        %4240 = vmatpush1.bf16.xpose.msra.mxu0 0
        %4241 = vmatprep.subr.bf16.mxu0 0
        %4242 = vmatpush1.bf16.xpose.msra.mxu0 0
        %4243 = vmatprep.subr.bf16.mxu0 0
        %4244 = vmatpush1.bf16.xpose.msra.mxu0 0
        %4245 = vmatprep.subr.bf16.mxu0 0
        %4246 = vmatpush1.bf16.xpose.msra.mxu0 0
        %4247 = vmatprep.subr.bf16.mxu0 0
        %4248 = vmatpush1.bf16.xpose.msra.mxu0 0
        %4249 = vmatprep.subr.bf16.mxu0 0
        %4250 = vmatpush1.bf16.xpose.msra.mxu0 0
        %4251 = vmatprep.subr.bf16.mxu0 0
        %4252 = vmatpush1.bf16.xpose.msra.mxu0 0
        %4253 = vmatprep.subr.bf16.mxu0 0
        %4254 = vmatpush1.bf16.xpose.msra.mxu0 0
        %4255 = vmatprep.mubr.bf16.mxu0 0
        %4256 = vmatmul.mubr.bf16.gmra.mrb[0].mxu0 %v4218
        %v4257 = vpop.f32.mrb[0].mxu0
        %v4258 = vadd.f32 0.0, %v4257
        %v4259 = vpop.f32.mrb[0].mxu0
        %v4260 = vpop.f32.mrb[0].mxu0
        %v4261 = vadd.f32 0.0, %v4260
        %v4262 = vpop.f32.mrb[0].mxu0
        %4263 = vdwg.mxu0
        %v4264 = vsel %vm1260, %v4258, -inf
        %4265 = vmax.xlane.f32.xlu0 %v4264
        %v4266 = vpop.xlane.xlu0 %4265
        %v4267 = vsel %vm1260, %v4261, -inf
        %4268 = vmax.xlane.f32.xlu0 %v4267
        %v4269 = vpop.xlane.xlu0 %4268
        %v4270 = vsub.f32 %v4258, %v4266
        %v4271 = vsub.f32 %v4261, %v4269
        %v4272 = vmul.f32 %v4270, 1.442695
        %v4273 = vpow.pop %v4272
        %v4274 = vmul.f32 %v4271, 1.442695
        %v4275 = vpow.pop %v4274
        %v4276 = vsel %vm1260, %v4273, 0.0
        %4277 = vadd.xlane.f32.xlu0 %v4276
        %v4278 = vpop.xlane.xlu0 %4277
        %v4279 = vsel %vm1260, %v4275, 0.0
        %4280 = vadd.xlane.f32.xlu0 %v4279
        %v4281 = vpop.xlane.xlu0 %4280
        %v4282 = vrcp.pop %v4278
        %v4283 = vrcp.pop %v4281
        %v4284 = vpack.c.bf16 %v4275, %v4273
        %v4286 = vsel %vm1260, %v4284, 0
        %4288 = vmatprep.subr.bf16.mxu0 0
        %4289 = vmatpush1.bf16.msra.mxu0 %v1210
        %4290 = vmatprep.subr.bf16.mxu0 0
        %4291 = vmatpush1.bf16.msra.mxu0 0
        %4292 = vmatprep.subr.bf16.mxu0 0
        %4293 = vmatpush1.bf16.msra.mxu0 0
        %4294 = vmatprep.subr.bf16.mxu0 0
        %4295 = vmatpush1.bf16.msra.mxu0 0
        %4296 = vmatprep.subr.bf16.mxu0 0
        %4297 = vmatpush1.bf16.msra.mxu0 0
        %4298 = vmatprep.subr.bf16.mxu0 0
        %4299 = vmatpush1.bf16.msra.mxu0 0
        %4300 = vmatprep.subr.bf16.mxu0 0
        %4301 = vmatpush1.bf16.msra.mxu0 0
        %4302 = vmatprep.subr.bf16.mxu0 0
        %4303 = vmatpush1.bf16.msra.mxu0 0
        %4304 = vmatprep.subr.bf16.mxu0 0
        %4305 = vmatpush1.bf16.msra.mxu0 0
        %4306 = vmatprep.subr.bf16.mxu0 0
        %4307 = vmatpush1.bf16.msra.mxu0 0
        %4308 = vmatprep.subr.bf16.mxu0 0
        %4309 = vmatpush1.bf16.msra.mxu0 0
        %4310 = vmatprep.subr.bf16.mxu0 0
        %4311 = vmatpush1.bf16.msra.mxu0 0
        %4312 = vmatprep.subr.bf16.mxu0 0
        %4313 = vmatpush1.bf16.msra.mxu0 0
        %4314 = vmatprep.subr.bf16.mxu0 0
        %4315 = vmatpush1.bf16.msra.mxu0 0
        %4316 = vmatprep.subr.bf16.mxu0 0
        %4317 = vmatpush1.bf16.msra.mxu0 0
        %4318 = vmatprep.subr.bf16.mxu0 0
        %4319 = vmatpush1.bf16.msra.mxu0 0
        %4320 = vmatprep.mubr.bf16.mxu0 0
        %4321 = vmatmul.mubr.bf16.gmra.mrb[0].mxu0 %v4286
        %v4322 = vpop.f32.mrb[0].mxu0
        %v4323 = vadd.f32 0.0, %v4322
        %v4324 = vpop.f32.mrb[0].mxu0
        %v4325 = vpop.f32.mrb[0].mxu0
        %v4326 = vadd.f32 0.0, %v4325
        %v4327 = vpop.f32.mrb[0].mxu0
        %4328 = vdwg.mxu0
        %v4329 = vmul.f32 %v4323, %v4282
        %v4330 = vmul.f32 %v4326, %v4283
        %v4331 = vpack.c.bf16 %v4330, %v4329
        %4332 = vst.msk [vmem:[#allocation2 + $0x30] sm:$0xff] %vm1212, %v4331
        %4334 = vrot.lane.b32.xlu0 %v1194, 96
        %v4335 = vpop.permute.xlu0 %4334
        %4337 = vrot.lane.b32.xlu0 %v1202, 96
        %v4338 = vpop.permute.xlu0 %4337
        %v4340 = vsel %vm1212, %v4335, 0
        %v4343 = vsel %vm1212, %v4338, 0
        %4345 = vmatprep.subr.bf16.mxu0 0
        %4346 = vmatpush1.bf16.xpose.msra.mxu0 %v4343
        %4347 = vmatprep.subr.bf16.mxu0 0
        %4348 = vmatpush1.bf16.xpose.msra.mxu0 0
        %4349 = vmatprep.subr.bf16.mxu0 0
        %4350 = vmatpush1.bf16.xpose.msra.mxu0 0
        %4351 = vmatprep.subr.bf16.mxu0 0
        %4352 = vmatpush1.bf16.xpose.msra.mxu0 0
        %4353 = vmatprep.subr.bf16.mxu0 0
        %4354 = vmatpush1.bf16.xpose.msra.mxu0 0
        %4355 = vmatprep.subr.bf16.mxu0 0
        %4356 = vmatpush1.bf16.xpose.msra.mxu0 0
        %4357 = vmatprep.subr.bf16.mxu0 0
        %4358 = vmatpush1.bf16.xpose.msra.mxu0 0
        %4359 = vmatprep.subr.bf16.mxu0 0
        %4360 = vmatpush1.bf16.xpose.msra.mxu0 0
        %4361 = vmatprep.subr.bf16.mxu0 0
        %4362 = vmatpush1.bf16.xpose.msra.mxu0 0
        %4363 = vmatprep.subr.bf16.mxu0 0
        %4364 = vmatpush1.bf16.xpose.msra.mxu0 0
        %4365 = vmatprep.subr.bf16.mxu0 0
        %4366 = vmatpush1.bf16.xpose.msra.mxu0 0
        %4367 = vmatprep.subr.bf16.mxu0 0
        %4368 = vmatpush1.bf16.xpose.msra.mxu0 0
        %4369 = vmatprep.subr.bf16.mxu0 0
        %4370 = vmatpush1.bf16.xpose.msra.mxu0 0
        %4371 = vmatprep.subr.bf16.mxu0 0
        %4372 = vmatpush1.bf16.xpose.msra.mxu0 0
        %4373 = vmatprep.subr.bf16.mxu0 0
        %4374 = vmatpush1.bf16.xpose.msra.mxu0 0
        %4375 = vmatprep.subr.bf16.mxu0 0
        %4376 = vmatpush1.bf16.xpose.msra.mxu0 0
        %4377 = vmatprep.mubr.bf16.mxu0 0
        %4378 = vmatmul.mubr.bf16.gmra.mrb[0].mxu0 %v4340
        %v4379 = vpop.f32.mrb[0].mxu0
        %v4380 = vadd.f32 0.0, %v4379
        %v4381 = vpop.f32.mrb[0].mxu0
        %v4382 = vpop.f32.mrb[0].mxu0
        %v4383 = vadd.f32 0.0, %v4382
        %v4384 = vpop.f32.mrb[0].mxu0
        %4385 = vdwg.mxu0
        %v4386 = vsel %vm1260, %v4380, -inf
        %4387 = vmax.xlane.f32.xlu0 %v4386
        %v4388 = vpop.xlane.xlu0 %4387
        %v4389 = vsel %vm1260, %v4383, -inf
        %4390 = vmax.xlane.f32.xlu0 %v4389
        %v4391 = vpop.xlane.xlu0 %4390
        %v4392 = vsub.f32 %v4380, %v4388
        %v4393 = vsub.f32 %v4383, %v4391
        %v4394 = vmul.f32 %v4392, 1.442695
        %v4395 = vpow.pop %v4394
        %v4396 = vmul.f32 %v4393, 1.442695
        %v4397 = vpow.pop %v4396
        %v4398 = vsel %vm1260, %v4395, 0.0
        %4399 = vadd.xlane.f32.xlu0 %v4398
        %v4400 = vpop.xlane.xlu0 %4399
        %v4401 = vsel %vm1260, %v4397, 0.0
        %4402 = vadd.xlane.f32.xlu0 %v4401
        %v4403 = vpop.xlane.xlu0 %4402
        %v4404 = vrcp.pop %v4400
        %v4405 = vrcp.pop %v4403
        %v4406 = vpack.c.bf16 %v4397, %v4395
        %4408 = vrot.lane.b32.xlu0 %v1210, 96
        %v4409 = vpop.permute.xlu0 %4408
        %v4412 = vsel %vm1260, %v4406, 0
        %4414 = vmatprep.subr.bf16.mxu0 0
        %4415 = vmatpush1.bf16.msra.mxu0 %v4409
        %4416 = vmatprep.subr.bf16.mxu0 0
        %4417 = vmatpush1.bf16.msra.mxu0 0
        %4418 = vmatprep.subr.bf16.mxu0 0
        %4419 = vmatpush1.bf16.msra.mxu0 0
        %4420 = vmatprep.subr.bf16.mxu0 0
        %4421 = vmatpush1.bf16.msra.mxu0 0
        %4422 = vmatprep.subr.bf16.mxu0 0
        %4423 = vmatpush1.bf16.msra.mxu0 0
        %4424 = vmatprep.subr.bf16.mxu0 0
        %4425 = vmatpush1.bf16.msra.mxu0 0
        %4426 = vmatprep.subr.bf16.mxu0 0
        %4427 = vmatpush1.bf16.msra.mxu0 0
        %4428 = vmatprep.subr.bf16.mxu0 0
        %4429 = vmatpush1.bf16.msra.mxu0 0
        %4430 = vmatprep.subr.bf16.mxu0 0
        %4431 = vmatpush1.bf16.msra.mxu0 0
        %4432 = vmatprep.subr.bf16.mxu0 0
        %4433 = vmatpush1.bf16.msra.mxu0 0
        %4434 = vmatprep.subr.bf16.mxu0 0
        %4435 = vmatpush1.bf16.msra.mxu0 0
        %4436 = vmatprep.subr.bf16.mxu0 0
        %4437 = vmatpush1.bf16.msra.mxu0 0
        %4438 = vmatprep.subr.bf16.mxu0 0
        %4439 = vmatpush1.bf16.msra.mxu0 0
        %4440 = vmatprep.subr.bf16.mxu0 0
        %4441 = vmatpush1.bf16.msra.mxu0 0
        %4442 = vmatprep.subr.bf16.mxu0 0
        %4443 = vmatpush1.bf16.msra.mxu0 0
        %4444 = vmatprep.subr.bf16.mxu0 0
        %4445 = vmatpush1.bf16.msra.mxu0 0
        %4446 = vmatprep.mubr.bf16.mxu0 0
        %4447 = vmatmul.mubr.bf16.gmra.mrb[0].mxu0 %v4412
        %v4448 = vpop.f32.mrb[0].mxu0
        %v4449 = vadd.f32 0.0, %v4448
        %v4450 = vpop.f32.mrb[0].mxu0
        %v4451 = vpop.f32.mrb[0].mxu0
        %v4452 = vadd.f32 0.0, %v4451
        %v4453 = vpop.f32.mrb[0].mxu0
        %4454 = vdwg.mxu0
        %v4455 = vmul.f32 %v4449, %v4404
        %v4456 = vmul.f32 %v4452, %v4405
        %v4457 = vpack.c.bf16 %v4456, %v4455
        %4459 = vrot.lane.b32.xlu0 %v4457, 32
        %v4460 = vpop.permute.xlu0 %4459
        %4462 = vst.msk [vmem:[#allocation2 + $0x30] sm:$0xff] %vm1459, %v4460
        %4463 = vrot.lane.b32.xlu0 %v1194, 64
        %v4464 = vpop.permute.xlu0 %4463
        %4465 = vrot.lane.b32.xlu0 %v1202, 64
        %v4466 = vpop.permute.xlu0 %4465
        %v4468 = vsel %vm1212, %v4464, 0
        %v4471 = vsel %vm1212, %v4466, 0
        %4473 = vmatprep.subr.bf16.mxu0 0
        %4474 = vmatpush1.bf16.xpose.msra.mxu0 %v4471
        %4475 = vmatprep.subr.bf16.mxu0 0
        %4476 = vmatpush1.bf16.xpose.msra.mxu0 0
        %4477 = vmatprep.subr.bf16.mxu0 0
        %4478 = vmatpush1.bf16.xpose.msra.mxu0 0
        %4479 = vmatprep.subr.bf16.mxu0 0
        %4480 = vmatpush1.bf16.xpose.msra.mxu0 0
        %4481 = vmatprep.subr.bf16.mxu0 0
        %4482 = vmatpush1.bf16.xpose.msra.mxu0 0
        %4483 = vmatprep.subr.bf16.mxu0 0
        %4484 = vmatpush1.bf16.xpose.msra.mxu0 0
        %4485 = vmatprep.subr.bf16.mxu0 0
        %4486 = vmatpush1.bf16.xpose.msra.mxu0 0
        %4487 = vmatprep.subr.bf16.mxu0 0
        %4488 = vmatpush1.bf16.xpose.msra.mxu0 0
        %4489 = vmatprep.subr.bf16.mxu0 0
        %4490 = vmatpush1.bf16.xpose.msra.mxu0 0
        %4491 = vmatprep.subr.bf16.mxu0 0
        %4492 = vmatpush1.bf16.xpose.msra.mxu0 0
        %4493 = vmatprep.subr.bf16.mxu0 0
        %4494 = vmatpush1.bf16.xpose.msra.mxu0 0
        %4495 = vmatprep.subr.bf16.mxu0 0
        %4496 = vmatpush1.bf16.xpose.msra.mxu0 0
        %4497 = vmatprep.subr.bf16.mxu0 0
        %4498 = vmatpush1.bf16.xpose.msra.mxu0 0
        %4499 = vmatprep.subr.bf16.mxu0 0
        %4500 = vmatpush1.bf16.xpose.msra.mxu0 0
        %4501 = vmatprep.subr.bf16.mxu0 0
        %4502 = vmatpush1.bf16.xpose.msra.mxu0 0
        %4503 = vmatprep.subr.bf16.mxu0 0
        %4504 = vmatpush1.bf16.xpose.msra.mxu0 0
        %4505 = vmatprep.mubr.bf16.mxu0 0
        %4506 = vmatmul.mubr.bf16.gmra.mrb[0].mxu0 %v4468
        %v4507 = vpop.f32.mrb[0].mxu0
        %v4508 = vadd.f32 0.0, %v4507
        %v4509 = vpop.f32.mrb[0].mxu0
        %v4510 = vpop.f32.mrb[0].mxu0
        %v4511 = vadd.f32 0.0, %v4510
        %v4512 = vpop.f32.mrb[0].mxu0
        %4513 = vdwg.mxu0
        %v4514 = vsel %vm1260, %v4508, -inf
        %4515 = vmax.xlane.f32.xlu0 %v4514
        %v4516 = vpop.xlane.xlu0 %4515
        %v4517 = vsel %vm1260, %v4511, -inf
        %4518 = vmax.xlane.f32.xlu0 %v4517
        %v4519 = vpop.xlane.xlu0 %4518
        %v4520 = vsub.f32 %v4508, %v4516
        %v4521 = vsub.f32 %v4511, %v4519
        %v4522 = vmul.f32 %v4520, 1.442695
        %v4523 = vpow.pop %v4522
        %v4524 = vmul.f32 %v4521, 1.442695
        %v4525 = vpow.pop %v4524
        %v4526 = vsel %vm1260, %v4523, 0.0
        %4527 = vadd.xlane.f32.xlu0 %v4526
        %v4528 = vpop.xlane.xlu0 %4527
        %v4529 = vsel %vm1260, %v4525, 0.0
        %4530 = vadd.xlane.f32.xlu0 %v4529
        %v4531 = vpop.xlane.xlu0 %4530
        %v4532 = vrcp.pop %v4528
        %v4533 = vrcp.pop %v4531
        %v4534 = vpack.c.bf16 %v4525, %v4523
        %4535 = vrot.lane.b32.xlu0 %v1210, 64
        %v4536 = vpop.permute.xlu0 %4535
        %v4539 = vsel %vm1260, %v4534, 0
        %4541 = vmatprep.subr.bf16.mxu0 0
        %4542 = vmatpush1.bf16.msra.mxu0 %v4536
        %4543 = vmatprep.subr.bf16.mxu0 0
        %4544 = vmatpush1.bf16.msra.mxu0 0
        %4545 = vmatprep.subr.bf16.mxu0 0
        %4546 = vmatpush1.bf16.msra.mxu0 0
        %4547 = vmatprep.subr.bf16.mxu0 0
        %4548 = vmatpush1.bf16.msra.mxu0 0
        %4549 = vmatprep.subr.bf16.mxu0 0
        %4550 = vmatpush1.bf16.msra.mxu0 0
        %4551 = vmatprep.subr.bf16.mxu0 0
        %4552 = vmatpush1.bf16.msra.mxu0 0
        %4553 = vmatprep.subr.bf16.mxu0 0
        %4554 = vmatpush1.bf16.msra.mxu0 0
        %4555 = vmatprep.subr.bf16.mxu0 0
        %4556 = vmatpush1.bf16.msra.mxu0 0
        %4557 = vmatprep.subr.bf16.mxu0 0
        %4558 = vmatpush1.bf16.msra.mxu0 0
        %4559 = vmatprep.subr.bf16.mxu0 0
        %4560 = vmatpush1.bf16.msra.mxu0 0
        %4561 = vmatprep.subr.bf16.mxu0 0
        %4562 = vmatpush1.bf16.msra.mxu0 0
        %4563 = vmatprep.subr.bf16.mxu0 0
        %4564 = vmatpush1.bf16.msra.mxu0 0
        %4565 = vmatprep.subr.bf16.mxu0 0
        %4566 = vmatpush1.bf16.msra.mxu0 0
        %4567 = vmatprep.subr.bf16.mxu0 0
        %4568 = vmatpush1.bf16.msra.mxu0 0
        %4569 = vmatprep.subr.bf16.mxu0 0
        %4570 = vmatpush1.bf16.msra.mxu0 0
        %4571 = vmatprep.subr.bf16.mxu0 0
        %4572 = vmatpush1.bf16.msra.mxu0 0
        %4573 = vmatprep.mubr.bf16.mxu0 0
        %4574 = vmatmul.mubr.bf16.gmra.mrb[0].mxu0 %v4539
        %v4575 = vpop.f32.mrb[0].mxu0
        %v4576 = vadd.f32 0.0, %v4575
        %v4577 = vpop.f32.mrb[0].mxu0
        %v4578 = vpop.f32.mrb[0].mxu0
        %v4579 = vadd.f32 0.0, %v4578
        %v4580 = vpop.f32.mrb[0].mxu0
        %4581 = vdwg.mxu0
        %v4582 = vmul.f32 %v4576, %v4532
        %v4583 = vmul.f32 %v4579, %v4533
        %v4584 = vpack.c.bf16 %v4583, %v4582
        %4586 = vrot.lane.b32.xlu0 %v4584, 64
        %v4587 = vpop.permute.xlu0 %4586
        %4589 = vst.msk [vmem:[#allocation2 + $0x30] sm:$0xff] %vm1587, %v4587
        %4590 = vrot.lane.b32.xlu0 %v1194, 32
        %v4591 = vpop.permute.xlu0 %4590
        %4592 = vrot.lane.b32.xlu0 %v1202, 32
        %v4593 = vpop.permute.xlu0 %4592
        %v4595 = vsel %vm1212, %v4591, 0
        %v4598 = vsel %vm1212, %v4593, 0
        %4600 = vmatprep.subr.bf16.mxu0 0
        %4601 = vmatpush1.bf16.xpose.msra.mxu0 %v4598
        %4602 = vmatprep.subr.bf16.mxu0 0
        %4603 = vmatpush1.bf16.xpose.msra.mxu0 0
        %4604 = vmatprep.subr.bf16.mxu0 0
        %4605 = vmatpush1.bf16.xpose.msra.mxu0 0
        %4606 = vmatprep.subr.bf16.mxu0 0
        %4607 = vmatpush1.bf16.xpose.msra.mxu0 0
        %4608 = vmatprep.subr.bf16.mxu0 0
        %4609 = vmatpush1.bf16.xpose.msra.mxu0 0
        %4610 = vmatprep.subr.bf16.mxu0 0
        %4611 = vmatpush1.bf16.xpose.msra.mxu0 0
        %4612 = vmatprep.subr.bf16.mxu0 0
        %4613 = vmatpush1.bf16.xpose.msra.mxu0 0
        %4614 = vmatprep.subr.bf16.mxu0 0
        %4615 = vmatpush1.bf16.xpose.msra.mxu0 0
        %4616 = vmatprep.subr.bf16.mxu0 0
        %4617 = vmatpush1.bf16.xpose.msra.mxu0 0
        %4618 = vmatprep.subr.bf16.mxu0 0
        %4619 = vmatpush1.bf16.xpose.msra.mxu0 0
        %4620 = vmatprep.subr.bf16.mxu0 0
        %4621 = vmatpush1.bf16.xpose.msra.mxu0 0
        %4622 = vmatprep.subr.bf16.mxu0 0
        %4623 = vmatpush1.bf16.xpose.msra.mxu0 0
        %4624 = vmatprep.subr.bf16.mxu0 0
        %4625 = vmatpush1.bf16.xpose.msra.mxu0 0
        %4626 = vmatprep.subr.bf16.mxu0 0
        %4627 = vmatpush1.bf16.xpose.msra.mxu0 0
        %4628 = vmatprep.subr.bf16.mxu0 0
        %4629 = vmatpush1.bf16.xpose.msra.mxu0 0
        %4630 = vmatprep.subr.bf16.mxu0 0
        %4631 = vmatpush1.bf16.xpose.msra.mxu0 0
        %4632 = vmatprep.mubr.bf16.mxu0 0
        %4633 = vmatmul.mubr.bf16.gmra.mrb[0].mxu0 %v4595
        %v4634 = vpop.f32.mrb[0].mxu0
        %v4635 = vadd.f32 0.0, %v4634
        %v4636 = vpop.f32.mrb[0].mxu0
        %v4637 = vpop.f32.mrb[0].mxu0
        %v4638 = vadd.f32 0.0, %v4637
        %v4639 = vpop.f32.mrb[0].mxu0
        %4640 = vdwg.mxu0
        %v4641 = vsel %vm1260, %v4635, -inf
        %4642 = vmax.xlane.f32.xlu0 %v4641
        %v4643 = vpop.xlane.xlu0 %4642
        %v4644 = vsel %vm1260, %v4638, -inf
        %4645 = vmax.xlane.f32.xlu0 %v4644
        %v4646 = vpop.xlane.xlu0 %4645
        %v4647 = vsub.f32 %v4635, %v4643
        %v4648 = vsub.f32 %v4638, %v4646
        %v4649 = vmul.f32 %v4647, 1.442695
        %v4650 = vpow.pop %v4649
        %v4651 = vmul.f32 %v4648, 1.442695
        %v4652 = vpow.pop %v4651
        %v4653 = vsel %vm1260, %v4650, 0.0
        %4654 = vadd.xlane.f32.xlu0 %v4653
        %v4655 = vpop.xlane.xlu0 %4654
        %v4656 = vsel %vm1260, %v4652, 0.0
        %4657 = vadd.xlane.f32.xlu0 %v4656
        %v4658 = vpop.xlane.xlu0 %4657
        %v4659 = vrcp.pop %v4655
        %v4660 = vrcp.pop %v4658
        %v4661 = vpack.c.bf16 %v4652, %v4650
        %4662 = vrot.lane.b32.xlu0 %v1210, 32
        %v4663 = vpop.permute.xlu0 %4662
        %v4666 = vsel %vm1260, %v4661, 0
        %4668 = vmatprep.subr.bf16.mxu0 0
        %4669 = vmatpush1.bf16.msra.mxu0 %v4663
        %4670 = vmatprep.subr.bf16.mxu0 0
        %4671 = vmatpush1.bf16.msra.mxu0 0
        %4672 = vmatprep.subr.bf16.mxu0 0
        %4673 = vmatpush1.bf16.msra.mxu0 0
        %4674 = vmatprep.subr.bf16.mxu0 0
        %4675 = vmatpush1.bf16.msra.mxu0 0
        %4676 = vmatprep.subr.bf16.mxu0 0
        %4677 = vmatpush1.bf16.msra.mxu0 0
        %4678 = vmatprep.subr.bf16.mxu0 0
        %4679 = vmatpush1.bf16.msra.mxu0 0
        %4680 = vmatprep.subr.bf16.mxu0 0
        %4681 = vmatpush1.bf16.msra.mxu0 0
        %4682 = vmatprep.subr.bf16.mxu0 0
        %4683 = vmatpush1.bf16.msra.mxu0 0
        %4684 = vmatprep.subr.bf16.mxu0 0
        %4685 = vmatpush1.bf16.msra.mxu0 0
        %4686 = vmatprep.subr.bf16.mxu0 0
        %4687 = vmatpush1.bf16.msra.mxu0 0
        %4688 = vmatprep.subr.bf16.mxu0 0
        %4689 = vmatpush1.bf16.msra.mxu0 0
        %4690 = vmatprep.subr.bf16.mxu0 0
        %4691 = vmatpush1.bf16.msra.mxu0 0
        %4692 = vmatprep.subr.bf16.mxu0 0
        %4693 = vmatpush1.bf16.msra.mxu0 0
        %4694 = vmatprep.subr.bf16.mxu0 0
        %4695 = vmatpush1.bf16.msra.mxu0 0
        %4696 = vmatprep.subr.bf16.mxu0 0
        %4697 = vmatpush1.bf16.msra.mxu0 0
        %4698 = vmatprep.subr.bf16.mxu0 0
        %4699 = vmatpush1.bf16.msra.mxu0 0
        %4700 = vmatprep.mubr.bf16.mxu0 0
        %4701 = vmatmul.mubr.bf16.gmra.mrb[0].mxu0 %v4666
        %v4702 = vpop.f32.mrb[0].mxu0
        %v4703 = vadd.f32 0.0, %v4702
        %v4704 = vpop.f32.mrb[0].mxu0
        %v4705 = vpop.f32.mrb[0].mxu0
        %v4706 = vadd.f32 0.0, %v4705
        %v4707 = vpop.f32.mrb[0].mxu0
        %4708 = vdwg.mxu0
        %v4709 = vmul.f32 %v4703, %v4659
        %v4710 = vmul.f32 %v4706, %v4660
        %v4711 = vpack.c.bf16 %v4710, %v4709
        %4713 = vrot.lane.b32.xlu0 %v4711, 96
        %v4714 = vpop.permute.xlu0 %4713
        %4716 = vst.msk [vmem:[#allocation2 + $0x30] sm:$0xff] %vm1715, %v4714
        %v4718 = vsel %vm1212, %v1195, 0
        %v4721 = vsel %vm1212, %v1203, 0
        %4723 = vmatprep.subr.bf16.mxu0 0
        %4724 = vmatpush1.bf16.xpose.msra.mxu0 %v4721
        %4725 = vmatprep.subr.bf16.mxu0 0
        %4726 = vmatpush1.bf16.xpose.msra.mxu0 0
        %4727 = vmatprep.subr.bf16.mxu0 0
        %4728 = vmatpush1.bf16.xpose.msra.mxu0 0
        %4729 = vmatprep.subr.bf16.mxu0 0
        %4730 = vmatpush1.bf16.xpose.msra.mxu0 0
        %4731 = vmatprep.subr.bf16.mxu0 0
        %4732 = vmatpush1.bf16.xpose.msra.mxu0 0
        %4733 = vmatprep.subr.bf16.mxu0 0
        %4734 = vmatpush1.bf16.xpose.msra.mxu0 0
        %4735 = vmatprep.subr.bf16.mxu0 0
        %4736 = vmatpush1.bf16.xpose.msra.mxu0 0
        %4737 = vmatprep.subr.bf16.mxu0 0
        %4738 = vmatpush1.bf16.xpose.msra.mxu0 0
        %4739 = vmatprep.subr.bf16.mxu0 0
        %4740 = vmatpush1.bf16.xpose.msra.mxu0 0
        %4741 = vmatprep.subr.bf16.mxu0 0
        %4742 = vmatpush1.bf16.xpose.msra.mxu0 0
        %4743 = vmatprep.subr.bf16.mxu0 0
        %4744 = vmatpush1.bf16.xpose.msra.mxu0 0
        %4745 = vmatprep.subr.bf16.mxu0 0
        %4746 = vmatpush1.bf16.xpose.msra.mxu0 0
        %4747 = vmatprep.subr.bf16.mxu0 0
        %4748 = vmatpush1.bf16.xpose.msra.mxu0 0
        %4749 = vmatprep.subr.bf16.mxu0 0
        %4750 = vmatpush1.bf16.xpose.msra.mxu0 0
        %4751 = vmatprep.subr.bf16.mxu0 0
        %4752 = vmatpush1.bf16.xpose.msra.mxu0 0
        %4753 = vmatprep.subr.bf16.mxu0 0
        %4754 = vmatpush1.bf16.xpose.msra.mxu0 0
        %4755 = vmatprep.mubr.bf16.mxu0 0
        %4756 = vmatmul.mubr.bf16.gmra.mrb[0].mxu0 %v4718
        %v4757 = vpop.f32.mrb[0].mxu0
        %v4758 = vadd.f32 0.0, %v4757
        %v4759 = vpop.f32.mrb[0].mxu0
        %v4760 = vpop.f32.mrb[0].mxu0
        %v4761 = vadd.f32 0.0, %v4760
        %v4762 = vpop.f32.mrb[0].mxu0
        %4763 = vdwg.mxu0
        %v4764 = vsel %vm1260, %v4758, -inf
        %4765 = vmax.xlane.f32.xlu0 %v4764
        %v4766 = vpop.xlane.xlu0 %4765
        %v4767 = vsel %vm1260, %v4761, -inf
        %4768 = vmax.xlane.f32.xlu0 %v4767
        %v4769 = vpop.xlane.xlu0 %4768
        %v4770 = vsub.f32 %v4758, %v4766
        %v4771 = vsub.f32 %v4761, %v4769
        %v4772 = vmul.f32 %v4770, 1.442695
        %v4773 = vpow.pop %v4772
        %v4774 = vmul.f32 %v4771, 1.442695
        %v4775 = vpow.pop %v4774
        %v4776 = vsel %vm1260, %v4773, 0.0
        %4777 = vadd.xlane.f32.xlu0 %v4776
        %v4778 = vpop.xlane.xlu0 %4777
        %v4779 = vsel %vm1260, %v4775, 0.0
        %4780 = vadd.xlane.f32.xlu0 %v4779
        %v4781 = vpop.xlane.xlu0 %4780
        %v4782 = vrcp.pop %v4778
        %v4783 = vrcp.pop %v4781
        %v4784 = vpack.c.bf16 %v4775, %v4773
        %v4786 = vsel %vm1260, %v4784, 0
        %4788 = vmatprep.subr.bf16.mxu0 0
        %4789 = vmatpush1.bf16.msra.mxu0 %v1211
        %4790 = vmatprep.subr.bf16.mxu0 0
        %4791 = vmatpush1.bf16.msra.mxu0 0
        %4792 = vmatprep.subr.bf16.mxu0 0
        %4793 = vmatpush1.bf16.msra.mxu0 0
        %4794 = vmatprep.subr.bf16.mxu0 0
        %4795 = vmatpush1.bf16.msra.mxu0 0
        %4796 = vmatprep.subr.bf16.mxu0 0
        %4797 = vmatpush1.bf16.msra.mxu0 0
        %4798 = vmatprep.subr.bf16.mxu0 0
        %4799 = vmatpush1.bf16.msra.mxu0 0
        %4800 = vmatprep.subr.bf16.mxu0 0
        %4801 = vmatpush1.bf16.msra.mxu0 0
        %4802 = vmatprep.subr.bf16.mxu0 0
        %4803 = vmatpush1.bf16.msra.mxu0 0
        %4804 = vmatprep.subr.bf16.mxu0 0
        %4805 = vmatpush1.bf16.msra.mxu0 0
        %4806 = vmatprep.subr.bf16.mxu0 0
        %4807 = vmatpush1.bf16.msra.mxu0 0
        %4808 = vmatprep.subr.bf16.mxu0 0
        %4809 = vmatpush1.bf16.msra.mxu0 0
        %4810 = vmatprep.subr.bf16.mxu0 0
        %4811 = vmatpush1.bf16.msra.mxu0 0
        %4812 = vmatprep.subr.bf16.mxu0 0
        %4813 = vmatpush1.bf16.msra.mxu0 0
        %4814 = vmatprep.subr.bf16.mxu0 0
        %4815 = vmatpush1.bf16.msra.mxu0 0
        %4816 = vmatprep.subr.bf16.mxu0 0
        %4817 = vmatpush1.bf16.msra.mxu0 0
        %4818 = vmatprep.subr.bf16.mxu0 0
        %4819 = vmatpush1.bf16.msra.mxu0 0
        %4820 = vmatprep.mubr.bf16.mxu0 0
        %4821 = vmatmul.mubr.bf16.gmra.mrb[0].mxu0 %v4786
        %v4822 = vpop.f32.mrb[0].mxu0
        %v4823 = vadd.f32 0.0, %v4822
        %v4824 = vpop.f32.mrb[0].mxu0
        %v4825 = vpop.f32.mrb[0].mxu0
        %v4826 = vadd.f32 0.0, %v4825
        %v4827 = vpop.f32.mrb[0].mxu0
        %4828 = vdwg.mxu0
        %v4829 = vmul.f32 %v4823, %v4782
        %v4830 = vmul.f32 %v4826, %v4783
        %v4831 = vpack.c.bf16 %v4830, %v4829
        %4832 = vst.msk [vmem:[#allocation2 + $0x38] sm:$0xff] %vm1212, %v4831
        %4834 = vrot.lane.b32.xlu0 %v1195, 96
        %v4835 = vpop.permute.xlu0 %4834
        %4837 = vrot.lane.b32.xlu0 %v1203, 96
        %v4838 = vpop.permute.xlu0 %4837
        %v4840 = vsel %vm1212, %v4835, 0
        %v4843 = vsel %vm1212, %v4838, 0
        %4845 = vmatprep.subr.bf16.mxu0 0
        %4846 = vmatpush1.bf16.xpose.msra.mxu0 %v4843
        %4847 = vmatprep.subr.bf16.mxu0 0
        %4848 = vmatpush1.bf16.xpose.msra.mxu0 0
        %4849 = vmatprep.subr.bf16.mxu0 0
        %4850 = vmatpush1.bf16.xpose.msra.mxu0 0
        %4851 = vmatprep.subr.bf16.mxu0 0
        %4852 = vmatpush1.bf16.xpose.msra.mxu0 0
        %4853 = vmatprep.subr.bf16.mxu0 0
        %4854 = vmatpush1.bf16.xpose.msra.mxu0 0
        %4855 = vmatprep.subr.bf16.mxu0 0
        %4856 = vmatpush1.bf16.xpose.msra.mxu0 0
        %4857 = vmatprep.subr.bf16.mxu0 0
        %4858 = vmatpush1.bf16.xpose.msra.mxu0 0
        %4859 = vmatprep.subr.bf16.mxu0 0
        %4860 = vmatpush1.bf16.xpose.msra.mxu0 0
        %4861 = vmatprep.subr.bf16.mxu0 0
        %4862 = vmatpush1.bf16.xpose.msra.mxu0 0
        %4863 = vmatprep.subr.bf16.mxu0 0
        %4864 = vmatpush1.bf16.xpose.msra.mxu0 0
        %4865 = vmatprep.subr.bf16.mxu0 0
        %4866 = vmatpush1.bf16.xpose.msra.mxu0 0
        %4867 = vmatprep.subr.bf16.mxu0 0
        %4868 = vmatpush1.bf16.xpose.msra.mxu0 0
        %4869 = vmatprep.subr.bf16.mxu0 0
        %4870 = vmatpush1.bf16.xpose.msra.mxu0 0
        %4871 = vmatprep.subr.bf16.mxu0 0
        %4872 = vmatpush1.bf16.xpose.msra.mxu0 0
        %4873 = vmatprep.subr.bf16.mxu0 0
        %4874 = vmatpush1.bf16.xpose.msra.mxu0 0
        %4875 = vmatprep.subr.bf16.mxu0 0
        %4876 = vmatpush1.bf16.xpose.msra.mxu0 0
        %4877 = vmatprep.mubr.bf16.mxu0 0
        %4878 = vmatmul.mubr.bf16.gmra.mrb[0].mxu0 %v4840
        %v4879 = vpop.f32.mrb[0].mxu0
        %v4880 = vadd.f32 0.0, %v4879
        %v4881 = vpop.f32.mrb[0].mxu0
        %v4882 = vpop.f32.mrb[0].mxu0
        %v4883 = vadd.f32 0.0, %v4882
        %v4884 = vpop.f32.mrb[0].mxu0
        %4885 = vdwg.mxu0
        %v4886 = vsel %vm1260, %v4880, -inf
        %4887 = vmax.xlane.f32.xlu0 %v4886
        %v4888 = vpop.xlane.xlu0 %4887
        %v4889 = vsel %vm1260, %v4883, -inf
        %4890 = vmax.xlane.f32.xlu0 %v4889
        %v4891 = vpop.xlane.xlu0 %4890
        %v4892 = vsub.f32 %v4880, %v4888
        %v4893 = vsub.f32 %v4883, %v4891
        %v4894 = vmul.f32 %v4892, 1.442695
        %v4895 = vpow.pop %v4894
        %v4896 = vmul.f32 %v4893, 1.442695
        %v4897 = vpow.pop %v4896
        %v4898 = vsel %vm1260, %v4895, 0.0
        %4899 = vadd.xlane.f32.xlu0 %v4898
        %v4900 = vpop.xlane.xlu0 %4899
        %v4901 = vsel %vm1260, %v4897, 0.0
        %4902 = vadd.xlane.f32.xlu0 %v4901
        %v4903 = vpop.xlane.xlu0 %4902
        %v4904 = vrcp.pop %v4900
        %v4905 = vrcp.pop %v4903
        %v4906 = vpack.c.bf16 %v4897, %v4895
        %4908 = vrot.lane.b32.xlu0 %v1211, 96
        %v4909 = vpop.permute.xlu0 %4908
        %v4912 = vsel %vm1260, %v4906, 0
        %4914 = vmatprep.subr.bf16.mxu0 0
        %4915 = vmatpush1.bf16.msra.mxu0 %v4909
        %4916 = vmatprep.subr.bf16.mxu0 0
        %4917 = vmatpush1.bf16.msra.mxu0 0
        %4918 = vmatprep.subr.bf16.mxu0 0
        %4919 = vmatpush1.bf16.msra.mxu0 0
        %4920 = vmatprep.subr.bf16.mxu0 0
        %4921 = vmatpush1.bf16.msra.mxu0 0
        %4922 = vmatprep.subr.bf16.mxu0 0
        %4923 = vmatpush1.bf16.msra.mxu0 0
        %4924 = vmatprep.subr.bf16.mxu0 0
        %4925 = vmatpush1.bf16.msra.mxu0 0
        %4926 = vmatprep.subr.bf16.mxu0 0
        %4927 = vmatpush1.bf16.msra.mxu0 0
        %4928 = vmatprep.subr.bf16.mxu0 0
        %4929 = vmatpush1.bf16.msra.mxu0 0
        %4930 = vmatprep.subr.bf16.mxu0 0
        %4931 = vmatpush1.bf16.msra.mxu0 0
        %4932 = vmatprep.subr.bf16.mxu0 0
        %4933 = vmatpush1.bf16.msra.mxu0 0
        %4934 = vmatprep.subr.bf16.mxu0 0
        %4935 = vmatpush1.bf16.msra.mxu0 0
        %4936 = vmatprep.subr.bf16.mxu0 0
        %4937 = vmatpush1.bf16.msra.mxu0 0
        %4938 = vmatprep.subr.bf16.mxu0 0
        %4939 = vmatpush1.bf16.msra.mxu0 0
        %4940 = vmatprep.subr.bf16.mxu0 0
        %4941 = vmatpush1.bf16.msra.mxu0 0
        %4942 = vmatprep.subr.bf16.mxu0 0
        %4943 = vmatpush1.bf16.msra.mxu0 0
        %4944 = vmatprep.subr.bf16.mxu0 0
        %4945 = vmatpush1.bf16.msra.mxu0 0
        %4946 = vmatprep.mubr.bf16.mxu0 0
        %4947 = vmatmul.mubr.bf16.gmra.mrb[0].mxu0 %v4912
        %v4948 = vpop.f32.mrb[0].mxu0
        %v4949 = vadd.f32 0.0, %v4948
        %v4950 = vpop.f32.mrb[0].mxu0
        %v4951 = vpop.f32.mrb[0].mxu0
        %v4952 = vadd.f32 0.0, %v4951
        %v4953 = vpop.f32.mrb[0].mxu0
        %4954 = vdwg.mxu0
        %v4955 = vmul.f32 %v4949, %v4904
        %v4956 = vmul.f32 %v4952, %v4905
        %v4957 = vpack.c.bf16 %v4956, %v4955
        %4959 = vrot.lane.b32.xlu0 %v4957, 32
        %v4960 = vpop.permute.xlu0 %4959
        %4962 = vst.msk [vmem:[#allocation2 + $0x38] sm:$0xff] %vm1459, %v4960
        %4963 = vrot.lane.b32.xlu0 %v1195, 64
        %v4964 = vpop.permute.xlu0 %4963
        %4965 = vrot.lane.b32.xlu0 %v1203, 64
        %v4966 = vpop.permute.xlu0 %4965
        %v4968 = vsel %vm1212, %v4964, 0
        %v4971 = vsel %vm1212, %v4966, 0
        %4973 = vmatprep.subr.bf16.mxu0 0
        %4974 = vmatpush1.bf16.xpose.msra.mxu0 %v4971
        %4975 = vmatprep.subr.bf16.mxu0 0
        %4976 = vmatpush1.bf16.xpose.msra.mxu0 0
        %4977 = vmatprep.subr.bf16.mxu0 0
        %4978 = vmatpush1.bf16.xpose.msra.mxu0 0
        %4979 = vmatprep.subr.bf16.mxu0 0
        %4980 = vmatpush1.bf16.xpose.msra.mxu0 0
        %4981 = vmatprep.subr.bf16.mxu0 0
        %4982 = vmatpush1.bf16.xpose.msra.mxu0 0
        %4983 = vmatprep.subr.bf16.mxu0 0
        %4984 = vmatpush1.bf16.xpose.msra.mxu0 0
        %4985 = vmatprep.subr.bf16.mxu0 0
        %4986 = vmatpush1.bf16.xpose.msra.mxu0 0
        %4987 = vmatprep.subr.bf16.mxu0 0
        %4988 = vmatpush1.bf16.xpose.msra.mxu0 0
        %4989 = vmatprep.subr.bf16.mxu0 0
        %4990 = vmatpush1.bf16.xpose.msra.mxu0 0
        %4991 = vmatprep.subr.bf16.mxu0 0
        %4992 = vmatpush1.bf16.xpose.msra.mxu0 0
        %4993 = vmatprep.subr.bf16.mxu0 0
        %4994 = vmatpush1.bf16.xpose.msra.mxu0 0
        %4995 = vmatprep.subr.bf16.mxu0 0
        %4996 = vmatpush1.bf16.xpose.msra.mxu0 0
        %4997 = vmatprep.subr.bf16.mxu0 0
        %4998 = vmatpush1.bf16.xpose.msra.mxu0 0
        %4999 = vmatprep.subr.bf16.mxu0 0
        %5000 = vmatpush1.bf16.xpose.msra.mxu0 0
        %5001 = vmatprep.subr.bf16.mxu0 0
        %5002 = vmatpush1.bf16.xpose.msra.mxu0 0
        %5003 = vmatprep.subr.bf16.mxu0 0
        %5004 = vmatpush1.bf16.xpose.msra.mxu0 0
        %5005 = vmatprep.mubr.bf16.mxu0 0
        %5006 = vmatmul.mubr.bf16.gmra.mrb[0].mxu0 %v4968
        %v5007 = vpop.f32.mrb[0].mxu0
        %v5008 = vadd.f32 0.0, %v5007
        %v5009 = vpop.f32.mrb[0].mxu0
        %v5010 = vpop.f32.mrb[0].mxu0
        %v5011 = vadd.f32 0.0, %v5010
        %v5012 = vpop.f32.mrb[0].mxu0
        %5013 = vdwg.mxu0
        %v5014 = vsel %vm1260, %v5008, -inf
        %5015 = vmax.xlane.f32.xlu0 %v5014
        %v5016 = vpop.xlane.xlu0 %5015
        %v5017 = vsel %vm1260, %v5011, -inf
        %5018 = vmax.xlane.f32.xlu0 %v5017
        %v5019 = vpop.xlane.xlu0 %5018
        %v5020 = vsub.f32 %v5008, %v5016
        %v5021 = vsub.f32 %v5011, %v5019
        %v5022 = vmul.f32 %v5020, 1.442695
        %v5023 = vpow.pop %v5022
        %v5024 = vmul.f32 %v5021, 1.442695
        %v5025 = vpow.pop %v5024
        %v5026 = vsel %vm1260, %v5023, 0.0
        %5027 = vadd.xlane.f32.xlu0 %v5026
        %v5028 = vpop.xlane.xlu0 %5027
        %v5029 = vsel %vm1260, %v5025, 0.0
        %5030 = vadd.xlane.f32.xlu0 %v5029
        %v5031 = vpop.xlane.xlu0 %5030
        %v5032 = vrcp.pop %v5028
        %v5033 = vrcp.pop %v5031
        %v5034 = vpack.c.bf16 %v5025, %v5023
        %5035 = vrot.lane.b32.xlu0 %v1211, 64
        %v5036 = vpop.permute.xlu0 %5035
        %v5039 = vsel %vm1260, %v5034, 0
        %5041 = vmatprep.subr.bf16.mxu0 0
        %5042 = vmatpush1.bf16.msra.mxu0 %v5036
        %5043 = vmatprep.subr.bf16.mxu0 0
        %5044 = vmatpush1.bf16.msra.mxu0 0
        %5045 = vmatprep.subr.bf16.mxu0 0
        %5046 = vmatpush1.bf16.msra.mxu0 0
        %5047 = vmatprep.subr.bf16.mxu0 0
        %5048 = vmatpush1.bf16.msra.mxu0 0
        %5049 = vmatprep.subr.bf16.mxu0 0
        %5050 = vmatpush1.bf16.msra.mxu0 0
        %5051 = vmatprep.subr.bf16.mxu0 0
        %5052 = vmatpush1.bf16.msra.mxu0 0
        %5053 = vmatprep.subr.bf16.mxu0 0
        %5054 = vmatpush1.bf16.msra.mxu0 0
        %5055 = vmatprep.subr.bf16.mxu0 0
        %5056 = vmatpush1.bf16.msra.mxu0 0
        %5057 = vmatprep.subr.bf16.mxu0 0
        %5058 = vmatpush1.bf16.msra.mxu0 0
        %5059 = vmatprep.subr.bf16.mxu0 0
        %5060 = vmatpush1.bf16.msra.mxu0 0
        %5061 = vmatprep.subr.bf16.mxu0 0
        %5062 = vmatpush1.bf16.msra.mxu0 0
        %5063 = vmatprep.subr.bf16.mxu0 0
        %5064 = vmatpush1.bf16.msra.mxu0 0
        %5065 = vmatprep.subr.bf16.mxu0 0
        %5066 = vmatpush1.bf16.msra.mxu0 0
        %5067 = vmatprep.subr.bf16.mxu0 0
        %5068 = vmatpush1.bf16.msra.mxu0 0
        %5069 = vmatprep.subr.bf16.mxu0 0
        %5070 = vmatpush1.bf16.msra.mxu0 0
        %5071 = vmatprep.subr.bf16.mxu0 0
        %5072 = vmatpush1.bf16.msra.mxu0 0
        %5073 = vmatprep.mubr.bf16.mxu0 0
        %5074 = vmatmul.mubr.bf16.gmra.mrb[0].mxu0 %v5039
        %v5075 = vpop.f32.mrb[0].mxu0
        %v5076 = vadd.f32 0.0, %v5075
        %v5077 = vpop.f32.mrb[0].mxu0
        %v5078 = vpop.f32.mrb[0].mxu0
        %v5079 = vadd.f32 0.0, %v5078
        %v5080 = vpop.f32.mrb[0].mxu0
        %5081 = vdwg.mxu0
        %v5082 = vmul.f32 %v5076, %v5032
        %v5083 = vmul.f32 %v5079, %v5033
        %v5084 = vpack.c.bf16 %v5083, %v5082
        %5086 = vrot.lane.b32.xlu0 %v5084, 64
        %v5087 = vpop.permute.xlu0 %5086
        %5089 = vst.msk [vmem:[#allocation2 + $0x38] sm:$0xff] %vm1587, %v5087
        %5090 = vrot.lane.b32.xlu0 %v1195, 32
        %v5091 = vpop.permute.xlu0 %5090
        %5092 = vrot.lane.b32.xlu0 %v1203, 32
        %v5093 = vpop.permute.xlu0 %5092
        %v5095 = vsel %vm1212, %v5091, 0
        %v5098 = vsel %vm1212, %v5093, 0
        %5100 = vmatprep.subr.bf16.mxu0 0
        %5101 = vmatpush1.bf16.xpose.msra.mxu0 %v5098
        %5102 = vmatprep.subr.bf16.mxu0 0
        %5103 = vmatpush1.bf16.xpose.msra.mxu0 0
        %5104 = vmatprep.subr.bf16.mxu0 0
        %5105 = vmatpush1.bf16.xpose.msra.mxu0 0
        %5106 = vmatprep.subr.bf16.mxu0 0
        %5107 = vmatpush1.bf16.xpose.msra.mxu0 0
        %5108 = vmatprep.subr.bf16.mxu0 0
        %5109 = vmatpush1.bf16.xpose.msra.mxu0 0
        %5110 = vmatprep.subr.bf16.mxu0 0
        %5111 = vmatpush1.bf16.xpose.msra.mxu0 0
        %5112 = vmatprep.subr.bf16.mxu0 0
        %5113 = vmatpush1.bf16.xpose.msra.mxu0 0
        %5114 = vmatprep.subr.bf16.mxu0 0
        %5115 = vmatpush1.bf16.xpose.msra.mxu0 0
        %5116 = vmatprep.subr.bf16.mxu0 0
        %5117 = vmatpush1.bf16.xpose.msra.mxu0 0
        %5118 = vmatprep.subr.bf16.mxu0 0
        %5119 = vmatpush1.bf16.xpose.msra.mxu0 0
        %5120 = vmatprep.subr.bf16.mxu0 0
        %5121 = vmatpush1.bf16.xpose.msra.mxu0 0
        %5122 = vmatprep.subr.bf16.mxu0 0
        %5123 = vmatpush1.bf16.xpose.msra.mxu0 0
        %5124 = vmatprep.subr.bf16.mxu0 0
        %5125 = vmatpush1.bf16.xpose.msra.mxu0 0
        %5126 = vmatprep.subr.bf16.mxu0 0
        %5127 = vmatpush1.bf16.xpose.msra.mxu0 0
        %5128 = vmatprep.subr.bf16.mxu0 0
        %5129 = vmatpush1.bf16.xpose.msra.mxu0 0
        %5130 = vmatprep.subr.bf16.mxu0 0
        %5131 = vmatpush1.bf16.xpose.msra.mxu0 0
        %5132 = vmatprep.mubr.bf16.mxu0 0
        %5133 = vmatmul.mubr.bf16.gmra.mrb[0].mxu0 %v5095
        %v5134 = vpop.f32.mrb[0].mxu0
        %v5135 = vadd.f32 0.0, %v5134
        %v5136 = vpop.f32.mrb[0].mxu0
        %v5137 = vpop.f32.mrb[0].mxu0
        %v5138 = vadd.f32 0.0, %v5137
        %v5139 = vpop.f32.mrb[0].mxu0
        %5140 = vdwg.mxu0
        %v5141 = vsel %vm1260, %v5135, -inf
        %5142 = vmax.xlane.f32.xlu0 %v5141
        %v5143 = vpop.xlane.xlu0 %5142
        %v5144 = vsel %vm1260, %v5138, -inf
        %5145 = vmax.xlane.f32.xlu0 %v5144
        %v5146 = vpop.xlane.xlu0 %5145
        %v5147 = vsub.f32 %v5135, %v5143
        %v5148 = vsub.f32 %v5138, %v5146
        %v5149 = vmul.f32 %v5147, 1.442695
        %v5150 = vpow.pop %v5149
        %v5151 = vmul.f32 %v5148, 1.442695
        %v5152 = vpow.pop %v5151
        %v5153 = vsel %vm1260, %v5150, 0.0
        %5154 = vadd.xlane.f32.xlu0 %v5153
        %v5155 = vpop.xlane.xlu0 %5154
        %v5156 = vsel %vm1260, %v5152, 0.0
        %5157 = vadd.xlane.f32.xlu0 %v5156
        %v5158 = vpop.xlane.xlu0 %5157
        %v5159 = vrcp.pop %v5155
        %v5160 = vrcp.pop %v5158
        %v5161 = vpack.c.bf16 %v5152, %v5150
        %5162 = vrot.lane.b32.xlu0 %v1211, 32
        %v5163 = vpop.permute.xlu0 %5162
        %v5166 = vsel %vm1260, %v5161, 0
        %5168 = vmatprep.subr.bf16.mxu0 0
        %5169 = vmatpush1.bf16.msra.mxu0 %v5163
        %5170 = vmatprep.subr.bf16.mxu0 0
        %5171 = vmatpush1.bf16.msra.mxu0 0
        %5172 = vmatprep.subr.bf16.mxu0 0
        %5173 = vmatpush1.bf16.msra.mxu0 0
        %5174 = vmatprep.subr.bf16.mxu0 0
        %5175 = vmatpush1.bf16.msra.mxu0 0
        %5176 = vmatprep.subr.bf16.mxu0 0
        %5177 = vmatpush1.bf16.msra.mxu0 0
        %5178 = vmatprep.subr.bf16.mxu0 0
        %5179 = vmatpush1.bf16.msra.mxu0 0
        %5180 = vmatprep.subr.bf16.mxu0 0
        %5181 = vmatpush1.bf16.msra.mxu0 0
        %5182 = vmatprep.subr.bf16.mxu0 0
        %5183 = vmatpush1.bf16.msra.mxu0 0
        %5184 = vmatprep.subr.bf16.mxu0 0
        %5185 = vmatpush1.bf16.msra.mxu0 0
        %5186 = vmatprep.subr.bf16.mxu0 0
        %5187 = vmatpush1.bf16.msra.mxu0 0
        %5188 = vmatprep.subr.bf16.mxu0 0
        %5189 = vmatpush1.bf16.msra.mxu0 0
        %5190 = vmatprep.subr.bf16.mxu0 0
        %5191 = vmatpush1.bf16.msra.mxu0 0
        %5192 = vmatprep.subr.bf16.mxu0 0
        %5193 = vmatpush1.bf16.msra.mxu0 0
        %5194 = vmatprep.subr.bf16.mxu0 0
        %5195 = vmatpush1.bf16.msra.mxu0 0
        %5196 = vmatprep.subr.bf16.mxu0 0
        %5197 = vmatpush1.bf16.msra.mxu0 0
        %5198 = vmatprep.subr.bf16.mxu0 0
        %5199 = vmatpush1.bf16.msra.mxu0 0
        %5200 = vmatprep.mubr.bf16.mxu0 0
        %5201 = vmatmul.mubr.bf16.gmra.mrb[0].mxu0 %v5166
        %v5202 = vpop.f32.mrb[0].mxu0
        %v5203 = vadd.f32 0.0, %v5202
        %v5204 = vpop.f32.mrb[0].mxu0
        %v5205 = vpop.f32.mrb[0].mxu0
        %v5206 = vadd.f32 0.0, %v5205
        %v5207 = vpop.f32.mrb[0].mxu0
        %5208 = vdwg.mxu0
        %v5209 = vmul.f32 %v5203, %v5159
        %v5210 = vmul.f32 %v5206, %v5160
        %v5211 = vpack.c.bf16 %v5210, %v5209
        %5213 = vrot.lane.b32.xlu0 %v5211, 96
        %v5214 = vpop.permute.xlu0 %5213
        %5216 = vst.msk [vmem:[#allocation2 + $0x38] sm:$0xff] %vm1715, %v5214
        %v5217 = vld [vmem:[#allocation2] sm:$0xff]
        %v5218 = vld [vmem:[#allocation2 + $0x8] sm:$0xff]
        %v5219 = vld [vmem:[#allocation2 + $0x10] sm:$0xff]
        %v5220 = vld [vmem:[#allocation2 + $0x18] sm:$0xff]
        %v5221 = vld [vmem:[#allocation2 + $0x20] sm:$0xff]
        %v5222 = vld [vmem:[#allocation2 + $0x28] sm:$0xff]
        %v5223 = vld [vmem:[#allocation2 + $0x30] sm:$0xff]
        %v5224 = vld [vmem:[#allocation2 + $0x38] sm:$0xff]
        %v5225 = vld [vmem:[#allocation11] sm:$0xf]
        %v5226 = vld [vmem:[#allocation11 + $0x4] sm:$0xf]
        %v5227 = vld [vmem:[#allocation11 + $0x8] sm:$0xf]
        %v5228 = vld [vmem:[#allocation11 + $0xc] sm:$0xf]
        %v5229 = vld [vmem:[#allocation11 + $0x10] sm:$0xf]
        %v5230 = vld [vmem:[#allocation11 + $0x14] sm:$0xf]
        %v5231 = vld [vmem:[#allocation11 + $0x18] sm:$0xf]
        %v5232 = vld [vmem:[#allocation11 + $0x1c] sm:$0xf]
        %v5233 = vld [vmem:[#allocation11 + $0x20] sm:$0xf]
        %v5234 = vld [vmem:[#allocation11 + $0x24] sm:$0xf]
        %v5235 = vld [vmem:[#allocation11 + $0x28] sm:$0xf]
        %v5236 = vld [vmem:[#allocation11 + $0x2c] sm:$0xf]
        %v5237 = vld [vmem:[#allocation11 + $0x30] sm:$0xf]
        %v5238 = vld [vmem:[#allocation11 + $0x34] sm:$0xf]
        %v5239 = vld [vmem:[#allocation11 + $0x38] sm:$0xf]
        %v5240 = vld [vmem:[#allocation11 + $0x3c] sm:$0xf]
        %v5241 = vld [vmem:[#allocation12] sm:$0x1]
        %v5243 = vlaneseq
        %v5244 = vshrl.u32 %v5243, 7
        %v5245 = vsub.s32 0, %v5244
        %v5246 = vrot.slane %v5241, %v5245
        %v5264 = vunpack.c.l.b16 %v5225
        %v5265 = vunpack.c.l.b16 %v5226
        %v5266 = vunpack.c.l.b16 %v5227
        %v5267 = vunpack.c.l.b16 %v5228
        %v5268 = vunpack.c.l.b16 %v5229
        %v5269 = vunpack.c.l.b16 %v5230
        %v5270 = vunpack.c.l.b16 %v5231
        %v5271 = vunpack.c.l.b16 %v5232
        %v5272 = vunpack.c.l.b16 %v5233
        %v5273 = vunpack.c.l.b16 %v5234
        %v5274 = vunpack.c.l.b16 %v5235
        %v5275 = vunpack.c.l.b16 %v5236
        %v5276 = vunpack.c.l.b16 %v5237
        %v5277 = vunpack.c.l.b16 %v5238
        %v5278 = vunpack.c.l.b16 %v5239
        %v5279 = vunpack.c.l.b16 %v5240
        %v5280 = vpack.c.b16 %v5265, %v5264
        %v5281 = vpack.c.b16 %v5267, %v5266
        %v5282 = vpack.c.b16 %v5269, %v5268
        %v5283 = vpack.c.b16 %v5271, %v5270
        %v5284 = vpack.c.b16 %v5273, %v5272
        %v5285 = vpack.c.b16 %v5275, %v5274
        %v5286 = vpack.c.b16 %v5277, %v5276
        %v5287 = vpack.c.b16 %v5279, %v5278
        %5296 = vmatprep.subr.bf16.mxu0 0
        %5297 = vmatpush1.bf16.msra.mxu0 %v5280
        %5298 = vmatprep.subr.bf16.mxu0 0
        %5299 = vmatpush1.bf16.msra.mxu0 %v5281
        %5300 = vmatprep.subr.bf16.mxu0 0
        %5301 = vmatpush1.bf16.msra.mxu0 %v5282
        %5302 = vmatprep.subr.bf16.mxu0 0
        %5303 = vmatpush1.bf16.msra.mxu0 %v5283
        %5304 = vmatprep.subr.bf16.mxu0 0
        %5305 = vmatpush1.bf16.msra.mxu0 %v5284
        %5306 = vmatprep.subr.bf16.mxu0 0
        %5307 = vmatpush1.bf16.msra.mxu0 %v5285
        %5308 = vmatprep.subr.bf16.mxu0 0
        %5309 = vmatpush1.bf16.msra.mxu0 %v5286
        %5310 = vmatprep.subr.bf16.mxu0 0
        %5311 = vmatpush1.bf16.msra.mxu0 %v5287
        %5312 = vmatprep.subr.bf16.mxu0 0
        %5313 = vmatpush1.bf16.msra.mxu0 0
        %5314 = vmatprep.subr.bf16.mxu0 0
        %5315 = vmatpush1.bf16.msra.mxu0 0
        %5316 = vmatprep.subr.bf16.mxu0 0
        %5317 = vmatpush1.bf16.msra.mxu0 0
        %5318 = vmatprep.subr.bf16.mxu0 0
        %5319 = vmatpush1.bf16.msra.mxu0 0
        %5320 = vmatprep.subr.bf16.mxu0 0
        %5321 = vmatpush1.bf16.msra.mxu0 0
        %5322 = vmatprep.subr.bf16.mxu0 0
        %5323 = vmatpush1.bf16.msra.mxu0 0
        %5324 = vmatprep.subr.bf16.mxu0 0
        %5325 = vmatpush1.bf16.msra.mxu0 0
        %5326 = vmatprep.subr.bf16.mxu0 0
        %5327 = vmatpush1.bf16.msra.mxu0 0
        %5328 = vmatprep.mubr.bf16.mxu0 0
        %5329 = vmatmul.mubr.bf16.gmra.mrb[0].mxu0 %v5217
        %v5330 = vpop.f32.mrb[0].mxu0
        %v5331 = vadd.f32 %v5246, %v5330
        %v5332 = vpop.f32.mrb[0].mxu0
        %v5333 = vpop.f32.mrb[0].mxu0
        %v5334 = vadd.f32 %v5246, %v5333
        %v5335 = vpop.f32.mrb[0].mxu0
        %5336 = vmatprep.mubr.bf16.mxu0 0
        %5337 = vmatmul.mubr.bf16.gmra.mrb[0].mxu0 %v5218
        %v5338 = vpop.f32.mrb[0].mxu0
        %v5339 = vadd.f32 %v5246, %v5338
        %v5340 = vpop.f32.mrb[0].mxu0
        %v5341 = vpop.f32.mrb[0].mxu0
        %v5342 = vadd.f32 %v5246, %v5341
        %v5343 = vpop.f32.mrb[0].mxu0
        %5344 = vmatprep.mubr.bf16.mxu0 0
        %5345 = vmatmul.mubr.bf16.gmra.mrb[0].mxu0 %v5219
        %v5346 = vpop.f32.mrb[0].mxu0
        %v5347 = vadd.f32 %v5246, %v5346
        %v5348 = vpop.f32.mrb[0].mxu0
        %v5349 = vpop.f32.mrb[0].mxu0
        %v5350 = vadd.f32 %v5246, %v5349
        %v5351 = vpop.f32.mrb[0].mxu0
        %5352 = vmatprep.mubr.bf16.mxu0 0
        %5353 = vmatmul.mubr.bf16.gmra.mrb[0].mxu0 %v5220
        %v5354 = vpop.f32.mrb[0].mxu0
        %v5355 = vadd.f32 %v5246, %v5354
        %v5356 = vpop.f32.mrb[0].mxu0
        %v5357 = vpop.f32.mrb[0].mxu0
        %v5358 = vadd.f32 %v5246, %v5357
        %v5359 = vpop.f32.mrb[0].mxu0
        %5360 = vmatprep.mubr.bf16.mxu0 0
        %5361 = vmatmul.mubr.bf16.gmra.mrb[0].mxu0 %v5221
        %v5362 = vpop.f32.mrb[0].mxu0
        %v5363 = vadd.f32 %v5246, %v5362
        %v5364 = vpop.f32.mrb[0].mxu0
        %v5365 = vpop.f32.mrb[0].mxu0
        %v5366 = vadd.f32 %v5246, %v5365
        %v5367 = vpop.f32.mrb[0].mxu0
        %5368 = vmatprep.mubr.bf16.mxu0 0
        %5369 = vmatmul.mubr.bf16.gmra.mrb[0].mxu0 %v5222
        %v5370 = vpop.f32.mrb[0].mxu0
        %v5371 = vadd.f32 %v5246, %v5370
        %v5372 = vpop.f32.mrb[0].mxu0
        %v5373 = vpop.f32.mrb[0].mxu0
        %v5374 = vadd.f32 %v5246, %v5373
        %v5375 = vpop.f32.mrb[0].mxu0
        %5376 = vmatprep.mubr.bf16.mxu0 0
        %5377 = vmatmul.mubr.bf16.gmra.mrb[0].mxu0 %v5223
        %v5378 = vpop.f32.mrb[0].mxu0
        %v5379 = vadd.f32 %v5246, %v5378
        %v5380 = vpop.f32.mrb[0].mxu0
        %v5381 = vpop.f32.mrb[0].mxu0
        %v5382 = vadd.f32 %v5246, %v5381
        %v5383 = vpop.f32.mrb[0].mxu0
        %5384 = vmatprep.mubr.bf16.mxu0 0
        %5385 = vmatmul.mubr.bf16.gmra.mrb[0].mxu0 %v5224
        %v5386 = vpop.f32.mrb[0].mxu0
        %v5387 = vadd.f32 %v5246, %v5386
        %v5388 = vpop.f32.mrb[0].mxu0
        %v5389 = vpop.f32.mrb[0].mxu0
        %v5390 = vadd.f32 %v5246, %v5389
        %v5391 = vpop.f32.mrb[0].mxu0
        %5392 = vdwg.mxu0
        %v5393 = vadd.f32 %v665, %v5331
        %v5394 = vadd.f32 %v666, %v5334
        %v5395 = vadd.f32 %v667, %v5339
        %v5396 = vadd.f32 %v668, %v5342
        %v5397 = vadd.f32 %v669, %v5347
        %v5398 = vadd.f32 %v670, %v5350
        %v5399 = vadd.f32 %v671, %v5355
        %v5400 = vadd.f32 %v672, %v5358
        %v5401 = vadd.f32 %v673, %v5363
        %v5402 = vadd.f32 %v674, %v5366
        %v5403 = vadd.f32 %v675, %v5371
        %v5404 = vadd.f32 %v676, %v5374
        %v5405 = vadd.f32 %v677, %v5379
        %v5406 = vadd.f32 %v678, %v5382
        %v5407 = vadd.f32 %v679, %v5387
        %v5408 = vadd.f32 %v680, %v5390
        %v5409 = vld [vmem:[#allocation14] sm:$0x1]
        %v5410 = vld [vmem:[#allocation15] sm:$0x1]
        %5411 = vadd.xlane.f32.xlu0 %v5393
        %v5412 = vpop.xlane.xlu0 %5411
        %5413 = vadd.xlane.f32.xlu0 %v5394
        %v5414 = vpop.xlane.xlu0 %5413
        %5415 = vadd.xlane.f32.xlu0 %v5395
        %v5416 = vpop.xlane.xlu0 %5415
        %5417 = vadd.xlane.f32.xlu0 %v5396
        %v5418 = vpop.xlane.xlu0 %5417
        %5419 = vadd.xlane.f32.xlu0 %v5397
        %v5420 = vpop.xlane.xlu0 %5419
        %5421 = vadd.xlane.f32.xlu0 %v5398
        %v5422 = vpop.xlane.xlu0 %5421
        %5423 = vadd.xlane.f32.xlu0 %v5399
        %v5424 = vpop.xlane.xlu0 %5423
        %5425 = vadd.xlane.f32.xlu0 %v5400
        %v5426 = vpop.xlane.xlu0 %5425
        %5427 = vadd.xlane.f32.xlu0 %v5401
        %v5428 = vpop.xlane.xlu0 %5427
        %5429 = vadd.xlane.f32.xlu0 %v5402
        %v5430 = vpop.xlane.xlu0 %5429
        %5431 = vadd.xlane.f32.xlu0 %v5403
        %v5432 = vpop.xlane.xlu0 %5431
        %5433 = vadd.xlane.f32.xlu0 %v5404
        %v5434 = vpop.xlane.xlu0 %5433
        %5435 = vadd.xlane.f32.xlu0 %v5405
        %v5436 = vpop.xlane.xlu0 %5435
        %5437 = vadd.xlane.f32.xlu0 %v5406
        %v5438 = vpop.xlane.xlu0 %5437
        %5439 = vadd.xlane.f32.xlu0 %v5407
        %v5440 = vpop.xlane.xlu0 %5439
        %5441 = vadd.xlane.f32.xlu0 %v5408
        %v5442 = vpop.xlane.xlu0 %5441
        %v5443 = vrcp.pop 128.0
        %v5444 = vmul.f32 %v5412, %v5443
        %v5445 = vmul.f32 %v5414, %v5443
        %v5446 = vmul.f32 %v5416, %v5443
        %v5447 = vmul.f32 %v5418, %v5443
        %v5448 = vmul.f32 %v5420, %v5443
        %v5449 = vmul.f32 %v5422, %v5443
        %v5450 = vmul.f32 %v5424, %v5443
        %v5451 = vmul.f32 %v5426, %v5443
        %v5452 = vmul.f32 %v5428, %v5443
        %v5453 = vmul.f32 %v5430, %v5443
        %v5454 = vmul.f32 %v5432, %v5443
        %v5455 = vmul.f32 %v5434, %v5443
        %v5456 = vmul.f32 %v5436, %v5443
        %v5457 = vmul.f32 %v5438, %v5443
        %v5458 = vmul.f32 %v5440, %v5443
        %v5459 = vmul.f32 %v5442, %v5443
        %v5460 = vsub.f32 %v5393, %v5444
        %v5461 = vsub.f32 %v5394, %v5445
        %v5462 = vsub.f32 %v5395, %v5446
        %v5463 = vsub.f32 %v5396, %v5447
        %v5464 = vsub.f32 %v5397, %v5448
        %v5465 = vsub.f32 %v5398, %v5449
        %v5466 = vsub.f32 %v5399, %v5450
        %v5467 = vsub.f32 %v5400, %v5451
        %v5468 = vsub.f32 %v5401, %v5452
        %v5469 = vsub.f32 %v5402, %v5453
        %v5470 = vsub.f32 %v5403, %v5454
        %v5471 = vsub.f32 %v5404, %v5455
        %v5472 = vsub.f32 %v5405, %v5456
        %v5473 = vsub.f32 %v5406, %v5457
        %v5474 = vsub.f32 %v5407, %v5458
        %v5475 = vsub.f32 %v5408, %v5459
        %v5476 = vmul.f32 %v5460, %v5460
        %v5477 = vmul.f32 %v5461, %v5461
        %v5478 = vmul.f32 %v5462, %v5462
        %v5479 = vmul.f32 %v5463, %v5463
        %v5480 = vmul.f32 %v5464, %v5464
        %v5481 = vmul.f32 %v5465, %v5465
        %v5482 = vmul.f32 %v5466, %v5466
        %v5483 = vmul.f32 %v5467, %v5467
        %v5484 = vmul.f32 %v5468, %v5468
        %v5485 = vmul.f32 %v5469, %v5469
        %v5486 = vmul.f32 %v5470, %v5470
        %v5487 = vmul.f32 %v5471, %v5471
        %v5488 = vmul.f32 %v5472, %v5472
        %v5489 = vmul.f32 %v5473, %v5473
        %v5490 = vmul.f32 %v5474, %v5474
        %v5491 = vmul.f32 %v5475, %v5475
        %5492 = vadd.xlane.f32.xlu0 %v5476
        %v5493 = vpop.xlane.xlu0 %5492
        %5494 = vadd.xlane.f32.xlu0 %v5477
        %v5495 = vpop.xlane.xlu0 %5494
        %5496 = vadd.xlane.f32.xlu0 %v5478
        %v5497 = vpop.xlane.xlu0 %5496
        %5498 = vadd.xlane.f32.xlu0 %v5479
        %v5499 = vpop.xlane.xlu0 %5498
        %5500 = vadd.xlane.f32.xlu0 %v5480
        %v5501 = vpop.xlane.xlu0 %5500
        %5502 = vadd.xlane.f32.xlu0 %v5481
        %v5503 = vpop.xlane.xlu0 %5502
        %5504 = vadd.xlane.f32.xlu0 %v5482
        %v5505 = vpop.xlane.xlu0 %5504
        %5506 = vadd.xlane.f32.xlu0 %v5483
        %v5507 = vpop.xlane.xlu0 %5506
        %5508 = vadd.xlane.f32.xlu0 %v5484
        %v5509 = vpop.xlane.xlu0 %5508
        %5510 = vadd.xlane.f32.xlu0 %v5485
        %v5511 = vpop.xlane.xlu0 %5510
        %5512 = vadd.xlane.f32.xlu0 %v5486
        %v5513 = vpop.xlane.xlu0 %5512
        %5514 = vadd.xlane.f32.xlu0 %v5487
        %v5515 = vpop.xlane.xlu0 %5514
        %5516 = vadd.xlane.f32.xlu0 %v5488
        %v5517 = vpop.xlane.xlu0 %5516
        %5518 = vadd.xlane.f32.xlu0 %v5489
        %v5519 = vpop.xlane.xlu0 %5518
        %5520 = vadd.xlane.f32.xlu0 %v5490
        %v5521 = vpop.xlane.xlu0 %5520
        %5522 = vadd.xlane.f32.xlu0 %v5491
        %v5523 = vpop.xlane.xlu0 %5522
        %v5524 = vmul.f32 %v5493, %v5443
        %v5525 = vmul.f32 %v5495, %v5443
        %v5526 = vmul.f32 %v5497, %v5443
        %v5527 = vmul.f32 %v5499, %v5443
        %v5528 = vmul.f32 %v5501, %v5443
        %v5529 = vmul.f32 %v5503, %v5443
        %v5530 = vmul.f32 %v5505, %v5443
        %v5531 = vmul.f32 %v5507, %v5443
        %v5532 = vmul.f32 %v5509, %v5443
        %v5533 = vmul.f32 %v5511, %v5443
        %v5534 = vmul.f32 %v5513, %v5443
        %v5535 = vmul.f32 %v5515, %v5443
        %v5536 = vmul.f32 %v5517, %v5443
        %v5537 = vmul.f32 %v5519, %v5443
        %v5538 = vmul.f32 %v5521, %v5443
        %v5539 = vmul.f32 %v5523, %v5443
        %v5540 = vadd.f32 %v5524, 1e-05
        %v5541 = vadd.f32 %v5525, 1e-05
        %v5542 = vadd.f32 %v5526, 1e-05
        %v5543 = vadd.f32 %v5527, 1e-05
        %v5544 = vadd.f32 %v5528, 1e-05
        %v5545 = vadd.f32 %v5529, 1e-05
        %v5546 = vadd.f32 %v5530, 1e-05
        %v5547 = vadd.f32 %v5531, 1e-05
        %v5548 = vadd.f32 %v5532, 1e-05
        %v5549 = vadd.f32 %v5533, 1e-05
        %v5550 = vadd.f32 %v5534, 1e-05
        %v5551 = vadd.f32 %v5535, 1e-05
        %v5552 = vadd.f32 %v5536, 1e-05
        %v5553 = vadd.f32 %v5537, 1e-05
        %v5554 = vadd.f32 %v5538, 1e-05
        %v5555 = vadd.f32 %v5539, 1e-05
        %v5556 = vrsqrt.pop %v5540
        %v5557 = vrsqrt.pop %v5541
        %v5558 = vrsqrt.pop %v5542
        %v5559 = vrsqrt.pop %v5543
        %v5560 = vrsqrt.pop %v5544
        %v5561 = vrsqrt.pop %v5545
        %v5562 = vrsqrt.pop %v5546
        %v5563 = vrsqrt.pop %v5547
        %v5564 = vrsqrt.pop %v5548
        %v5565 = vrsqrt.pop %v5549
        %v5566 = vrsqrt.pop %v5550
        %v5567 = vrsqrt.pop %v5551
        %v5568 = vrsqrt.pop %v5552
        %v5569 = vrsqrt.pop %v5553
        %v5570 = vrsqrt.pop %v5554
        %v5571 = vrsqrt.pop %v5555
        %v5572 = vmul.f32 %v5460, %v5556
        %v5573 = vmul.f32 %v5461, %v5557
        %v5574 = vmul.f32 %v5462, %v5558
        %v5575 = vmul.f32 %v5463, %v5559
        %v5576 = vmul.f32 %v5464, %v5560
        %v5577 = vmul.f32 %v5465, %v5561
        %v5578 = vmul.f32 %v5466, %v5562
        %v5579 = vmul.f32 %v5467, %v5563
        %v5580 = vmul.f32 %v5468, %v5564
        %v5581 = vmul.f32 %v5469, %v5565
        %v5582 = vmul.f32 %v5470, %v5566
        %v5583 = vmul.f32 %v5471, %v5567
        %v5584 = vmul.f32 %v5472, %v5568
        %v5585 = vmul.f32 %v5473, %v5569
        %v5586 = vmul.f32 %v5474, %v5570
        %v5587 = vmul.f32 %v5475, %v5571
        %v5589 = vlaneseq
        %v5590 = vshrl.u32 %v5589, 7
        %v5591 = vsub.s32 0, %v5590
        %v5592 = vrot.slane %v5409, %v5591
        %v5594 = vmul.f32 %v5572, %v5592
        %v5595 = vmul.f32 %v5573, %v5592
        %v5596 = vmul.f32 %v5574, %v5592
        %v5597 = vmul.f32 %v5575, %v5592
        %v5598 = vmul.f32 %v5576, %v5592
        %v5599 = vmul.f32 %v5577, %v5592
        %v5600 = vmul.f32 %v5578, %v5592
        %v5601 = vmul.f32 %v5579, %v5592
        %v5602 = vmul.f32 %v5580, %v5592
        %v5603 = vmul.f32 %v5581, %v5592
        %v5604 = vmul.f32 %v5582, %v5592
        %v5605 = vmul.f32 %v5583, %v5592
        %v5606 = vmul.f32 %v5584, %v5592
        %v5607 = vmul.f32 %v5585, %v5592
        %v5608 = vmul.f32 %v5586, %v5592
        %v5609 = vmul.f32 %v5587, %v5592
        %v5611 = vlaneseq
        %v5612 = vshrl.u32 %v5611, 7
        %v5613 = vsub.s32 0, %v5612
        %v5614 = vrot.slane %v5410, %v5613
        %v5616 = vadd.f32 %v5594, %v5614
        %v5617 = vadd.f32 %v5595, %v5614
        %v5618 = vadd.f32 %v5596, %v5614
        %v5619 = vadd.f32 %v5597, %v5614
        %v5620 = vadd.f32 %v5598, %v5614
        %v5621 = vadd.f32 %v5599, %v5614
        %v5622 = vadd.f32 %v5600, %v5614
        %v5623 = vadd.f32 %v5601, %v5614
        %v5624 = vadd.f32 %v5602, %v5614
        %v5625 = vadd.f32 %v5603, %v5614
        %v5626 = vadd.f32 %v5604, %v5614
        %v5627 = vadd.f32 %v5605, %v5614
        %v5628 = vadd.f32 %v5606, %v5614
        %v5629 = vadd.f32 %v5607, %v5614
        %v5630 = vadd.f32 %v5608, %v5614
        %v5631 = vadd.f32 %v5609, %v5614
        %v5632 = vpack.c.bf16 %v5617, %v5616
        %v5633 = vpack.c.bf16 %v5619, %v5618
        %v5634 = vpack.c.bf16 %v5621, %v5620
        %v5635 = vpack.c.bf16 %v5623, %v5622
        %v5636 = vpack.c.bf16 %v5625, %v5624
        %v5637 = vpack.c.bf16 %v5627, %v5626
        %v5638 = vpack.c.bf16 %v5629, %v5628
        %v5639 = vpack.c.bf16 %v5631, %v5630
        %v5640 = vld [vmem:[#allocation17] sm:$0xff]
        %v5641 = vld [vmem:[#allocation17 + $0x8] sm:$0xff]
        %v5642 = vld [vmem:[#allocation17 + $0x10] sm:$0xff]
        %v5643 = vld [vmem:[#allocation17 + $0x18] sm:$0xff]
        %v5644 = vld [vmem:[#allocation17 + $0x20] sm:$0xff]
        %v5645 = vld [vmem:[#allocation17 + $0x28] sm:$0xff]
        %v5646 = vld [vmem:[#allocation17 + $0x30] sm:$0xff]
        %v5647 = vld [vmem:[#allocation17 + $0x38] sm:$0xff]
        %v5648 = vld [vmem:[#allocation17 + $0x40] sm:$0xff]
        %v5649 = vld [vmem:[#allocation17 + $0x48] sm:$0xff]
        %v5650 = vld [vmem:[#allocation17 + $0x50] sm:$0xff]
        %v5651 = vld [vmem:[#allocation17 + $0x58] sm:$0xff]
        %v5652 = vld [vmem:[#allocation17 + $0x60] sm:$0xff]
        %v5653 = vld [vmem:[#allocation17 + $0x68] sm:$0xff]
        %v5654 = vld [vmem:[#allocation17 + $0x70] sm:$0xff]
        %v5655 = vld [vmem:[#allocation17 + $0x78] sm:$0xff]
        %v5656 = vld [vmem:[#allocation18] sm:$0x3]
        %v5658 = vlaneseq
        %v5659 = vshrl.u32 %v5658, 7
        %v5660 = vsub.s32 0, %v5659
        %v5661 = vrot.slane %v5656, %v5660
        %v5662 = vlaneseq
        %v5663 = vshrl.u32 %v5662, 7
        %v5664 = vsub.s32 1, %v5663
        %v5665 = vrot.slane %v5656, %v5664
        %v5684 = vunpack.c.l.b16 %v5640
        %v5685 = vunpack.c.h.b16 %v5640
        %v5686 = vunpack.c.l.b16 %v5641
        %v5687 = vunpack.c.h.b16 %v5641
        %v5688 = vunpack.c.l.b16 %v5642
        %v5689 = vunpack.c.h.b16 %v5642
        %v5690 = vunpack.c.l.b16 %v5643
        %v5691 = vunpack.c.h.b16 %v5643
        %v5692 = vunpack.c.l.b16 %v5644
        %v5693 = vunpack.c.h.b16 %v5644
        %v5694 = vunpack.c.l.b16 %v5645
        %v5695 = vunpack.c.h.b16 %v5645
        %v5696 = vunpack.c.l.b16 %v5646
        %v5697 = vunpack.c.h.b16 %v5646
        %v5698 = vunpack.c.l.b16 %v5647
        %v5699 = vunpack.c.h.b16 %v5647
        %v5700 = vunpack.c.l.b16 %v5648
        %v5701 = vunpack.c.h.b16 %v5648
        %v5702 = vunpack.c.l.b16 %v5649
        %v5703 = vunpack.c.h.b16 %v5649
        %v5704 = vunpack.c.l.b16 %v5650
        %v5705 = vunpack.c.h.b16 %v5650
        %v5706 = vunpack.c.l.b16 %v5651
        %v5707 = vunpack.c.h.b16 %v5651
        %v5708 = vunpack.c.l.b16 %v5652
        %v5709 = vunpack.c.h.b16 %v5652
        %v5710 = vunpack.c.l.b16 %v5653
        %v5711 = vunpack.c.h.b16 %v5653
        %v5712 = vunpack.c.l.b16 %v5654
        %v5713 = vunpack.c.h.b16 %v5654
        %v5714 = vunpack.c.l.b16 %v5655
        %v5715 = vunpack.c.h.b16 %v5655
        %v5716 = vpack.c.b16 %v5686, %v5684
        %v5717 = vpack.c.b16 %v5687, %v5685
        %v5718 = vpack.c.b16 %v5690, %v5688
        %v5719 = vpack.c.b16 %v5691, %v5689
        %v5720 = vpack.c.b16 %v5694, %v5692
        %v5721 = vpack.c.b16 %v5695, %v5693
        %v5722 = vpack.c.b16 %v5698, %v5696
        %v5723 = vpack.c.b16 %v5699, %v5697
        %v5724 = vpack.c.b16 %v5702, %v5700
        %v5725 = vpack.c.b16 %v5703, %v5701
        %v5726 = vpack.c.b16 %v5706, %v5704
        %v5727 = vpack.c.b16 %v5707, %v5705
        %v5728 = vpack.c.b16 %v5710, %v5708
        %v5729 = vpack.c.b16 %v5711, %v5709
        %v5730 = vpack.c.b16 %v5714, %v5712
        %v5731 = vpack.c.b16 %v5715, %v5713
        %5748 = vmatprep.subr.bf16.mxu0 %v5717
        %5749 = vmatpush1.bf16.msra.mxu0 %v5716
        %5750 = vmatprep.subr.bf16.mxu0 %v5719
        %5751 = vmatpush1.bf16.msra.mxu0 %v5718
        %5752 = vmatprep.subr.bf16.mxu0 %v5721
        %5753 = vmatpush1.bf16.msra.mxu0 %v5720
        %5754 = vmatprep.subr.bf16.mxu0 %v5723
        %5755 = vmatpush1.bf16.msra.mxu0 %v5722
        %5756 = vmatprep.subr.bf16.mxu0 %v5725
        %5757 = vmatpush1.bf16.msra.mxu0 %v5724
        %5758 = vmatprep.subr.bf16.mxu0 %v5727
        %5759 = vmatpush1.bf16.msra.mxu0 %v5726
        %5760 = vmatprep.subr.bf16.mxu0 %v5729
        %5761 = vmatpush1.bf16.msra.mxu0 %v5728
        %5762 = vmatprep.subr.bf16.mxu0 %v5731
        %5763 = vmatpush1.bf16.msra.mxu0 %v5730
        %5764 = vmatprep.subr.bf16.mxu0 0
        %5765 = vmatpush1.bf16.msra.mxu0 0
        %5766 = vmatprep.subr.bf16.mxu0 0
        %5767 = vmatpush1.bf16.msra.mxu0 0
        %5768 = vmatprep.subr.bf16.mxu0 0
        %5769 = vmatpush1.bf16.msra.mxu0 0
        %5770 = vmatprep.subr.bf16.mxu0 0
        %5771 = vmatpush1.bf16.msra.mxu0 0
        %5772 = vmatprep.subr.bf16.mxu0 0
        %5773 = vmatpush1.bf16.msra.mxu0 0
        %5774 = vmatprep.subr.bf16.mxu0 0
        %5775 = vmatpush1.bf16.msra.mxu0 0
        %5776 = vmatprep.subr.bf16.mxu0 0
        %5777 = vmatpush1.bf16.msra.mxu0 0
        %5778 = vmatprep.subr.bf16.mxu0 0
        %5779 = vmatpush1.bf16.msra.mxu0 0
        %5780 = vmatprep.mubr.bf16.mxu0 0
        %5781 = vmatmul.mubr.bf16.gmra.mrb[0].mxu0 %v5632
        %v5782 = vpop.f32.mrb[0].mxu0
        %v5783 = vadd.f32 %v5661, %v5782
        %v5784 = vpop.f32.mrb[0].mxu0
        %v5785 = vadd.f32 %v5665, %v5784
        %v5786 = vpop.f32.mrb[0].mxu0
        %v5787 = vadd.f32 %v5661, %v5786
        %v5788 = vpop.f32.mrb[0].mxu0
        %v5789 = vadd.f32 %v5665, %v5788
        %5790 = vmatprep.mubr.bf16.mxu0 0
        %5791 = vmatmul.mubr.bf16.gmra.mrb[0].mxu0 %v5633
        %v5792 = vpop.f32.mrb[0].mxu0
        %v5793 = vadd.f32 %v5661, %v5792
        %v5794 = vpop.f32.mrb[0].mxu0
        %v5795 = vadd.f32 %v5665, %v5794
        %v5796 = vpop.f32.mrb[0].mxu0
        %v5797 = vadd.f32 %v5661, %v5796
        %v5798 = vpop.f32.mrb[0].mxu0
        %v5799 = vadd.f32 %v5665, %v5798
        %5800 = vmatprep.mubr.bf16.mxu0 0
        %5801 = vmatmul.mubr.bf16.gmra.mrb[0].mxu0 %v5634
        %v5802 = vpop.f32.mrb[0].mxu0
        %v5803 = vadd.f32 %v5661, %v5802
        %v5804 = vpop.f32.mrb[0].mxu0
        %v5805 = vadd.f32 %v5665, %v5804
        %v5806 = vpop.f32.mrb[0].mxu0
        %v5807 = vadd.f32 %v5661, %v5806
        %v5808 = vpop.f32.mrb[0].mxu0
        %v5809 = vadd.f32 %v5665, %v5808
        %5810 = vmatprep.mubr.bf16.mxu0 0
        %5811 = vmatmul.mubr.bf16.gmra.mrb[0].mxu0 %v5635
        %v5812 = vpop.f32.mrb[0].mxu0
        %v5813 = vadd.f32 %v5661, %v5812
        %v5814 = vpop.f32.mrb[0].mxu0
        %v5815 = vadd.f32 %v5665, %v5814
        %v5816 = vpop.f32.mrb[0].mxu0
        %v5817 = vadd.f32 %v5661, %v5816
        %v5818 = vpop.f32.mrb[0].mxu0
        %v5819 = vadd.f32 %v5665, %v5818
        %5820 = vmatprep.mubr.bf16.mxu0 0
        %5821 = vmatmul.mubr.bf16.gmra.mrb[0].mxu0 %v5636
        %v5822 = vpop.f32.mrb[0].mxu0
        %v5823 = vadd.f32 %v5661, %v5822
        %v5824 = vpop.f32.mrb[0].mxu0
        %v5825 = vadd.f32 %v5665, %v5824
        %v5826 = vpop.f32.mrb[0].mxu0
        %v5827 = vadd.f32 %v5661, %v5826
        %v5828 = vpop.f32.mrb[0].mxu0
        %v5829 = vadd.f32 %v5665, %v5828
        %5830 = vmatprep.mubr.bf16.mxu0 0
        %5831 = vmatmul.mubr.bf16.gmra.mrb[0].mxu0 %v5637
        %v5832 = vpop.f32.mrb[0].mxu0
        %v5833 = vadd.f32 %v5661, %v5832
        %v5834 = vpop.f32.mrb[0].mxu0
        %v5835 = vadd.f32 %v5665, %v5834
        %v5836 = vpop.f32.mrb[0].mxu0
        %v5837 = vadd.f32 %v5661, %v5836
        %v5838 = vpop.f32.mrb[0].mxu0
        %v5839 = vadd.f32 %v5665, %v5838
        %5840 = vmatprep.mubr.bf16.mxu0 0
        %5841 = vmatmul.mubr.bf16.gmra.mrb[0].mxu0 %v5638
        %v5842 = vpop.f32.mrb[0].mxu0
        %v5843 = vadd.f32 %v5661, %v5842
        %v5844 = vpop.f32.mrb[0].mxu0
        %v5845 = vadd.f32 %v5665, %v5844
        %v5846 = vpop.f32.mrb[0].mxu0
        %v5847 = vadd.f32 %v5661, %v5846
        %v5848 = vpop.f32.mrb[0].mxu0
        %v5849 = vadd.f32 %v5665, %v5848
        %5850 = vmatprep.mubr.bf16.mxu0 0
        %5851 = vmatmul.mubr.bf16.gmra.mrb[0].mxu0 %v5639
        %v5852 = vpop.f32.mrb[0].mxu0
        %v5853 = vadd.f32 %v5661, %v5852
        %v5854 = vpop.f32.mrb[0].mxu0
        %v5855 = vadd.f32 %v5665, %v5854
        %v5856 = vpop.f32.mrb[0].mxu0
        %v5857 = vadd.f32 %v5661, %v5856
        %v5858 = vpop.f32.mrb[0].mxu0
        %v5859 = vadd.f32 %v5665, %v5858
        %5860 = vdwg.mxu0
        %v5861 = vmul.f32 %v5783, %v5783
        %v5862 = vmul.f32 %v5785, %v5785
        %v5863 = vmul.f32 %v5787, %v5787
        %v5864 = vmul.f32 %v5789, %v5789
        %v5865 = vmul.f32 %v5793, %v5793
        %v5866 = vmul.f32 %v5795, %v5795
        %v5867 = vmul.f32 %v5797, %v5797
        %v5868 = vmul.f32 %v5799, %v5799
        %v5869 = vmul.f32 %v5803, %v5803
        %v5870 = vmul.f32 %v5805, %v5805
        %v5871 = vmul.f32 %v5807, %v5807
        %v5872 = vmul.f32 %v5809, %v5809
        %v5873 = vmul.f32 %v5813, %v5813
        %v5874 = vmul.f32 %v5815, %v5815
        %v5875 = vmul.f32 %v5817, %v5817
        %v5876 = vmul.f32 %v5819, %v5819
        %v5877 = vmul.f32 %v5823, %v5823
        %v5878 = vmul.f32 %v5825, %v5825
        %v5879 = vmul.f32 %v5827, %v5827
        %v5880 = vmul.f32 %v5829, %v5829
        %v5881 = vmul.f32 %v5833, %v5833
        %v5882 = vmul.f32 %v5835, %v5835
        %v5883 = vmul.f32 %v5837, %v5837
        %v5884 = vmul.f32 %v5839, %v5839
        %v5885 = vmul.f32 %v5843, %v5843
        %v5886 = vmul.f32 %v5845, %v5845
        %v5887 = vmul.f32 %v5847, %v5847
        %v5888 = vmul.f32 %v5849, %v5849
        %v5889 = vmul.f32 %v5853, %v5853
        %v5890 = vmul.f32 %v5855, %v5855
        %v5891 = vmul.f32 %v5857, %v5857
        %v5892 = vmul.f32 %v5859, %v5859
        %v5893 = vmul.f32 %v5783, %v5861
        %v5894 = vmul.f32 %v5785, %v5862
        %v5895 = vmul.f32 %v5787, %v5863
        %v5896 = vmul.f32 %v5789, %v5864
        %v5897 = vmul.f32 %v5793, %v5865
        %v5898 = vmul.f32 %v5795, %v5866
        %v5899 = vmul.f32 %v5797, %v5867
        %v5900 = vmul.f32 %v5799, %v5868
        %v5901 = vmul.f32 %v5803, %v5869
        %v5902 = vmul.f32 %v5805, %v5870
        %v5903 = vmul.f32 %v5807, %v5871
        %v5904 = vmul.f32 %v5809, %v5872
        %v5905 = vmul.f32 %v5813, %v5873
        %v5906 = vmul.f32 %v5815, %v5874
        %v5907 = vmul.f32 %v5817, %v5875
        %v5908 = vmul.f32 %v5819, %v5876
        %v5909 = vmul.f32 %v5823, %v5877
        %v5910 = vmul.f32 %v5825, %v5878
        %v5911 = vmul.f32 %v5827, %v5879
        %v5912 = vmul.f32 %v5829, %v5880
        %v5913 = vmul.f32 %v5833, %v5881
        %v5914 = vmul.f32 %v5835, %v5882
        %v5915 = vmul.f32 %v5837, %v5883
        %v5916 = vmul.f32 %v5839, %v5884
        %v5917 = vmul.f32 %v5843, %v5885
        %v5918 = vmul.f32 %v5845, %v5886
        %v5919 = vmul.f32 %v5847, %v5887
        %v5920 = vmul.f32 %v5849, %v5888
        %v5921 = vmul.f32 %v5853, %v5889
        %v5922 = vmul.f32 %v5855, %v5890
        %v5923 = vmul.f32 %v5857, %v5891
        %v5924 = vmul.f32 %v5859, %v5892
        %v5925 = vmul.f32 %v5893, 0.044715
        %v5926 = vmul.f32 %v5894, 0.044715
        %v5927 = vmul.f32 %v5895, 0.044715
        %v5928 = vmul.f32 %v5896, 0.044715
        %v5929 = vmul.f32 %v5897, 0.044715
        %v5930 = vmul.f32 %v5898, 0.044715
        %v5931 = vmul.f32 %v5899, 0.044715
        %v5932 = vmul.f32 %v5900, 0.044715
        %v5933 = vmul.f32 %v5901, 0.044715
        %v5934 = vmul.f32 %v5902, 0.044715
        %v5935 = vmul.f32 %v5903, 0.044715
        %v5936 = vmul.f32 %v5904, 0.044715
        %v5937 = vmul.f32 %v5905, 0.044715
        %v5938 = vmul.f32 %v5906, 0.044715
        %v5939 = vmul.f32 %v5907, 0.044715
        %v5940 = vmul.f32 %v5908, 0.044715
        %v5941 = vmul.f32 %v5909, 0.044715
        %v5942 = vmul.f32 %v5910, 0.044715
        %v5943 = vmul.f32 %v5911, 0.044715
        %v5944 = vmul.f32 %v5912, 0.044715
        %v5945 = vmul.f32 %v5913, 0.044715
        %v5946 = vmul.f32 %v5914, 0.044715
        %v5947 = vmul.f32 %v5915, 0.044715
        %v5948 = vmul.f32 %v5916, 0.044715
        %v5949 = vmul.f32 %v5917, 0.044715
        %v5950 = vmul.f32 %v5918, 0.044715
        %v5951 = vmul.f32 %v5919, 0.044715
        %v5952 = vmul.f32 %v5920, 0.044715
        %v5953 = vmul.f32 %v5921, 0.044715
        %v5954 = vmul.f32 %v5922, 0.044715
        %v5955 = vmul.f32 %v5923, 0.044715
        %v5956 = vmul.f32 %v5924, 0.044715
        %v5957 = vadd.f32 %v5783, %v5925
        %v5958 = vadd.f32 %v5785, %v5926
        %v5959 = vadd.f32 %v5787, %v5927
        %v5960 = vadd.f32 %v5789, %v5928
        %v5961 = vadd.f32 %v5793, %v5929
        %v5962 = vadd.f32 %v5795, %v5930
        %v5963 = vadd.f32 %v5797, %v5931
        %v5964 = vadd.f32 %v5799, %v5932
        %v5965 = vadd.f32 %v5803, %v5933
        %v5966 = vadd.f32 %v5805, %v5934
        %v5967 = vadd.f32 %v5807, %v5935
        %v5968 = vadd.f32 %v5809, %v5936
        %v5969 = vadd.f32 %v5813, %v5937
        %v5970 = vadd.f32 %v5815, %v5938
        %v5971 = vadd.f32 %v5817, %v5939
        %v5972 = vadd.f32 %v5819, %v5940
        %v5973 = vadd.f32 %v5823, %v5941
        %v5974 = vadd.f32 %v5825, %v5942
        %v5975 = vadd.f32 %v5827, %v5943
        %v5976 = vadd.f32 %v5829, %v5944
        %v5977 = vadd.f32 %v5833, %v5945
        %v5978 = vadd.f32 %v5835, %v5946
        %v5979 = vadd.f32 %v5837, %v5947
        %v5980 = vadd.f32 %v5839, %v5948
        %v5981 = vadd.f32 %v5843, %v5949
        %v5982 = vadd.f32 %v5845, %v5950
        %v5983 = vadd.f32 %v5847, %v5951
        %v5984 = vadd.f32 %v5849, %v5952
        %v5985 = vadd.f32 %v5853, %v5953
        %v5986 = vadd.f32 %v5855, %v5954
        %v5987 = vadd.f32 %v5857, %v5955
        %v5988 = vadd.f32 %v5859, %v5956
        %v5989 = vmul.f32 %v5957, 0.7978846
        %v5990 = vmul.f32 %v5958, 0.7978846
        %v5991 = vmul.f32 %v5959, 0.7978846
        %v5992 = vmul.f32 %v5960, 0.7978846
        %v5993 = vmul.f32 %v5961, 0.7978846
        %v5994 = vmul.f32 %v5962, 0.7978846
        %v5995 = vmul.f32 %v5963, 0.7978846
        %v5996 = vmul.f32 %v5964, 0.7978846
        %v5997 = vmul.f32 %v5965, 0.7978846
        %v5998 = vmul.f32 %v5966, 0.7978846
        %v5999 = vmul.f32 %v5967, 0.7978846
        %v6000 = vmul.f32 %v5968, 0.7978846
        %v6001 = vmul.f32 %v5969, 0.7978846
        %v6002 = vmul.f32 %v5970, 0.7978846
        %v6003 = vmul.f32 %v5971, 0.7978846
        %v6004 = vmul.f32 %v5972, 0.7978846
        %v6005 = vmul.f32 %v5973, 0.7978846
        %v6006 = vmul.f32 %v5974, 0.7978846
        %v6007 = vmul.f32 %v5975, 0.7978846
        %v6008 = vmul.f32 %v5976, 0.7978846
        %v6009 = vmul.f32 %v5977, 0.7978846
        %v6010 = vmul.f32 %v5978, 0.7978846
        %v6011 = vmul.f32 %v5979, 0.7978846
        %v6012 = vmul.f32 %v5980, 0.7978846
        %v6013 = vmul.f32 %v5981, 0.7978846
        %v6014 = vmul.f32 %v5982, 0.7978846
        %v6015 = vmul.f32 %v5983, 0.7978846
        %v6016 = vmul.f32 %v5984, 0.7978846
        %v6017 = vmul.f32 %v5985, 0.7978846
        %v6018 = vmul.f32 %v5986, 0.7978846
        %v6019 = vmul.f32 %v5987, 0.7978846
        %v6020 = vmul.f32 %v5988, 0.7978846
        %v6021 = vtanh.pop %v5989
        %v6022 = vtanh.pop %v5990
        %v6023 = vtanh.pop %v5991
        %v6024 = vtanh.pop %v5992
        %v6025 = vtanh.pop %v5993
        %v6026 = vtanh.pop %v5994
        %v6027 = vtanh.pop %v5995
        %v6028 = vtanh.pop %v5996
        %v6029 = vtanh.pop %v5997
        %v6030 = vtanh.pop %v5998
        %v6031 = vtanh.pop %v5999
        %v6032 = vtanh.pop %v6000
        %v6033 = vtanh.pop %v6001
        %v6034 = vtanh.pop %v6002
        %v6035 = vtanh.pop %v6003
        %v6036 = vtanh.pop %v6004
        %v6037 = vtanh.pop %v6005
        %v6038 = vtanh.pop %v6006
        %v6039 = vtanh.pop %v6007
        %v6040 = vtanh.pop %v6008
        %v6041 = vtanh.pop %v6009
        %v6042 = vtanh.pop %v6010
        %v6043 = vtanh.pop %v6011
        %v6044 = vtanh.pop %v6012
        %v6045 = vtanh.pop %v6013
        %v6046 = vtanh.pop %v6014
        %v6047 = vtanh.pop %v6015
        %v6048 = vtanh.pop %v6016
        %v6049 = vtanh.pop %v6017
        %v6050 = vtanh.pop %v6018
        %v6051 = vtanh.pop %v6019
        %v6052 = vtanh.pop %v6020
        %v6053 = vadd.f32 %v6021, 1.0
        %v6054 = vadd.f32 %v6022, 1.0
        %v6055 = vadd.f32 %v6023, 1.0
        %v6056 = vadd.f32 %v6024, 1.0
        %v6057 = vadd.f32 %v6025, 1.0
        %v6058 = vadd.f32 %v6026, 1.0
        %v6059 = vadd.f32 %v6027, 1.0
        %v6060 = vadd.f32 %v6028, 1.0
        %v6061 = vadd.f32 %v6029, 1.0
        %v6062 = vadd.f32 %v6030, 1.0
        %v6063 = vadd.f32 %v6031, 1.0
        %v6064 = vadd.f32 %v6032, 1.0
        %v6065 = vadd.f32 %v6033, 1.0
        %v6066 = vadd.f32 %v6034, 1.0
        %v6067 = vadd.f32 %v6035, 1.0
        %v6068 = vadd.f32 %v6036, 1.0
        %v6069 = vadd.f32 %v6037, 1.0
        %v6070 = vadd.f32 %v6038, 1.0
        %v6071 = vadd.f32 %v6039, 1.0
        %v6072 = vadd.f32 %v6040, 1.0
        %v6073 = vadd.f32 %v6041, 1.0
        %v6074 = vadd.f32 %v6042, 1.0
        %v6075 = vadd.f32 %v6043, 1.0
        %v6076 = vadd.f32 %v6044, 1.0
        %v6077 = vadd.f32 %v6045, 1.0
        %v6078 = vadd.f32 %v6046, 1.0
        %v6079 = vadd.f32 %v6047, 1.0
        %v6080 = vadd.f32 %v6048, 1.0
        %v6081 = vadd.f32 %v6049, 1.0
        %v6082 = vadd.f32 %v6050, 1.0
        %v6083 = vadd.f32 %v6051, 1.0
        %v6084 = vadd.f32 %v6052, 1.0
        %v6085 = vmul.f32 %v6053, 0.5
        %v6086 = vmul.f32 %v6054, 0.5
        %v6087 = vmul.f32 %v6055, 0.5
        %v6088 = vmul.f32 %v6056, 0.5
        %v6089 = vmul.f32 %v6057, 0.5
        %v6090 = vmul.f32 %v6058, 0.5
        %v6091 = vmul.f32 %v6059, 0.5
        %v6092 = vmul.f32 %v6060, 0.5
        %v6093 = vmul.f32 %v6061, 0.5
        %v6094 = vmul.f32 %v6062, 0.5
        %v6095 = vmul.f32 %v6063, 0.5
        %v6096 = vmul.f32 %v6064, 0.5
        %v6097 = vmul.f32 %v6065, 0.5
        %v6098 = vmul.f32 %v6066, 0.5
        %v6099 = vmul.f32 %v6067, 0.5
        %v6100 = vmul.f32 %v6068, 0.5
        %v6101 = vmul.f32 %v6069, 0.5
        %v6102 = vmul.f32 %v6070, 0.5
        %v6103 = vmul.f32 %v6071, 0.5
        %v6104 = vmul.f32 %v6072, 0.5
        %v6105 = vmul.f32 %v6073, 0.5
        %v6106 = vmul.f32 %v6074, 0.5
        %v6107 = vmul.f32 %v6075, 0.5
        %v6108 = vmul.f32 %v6076, 0.5
        %v6109 = vmul.f32 %v6077, 0.5
        %v6110 = vmul.f32 %v6078, 0.5
        %v6111 = vmul.f32 %v6079, 0.5
        %v6112 = vmul.f32 %v6080, 0.5
        %v6113 = vmul.f32 %v6081, 0.5
        %v6114 = vmul.f32 %v6082, 0.5
        %v6115 = vmul.f32 %v6083, 0.5
        %v6116 = vmul.f32 %v6084, 0.5
        %v6117 = vmul.f32 %v5783, %v6085
        %v6118 = vmul.f32 %v5785, %v6086
        %v6119 = vmul.f32 %v5787, %v6087
        %v6120 = vmul.f32 %v5789, %v6088
        %v6121 = vmul.f32 %v5793, %v6089
        %v6122 = vmul.f32 %v5795, %v6090
        %v6123 = vmul.f32 %v5797, %v6091
        %v6124 = vmul.f32 %v5799, %v6092
        %v6125 = vmul.f32 %v5803, %v6093
        %v6126 = vmul.f32 %v5805, %v6094
        %v6127 = vmul.f32 %v5807, %v6095
        %v6128 = vmul.f32 %v5809, %v6096
        %v6129 = vmul.f32 %v5813, %v6097
        %v6130 = vmul.f32 %v5815, %v6098
        %v6131 = vmul.f32 %v5817, %v6099
        %v6132 = vmul.f32 %v5819, %v6100
        %v6133 = vmul.f32 %v5823, %v6101
        %v6134 = vmul.f32 %v5825, %v6102
        %v6135 = vmul.f32 %v5827, %v6103
        %v6136 = vmul.f32 %v5829, %v6104
        %v6137 = vmul.f32 %v5833, %v6105
        %v6138 = vmul.f32 %v5835, %v6106
        %v6139 = vmul.f32 %v5837, %v6107
        %v6140 = vmul.f32 %v5839, %v6108
        %v6141 = vmul.f32 %v5843, %v6109
        %v6142 = vmul.f32 %v5845, %v6110
        %v6143 = vmul.f32 %v5847, %v6111
        %v6144 = vmul.f32 %v5849, %v6112
        %v6145 = vmul.f32 %v5853, %v6113
        %v6146 = vmul.f32 %v5855, %v6114
        %v6147 = vmul.f32 %v5857, %v6115
        %v6148 = vmul.f32 %v5859, %v6116
        %v6149 = vpack.c.bf16 %v6119, %v6117
        %v6150 = vpack.c.bf16 %v6120, %v6118
        %v6151 = vpack.c.bf16 %v6123, %v6121
        %v6152 = vpack.c.bf16 %v6124, %v6122
        %v6153 = vpack.c.bf16 %v6127, %v6125
        %v6154 = vpack.c.bf16 %v6128, %v6126
        %v6155 = vpack.c.bf16 %v6131, %v6129
        %v6156 = vpack.c.bf16 %v6132, %v6130
        %v6157 = vpack.c.bf16 %v6135, %v6133
        %v6158 = vpack.c.bf16 %v6136, %v6134
        %v6159 = vpack.c.bf16 %v6139, %v6137
        %v6160 = vpack.c.bf16 %v6140, %v6138
        %v6161 = vpack.c.bf16 %v6143, %v6141
        %v6162 = vpack.c.bf16 %v6144, %v6142
        %v6163 = vpack.c.bf16 %v6147, %v6145
        %v6164 = vpack.c.bf16 %v6148, %v6146
        %v6165 = vld [vmem:[#allocation20] sm:$0xf]
        %v6166 = vld [vmem:[#allocation20 + $0x4] sm:$0xf]
        %v6167 = vld [vmem:[#allocation20 + $0x8] sm:$0xf]
        %v6168 = vld [vmem:[#allocation20 + $0xc] sm:$0xf]
        %v6169 = vld [vmem:[#allocation20 + $0x10] sm:$0xf]
        %v6170 = vld [vmem:[#allocation20 + $0x14] sm:$0xf]
        %v6171 = vld [vmem:[#allocation20 + $0x18] sm:$0xf]
        %v6172 = vld [vmem:[#allocation20 + $0x1c] sm:$0xf]
        %v6173 = vld [vmem:[#allocation20 + $0x20] sm:$0xf]
        %v6174 = vld [vmem:[#allocation20 + $0x24] sm:$0xf]
        %v6175 = vld [vmem:[#allocation20 + $0x28] sm:$0xf]
        %v6176 = vld [vmem:[#allocation20 + $0x2c] sm:$0xf]
        %v6177 = vld [vmem:[#allocation20 + $0x30] sm:$0xf]
        %v6178 = vld [vmem:[#allocation20 + $0x34] sm:$0xf]
        %v6179 = vld [vmem:[#allocation20 + $0x38] sm:$0xf]
        %v6180 = vld [vmem:[#allocation20 + $0x3c] sm:$0xf]
        %v6181 = vld [vmem:[#allocation20 + $0x40] sm:$0xf]
        %v6182 = vld [vmem:[#allocation20 + $0x44] sm:$0xf]
        %v6183 = vld [vmem:[#allocation20 + $0x48] sm:$0xf]
        %v6184 = vld [vmem:[#allocation20 + $0x4c] sm:$0xf]
        %v6185 = vld [vmem:[#allocation20 + $0x50] sm:$0xf]
        %v6186 = vld [vmem:[#allocation20 + $0x54] sm:$0xf]
        %v6187 = vld [vmem:[#allocation20 + $0x58] sm:$0xf]
        %v6188 = vld [vmem:[#allocation20 + $0x5c] sm:$0xf]
        %v6189 = vld [vmem:[#allocation20 + $0x60] sm:$0xf]
        %v6190 = vld [vmem:[#allocation20 + $0x64] sm:$0xf]
        %v6191 = vld [vmem:[#allocation20 + $0x68] sm:$0xf]
        %v6192 = vld [vmem:[#allocation20 + $0x6c] sm:$0xf]
        %v6193 = vld [vmem:[#allocation20 + $0x70] sm:$0xf]
        %v6194 = vld [vmem:[#allocation20 + $0x74] sm:$0xf]
        %v6195 = vld [vmem:[#allocation20 + $0x78] sm:$0xf]
        %v6196 = vld [vmem:[#allocation20 + $0x7c] sm:$0xf]
        %v6197 = vld [vmem:[#allocation21] sm:$0x1]
        %v6199 = vlaneseq
        %v6200 = vshrl.u32 %v6199, 7
        %v6201 = vsub.s32 0, %v6200
        %v6202 = vrot.slane %v6197, %v6201
        %v6236 = vunpack.c.l.b16 %v6165
        %v6237 = vunpack.c.l.b16 %v6166
        %v6238 = vunpack.c.l.b16 %v6167
        %v6239 = vunpack.c.l.b16 %v6168
        %v6240 = vunpack.c.l.b16 %v6169
        %v6241 = vunpack.c.l.b16 %v6170
        %v6242 = vunpack.c.l.b16 %v6171
        %v6243 = vunpack.c.l.b16 %v6172
        %v6244 = vunpack.c.l.b16 %v6173
        %v6245 = vunpack.c.l.b16 %v6174
        %v6246 = vunpack.c.l.b16 %v6175
        %v6247 = vunpack.c.l.b16 %v6176
        %v6248 = vunpack.c.l.b16 %v6177
        %v6249 = vunpack.c.l.b16 %v6178
        %v6250 = vunpack.c.l.b16 %v6179
        %v6251 = vunpack.c.l.b16 %v6180
        %v6252 = vunpack.c.l.b16 %v6181
        %v6253 = vunpack.c.l.b16 %v6182
        %v6254 = vunpack.c.l.b16 %v6183
        %v6255 = vunpack.c.l.b16 %v6184
        %v6256 = vunpack.c.l.b16 %v6185
        %v6257 = vunpack.c.l.b16 %v6186
        %v6258 = vunpack.c.l.b16 %v6187
        %v6259 = vunpack.c.l.b16 %v6188
        %v6260 = vunpack.c.l.b16 %v6189
        %v6261 = vunpack.c.l.b16 %v6190
        %v6262 = vunpack.c.l.b16 %v6191
        %v6263 = vunpack.c.l.b16 %v6192
        %v6264 = vunpack.c.l.b16 %v6193
        %v6265 = vunpack.c.l.b16 %v6194
        %v6266 = vunpack.c.l.b16 %v6195
        %v6267 = vunpack.c.l.b16 %v6196
        %v6268 = vpack.c.b16 %v6237, %v6236
        %v6269 = vpack.c.b16 %v6239, %v6238
        %v6270 = vpack.c.b16 %v6241, %v6240
        %v6271 = vpack.c.b16 %v6243, %v6242
        %v6272 = vpack.c.b16 %v6245, %v6244
        %v6273 = vpack.c.b16 %v6247, %v6246
        %v6274 = vpack.c.b16 %v6249, %v6248
        %v6275 = vpack.c.b16 %v6251, %v6250
        %v6276 = vpack.c.b16 %v6253, %v6252
        %v6277 = vpack.c.b16 %v6255, %v6254
        %v6278 = vpack.c.b16 %v6257, %v6256
        %v6279 = vpack.c.b16 %v6259, %v6258
        %v6280 = vpack.c.b16 %v6261, %v6260
        %v6281 = vpack.c.b16 %v6263, %v6262
        %v6282 = vpack.c.b16 %v6265, %v6264
        %v6283 = vpack.c.b16 %v6267, %v6266
        %6300 = vmatprep.subr.bf16.mxu0 0
        %6301 = vmatpush1.bf16.msra.mxu0 %v6268
        %6302 = vmatprep.subr.bf16.mxu0 0
        %6303 = vmatpush1.bf16.msra.mxu0 %v6269
        %6304 = vmatprep.subr.bf16.mxu0 0
        %6305 = vmatpush1.bf16.msra.mxu0 %v6270
        %6306 = vmatprep.subr.bf16.mxu0 0
        %6307 = vmatpush1.bf16.msra.mxu0 %v6271
        %6308 = vmatprep.subr.bf16.mxu0 0
        %6309 = vmatpush1.bf16.msra.mxu0 %v6272
        %6310 = vmatprep.subr.bf16.mxu0 0
        %6311 = vmatpush1.bf16.msra.mxu0 %v6273
        %6312 = vmatprep.subr.bf16.mxu0 0
        %6313 = vmatpush1.bf16.msra.mxu0 %v6274
        %6314 = vmatprep.subr.bf16.mxu0 0
        %6315 = vmatpush1.bf16.msra.mxu0 %v6275
        %6316 = vmatprep.subr.bf16.mxu0 0
        %6317 = vmatpush1.bf16.msra.mxu0 %v6276
        %6318 = vmatprep.subr.bf16.mxu0 0
        %6319 = vmatpush1.bf16.msra.mxu0 %v6277
        %6320 = vmatprep.subr.bf16.mxu0 0
        %6321 = vmatpush1.bf16.msra.mxu0 %v6278
        %6322 = vmatprep.subr.bf16.mxu0 0
        %6323 = vmatpush1.bf16.msra.mxu0 %v6279
        %6324 = vmatprep.subr.bf16.mxu0 0
        %6325 = vmatpush1.bf16.msra.mxu0 %v6280
        %6326 = vmatprep.subr.bf16.mxu0 0
        %6327 = vmatpush1.bf16.msra.mxu0 %v6281
        %6328 = vmatprep.subr.bf16.mxu0 0
        %6329 = vmatpush1.bf16.msra.mxu0 %v6282
        %6330 = vmatprep.subr.bf16.mxu0 0
        %6331 = vmatpush1.bf16.msra.mxu0 %v6283
        %6332 = vmatprep.mubr.bf16.mxu0 %v6150
        %6333 = vmatmul.mubr.bf16.gmra.mrb[0].mxu0 %v6149
        %v6334 = vpop.f32.mrb[0].mxu0
        %v6335 = vadd.f32 %v6202, %v6334
        %v6336 = vpop.f32.mrb[0].mxu0
        %v6337 = vpop.f32.mrb[0].mxu0
        %v6338 = vadd.f32 %v6202, %v6337
        %v6339 = vpop.f32.mrb[0].mxu0
        %6340 = vmatprep.mubr.bf16.mxu0 %v6152
        %6341 = vmatmul.mubr.bf16.gmra.mrb[0].mxu0 %v6151
        %v6342 = vpop.f32.mrb[0].mxu0
        %v6343 = vadd.f32 %v6202, %v6342
        %v6344 = vpop.f32.mrb[0].mxu0
        %v6345 = vpop.f32.mrb[0].mxu0
        %v6346 = vadd.f32 %v6202, %v6345
        %v6347 = vpop.f32.mrb[0].mxu0
        %6348 = vmatprep.mubr.bf16.mxu0 %v6154
        %6349 = vmatmul.mubr.bf16.gmra.mrb[0].mxu0 %v6153
        %v6350 = vpop.f32.mrb[0].mxu0
        %v6351 = vadd.f32 %v6202, %v6350
        %v6352 = vpop.f32.mrb[0].mxu0
        %v6353 = vpop.f32.mrb[0].mxu0
        %v6354 = vadd.f32 %v6202, %v6353
        %v6355 = vpop.f32.mrb[0].mxu0
        %6356 = vmatprep.mubr.bf16.mxu0 %v6156
        %6357 = vmatmul.mubr.bf16.gmra.mrb[0].mxu0 %v6155
        %v6358 = vpop.f32.mrb[0].mxu0
        %v6359 = vadd.f32 %v6202, %v6358
        %v6360 = vpop.f32.mrb[0].mxu0
        %v6361 = vpop.f32.mrb[0].mxu0
        %v6362 = vadd.f32 %v6202, %v6361
        %v6363 = vpop.f32.mrb[0].mxu0
        %6364 = vmatprep.mubr.bf16.mxu0 %v6158
        %6365 = vmatmul.mubr.bf16.gmra.mrb[0].mxu0 %v6157
        %v6366 = vpop.f32.mrb[0].mxu0
        %v6367 = vadd.f32 %v6202, %v6366
        %v6368 = vpop.f32.mrb[0].mxu0
        %v6369 = vpop.f32.mrb[0].mxu0
        %v6370 = vadd.f32 %v6202, %v6369
        %v6371 = vpop.f32.mrb[0].mxu0
        %6372 = vmatprep.mubr.bf16.mxu0 %v6160
        %6373 = vmatmul.mubr.bf16.gmra.mrb[0].mxu0 %v6159
        %v6374 = vpop.f32.mrb[0].mxu0
        %v6375 = vadd.f32 %v6202, %v6374
        %v6376 = vpop.f32.mrb[0].mxu0
        %v6377 = vpop.f32.mrb[0].mxu0
        %v6378 = vadd.f32 %v6202, %v6377
        %v6379 = vpop.f32.mrb[0].mxu0
        %6380 = vmatprep.mubr.bf16.mxu0 %v6162
        %6381 = vmatmul.mubr.bf16.gmra.mrb[0].mxu0 %v6161
        %v6382 = vpop.f32.mrb[0].mxu0
        %v6383 = vadd.f32 %v6202, %v6382
        %v6384 = vpop.f32.mrb[0].mxu0
        %v6385 = vpop.f32.mrb[0].mxu0
        %v6386 = vadd.f32 %v6202, %v6385
        %v6387 = vpop.f32.mrb[0].mxu0
        %6388 = vmatprep.mubr.bf16.mxu0 %v6164
        %6389 = vmatmul.mubr.bf16.gmra.mrb[0].mxu0 %v6163
        %v6390 = vpop.f32.mrb[0].mxu0
        %v6391 = vadd.f32 %v6202, %v6390
        %v6392 = vpop.f32.mrb[0].mxu0
        %v6393 = vpop.f32.mrb[0].mxu0
        %v6394 = vadd.f32 %v6202, %v6393
        %v6395 = vpop.f32.mrb[0].mxu0
        %6396 = vdwg.mxu0
        %v6397 = vadd.f32 %v5616, %v6335
        %v6398 = vadd.f32 %v5617, %v6338
        %v6399 = vadd.f32 %v5618, %v6343
        %v6400 = vadd.f32 %v5619, %v6346
        %v6401 = vadd.f32 %v5620, %v6351
        %v6402 = vadd.f32 %v5621, %v6354
        %v6403 = vadd.f32 %v5622, %v6359
        %v6404 = vadd.f32 %v5623, %v6362
        %v6405 = vadd.f32 %v5624, %v6367
        %v6406 = vadd.f32 %v5625, %v6370
        %v6407 = vadd.f32 %v5626, %v6375
        %v6408 = vadd.f32 %v5627, %v6378
        %v6409 = vadd.f32 %v5628, %v6383
        %v6410 = vadd.f32 %v5629, %v6386
        %v6411 = vadd.f32 %v5630, %v6391
        %v6412 = vadd.f32 %v5631, %v6394
        %v6413 = vld [vmem:[#allocation23] sm:$0x1]
        %v6414 = vld [vmem:[#allocation24] sm:$0x1]
        %6415 = vadd.xlane.f32.xlu0 %v6397
        %v6416 = vpop.xlane.xlu0 %6415
        %6417 = vadd.xlane.f32.xlu0 %v6398
        %v6418 = vpop.xlane.xlu0 %6417
        %6419 = vadd.xlane.f32.xlu0 %v6399
        %v6420 = vpop.xlane.xlu0 %6419
        %6421 = vadd.xlane.f32.xlu0 %v6400
        %v6422 = vpop.xlane.xlu0 %6421
        %6423 = vadd.xlane.f32.xlu0 %v6401
        %v6424 = vpop.xlane.xlu0 %6423
        %6425 = vadd.xlane.f32.xlu0 %v6402
        %v6426 = vpop.xlane.xlu0 %6425
        %6427 = vadd.xlane.f32.xlu0 %v6403
        %v6428 = vpop.xlane.xlu0 %6427
        %6429 = vadd.xlane.f32.xlu0 %v6404
        %v6430 = vpop.xlane.xlu0 %6429
        %6431 = vadd.xlane.f32.xlu0 %v6405
        %v6432 = vpop.xlane.xlu0 %6431
        %6433 = vadd.xlane.f32.xlu0 %v6406
        %v6434 = vpop.xlane.xlu0 %6433
        %6435 = vadd.xlane.f32.xlu0 %v6407
        %v6436 = vpop.xlane.xlu0 %6435
        %6437 = vadd.xlane.f32.xlu0 %v6408
        %v6438 = vpop.xlane.xlu0 %6437
        %6439 = vadd.xlane.f32.xlu0 %v6409
        %v6440 = vpop.xlane.xlu0 %6439
        %6441 = vadd.xlane.f32.xlu0 %v6410
        %v6442 = vpop.xlane.xlu0 %6441
        %6443 = vadd.xlane.f32.xlu0 %v6411
        %v6444 = vpop.xlane.xlu0 %6443
        %6445 = vadd.xlane.f32.xlu0 %v6412
        %v6446 = vpop.xlane.xlu0 %6445
        %v6447 = vmul.f32 %v6416, %v5443
        %v6448 = vmul.f32 %v6418, %v5443
        %v6449 = vmul.f32 %v6420, %v5443
        %v6450 = vmul.f32 %v6422, %v5443
        %v6451 = vmul.f32 %v6424, %v5443
        %v6452 = vmul.f32 %v6426, %v5443
        %v6453 = vmul.f32 %v6428, %v5443
        %v6454 = vmul.f32 %v6430, %v5443
        %v6455 = vmul.f32 %v6432, %v5443
        %v6456 = vmul.f32 %v6434, %v5443
        %v6457 = vmul.f32 %v6436, %v5443
        %v6458 = vmul.f32 %v6438, %v5443
        %v6459 = vmul.f32 %v6440, %v5443
        %v6460 = vmul.f32 %v6442, %v5443
        %v6461 = vmul.f32 %v6444, %v5443
        %v6462 = vmul.f32 %v6446, %v5443
        %v6463 = vsub.f32 %v6397, %v6447
        %v6464 = vsub.f32 %v6398, %v6448
        %v6465 = vsub.f32 %v6399, %v6449
        %v6466 = vsub.f32 %v6400, %v6450
        %v6467 = vsub.f32 %v6401, %v6451
        %v6468 = vsub.f32 %v6402, %v6452
        %v6469 = vsub.f32 %v6403, %v6453
        %v6470 = vsub.f32 %v6404, %v6454
        %v6471 = vsub.f32 %v6405, %v6455
        %v6472 = vsub.f32 %v6406, %v6456
        %v6473 = vsub.f32 %v6407, %v6457
        %v6474 = vsub.f32 %v6408, %v6458
        %v6475 = vsub.f32 %v6409, %v6459
        %v6476 = vsub.f32 %v6410, %v6460
        %v6477 = vsub.f32 %v6411, %v6461
        %v6478 = vsub.f32 %v6412, %v6462
        %v6479 = vmul.f32 %v6463, %v6463
        %v6480 = vmul.f32 %v6464, %v6464
        %v6481 = vmul.f32 %v6465, %v6465
        %v6482 = vmul.f32 %v6466, %v6466
        %v6483 = vmul.f32 %v6467, %v6467
        %v6484 = vmul.f32 %v6468, %v6468
        %v6485 = vmul.f32 %v6469, %v6469
        %v6486 = vmul.f32 %v6470, %v6470
        %v6487 = vmul.f32 %v6471, %v6471
        %v6488 = vmul.f32 %v6472, %v6472
        %v6489 = vmul.f32 %v6473, %v6473
        %v6490 = vmul.f32 %v6474, %v6474
        %v6491 = vmul.f32 %v6475, %v6475
        %v6492 = vmul.f32 %v6476, %v6476
        %v6493 = vmul.f32 %v6477, %v6477
        %v6494 = vmul.f32 %v6478, %v6478
        %6495 = vadd.xlane.f32.xlu0 %v6479
        %v6496 = vpop.xlane.xlu0 %6495
        %6497 = vadd.xlane.f32.xlu0 %v6480
        %v6498 = vpop.xlane.xlu0 %6497
        %6499 = vadd.xlane.f32.xlu0 %v6481
        %v6500 = vpop.xlane.xlu0 %6499
        %6501 = vadd.xlane.f32.xlu0 %v6482
        %v6502 = vpop.xlane.xlu0 %6501
        %6503 = vadd.xlane.f32.xlu0 %v6483
        %v6504 = vpop.xlane.xlu0 %6503
        %6505 = vadd.xlane.f32.xlu0 %v6484
        %v6506 = vpop.xlane.xlu0 %6505
        %6507 = vadd.xlane.f32.xlu0 %v6485
        %v6508 = vpop.xlane.xlu0 %6507
        %6509 = vadd.xlane.f32.xlu0 %v6486
        %v6510 = vpop.xlane.xlu0 %6509
        %6511 = vadd.xlane.f32.xlu0 %v6487
        %v6512 = vpop.xlane.xlu0 %6511
        %6513 = vadd.xlane.f32.xlu0 %v6488
        %v6514 = vpop.xlane.xlu0 %6513
        %6515 = vadd.xlane.f32.xlu0 %v6489
        %v6516 = vpop.xlane.xlu0 %6515
        %6517 = vadd.xlane.f32.xlu0 %v6490
        %v6518 = vpop.xlane.xlu0 %6517
        %6519 = vadd.xlane.f32.xlu0 %v6491
        %v6520 = vpop.xlane.xlu0 %6519
        %6521 = vadd.xlane.f32.xlu0 %v6492
        %v6522 = vpop.xlane.xlu0 %6521
        %6523 = vadd.xlane.f32.xlu0 %v6493
        %v6524 = vpop.xlane.xlu0 %6523
        %6525 = vadd.xlane.f32.xlu0 %v6494
        %v6526 = vpop.xlane.xlu0 %6525
        %v6527 = vmul.f32 %v6496, %v5443
        %v6528 = vmul.f32 %v6498, %v5443
        %v6529 = vmul.f32 %v6500, %v5443
        %v6530 = vmul.f32 %v6502, %v5443
        %v6531 = vmul.f32 %v6504, %v5443
        %v6532 = vmul.f32 %v6506, %v5443
        %v6533 = vmul.f32 %v6508, %v5443
        %v6534 = vmul.f32 %v6510, %v5443
        %v6535 = vmul.f32 %v6512, %v5443
        %v6536 = vmul.f32 %v6514, %v5443
        %v6537 = vmul.f32 %v6516, %v5443
        %v6538 = vmul.f32 %v6518, %v5443
        %v6539 = vmul.f32 %v6520, %v5443
        %v6540 = vmul.f32 %v6522, %v5443
        %v6541 = vmul.f32 %v6524, %v5443
        %v6542 = vmul.f32 %v6526, %v5443
        %v6543 = vadd.f32 %v6527, 1e-05
        %v6544 = vadd.f32 %v6528, 1e-05
        %v6545 = vadd.f32 %v6529, 1e-05
        %v6546 = vadd.f32 %v6530, 1e-05
        %v6547 = vadd.f32 %v6531, 1e-05
        %v6548 = vadd.f32 %v6532, 1e-05
        %v6549 = vadd.f32 %v6533, 1e-05
        %v6550 = vadd.f32 %v6534, 1e-05
        %v6551 = vadd.f32 %v6535, 1e-05
        %v6552 = vadd.f32 %v6536, 1e-05
        %v6553 = vadd.f32 %v6537, 1e-05
        %v6554 = vadd.f32 %v6538, 1e-05
        %v6555 = vadd.f32 %v6539, 1e-05
        %v6556 = vadd.f32 %v6540, 1e-05
        %v6557 = vadd.f32 %v6541, 1e-05
        %v6558 = vadd.f32 %v6542, 1e-05
        %v6559 = vrsqrt.pop %v6543
        %v6560 = vrsqrt.pop %v6544
        %v6561 = vrsqrt.pop %v6545
        %v6562 = vrsqrt.pop %v6546
        %v6563 = vrsqrt.pop %v6547
        %v6564 = vrsqrt.pop %v6548
        %v6565 = vrsqrt.pop %v6549
        %v6566 = vrsqrt.pop %v6550
        %v6567 = vrsqrt.pop %v6551
        %v6568 = vrsqrt.pop %v6552
        %v6569 = vrsqrt.pop %v6553
        %v6570 = vrsqrt.pop %v6554
        %v6571 = vrsqrt.pop %v6555
        %v6572 = vrsqrt.pop %v6556
        %v6573 = vrsqrt.pop %v6557
        %v6574 = vrsqrt.pop %v6558
        %v6575 = vmul.f32 %v6463, %v6559
        %v6576 = vmul.f32 %v6464, %v6560
        %v6577 = vmul.f32 %v6465, %v6561
        %v6578 = vmul.f32 %v6466, %v6562
        %v6579 = vmul.f32 %v6467, %v6563
        %v6580 = vmul.f32 %v6468, %v6564
        %v6581 = vmul.f32 %v6469, %v6565
        %v6582 = vmul.f32 %v6470, %v6566
        %v6583 = vmul.f32 %v6471, %v6567
        %v6584 = vmul.f32 %v6472, %v6568
        %v6585 = vmul.f32 %v6473, %v6569
        %v6586 = vmul.f32 %v6474, %v6570
        %v6587 = vmul.f32 %v6475, %v6571
        %v6588 = vmul.f32 %v6476, %v6572
        %v6589 = vmul.f32 %v6477, %v6573
        %v6590 = vmul.f32 %v6478, %v6574
        %v6592 = vlaneseq
        %v6593 = vshrl.u32 %v6592, 7
        %v6594 = vsub.s32 0, %v6593
        %v6595 = vrot.slane %v6413, %v6594
        %v6597 = vmul.f32 %v6575, %v6595
        %v6598 = vmul.f32 %v6576, %v6595
        %v6599 = vmul.f32 %v6577, %v6595
        %v6600 = vmul.f32 %v6578, %v6595
        %v6601 = vmul.f32 %v6579, %v6595
        %v6602 = vmul.f32 %v6580, %v6595
        %v6603 = vmul.f32 %v6581, %v6595
        %v6604 = vmul.f32 %v6582, %v6595
        %v6605 = vmul.f32 %v6583, %v6595
        %v6606 = vmul.f32 %v6584, %v6595
        %v6607 = vmul.f32 %v6585, %v6595
        %v6608 = vmul.f32 %v6586, %v6595
        %v6609 = vmul.f32 %v6587, %v6595
        %v6610 = vmul.f32 %v6588, %v6595
        %v6611 = vmul.f32 %v6589, %v6595
        %v6612 = vmul.f32 %v6590, %v6595
        %v6614 = vlaneseq
        %v6615 = vshrl.u32 %v6614, 7
        %v6616 = vsub.s32 0, %v6615
        %v6617 = vrot.slane %v6414, %v6616
        %v6619 = vadd.f32 %v6597, %v6617
        %v6620 = vadd.f32 %v6598, %v6617
        %v6621 = vadd.f32 %v6599, %v6617
        %v6622 = vadd.f32 %v6600, %v6617
        %v6623 = vadd.f32 %v6601, %v6617
        %v6624 = vadd.f32 %v6602, %v6617
        %v6625 = vadd.f32 %v6603, %v6617
        %v6626 = vadd.f32 %v6604, %v6617
        %v6627 = vadd.f32 %v6605, %v6617
        %v6628 = vadd.f32 %v6606, %v6617
        %v6629 = vadd.f32 %v6607, %v6617
        %v6630 = vadd.f32 %v6608, %v6617
        %v6631 = vadd.f32 %v6609, %v6617
        %v6632 = vadd.f32 %v6610, %v6617
        %v6633 = vadd.f32 %v6611, %v6617
        %v6634 = vadd.f32 %v6612, %v6617
        %6635 = vst [vmem:[%s661] sm:$0xff] %v6619
        %6636 = vst [vmem:[%s661 + $0x8] sm:$0xff] %v6620
        %6637 = vst [vmem:[%s661 + $0x10] sm:$0xff] %v6621
        %6638 = vst [vmem:[%s661 + $0x18] sm:$0xff] %v6622
        %6639 = vst [vmem:[%s661 + $0x20] sm:$0xff] %v6623
        %6640 = vst [vmem:[%s661 + $0x28] sm:$0xff] %v6624
        %6641 = vst [vmem:[%s661 + $0x30] sm:$0xff] %v6625
        %6642 = vst [vmem:[%s661 + $0x38] sm:$0xff] %v6626
        %6643 = vst [vmem:[%s661 + $0x40] sm:$0xff] %v6627
        %6644 = vst [vmem:[%s661 + $0x48] sm:$0xff] %v6628
        %6645 = vst [vmem:[%s661 + $0x50] sm:$0xff] %v6629
        %6646 = vst [vmem:[%s661 + $0x58] sm:$0xff] %v6630
        %6647 = vst [vmem:[%s661 + $0x60] sm:$0xff] %v6631
        %6648 = vst [vmem:[%s661 + $0x68] sm:$0xff] %v6632
        %6649 = vst [vmem:[%s661 + $0x70] sm:$0xff] %v6633
        %6650 = vst [vmem:[%s661 + $0x78] sm:$0xff] %v6634
        %s6651 = sand.u32 %s345, 1
        %s6652 = scalar_lea.sflag [#allocation5], %s6651
        %s6653 = sand.u32 %s345, 1
        %s6654 = smul.addr %s6653, 128
        %s6655 = scalar_lea.vmem [#allocation26], %s6654
        // Predicated region
        $region133: #{tpu_custom_call.1} parent=75 // pred_check
          %p6656 = pneg %p355
        $region134: #{tpu_custom_call.1} parent=75 // pred_check_branch
          %6658 = sbr.rel (%p6656) target = $region136
        $region135: #{tpu_custom_call.1} parent=75 // pred_region
          %s6659 = smul.u32 8, %s38
          %s6661 = ssub.s32 2048, 2048
          %6662 = vsyncadd %s6652, %s6661
          %s6663 = smul.addr %s6659, 2
          %s6664 = smul.addr %s6663, 128
          %s6665 = scalar_lea.hbm %s14, %s6664
          %s6666 = sshll.u32 %s6655, 4
          %s6667 = int_to_ptr.vmem [resolvable:$true] %s6666
          %6672 = dma.vmem_to_hbm [thread:$0]  %s6667, 2048, %s6665, %s6652, 128, 128, 8
        $region136: #{tpu_custom_call.1} parent=75 // pred_fallthru
          _
      $region76: #{tpu_custom_call.1} parent=5 // pred_fallthru
        _
      %p6673 = scmp.le.s32.totalorder 2, %s33
      // Predicated region
      $region137: #{tpu_custom_call.1} parent=5 // pred_check
        %p6674 = pneg %p6673
      $region138: #{tpu_custom_call.1} parent=5 // pred_check_branch
        %6676 = sbr.rel (%p6674) target = $region140
      $region139: #{tpu_custom_call.1} parent=5 // pred_region
        %s6677 = ssub.s32 %s33, 2
        // Predicated region
        $region141: #{tpu_custom_call.1} parent=139 // pred_check
          %p6678 = pneg %p361
        $region142: #{tpu_custom_call.1} parent=139 // pred_check_branch
          %6680 = sbr.rel (%p6678) target = $region144
        $region143: #{tpu_custom_call.1} parent=139 // pred_region
          %s6681 = sand.u32 %s346, 1
          %s6682 = scalar_lea.sflag [#allocation5], %s6681
          %s6683 = sand.u32 %s346, 1
          %s6684 = smul.addr %s6683, 128
          %s6685 = scalar_lea.vmem [#allocation26], %s6684
          %6686 = dma.done %s6682, 2048
        $region144: #{tpu_custom_call.1} parent=139 // pred_fallthru
          _
      $region140: #{tpu_custom_call.1} parent=5 // pred_fallthru
        _
    $region6: #{tpu_custom_call.1} parent=1 // loop_footer
      %s37 = sadd.s32 1, %s33
    $region7: #{tpu_custom_call.1} parent=1 // loop_footer_branch
      %32 = sbr.rel target = $region3
    $region8: #{tpu_custom_call.1} parent=1 // loop_exit
      _
    %6687 = vsyncpa [#allocation4], 1
    %s6688 = scalar_lea.sflag [#allocation4], 1
    %6689 = vsyncpa %s6688, 1
    %6690 = vsyncpa [#allocation7], 1
    %6691 = vsyncpa [#allocation10], 1
    %6692 = vsyncpa [#allocation13], 1
    %6693 = vsyncpa [#allocation16], 1
    %6694 = vsyncpa [#allocation19], 1
    %6695 = vsyncpa [#allocation22], 1
    %6696 = vsyncpa [#allocation25], 1
    %6697 = vsyncpa [#allocation5], 1
    %s6698 = scalar_lea.sflag [#allocation5], 1
    %6699 = vsyncpa %s6698, 1

</llo_original>
